<compile_context>
chip_gen: v7x
topology: tpu7x:2x2x1
jax: 0.10.0
libtpu: 0.0.40
codegen_flags: <defaults>
</compile_context>

<pallas_src>
import functools
import math

import jax
import jax.numpy as jnp
from jax import lax
from jax.experimental import pallas as pl
from jax.experimental.pallas import tpu as pltpu


def _round_up(n, m):
    return (n + m - 1) // m * m


def _vmem_limit_bytes():
    """Per-generation VMEM limit with headroom (v7x ~54 MiB, v5e/v6e ~112 MiB)."""
    cap = None
    try:
        cap = getattr(pltpu.get_tpu_info(), "vmem_capacity_bytes", None)
    except Exception:
        cap = None
    if not cap or cap <= 0:
        return 64 * 1024 * 1024                       # safe on every generation
    if cap <= 64 * 1024 * 1024:                       # v7x-class: leave ~15% headroom
        return int(cap * 0.85)
    return min(int(cap * 0.85), 112 * 1024 * 1024)    # v5e/v6e: use most of 128 MiB


def _pick_batch_tile(B, prefer=128, prefer_tiles=1):
    """Even-split batch tile <= `prefer` rows, multiple of 8 sublanes."""
    n_tiles = max(prefer_tiles, -(-B // prefer))
    tile = _round_up(-(-B // n_tiles), 8)
    return max(8, min(tile, _round_up(B, 8)))


def _pick_time_chunk(T, tb, d_in, hp, itemsize, vmem_limit):
    """Largest time chunk whose blocks + scratch fit in ~70% of the VMEM limit."""
    weights = (d_in * 4 * hp + hp * 4 * hp) * itemsize * 2 + 4 * hp * 4 * 2
    state = tb * hp * (itemsize + 4)                       # bf16 h + f32 c
    per_t = tb * (d_in * itemsize * 2 + hp * itemsize * 2 + 4 * hp * 4)
    budget = int(vmem_limit * 0.7) - weights - state
    return int(max(1, min(T, budget // per_t)))


def _sigmoid1(x):
    # exact identity sigmoid(x) = 0.5 * (1 + tanh(x/2)): one EUP op instead of two
    return 0.5 * jnp.tanh(0.5 * x) + 0.5


# ---------------------------------------------------------------------------
# Pallas kernel: one LSTM layer, grid = (batch tiles [parallel], time chunks
# [arbitrary]).  Optionally fuses the final nn.Linear as an epilogue.
# ---------------------------------------------------------------------------
def _lstm_layer_kernel(*refs, t_valid, fuse_fc):
    """Refs (fuse_fc=False):
         x_ref   (Tc*TB, Din)   wih_ref (Din, 4Hp)   whh_ref (Hp, 4Hp)
         b_ref   (1, 4Hp)       hseq_ref (Tc*TB, Hp)
         xg_sc   (Tc*TB, 4Hp) f32   h_sc (TB, Hp) bf16   c_sc (TB, Hp) f32
       Refs (fuse_fc=True): hseq_ref replaced by fcw_ref (Hp, Op), fcb_ref (1, Op),
         out_ref (TB, Op) f32.
    """
    if fuse_fc:
        (x_ref, wih_ref, whh_ref, b_ref, fcw_ref, fcb_ref,
         out_ref, xg_sc, h_sc, c_sc) = refs
        hseq_ref = None
    else:
        (x_ref, wih_ref, whh_ref, b_ref, hseq_ref, xg_sc, h_sc, c_sc) = refs

    tb, hp = h_sc.shape
    tc = xg_sc.shape[0] // tb
    t_chunk = pl.program_id(1)
    n_tc = pl.num_programs(1)

    # Persistent state scratch: (re)initialize at the first time chunk of a tile.
    @pl.when(t_chunk == 0)
    def _():
        h_sc[...] = jnp.zeros_like(h_sc)
        c_sc[...] = jnp.zeros_like(c_sc)

    # Hoisted input projection for this chunk: one big MXU matmul, bias folded once.
    xg_sc[...] = (
        jnp.dot(x_ref[...], wih_ref[...], preferred_element_type=jnp.float32)
        + b_ref[...])

    need_mask = (t_valid % tc) != 0   # only the padded tail chunk has invalid steps

    def step(s, carry):
        def run():
            row = pl.multiple_of(s * tb, tb)
            # Only the irreducibly-serial part stays in the loop: h @ W_hh^T.
            gates = xg_sc[pl.ds(row, tb), :] + jnp.dot(
                h_sc[...], whh_ref[...], preferred_element_type=jnp.float32)
            i = _sigmoid1(gates[:, 0 * hp:1 * hp])
            f = _sigmoid1(gates[:, 1 * hp:2 * hp])
            g = jnp.tanh(gates[:, 2 * hp:3 * hp])
            o = _sigmoid1(gates[:, 3 * hp:4 * hp])
            c = f * c_sc[...] + i * g
            h_bf = (o * jnp.tanh(c)).astype(h_sc.dtype)   # single f32->bf16 cast
            c_sc[...] = c
            h_sc[...] = h_bf
            if hseq_ref is not None:
                hseq_ref[pl.ds(row, tb), :] = h_bf

        if need_mask:
            pl.when(t_chunk * tc + s < t_valid)(run)
        else:
            run()
        return carry

    # Modest unroll: scheduler visibility without blowing the 64-vreg file.
    lax.fori_loop(0, tc, step, 0, unroll=min(tc, 8))

    if fuse_fc:
        @pl.when(t_chunk == n_tc - 1)
        def _():
            # Fused final nn.Linear on the last valid hidden state (lane-dense Op).
            out_ref[...] = (
                jnp.dot(h_sc[...], fcw_ref[...],
                        preferred_element_type=jnp.float32)
                + fcb_ref[...])


# ---------------------------------------------------------------------------
# pallas_call wrapper for one layer.
# ---------------------------------------------------------------------------
def _layer_call(x, wih_t, whh_t, b, *, tb, tc, t_valid, vmem_limit, fc=None):
    """x: (n_bt, Tp*TB, Din) -> (n_bt, Tp*TB, Hp), or with fc: (n_bt, TB, Op)."""
    n_bt, ttb, d_in = x.shape
    hp = whh_t.shape[0]
    n_tc = ttb // (tc * tb)

    kernel = functools.partial(_lstm_layer_kernel, t_valid=t_valid,
                               fuse_fc=fc is not None)
    cparams = pltpu.CompilerParams(
        dimension_semantics=("parallel", "arbitrary"),
        vmem_limit_bytes=int(vmem_limit))
    wspec = lambda a: pl.BlockSpec(a.shape, lambda i, t: (0, 0))
    x_spec = pl.BlockSpec((None, tc * tb, d_in), lambda i, t: (i, t, 0))
    scratch = [pltpu.VMEM((tc * tb, 4 * hp), jnp.float32),   # chunk gate scratch
               pltpu.VMEM((tb, hp), x.dtype),                # bf16 hidden state
               pltpu.VMEM((tb, hp), jnp.float32)]            # f32 cell state

    if fc is None:
        return pl.pallas_call(
            kernel,
            out_shape=jax.ShapeDtypeStruct((n_bt, ttb, hp), x.dtype),
            grid_spec=pltpu.PrefetchScalarGridSpec(
                num_scalar_prefetch=0, grid=(n_bt, n_tc),
                in_specs=[x_spec, wspec(wih_t), wspec(whh_t), wspec(b)],
                out_specs=pl.BlockSpec((None, tc * tb, hp), lambda i, t: (i, t, 0)),
                scratch_shapes=scratch),
            compiler_params=cparams,
        )(x, wih_t, whh_t, b)

    fc_wt, fc_b = fc
    op = fc_wt.shape[1]
    return pl.pallas_call(
        kernel,
        out_shape=jax.ShapeDtypeStruct((n_bt, tb, op), jnp.float32),
        grid_spec=pltpu.PrefetchScalarGridSpec(
            num_scalar_prefetch=0, grid=(n_bt, n_tc),
            in_specs=[x_spec, wspec(wih_t), wspec(whh_t), wspec(b),
                      wspec(fc_wt), wspec(fc_b)],
            out_specs=pl.BlockSpec((None, tb, op), lambda i, t: (i, 0, 0)),
            scratch_shapes=scratch),
        compiler_params=cparams,
    )(x, wih_t, whh_t, b, fc_wt, fc_b)


# ---------------------------------------------------------------------------
# Model (deterministic init mirroring nn.LSTM / nn.Linear shapes & init range)
# ---------------------------------------------------------------------------
class LSTMModelPallas:
    """JAX/Pallas equivalent of the PyTorch LSTMModel forward pass (eval mode)."""

    def __init__(self, input_size, hidden_size, num_layers, dropout, output_size=1,
                 key=None, matmul_dtype=jnp.bfloat16, batch_tile=None,
                 prefer_batch_tiles=1):
        # TODO(synk): nn.LSTM inter-layer dropout is train-only; this eval forward is dropout-free.
        del dropout
        if key is None:
            key = jax.random.PRNGKey(0)
        if batch_tile is not None:
            assert batch_tile % 8 == 0, "batch_tile must be a multiple of 8 sublanes"
        self.input_size = input_size
        self.hidden_size = hidden_size
        self.output_size = output_size
        self.matmul_dtype = matmul_dtype
        self.batch_tile = batch_tile            # None -> auto (~128-row tiles)
        self.prefer_batch_tiles = prefer_batch_tiles   # set 2 on v7x (feed both TCs)
        self.hp = _round_up(hidden_size, 128)   # lane-aligned i/f/g/o gate blocks
        self.op = _round_up(output_size, 128)   # lane-dense fused-FC output
        self.vmem_limit = _vmem_limit_bytes()

        H, Hp = hidden_size, self.hp
        stdv = 1.0 / math.sqrt(hidden_size)
        self.layers = []      # unpadded f32 copies (reference)
        self.layers_dev = []  # padded, lane-aligned, matmul_dtype MXU operands
        for l in range(num_layers):
            in_dim = input_size if l == 0 else hidden_size
            in_dim_dev = input_size if l == 0 else Hp
            key, k1, k2, k3, k4 = jax.random.split(key, 5)
            w_ih = jax.random.uniform(k1, (4 * H, in_dim), jnp.float32, -stdv, stdv)
            w_hh = jax.random.uniform(k2, (4 * H, H), jnp.float32, -stdv, stdv)
            b_ih = jax.random.uniform(k3, (4 * H,), jnp.float32, -stdv, stdv)
            b_hh = jax.random.uniform(k4, (4 * H,), jnp.float32, -stdv, stdv)
            self.layers.append((w_ih.T, w_hh.T, (b_ih + b_hh)[None, :]))
            # Pad each gate block to Hp columns (128-lane aligned) and the hidden
            # input dim to Hp; zero padding keeps the padded h columns exactly 0.
            wih_p = jnp.zeros((4, Hp, in_dim_dev), jnp.float32)
            wih_p = wih_p.at[:, :H, :in_dim].set(w_ih.reshape(4, H, in_dim))
            whh_p = jnp.zeros((4, Hp, Hp), jnp.float32)
            whh_p = whh_p.at[:, :H, :H].set(w_hh.reshape(4, H, H))
            b_p = jnp.zeros((4, Hp), jnp.float32).at[:, :H].set(
                (b_ih + b_hh).reshape(4, H))
            self.layers_dev.append((
                wih_p.reshape(4 * Hp, in_dim_dev).T.astype(matmul_dtype),  # (Din, 4Hp)
                whh_p.reshape(4 * Hp, Hp).T.astype(matmul_dtype),          # (Hp, 4Hp)
                b_p.reshape(1, 4 * Hp)))                                   # (1, 4Hp) f32

        key, k5, k6 = jax.random.split(key, 3)
        fc_w = jax.random.uniform(k5, (output_size, H), jnp.float32, -stdv, stdv)
        fc_b = jax.random.uniform(k6, (output_size,), jnp.float32, -stdv, stdv)
        self.fc_wT = fc_w.T                     # (H, O)  f32 reference copy
        self.fc_b = fc_b[None, :]               # (1, O)
        fcw_p = jnp.zeros((Hp, self.op), jnp.float32).at[:H, :output_size].set(fc_w.T)
        fcb_p = jnp.zeros((1, self.op), jnp.float32).at[:, :output_size].set(self.fc_b)
        self.fc_wT_dev = fcw_p.astype(matmul_dtype)
        self.fc_b_dev = fcb_p

    def __call__(self, x):
        B, T, D = x.shape
        Hp = self.hp
        tb = self.batch_tile or _pick_batch_tile(B, prefer=128,
                                                 prefer_tiles=self.prefer_batch_tiles)
        Bp = _round_up(B, tb)
        n_bt = Bp // tb
        d_worst = Hp if len(self.layers_dev) > 1 else D
        itemsize = jnp.dtype(self.matmul_dtype).itemsize
        tc = _pick_time_chunk(T, tb, d_worst, Hp, itemsize, self.vmem_limit)
        Tp = _round_up(T, tc)

        # Pad batch -> sublane tile, time -> full chunks; go to time-major,
        # batch-tile-blocked layout (n_bt, Tp*TB, D).  Wrapper-side plumbing, once.
        xp = jnp.pad(x, ((0, Bp - B), (0, Tp - T), (0, 0)))
        xp = (xp.reshape(n_bt, tb, Tp, D)
                .transpose(0, 2, 1, 3)
                .reshape(n_bt, Tp * tb, D)
                .astype(self.matmul_dtype))

        out = xp
        n = len(self.layers_dev)
        # TODO(synk): on v5e/v6e, consecutive layers could be fused into one
        # pallas_call (hseq kept in VMEM) to avoid the per-layer hseq HBM round-trip.
        for l, (wih_t, whh_t, b) in enumerate(self.layers_dev):
            fc = (self.fc_wT_dev, self.fc_b_dev) if l == n - 1 else None
            out = _layer_call(out, wih_t, whh_t, b, tb=tb, tc=tc, t_valid=T,
                              vmem_limit=self.vmem_limit, fc=fc)
        return out.reshape(Bp, self.op)[:B, :self.output_size]


# ---------------------------------------------------------------------------
# Pure-JAX reference (lax.scan) with matching MXU-operand dtype.
# ---------------------------------------------------------------------------
def lstm_model_ref(x, model, matmul_dtype=jnp.float32):
    out = x
    for (wih_t, whh_t, b) in model.layers:
        B = out.shape[0]
        H = whh_t.shape[0]
        wih_c = wih_t.astype(matmul_dtype)
        whh_c = whh_t.astype(matmul_dtype)

        def step(carry, x_t, wih_c=wih_c, whh_c=whh_c, b=b):
            h, c = carry
            gates = (jnp.dot(x_t.astype(matmul_dtype), wih_c,
                             preferred_element_type=jnp.float32)
                     + jnp.dot(h.astype(matmul_dtype), whh_c,
                               preferred_element_type=jnp.float32)
                     + b)
            i, f, g, o = jnp.split(gates, 4, axis=-1)
            c = jax.nn.sigmoid(f) * c + jax.nn.sigmoid(i) * jnp.tanh(g)
            h = jax.nn.sigmoid(o) * jnp.tanh(c)
            return (h, c), h

        init = (jnp.zeros((B, H), jnp.float32), jnp.zeros((B, H), jnp.float32))
        _, hs = lax.scan(step, init, jnp.swapaxes(out, 0, 1))
        out = jnp.swapaxes(hs, 0, 1)
    h_last = out[:, -1, :].astype(matmul_dtype)
    return (jnp.dot(h_last, model.fc_wT.astype(matmul_dtype),
                    preferred_element_type=jnp.float32) + model.fc_b)


# ---------------------------------------------------------------------------
if __name__ == "__main__":
    batch, seq, input_size = 4, 8, 8
    hidden_size, num_layers, output_size = 32, 2, 1

    key = jax.random.PRNGKey(0)
    key, xk, pk = jax.random.split(key, 3)
    x = jax.random.normal(xk, (batch, seq, input_size), jnp.float32)

    model = LSTMModelPallas(input_size, hidden_size, num_layers, dropout=0.1,
                            output_size=output_size, key=pk)

    fwd = jax.jit(lambda inp: model(inp))
    y = jax.block_until_ready(fwd(x))
    assert y.shape == (batch, output_size), y.shape

    # Kernel vs. reference using the same math (bf16 MXU operands, f32 accum/state).
    y_ref = jax.block_until_ready(lstm_model_ref(x, model, model.matmul_dtype))
    assert jnp.allclose(y, y_ref, atol=2e-3, rtol=2e-3), (y, y_ref)

    # And stays close to the full-f32 PyTorch semantics.
    y_f32 = jax.block_until_ready(lstm_model_ref(x, model, jnp.float32))
    assert jnp.allclose(y, y_f32, atol=5e-2, rtol=5e-2), (y, y_f32)

    print("KERNEL_OK")
</pallas_src>

<mosaic_0001>
module attributes {stable_mosaic.version = 11 : i64} {
  func.func @_lstm_layer_kernel(%arg0: i32, %arg1: i32, %arg2: memref<1x64x8xbf16, #tpu.memory_space<vmem>>, %arg3: memref<8x512xbf16, #tpu.memory_space<vmem>>, %arg4: memref<128x512xbf16, #tpu.memory_space<vmem>>, %arg5: memref<1x512xf32, #tpu.memory_space<vmem>>, %arg6: memref<1x64x128xbf16, #tpu.memory_space<vmem>>, %arg7: memref<64x512xf32, #tpu.memory_space<vmem>>, %arg8: memref<8x128xbf16, #tpu.memory_space<vmem>>, %arg9: memref<8x128xf32, #tpu.memory_space<vmem>>) attributes {dimension_semantics = [#tpu.dimension_semantics<parallel>, #tpu.dimension_semantics<arbitrary>], iteration_bounds = array<i64: 1, 1>, scalar_prefetch = 0 : i64, scratch_operands = 3 : i64, tpu.core_type = #tpu.core_type<tc>, window_params = [{transform_indices = @transform_0, window_bounds = array<i64: 1, 64, 8>}, {pipeline_mode = #tpu.pipeline_mode<synchronous>, transform_indices = @transform_1, window_bounds = array<i64: 8, 512>}, {pipeline_mode = #tpu.pipeline_mode<synchronous>, transform_indices = @transform_2, window_bounds = array<i64: 128, 512>}, {pipeline_mode = #tpu.pipeline_mode<synchronous>, transform_indices = @transform_3, window_bounds = array<i64: 1, 512>}, {transform_indices = @transform_4, window_bounds = array<i64: 1, 64, 128>}]} {
    %c0_i32 = arith.constant 0 : i32
    %0 = arith.cmpi eq, %arg1, %c0_i32 : i32
    %1 = arith.extui %0 : i1 to i32
    %c0_i32_0 = arith.constant 0 : i32
    %2 = arith.cmpi ne, %1, %c0_i32_0 : i32
    scf.if %2 {
      %cst_202 = arith.constant 0.000000e+00 : bf16
      %387 = vector.broadcast %cst_202 : bf16 to vector<8x128xbf16>
      %c0_203 = arith.constant 0 : index
      %c0_204 = arith.constant 0 : index
      %388 = vector.load %arg8[%c0_203, %c0_204] : memref<8x128xbf16, #tpu.memory_space<vmem>>, vector<8x128xbf16>
      tpu.vector_store %arg8[%c0_203, %c0_204], %387 {strides = array<i32>} : memref<8x128xbf16, #tpu.memory_space<vmem>>, vector<8x128xbf16>,
      %cst_205 = arith.constant 0.000000e+00 : f32
      %389 = vector.broadcast %cst_205 : f32 to vector<8x128xf32>
      %c0_206 = arith.constant 0 : index
      %c0_207 = arith.constant 0 : index
      %390 = vector.load %arg9[%c0_206, %c0_207] : memref<8x128xf32, #tpu.memory_space<vmem>>, vector<8x128xf32>
      tpu.vector_store %arg9[%c0_206, %c0_207], %389 {strides = array<i32>} : memref<8x128xf32, #tpu.memory_space<vmem>>, vector<8x128xf32>,
    } else {
    }
    %c0 = arith.constant 0 : index
    %c0_1 = arith.constant 0 : index
    %c0_2 = arith.constant 0 : index
    %3 = vector.load %arg2[%c0, %c0_1, %c0_2] : memref<1x64x8xbf16, #tpu.memory_space<vmem>>, vector<1x64x8xbf16>
    %4 = vector.shape_cast %3 : vector<1x64x8xbf16> to vector<64x8xbf16>
    %c0_3 = arith.constant 0 : index
    %c0_4 = arith.constant 0 : index
    %5 = vector.load %arg3[%c0_3, %c0_4] : memref<8x512xbf16, #tpu.memory_space<vmem>>, vector<8x512xbf16>
    %cst = arith.constant dense<0.000000e+00> : vector<64x512xf32>
    %6 = tpu.matmul %4, %5, %cst {dimension_numbers = #tpu.dot_dimension_numbers<[1], [0], [0], [1], [0, 0, 1, 1], [], []>} : vector<64x8xbf16>, vector<8x512xbf16>, vector<64x512xf32> -> vector<64x512xf32>
    %c0_5 = arith.constant 0 : index
    %c0_6 = arith.constant 0 : index
    %7 = vector.load %arg5[%c0_5, %c0_6] : memref<1x512xf32, #tpu.memory_space<vmem>>, vector<1x512xf32>
    %8 = vector.broadcast %7 : vector<1x512xf32> to vector<64x512xf32>
    %9 = arith.addf %6, %8 : vector<64x512xf32>
    %c0_7 = arith.constant 0 : index
    %c0_8 = arith.constant 0 : index
    %10 = vector.load %arg7[%c0_7, %c0_8] : memref<64x512xf32, #tpu.memory_space<vmem>>, vector<64x512xf32>
    tpu.vector_store %arg7[%c0_7, %c0_8], %9 {strides = array<i32>} : memref<64x512xf32, #tpu.memory_space<vmem>>, vector<64x512xf32>,
    %c0_i32_9 = arith.constant 0 : i32
    %c8_i32 = arith.constant 8 : i32
    %11 = arith.muli %c0_i32_9, %c8_i32 : i32
    %12 = tpu.assume_multiple %11, 8 : i32
    %13 = arith.index_cast %12 : i32 to index
    %c0_10 = arith.constant 0 : index
    %14 = vector.load %arg7[%13, %c0_10] : memref<64x512xf32, #tpu.memory_space<vmem>>, vector<8x512xf32>
    %c0_11 = arith.constant 0 : index
    %c0_12 = arith.constant 0 : index
    %15 = vector.load %arg8[%c0_11, %c0_12] : memref<8x128xbf16, #tpu.memory_space<vmem>>, vector<8x128xbf16>
    %c0_13 = arith.constant 0 : index
    %c0_14 = arith.constant 0 : index
    %16 = vector.load %arg4[%c0_13, %c0_14] : memref<128x512xbf16, #tpu.memory_space<vmem>>, vector<128x512xbf16>
    %cst_15 = arith.constant dense<0.000000e+00> : vector<8x512xf32>
    %17 = tpu.matmul %15, %16, %cst_15 {dimension_numbers = #tpu.dot_dimension_numbers<[1], [0], [0], [1], [0, 0, 1, 1], [], []>} : vector<8x128xbf16>, vector<128x512xbf16>, vector<8x512xf32> -> vector<8x512xf32>
    %18 = arith.addf %14, %17 : vector<8x512xf32>
    %19 = vector.extract_strided_slice %18 {offsets = [0, 0], sizes = [8, 128], strides = [1, 1]} : vector<8x512xf32> to vector<8x128xf32>
    %cst_16 = arith.constant 5.000000e-01 : f32
    %20 = vector.broadcast %cst_16 : f32 to vector<8x128xf32>
    %21 = arith.mulf %20, %19 : vector<8x128xf32>
    %22 = math.tanh %21 : vector<8x128xf32>
    %cst_17 = arith.constant 5.000000e-01 : f32
    %23 = vector.broadcast %cst_17 : f32 to vector<8x128xf32>
    %24 = arith.mulf %23, %22 : vector<8x128xf32>
    %cst_18 = arith.constant 5.000000e-01 : f32
    %25 = vector.broadcast %cst_18 : f32 to vector<8x128xf32>
    %26 = arith.addf %24, %25 : vector<8x128xf32>
    %27 = vector.extract_strided_slice %18 {offsets = [0, 128], sizes = [8, 128], strides = [1, 1]} : vector<8x512xf32> to vector<8x128xf32>
    %cst_19 = arith.constant 5.000000e-01 : f32
    %28 = vector.broadcast %cst_19 : f32 to vector<8x128xf32>
    %29 = arith.mulf %28, %27 : vector<8x128xf32>
    %30 = math.tanh %29 : vector<8x128xf32>
    %cst_20 = arith.constant 5.000000e-01 : f32
    %31 = vector.broadcast %cst_20 : f32 to vector<8x128xf32>
    %32 = arith.mulf %31, %30 : vector<8x128xf32>
    %cst_21 = arith.constant 5.000000e-01 : f32
    %33 = vector.broadcast %cst_21 : f32 to vector<8x128xf32>
    %34 = arith.addf %32, %33 : vector<8x128xf32>
    %35 = vector.extract_strided_slice %18 {offsets = [0, 256], sizes = [8, 128], strides = [1, 1]} : vector<8x512xf32> to vector<8x128xf32>
    %36 = math.tanh %35 : vector<8x128xf32>
    %37 = vector.extract_strided_slice %18 {offsets = [0, 384], sizes = [8, 128], strides = [1, 1]} : vector<8x512xf32> to vector<8x128xf32>
    %cst_22 = arith.constant 5.000000e-01 : f32
    %38 = vector.broadcast %cst_22 : f32 to vector<8x128xf32>
    %39 = arith.mulf %38, %37 : vector<8x128xf32>
    %40 = math.tanh %39 : vector<8x128xf32>
    %cst_23 = arith.constant 5.000000e-01 : f32
    %41 = vector.broadcast %cst_23 : f32 to vector<8x128xf32>
    %42 = arith.mulf %41, %40 : vector<8x128xf32>
    %cst_24 = arith.constant 5.000000e-01 : f32
    %43 = vector.broadcast %cst_24 : f32 to vector<8x128xf32>
    %44 = arith.addf %42, %43 : vector<8x128xf32>
    %c0_25 = arith.constant 0 : index
    %c0_26 = arith.constant 0 : index
    %45 = vector.load %arg9[%c0_25, %c0_26] : memref<8x128xf32, #tpu.memory_space<vmem>>, vector<8x128xf32>
    %46 = arith.mulf %34, %45 : vector<8x128xf32>
    %47 = arith.mulf %26, %36 : vector<8x128xf32>
    %48 = arith.addf %46, %47 : vector<8x128xf32>
    %49 = math.tanh %48 : vector<8x128xf32>
    %50 = arith.mulf %44, %49 : vector<8x128xf32>
    %51 = arith.truncf %50 : vector<8x128xf32> to vector<8x128xbf16>
    %c0_27 = arith.constant 0 : index
    %c0_28 = arith.constant 0 : index
    %52 = vector.load %arg9[%c0_27, %c0_28] : memref<8x128xf32, #tpu.memory_space<vmem>>, vector<8x128xf32>
    tpu.vector_store %arg9[%c0_27, %c0_28], %48 {strides = array<i32>} : memref<8x128xf32, #tpu.memory_space<vmem>>, vector<8x128xf32>,
    %c0_29 = arith.constant 0 : index
    %c0_30 = arith.constant 0 : index
    %53 = vector.load %arg8[%c0_29, %c0_30] : memref<8x128xbf16, #tpu.memory_space<vmem>>, vector<8x128xbf16>
    tpu.vector_store %arg8[%c0_29, %c0_30], %51 {strides = array<i32>} : memref<8x128xbf16, #tpu.memory_space<vmem>>, vector<8x128xbf16>,
    %c0_31 = arith.constant 0 : index
    %54 = arith.index_cast %12 : i32 to index
    %c0_32 = arith.constant 0 : index
    %55 = vector.load %arg6[%c0_31, %54, %c0_32] : memref<1x64x128xbf16, #tpu.memory_space<vmem>>, vector<1x8x128xbf16>
    %56 = vector.shape_cast %55 : vector<1x8x128xbf16> to vector<8x128xbf16>
    %57 = vector.shape_cast %51 : vector<8x128xbf16> to vector<1x8x128xbf16>
    tpu.vector_store %arg6[%c0_31, %54, %c0_32], %57 {strides = array<i32>} : memref<1x64x128xbf16, #tpu.memory_space<vmem>>, vector<1x8x128xbf16>,
    %c1_i32 = arith.constant 1 : i32
    %c8_i32_33 = arith.constant 8 : i32
    %58 = arith.muli %c1_i32, %c8_i32_33 : i32
    %59 = tpu.assume_multiple %58, 8 : i32
    %60 = arith.index_cast %59 : i32 to index
    %c0_34 = arith.constant 0 : index
    %61 = vector.load %arg7[%60, %c0_34] : memref<64x512xf32, #tpu.memory_space<vmem>>, vector<8x512xf32>
    %c0_35 = arith.constant 0 : index
    %c0_36 = arith.constant 0 : index
    %62 = vector.load %arg8[%c0_35, %c0_36] : memref<8x128xbf16, #tpu.memory_space<vmem>>, vector<8x128xbf16>
    %c0_37 = arith.constant 0 : index
    %c0_38 = arith.constant 0 : index
    %63 = vector.load %arg4[%c0_37, %c0_38] : memref<128x512xbf16, #tpu.memory_space<vmem>>, vector<128x512xbf16>
    %cst_39 = arith.constant dense<0.000000e+00> : vector<8x512xf32>
    %64 = tpu.matmul %62, %63, %cst_39 {dimension_numbers = #tpu.dot_dimension_numbers<[1], [0], [0], [1], [0, 0, 1, 1], [], []>} : vector<8x128xbf16>, vector<128x512xbf16>, vector<8x512xf32> -> vector<8x512xf32>
    %65 = arith.addf %61, %64 : vector<8x512xf32>
    %66 = vector.extract_strided_slice %65 {offsets = [0, 0], sizes = [8, 128], strides = [1, 1]} : vector<8x512xf32> to vector<8x128xf32>
    %cst_40 = arith.constant 5.000000e-01 : f32
    %67 = vector.broadcast %cst_40 : f32 to vector<8x128xf32>
    %68 = arith.mulf %67, %66 : vector<8x128xf32>
    %69 = math.tanh %68 : vector<8x128xf32>
    %cst_41 = arith.constant 5.000000e-01 : f32
    %70 = vector.broadcast %cst_41 : f32 to vector<8x128xf32>
    %71 = arith.mulf %70, %69 : vector<8x128xf32>
    %cst_42 = arith.constant 5.000000e-01 : f32
    %72 = vector.broadcast %cst_42 : f32 to vector<8x128xf32>
    %73 = arith.addf %71, %72 : vector<8x128xf32>
    %74 = vector.extract_strided_slice %65 {offsets = [0, 128], sizes = [8, 128], strides = [1, 1]} : vector<8x512xf32> to vector<8x128xf32>
    %cst_43 = arith.constant 5.000000e-01 : f32
    %75 = vector.broadcast %cst_43 : f32 to vector<8x128xf32>
    %76 = arith.mulf %75, %74 : vector<8x128xf32>
    %77 = math.tanh %76 : vector<8x128xf32>
    %cst_44 = arith.constant 5.000000e-01 : f32
    %78 = vector.broadcast %cst_44 : f32 to vector<8x128xf32>
    %79 = arith.mulf %78, %77 : vector<8x128xf32>
    %cst_45 = arith.constant 5.000000e-01 : f32
    %80 = vector.broadcast %cst_45 : f32 to vector<8x128xf32>
    %81 = arith.addf %79, %80 : vector<8x128xf32>
    %82 = vector.extract_strided_slice %65 {offsets = [0, 256], sizes = [8, 128], strides = [1, 1]} : vector<8x512xf32> to vector<8x128xf32>
    %83 = math.tanh %82 : vector<8x128xf32>
    %84 = vector.extract_strided_slice %65 {offsets = [0, 384], sizes = [8, 128], strides = [1, 1]} : vector<8x512xf32> to vector<8x128xf32>
    %cst_46 = arith.constant 5.000000e-01 : f32
    %85 = vector.broadcast %cst_46 : f32 to vector<8x128xf32>
    %86 = arith.mulf %85, %84 : vector<8x128xf32>
    %87 = math.tanh %86 : vector<8x128xf32>
    %cst_47 = arith.constant 5.000000e-01 : f32
    %88 = vector.broadcast %cst_47 : f32 to vector<8x128xf32>
    %89 = arith.mulf %88, %87 : vector<8x128xf32>
    %cst_48 = arith.constant 5.000000e-01 : f32
    %90 = vector.broadcast %cst_48 : f32 to vector<8x128xf32>
    %91 = arith.addf %89, %90 : vector<8x128xf32>
    %c0_49 = arith.constant 0 : index
    %c0_50 = arith.constant 0 : index
    %92 = vector.load %arg9[%c0_49, %c0_50] : memref<8x128xf32, #tpu.memory_space<vmem>>, vector<8x128xf32>
    %93 = arith.mulf %81, %92 : vector<8x128xf32>
    %94 = arith.mulf %73, %83 : vector<8x128xf32>
    %95 = arith.addf %93, %94 : vector<8x128xf32>
    %96 = math.tanh %95 : vector<8x128xf32>
    %97 = arith.mulf %91, %96 : vector<8x128xf32>
    %98 = arith.truncf %97 : vector<8x128xf32> to vector<8x128xbf16>
    %c0_51 = arith.constant 0 : index
    %c0_52 = arith.constant 0 : index
    %99 = vector.load %arg9[%c0_51, %c0_52] : memref<8x128xf32, #tpu.memory_space<vmem>>, vector<8x128xf32>
    tpu.vector_store %arg9[%c0_51, %c0_52], %95 {strides = array<i32>} : memref<8x128xf32, #tpu.memory_space<vmem>>, vector<8x128xf32>,
    %c0_53 = arith.constant 0 : index
    %c0_54 = arith.constant 0 : index
    %100 = vector.load %arg8[%c0_53, %c0_54] : memref<8x128xbf16, #tpu.memory_space<vmem>>, vector<8x128xbf16>
    tpu.vector_store %arg8[%c0_53, %c0_54], %98 {strides = array<i32>} : memref<8x128xbf16, #tpu.memory_space<vmem>>, vector<8x128xbf16>,
    %c0_55 = arith.constant 0 : index
    %101 = arith.index_cast %59 : i32 to index
    %c0_56 = arith.constant 0 : index
    %102 = vector.load %arg6[%c0_55, %101, %c0_56] : memref<1x64x128xbf16, #tpu.memory_space<vmem>>, vector<1x8x128xbf16>
    %103 = vector.shape_cast %102 : vector<1x8x128xbf16> to vector<8x128xbf16>
    %104 = vector.shape_cast %98 : vector<8x128xbf16> to vector<1x8x128xbf16>
    tpu.vector_store %arg6[%c0_55, %101, %c0_56], %104 {strides = array<i32>} : memref<1x64x128xbf16, #tpu.memory_space<vmem>>, vector<1x8x128xbf16>,
    %c2_i32 = arith.constant 2 : i32
    %c8_i32_57 = arith.constant 8 : i32
    %105 = arith.muli %c2_i32, %c8_i32_57 : i32
    %106 = tpu.assume_multiple %105, 8 : i32
    %107 = arith.index_cast %106 : i32 to index
    %c0_58 = arith.constant 0 : index
    %108 = vector.load %arg7[%107, %c0_58] : memref<64x512xf32, #tpu.memory_space<vmem>>, vector<8x512xf32>
    %c0_59 = arith.constant 0 : index
    %c0_60 = arith.constant 0 : index
    %109 = vector.load %arg8[%c0_59, %c0_60] : memref<8x128xbf16, #tpu.memory_space<vmem>>, vector<8x128xbf16>
    %c0_61 = arith.constant 0 : index
    %c0_62 = arith.constant 0 : index
    %110 = vector.load %arg4[%c0_61, %c0_62] : memref<128x512xbf16, #tpu.memory_space<vmem>>, vector<128x512xbf16>
    %cst_63 = arith.constant dense<0.000000e+00> : vector<8x512xf32>
    %111 = tpu.matmul %109, %110, %cst_63 {dimension_numbers = #tpu.dot_dimension_numbers<[1], [0], [0], [1], [0, 0, 1, 1], [], []>} : vector<8x128xbf16>, vector<128x512xbf16>, vector<8x512xf32> -> vector<8x512xf32>
    %112 = arith.addf %108, %111 : vector<8x512xf32>
    %113 = vector.extract_strided_slice %112 {offsets = [0, 0], sizes = [8, 128], strides = [1, 1]} : vector<8x512xf32> to vector<8x128xf32>
    %cst_64 = arith.constant 5.000000e-01 : f32
    %114 = vector.broadcast %cst_64 : f32 to vector<8x128xf32>
    %115 = arith.mulf %114, %113 : vector<8x128xf32>
    %116 = math.tanh %115 : vector<8x128xf32>
    %cst_65 = arith.constant 5.000000e-01 : f32
    %117 = vector.broadcast %cst_65 : f32 to vector<8x128xf32>
    %118 = arith.mulf %117, %116 : vector<8x128xf32>
    %cst_66 = arith.constant 5.000000e-01 : f32
    %119 = vector.broadcast %cst_66 : f32 to vector<8x128xf32>
    %120 = arith.addf %118, %119 : vector<8x128xf32>
    %121 = vector.extract_strided_slice %112 {offsets = [0, 128], sizes = [8, 128], strides = [1, 1]} : vector<8x512xf32> to vector<8x128xf32>
    %cst_67 = arith.constant 5.000000e-01 : f32
    %122 = vector.broadcast %cst_67 : f32 to vector<8x128xf32>
    %123 = arith.mulf %122, %121 : vector<8x128xf32>
    %124 = math.tanh %123 : vector<8x128xf32>
    %cst_68 = arith.constant 5.000000e-01 : f32
    %125 = vector.broadcast %cst_68 : f32 to vector<8x128xf32>
    %126 = arith.mulf %125, %124 : vector<8x128xf32>
    %cst_69 = arith.constant 5.000000e-01 : f32
    %127 = vector.broadcast %cst_69 : f32 to vector<8x128xf32>
    %128 = arith.addf %126, %127 : vector<8x128xf32>
    %129 = vector.extract_strided_slice %112 {offsets = [0, 256], sizes = [8, 128], strides = [1, 1]} : vector<8x512xf32> to vector<8x128xf32>
    %130 = math.tanh %129 : vector<8x128xf32>
    %131 = vector.extract_strided_slice %112 {offsets = [0, 384], sizes = [8, 128], strides = [1, 1]} : vector<8x512xf32> to vector<8x128xf32>
    %cst_70 = arith.constant 5.000000e-01 : f32
    %132 = vector.broadcast %cst_70 : f32 to vector<8x128xf32>
    %133 = arith.mulf %132, %131 : vector<8x128xf32>
    %134 = math.tanh %133 : vector<8x128xf32>
    %cst_71 = arith.constant 5.000000e-01 : f32
    %135 = vector.broadcast %cst_71 : f32 to vector<8x128xf32>
    %136 = arith.mulf %135, %134 : vector<8x128xf32>
    %cst_72 = arith.constant 5.000000e-01 : f32
    %137 = vector.broadcast %cst_72 : f32 to vector<8x128xf32>
    %138 = arith.addf %136, %137 : vector<8x128xf32>
    %c0_73 = arith.constant 0 : index
    %c0_74 = arith.constant 0 : index
    %139 = vector.load %arg9[%c0_73, %c0_74] : memref<8x128xf32, #tpu.memory_space<vmem>>, vector<8x128xf32>
    %140 = arith.mulf %128, %139 : vector<8x128xf32>
    %141 = arith.mulf %120, %130 : vector<8x128xf32>
    %142 = arith.addf %140, %141 : vector<8x128xf32>
    %143 = math.tanh %142 : vector<8x128xf32>
    %144 = arith.mulf %138, %143 : vector<8x128xf32>
    %145 = arith.truncf %144 : vector<8x128xf32> to vector<8x128xbf16>
    %c0_75 = arith.constant 0 : index
    %c0_76 = arith.constant 0 : index
    %146 = vector.load %arg9[%c0_75, %c0_76] : memref<8x128xf32, #tpu.memory_space<vmem>>, vector<8x128xf32>
    tpu.vector_store %arg9[%c0_75, %c0_76], %142 {strides = array<i32>} : memref<8x128xf32, #tpu.memory_space<vmem>>, vector<8x128xf32>,
    %c0_77 = arith.constant 0 : index
    %c0_78 = arith.constant 0 : index
    %147 = vector.load %arg8[%c0_77, %c0_78] : memref<8x128xbf16, #tpu.memory_space<vmem>>, vector<8x128xbf16>
    tpu.vector_store %arg8[%c0_77, %c0_78], %145 {strides = array<i32>} : memref<8x128xbf16, #tpu.memory_space<vmem>>, vector<8x128xbf16>,
    %c0_79 = arith.constant 0 : index
    %148 = arith.index_cast %106 : i32 to index
    %c0_80 = arith.constant 0 : index
    %149 = vector.load %arg6[%c0_79, %148, %c0_80] : memref<1x64x128xbf16, #tpu.memory_space<vmem>>, vector<1x8x128xbf16>
    %150 = vector.shape_cast %149 : vector<1x8x128xbf16> to vector<8x128xbf16>
    %151 = vector.shape_cast %145 : vector<8x128xbf16> to vector<1x8x128xbf16>
    tpu.vector_store %arg6[%c0_79, %148, %c0_80], %151 {strides = array<i32>} : memref<1x64x128xbf16, #tpu.memory_space<vmem>>, vector<1x8x128xbf16>,
    %c3_i32 = arith.constant 3 : i32
    %c8_i32_81 = arith.constant 8 : i32
    %152 = arith.muli %c3_i32, %c8_i32_81 : i32
    %153 = tpu.assume_multiple %152, 8 : i32
    %154 = arith.index_cast %153 : i32 to index
    %c0_82 = arith.constant 0 : index
    %155 = vector.load %arg7[%154, %c0_82] : memref<64x512xf32, #tpu.memory_space<vmem>>, vector<8x512xf32>
    %c0_83 = arith.constant 0 : index
    %c0_84 = arith.constant 0 : index
    %156 = vector.load %arg8[%c0_83, %c0_84] : memref<8x128xbf16, #tpu.memory_space<vmem>>, vector<8x128xbf16>
    %c0_85 = arith.constant 0 : index
    %c0_86 = arith.constant 0 : index
    %157 = vector.load %arg4[%c0_85, %c0_86] : memref<128x512xbf16, #tpu.memory_space<vmem>>, vector<128x512xbf16>
    %cst_87 = arith.constant dense<0.000000e+00> : vector<8x512xf32>
    %158 = tpu.matmul %156, %157, %cst_87 {dimension_numbers = #tpu.dot_dimension_numbers<[1], [0], [0], [1], [0, 0, 1, 1], [], []>} : vector<8x128xbf16>, vector<128x512xbf16>, vector<8x512xf32> -> vector<8x512xf32>
    %159 = arith.addf %155, %158 : vector<8x512xf32>
    %160 = vector.extract_strided_slice %159 {offsets = [0, 0], sizes = [8, 128], strides = [1, 1]} : vector<8x512xf32> to vector<8x128xf32>
    %cst_88 = arith.constant 5.000000e-01 : f32
    %161 = vector.broadcast %cst_88 : f32 to vector<8x128xf32>
    %162 = arith.mulf %161, %160 : vector<8x128xf32>
    %163 = math.tanh %162 : vector<8x128xf32>
    %cst_89 = arith.constant 5.000000e-01 : f32
    %164 = vector.broadcast %cst_89 : f32 to vector<8x128xf32>
    %165 = arith.mulf %164, %163 : vector<8x128xf32>
    %cst_90 = arith.constant 5.000000e-01 : f32
    %166 = vector.broadcast %cst_90 : f32 to vector<8x128xf32>
    %167 = arith.addf %165, %166 : vector<8x128xf32>
    %168 = vector.extract_strided_slice %159 {offsets = [0, 128], sizes = [8, 128], strides = [1, 1]} : vector<8x512xf32> to vector<8x128xf32>
    %cst_91 = arith.constant 5.000000e-01 : f32
    %169 = vector.broadcast %cst_91 : f32 to vector<8x128xf32>
    %170 = arith.mulf %169, %168 : vector<8x128xf32>
    %171 = math.tanh %170 : vector<8x128xf32>
    %cst_92 = arith.constant 5.000000e-01 : f32
    %172 = vector.broadcast %cst_92 : f32 to vector<8x128xf32>
    %173 = arith.mulf %172, %171 : vector<8x128xf32>
    %cst_93 = arith.constant 5.000000e-01 : f32
    %174 = vector.broadcast %cst_93 : f32 to vector<8x128xf32>
    %175 = arith.addf %173, %174 : vector<8x128xf32>
    %176 = vector.extract_strided_slice %159 {offsets = [0, 256], sizes = [8, 128], strides = [1, 1]} : vector<8x512xf32> to vector<8x128xf32>
    %177 = math.tanh %176 : vector<8x128xf32>
    %178 = vector.extract_strided_slice %159 {offsets = [0, 384], sizes = [8, 128], strides = [1, 1]} : vector<8x512xf32> to vector<8x128xf32>
    %cst_94 = arith.constant 5.000000e-01 : f32
    %179 = vector.broadcast %cst_94 : f32 to vector<8x128xf32>
    %180 = arith.mulf %179, %178 : vector<8x128xf32>
    %181 = math.tanh %180 : vector<8x128xf32>
    %cst_95 = arith.constant 5.000000e-01 : f32
    %182 = vector.broadcast %cst_95 : f32 to vector<8x128xf32>
    %183 = arith.mulf %182, %181 : vector<8x128xf32>
    %cst_96 = arith.constant 5.000000e-01 : f32
    %184 = vector.broadcast %cst_96 : f32 to vector<8x128xf32>
    %185 = arith.addf %183, %184 : vector<8x128xf32>
    %c0_97 = arith.constant 0 : index
    %c0_98 = arith.constant 0 : index
    %186 = vector.load %arg9[%c0_97, %c0_98] : memref<8x128xf32, #tpu.memory_space<vmem>>, vector<8x128xf32>
    %187 = arith.mulf %175, %186 : vector<8x128xf32>
    %188 = arith.mulf %167, %177 : vector<8x128xf32>
    %189 = arith.addf %187, %188 : vector<8x128xf32>
    %190 = math.tanh %189 : vector<8x128xf32>
    %191 = arith.mulf %185, %190 : vector<8x128xf32>
    %192 = arith.truncf %191 : vector<8x128xf32> to vector<8x128xbf16>
    %c0_99 = arith.constant 0 : index
    %c0_100 = arith.constant 0 : index
    %193 = vector.load %arg9[%c0_99, %c0_100] : memref<8x128xf32, #tpu.memory_space<vmem>>, vector<8x128xf32>
    tpu.vector_store %arg9[%c0_99, %c0_100], %189 {strides = array<i32>} : memref<8x128xf32, #tpu.memory_space<vmem>>, vector<8x128xf32>,
    %c0_101 = arith.constant 0 : index
    %c0_102 = arith.constant 0 : index
    %194 = vector.load %arg8[%c0_101, %c0_102] : memref<8x128xbf16, #tpu.memory_space<vmem>>, vector<8x128xbf16>
    tpu.vector_store %arg8[%c0_101, %c0_102], %192 {strides = array<i32>} : memref<8x128xbf16, #tpu.memory_space<vmem>>, vector<8x128xbf16>,
    %c0_103 = arith.constant 0 : index
    %195 = arith.index_cast %153 : i32 to index
    %c0_104 = arith.constant 0 : index
    %196 = vector.load %arg6[%c0_103, %195, %c0_104] : memref<1x64x128xbf16, #tpu.memory_space<vmem>>, vector<1x8x128xbf16>
    %197 = vector.shape_cast %196 : vector<1x8x128xbf16> to vector<8x128xbf16>
    %198 = vector.shape_cast %192 : vector<8x128xbf16> to vector<1x8x128xbf16>
    tpu.vector_store %arg6[%c0_103, %195, %c0_104], %198 {strides = array<i32>} : memref<1x64x128xbf16, #tpu.memory_space<vmem>>, vector<1x8x128xbf16>,
    %c4_i32 = arith.constant 4 : i32
    %c8_i32_105 = arith.constant 8 : i32
    %199 = arith.muli %c4_i32, %c8_i32_105 : i32
    %200 = tpu.assume_multiple %199, 8 : i32
    %201 = arith.index_cast %200 : i32 to index
    %c0_106 = arith.constant 0 : index
    %202 = vector.load %arg7[%201, %c0_106] : memref<64x512xf32, #tpu.memory_space<vmem>>, vector<8x512xf32>
    %c0_107 = arith.constant 0 : index
    %c0_108 = arith.constant 0 : index
    %203 = vector.load %arg8[%c0_107, %c0_108] : memref<8x128xbf16, #tpu.memory_space<vmem>>, vector<8x128xbf16>
    %c0_109 = arith.constant 0 : index
    %c0_110 = arith.constant 0 : index
    %204 = vector.load %arg4[%c0_109, %c0_110] : memref<128x512xbf16, #tpu.memory_space<vmem>>, vector<128x512xbf16>
    %cst_111 = arith.constant dense<0.000000e+00> : vector<8x512xf32>
    %205 = tpu.matmul %203, %204, %cst_111 {dimension_numbers = #tpu.dot_dimension_numbers<[1], [0], [0], [1], [0, 0, 1, 1], [], []>} : vector<8x128xbf16>, vector<128x512xbf16>, vector<8x512xf32> -> vector<8x512xf32>
    %206 = arith.addf %202, %205 : vector<8x512xf32>
    %207 = vector.extract_strided_slice %206 {offsets = [0, 0], sizes = [8, 128], strides = [1, 1]} : vector<8x512xf32> to vector<8x128xf32>
    %cst_112 = arith.constant 5.000000e-01 : f32
    %208 = vector.broadcast %cst_112 : f32 to vector<8x128xf32>
    %209 = arith.mulf %208, %207 : vector<8x128xf32>
    %210 = math.tanh %209 : vector<8x128xf32>
    %cst_113 = arith.constant 5.000000e-01 : f32
    %211 = vector.broadcast %cst_113 : f32 to vector<8x128xf32>
    %212 = arith.mulf %211, %210 : vector<8x128xf32>
    %cst_114 = arith.constant 5.000000e-01 : f32
    %213 = vector.broadcast %cst_114 : f32 to vector<8x128xf32>
    %214 = arith.addf %212, %213 : vector<8x128xf32>
    %215 = vector.extract_strided_slice %206 {offsets = [0, 128], sizes = [8, 128], strides = [1, 1]} : vector<8x512xf32> to vector<8x128xf32>
    %cst_115 = arith.constant 5.000000e-01 : f32
    %216 = vector.broadcast %cst_115 : f32 to vector<8x128xf32>
    %217 = arith.mulf %216, %215 : vector<8x128xf32>
    %218 = math.tanh %217 : vector<8x128xf32>
    %cst_116 = arith.constant 5.000000e-01 : f32
    %219 = vector.broadcast %cst_116 : f32 to vector<8x128xf32>
    %220 = arith.mulf %219, %218 : vector<8x128xf32>
    %cst_117 = arith.constant 5.000000e-01 : f32
    %221 = vector.broadcast %cst_117 : f32 to vector<8x128xf32>
    %222 = arith.addf %220, %221 : vector<8x128xf32>
    %223 = vector.extract_strided_slice %206 {offsets = [0, 256], sizes = [8, 128], strides = [1, 1]} : vector<8x512xf32> to vector<8x128xf32>
    %224 = math.tanh %223 : vector<8x128xf32>
    %225 = vector.extract_strided_slice %206 {offsets = [0, 384], sizes = [8, 128], strides = [1, 1]} : vector<8x512xf32> to vector<8x128xf32>
    %cst_118 = arith.constant 5.000000e-01 : f32
    %226 = vector.broadcast %cst_118 : f32 to vector<8x128xf32>
    %227 = arith.mulf %226, %225 : vector<8x128xf32>
    %228 = math.tanh %227 : vector<8x128xf32>
    %cst_119 = arith.constant 5.000000e-01 : f32
    %229 = vector.broadcast %cst_119 : f32 to vector<8x128xf32>
    %230 = arith.mulf %229, %228 : vector<8x128xf32>
    %cst_120 = arith.constant 5.000000e-01 : f32
    %231 = vector.broadcast %cst_120 : f32 to vector<8x128xf32>
    %232 = arith.addf %230, %231 : vector<8x128xf32>
    %c0_121 = arith.constant 0 : index
    %c0_122 = arith.constant 0 : index
    %233 = vector.load %arg9[%c0_121, %c0_122] : memref<8x128xf32, #tpu.memory_space<vmem>>, vector<8x128xf32>
    %234 = arith.mulf %222, %233 : vector<8x128xf32>
    %235 = arith.mulf %214, %224 : vector<8x128xf32>
    %236 = arith.addf %234, %235 : vector<8x128xf32>
    %237 = math.tanh %236 : vector<8x128xf32>
    %238 = arith.mulf %232, %237 : vector<8x128xf32>
    %239 = arith.truncf %238 : vector<8x128xf32> to vector<8x128xbf16>
    %c0_123 = arith.constant 0 : index
    %c0_124 = arith.constant 0 : index
    %240 = vector.load %arg9[%c0_123, %c0_124] : memref<8x128xf32, #tpu.memory_space<vmem>>, vector<8x128xf32>
    tpu.vector_store %arg9[%c0_123, %c0_124], %236 {strides = array<i32>} : memref<8x128xf32, #tpu.memory_space<vmem>>, vector<8x128xf32>,
    %c0_125 = arith.constant 0 : index
    %c0_126 = arith.constant 0 : index
    %241 = vector.load %arg8[%c0_125, %c0_126] : memref<8x128xbf16, #tpu.memory_space<vmem>>, vector<8x128xbf16>
    tpu.vector_store %arg8[%c0_125, %c0_126], %239 {strides = array<i32>} : memref<8x128xbf16, #tpu.memory_space<vmem>>, vector<8x128xbf16>,
    %c0_127 = arith.constant 0 : index
    %242 = arith.index_cast %200 : i32 to index
    %c0_128 = arith.constant 0 : index
    %243 = vector.load %arg6[%c0_127, %242, %c0_128] : memref<1x64x128xbf16, #tpu.memory_space<vmem>>, vector<1x8x128xbf16>
    %244 = vector.shape_cast %243 : vector<1x8x128xbf16> to vector<8x128xbf16>
    %245 = vector.shape_cast %239 : vector<8x128xbf16> to vector<1x8x128xbf16>
    tpu.vector_store %arg6[%c0_127, %242, %c0_128], %245 {strides = array<i32>} : memref<1x64x128xbf16, #tpu.memory_space<vmem>>, vector<1x8x128xbf16>,
    %c5_i32 = arith.constant 5 : i32
    %c8_i32_129 = arith.constant 8 : i32
    %246 = arith.muli %c5_i32, %c8_i32_129 : i32
    %247 = tpu.assume_multiple %246, 8 : i32
    %248 = arith.index_cast %247 : i32 to index
    %c0_130 = arith.constant 0 : index
    %249 = vector.load %arg7[%248, %c0_130] : memref<64x512xf32, #tpu.memory_space<vmem>>, vector<8x512xf32>
    %c0_131 = arith.constant 0 : index
    %c0_132 = arith.constant 0 : index
    %250 = vector.load %arg8[%c0_131, %c0_132] : memref<8x128xbf16, #tpu.memory_space<vmem>>, vector<8x128xbf16>
    %c0_133 = arith.constant 0 : index
    %c0_134 = arith.constant 0 : index
    %251 = vector.load %arg4[%c0_133, %c0_134] : memref<128x512xbf16, #tpu.memory_space<vmem>>, vector<128x512xbf16>
    %cst_135 = arith.constant dense<0.000000e+00> : vector<8x512xf32>
    %252 = tpu.matmul %250, %251, %cst_135 {dimension_numbers = #tpu.dot_dimension_numbers<[1], [0], [0], [1], [0, 0, 1, 1], [], []>} : vector<8x128xbf16>, vector<128x512xbf16>, vector<8x512xf32> -> vector<8x512xf32>
    %253 = arith.addf %249, %252 : vector<8x512xf32>
    %254 = vector.extract_strided_slice %253 {offsets = [0, 0], sizes = [8, 128], strides = [1, 1]} : vector<8x512xf32> to vector<8x128xf32>
    %cst_136 = arith.constant 5.000000e-01 : f32
    %255 = vector.broadcast %cst_136 : f32 to vector<8x128xf32>
    %256 = arith.mulf %255, %254 : vector<8x128xf32>
    %257 = math.tanh %256 : vector<8x128xf32>
    %cst_137 = arith.constant 5.000000e-01 : f32
    %258 = vector.broadcast %cst_137 : f32 to vector<8x128xf32>
    %259 = arith.mulf %258, %257 : vector<8x128xf32>
    %cst_138 = arith.constant 5.000000e-01 : f32
    %260 = vector.broadcast %cst_138 : f32 to vector<8x128xf32>
    %261 = arith.addf %259, %260 : vector<8x128xf32>
    %262 = vector.extract_strided_slice %253 {offsets = [0, 128], sizes = [8, 128], strides = [1, 1]} : vector<8x512xf32> to vector<8x128xf32>
    %cst_139 = arith.constant 5.000000e-01 : f32
    %263 = vector.broadcast %cst_139 : f32 to vector<8x128xf32>
    %264 = arith.mulf %263, %262 : vector<8x128xf32>
    %265 = math.tanh %264 : vector<8x128xf32>
    %cst_140 = arith.constant 5.000000e-01 : f32
    %266 = vector.broadcast %cst_140 : f32 to vector<8x128xf32>
    %267 = arith.mulf %266, %265 : vector<8x128xf32>
    %cst_141 = arith.constant 5.000000e-01 : f32
    %268 = vector.broadcast %cst_141 : f32 to vector<8x128xf32>
    %269 = arith.addf %267, %268 : vector<8x128xf32>
    %270 = vector.extract_strided_slice %253 {offsets = [0, 256], sizes = [8, 128], strides = [1, 1]} : vector<8x512xf32> to vector<8x128xf32>
    %271 = math.tanh %270 : vector<8x128xf32>
    %272 = vector.extract_strided_slice %253 {offsets = [0, 384], sizes = [8, 128], strides = [1, 1]} : vector<8x512xf32> to vector<8x128xf32>
    %cst_142 = arith.constant 5.000000e-01 : f32
    %273 = vector.broadcast %cst_142 : f32 to vector<8x128xf32>
    %274 = arith.mulf %273, %272 : vector<8x128xf32>
    %275 = math.tanh %274 : vector<8x128xf32>
    %cst_143 = arith.constant 5.000000e-01 : f32
    %276 = vector.broadcast %cst_143 : f32 to vector<8x128xf32>
    %277 = arith.mulf %276, %275 : vector<8x128xf32>
    %cst_144 = arith.constant 5.000000e-01 : f32
    %278 = vector.broadcast %cst_144 : f32 to vector<8x128xf32>
    %279 = arith.addf %277, %278 : vector<8x128xf32>
    %c0_145 = arith.constant 0 : index
    %c0_146 = arith.constant 0 : index
    %280 = vector.load %arg9[%c0_145, %c0_146] : memref<8x128xf32, #tpu.memory_space<vmem>>, vector<8x128xf32>
    %281 = arith.mulf %269, %280 : vector<8x128xf32>
    %282 = arith.mulf %261, %271 : vector<8x128xf32>
    %283 = arith.addf %281, %282 : vector<8x128xf32>
    %284 = math.tanh %283 : vector<8x128xf32>
    %285 = arith.mulf %279, %284 : vector<8x128xf32>
    %286 = arith.truncf %285 : vector<8x128xf32> to vector<8x128xbf16>
    %c0_147 = arith.constant 0 : index
    %c0_148 = arith.constant 0 : index
    %287 = vector.load %arg9[%c0_147, %c0_148] : memref<8x128xf32, #tpu.memory_space<vmem>>, vector<8x128xf32>
    tpu.vector_store %arg9[%c0_147, %c0_148], %283 {strides = array<i32>} : memref<8x128xf32, #tpu.memory_space<vmem>>, vector<8x128xf32>,
    %c0_149 = arith.constant 0 : index
    %c0_150 = arith.constant 0 : index
    %288 = vector.load %arg8[%c0_149, %c0_150] : memref<8x128xbf16, #tpu.memory_space<vmem>>, vector<8x128xbf16>
    tpu.vector_store %arg8[%c0_149, %c0_150], %286 {strides = array<i32>} : memref<8x128xbf16, #tpu.memory_space<vmem>>, vector<8x128xbf16>,
    %c0_151 = arith.constant 0 : index
    %289 = arith.index_cast %247 : i32 to index
    %c0_152 = arith.constant 0 : index
    %290 = vector.load %arg6[%c0_151, %289, %c0_152] : memref<1x64x128xbf16, #tpu.memory_space<vmem>>, vector<1x8x128xbf16>
    %291 = vector.shape_cast %290 : vector<1x8x128xbf16> to vector<8x128xbf16>
    %292 = vector.shape_cast %286 : vector<8x128xbf16> to vector<1x8x128xbf16>
    tpu.vector_store %arg6[%c0_151, %289, %c0_152], %292 {strides = array<i32>} : memref<1x64x128xbf16, #tpu.memory_space<vmem>>, vector<1x8x128xbf16>,
    %c6_i32 = arith.constant 6 : i32
    %c8_i32_153 = arith.constant 8 : i32
    %293 = arith.muli %c6_i32, %c8_i32_153 : i32
    %294 = tpu.assume_multiple %293, 8 : i32
    %295 = arith.index_cast %294 : i32 to index
    %c0_154 = arith.constant 0 : index
    %296 = vector.load %arg7[%295, %c0_154] : memref<64x512xf32, #tpu.memory_space<vmem>>, vector<8x512xf32>
    %c0_155 = arith.constant 0 : index
    %c0_156 = arith.constant 0 : index
    %297 = vector.load %arg8[%c0_155, %c0_156] : memref<8x128xbf16, #tpu.memory_space<vmem>>, vector<8x128xbf16>
    %c0_157 = arith.constant 0 : index
    %c0_158 = arith.constant 0 : index
    %298 = vector.load %arg4[%c0_157, %c0_158] : memref<128x512xbf16, #tpu.memory_space<vmem>>, vector<128x512xbf16>
    %cst_159 = arith.constant dense<0.000000e+00> : vector<8x512xf32>
    %299 = tpu.matmul %297, %298, %cst_159 {dimension_numbers = #tpu.dot_dimension_numbers<[1], [0], [0], [1], [0, 0, 1, 1], [], []>} : vector<8x128xbf16>, vector<128x512xbf16>, vector<8x512xf32> -> vector<8x512xf32>
    %300 = arith.addf %296, %299 : vector<8x512xf32>
    %301 = vector.extract_strided_slice %300 {offsets = [0, 0], sizes = [8, 128], strides = [1, 1]} : vector<8x512xf32> to vector<8x128xf32>
    %cst_160 = arith.constant 5.000000e-01 : f32
    %302 = vector.broadcast %cst_160 : f32 to vector<8x128xf32>
    %303 = arith.mulf %302, %301 : vector<8x128xf32>
    %304 = math.tanh %303 : vector<8x128xf32>
    %cst_161 = arith.constant 5.000000e-01 : f32
    %305 = vector.broadcast %cst_161 : f32 to vector<8x128xf32>
    %306 = arith.mulf %305, %304 : vector<8x128xf32>
    %cst_162 = arith.constant 5.000000e-01 : f32
    %307 = vector.broadcast %cst_162 : f32 to vector<8x128xf32>
    %308 = arith.addf %306, %307 : vector<8x128xf32>
    %309 = vector.extract_strided_slice %300 {offsets = [0, 128], sizes = [8, 128], strides = [1, 1]} : vector<8x512xf32> to vector<8x128xf32>
    %cst_163 = arith.constant 5.000000e-01 : f32
    %310 = vector.broadcast %cst_163 : f32 to vector<8x128xf32>
    %311 = arith.mulf %310, %309 : vector<8x128xf32>
    %312 = math.tanh %311 : vector<8x128xf32>
    %cst_164 = arith.constant 5.000000e-01 : f32
    %313 = vector.broadcast %cst_164 : f32 to vector<8x128xf32>
    %314 = arith.mulf %313, %312 : vector<8x128xf32>
    %cst_165 = arith.constant 5.000000e-01 : f32
    %315 = vector.broadcast %cst_165 : f32 to vector<8x128xf32>
    %316 = arith.addf %314, %315 : vector<8x128xf32>
    %317 = vector.extract_strided_slice %300 {offsets = [0, 256], sizes = [8, 128], strides = [1, 1]} : vector<8x512xf32> to vector<8x128xf32>
    %318 = math.tanh %317 : vector<8x128xf32>
    %319 = vector.extract_strided_slice %300 {offsets = [0, 384], sizes = [8, 128], strides = [1, 1]} : vector<8x512xf32> to vector<8x128xf32>
    %cst_166 = arith.constant 5.000000e-01 : f32
    %320 = vector.broadcast %cst_166 : f32 to vector<8x128xf32>
    %321 = arith.mulf %320, %319 : vector<8x128xf32>
    %322 = math.tanh %321 : vector<8x128xf32>
    %cst_167 = arith.constant 5.000000e-01 : f32
    %323 = vector.broadcast %cst_167 : f32 to vector<8x128xf32>
    %324 = arith.mulf %323, %322 : vector<8x128xf32>
    %cst_168 = arith.constant 5.000000e-01 : f32
    %325 = vector.broadcast %cst_168 : f32 to vector<8x128xf32>
    %326 = arith.addf %324, %325 : vector<8x128xf32>
    %c0_169 = arith.constant 0 : index
    %c0_170 = arith.constant 0 : index
    %327 = vector.load %arg9[%c0_169, %c0_170] : memref<8x128xf32, #tpu.memory_space<vmem>>, vector<8x128xf32>
    %328 = arith.mulf %316, %327 : vector<8x128xf32>
    %329 = arith.mulf %308, %318 : vector<8x128xf32>
    %330 = arith.addf %328, %329 : vector<8x128xf32>
    %331 = math.tanh %330 : vector<8x128xf32>
    %332 = arith.mulf %326, %331 : vector<8x128xf32>
    %333 = arith.truncf %332 : vector<8x128xf32> to vector<8x128xbf16>
    %c0_171 = arith.constant 0 : index
    %c0_172 = arith.constant 0 : index
    %334 = vector.load %arg9[%c0_171, %c0_172] : memref<8x128xf32, #tpu.memory_space<vmem>>, vector<8x128xf32>
    tpu.vector_store %arg9[%c0_171, %c0_172], %330 {strides = array<i32>} : memref<8x128xf32, #tpu.memory_space<vmem>>, vector<8x128xf32>,
    %c0_173 = arith.constant 0 : index
    %c0_174 = arith.constant 0 : index
    %335 = vector.load %arg8[%c0_173, %c0_174] : memref<8x128xbf16, #tpu.memory_space<vmem>>, vector<8x128xbf16>
    tpu.vector_store %arg8[%c0_173, %c0_174], %333 {strides = array<i32>} : memref<8x128xbf16, #tpu.memory_space<vmem>>, vector<8x128xbf16>,
    %c0_175 = arith.constant 0 : index
    %336 = arith.index_cast %294 : i32 to index
    %c0_176 = arith.constant 0 : index
    %337 = vector.load %arg6[%c0_175, %336, %c0_176] : memref<1x64x128xbf16, #tpu.memory_space<vmem>>, vector<1x8x128xbf16>
    %338 = vector.shape_cast %337 : vector<1x8x128xbf16> to vector<8x128xbf16>
    %339 = vector.shape_cast %333 : vector<8x128xbf16> to vector<1x8x128xbf16>
    tpu.vector_store %arg6[%c0_175, %336, %c0_176], %339 {strides = array<i32>} : memref<1x64x128xbf16, #tpu.memory_space<vmem>>, vector<1x8x128xbf16>,
    %c7_i32 = arith.constant 7 : i32
    %c8_i32_177 = arith.constant 8 : i32
    %340 = arith.muli %c7_i32, %c8_i32_177 : i32
    %341 = tpu.assume_multiple %340, 8 : i32
    %342 = arith.index_cast %341 : i32 to index
    %c0_178 = arith.constant 0 : index
    %343 = vector.load %arg7[%342, %c0_178] : memref<64x512xf32, #tpu.memory_space<vmem>>, vector<8x512xf32>
    %c0_179 = arith.constant 0 : index
    %c0_180 = arith.constant 0 : index
    %344 = vector.load %arg8[%c0_179, %c0_180] : memref<8x128xbf16, #tpu.memory_space<vmem>>, vector<8x128xbf16>
    %c0_181 = arith.constant 0 : index
    %c0_182 = arith.constant 0 : index
    %345 = vector.load %arg4[%c0_181, %c0_182] : memref<128x512xbf16, #tpu.memory_space<vmem>>, vector<128x512xbf16>
    %cst_183 = arith.constant dense<0.000000e+00> : vector<8x512xf32>
    %346 = tpu.matmul %344, %345, %cst_183 {dimension_numbers = #tpu.dot_dimension_numbers<[1], [0], [0], [1], [0, 0, 1, 1], [], []>} : vector<8x128xbf16>, vector<128x512xbf16>, vector<8x512xf32> -> vector<8x512xf32>
    %347 = arith.addf %343, %346 : vector<8x512xf32>
    %348 = vector.extract_strided_slice %347 {offsets = [0, 0], sizes = [8, 128], strides = [1, 1]} : vector<8x512xf32> to vector<8x128xf32>
    %cst_184 = arith.constant 5.000000e-01 : f32
    %349 = vector.broadcast %cst_184 : f32 to vector<8x128xf32>
    %350 = arith.mulf %349, %348 : vector<8x128xf32>
    %351 = math.tanh %350 : vector<8x128xf32>
    %cst_185 = arith.constant 5.000000e-01 : f32
    %352 = vector.broadcast %cst_185 : f32 to vector<8x128xf32>
    %353 = arith.mulf %352, %351 : vector<8x128xf32>
    %cst_186 = arith.constant 5.000000e-01 : f32
    %354 = vector.broadcast %cst_186 : f32 to vector<8x128xf32>
    %355 = arith.addf %353, %354 : vector<8x128xf32>
    %356 = vector.extract_strided_slice %347 {offsets = [0, 128], sizes = [8, 128], strides = [1, 1]} : vector<8x512xf32> to vector<8x128xf32>
    %cst_187 = arith.constant 5.000000e-01 : f32
    %357 = vector.broadcast %cst_187 : f32 to vector<8x128xf32>
    %358 = arith.mulf %357, %356 : vector<8x128xf32>
    %359 = math.tanh %358 : vector<8x128xf32>
    %cst_188 = arith.constant 5.000000e-01 : f32
    %360 = vector.broadcast %cst_188 : f32 to vector<8x128xf32>
    %361 = arith.mulf %360, %359 : vector<8x128xf32>
    %cst_189 = arith.constant 5.000000e-01 : f32
    %362 = vector.broadcast %cst_189 : f32 to vector<8x128xf32>
    %363 = arith.addf %361, %362 : vector<8x128xf32>
    %364 = vector.extract_strided_slice %347 {offsets = [0, 256], sizes = [8, 128], strides = [1, 1]} : vector<8x512xf32> to vector<8x128xf32>
    %365 = math.tanh %364 : vector<8x128xf32>
    %366 = vector.extract_strided_slice %347 {offsets = [0, 384], sizes = [8, 128], strides = [1, 1]} : vector<8x512xf32> to vector<8x128xf32>
    %cst_190 = arith.constant 5.000000e-01 : f32
    %367 = vector.broadcast %cst_190 : f32 to vector<8x128xf32>
    %368 = arith.mulf %367, %366 : vector<8x128xf32>
    %369 = math.tanh %368 : vector<8x128xf32>
    %cst_191 = arith.constant 5.000000e-01 : f32
    %370 = vector.broadcast %cst_191 : f32 to vector<8x128xf32>
    %371 = arith.mulf %370, %369 : vector<8x128xf32>
    %cst_192 = arith.constant 5.000000e-01 : f32
    %372 = vector.broadcast %cst_192 : f32 to vector<8x128xf32>
    %373 = arith.addf %371, %372 : vector<8x128xf32>
    %c0_193 = arith.constant 0 : index
    %c0_194 = arith.constant 0 : index
    %374 = vector.load %arg9[%c0_193, %c0_194] : memref<8x128xf32, #tpu.memory_space<vmem>>, vector<8x128xf32>
    %375 = arith.mulf %363, %374 : vector<8x128xf32>
    %376 = arith.mulf %355, %365 : vector<8x128xf32>
    %377 = arith.addf %375, %376 : vector<8x128xf32>
    %378 = math.tanh %377 : vector<8x128xf32>
    %379 = arith.mulf %373, %378 : vector<8x128xf32>
    %380 = arith.truncf %379 : vector<8x128xf32> to vector<8x128xbf16>
    %c0_195 = arith.constant 0 : index
    %c0_196 = arith.constant 0 : index
    %381 = vector.load %arg9[%c0_195, %c0_196] : memref<8x128xf32, #tpu.memory_space<vmem>>, vector<8x128xf32>
    tpu.vector_store %arg9[%c0_195, %c0_196], %377 {strides = array<i32>} : memref<8x128xf32, #tpu.memory_space<vmem>>, vector<8x128xf32>,
    %c0_197 = arith.constant 0 : index
    %c0_198 = arith.constant 0 : index
    %382 = vector.load %arg8[%c0_197, %c0_198] : memref<8x128xbf16, #tpu.memory_space<vmem>>, vector<8x128xbf16>
    tpu.vector_store %arg8[%c0_197, %c0_198], %380 {strides = array<i32>} : memref<8x128xbf16, #tpu.memory_space<vmem>>, vector<8x128xbf16>,
    %c0_199 = arith.constant 0 : index
    %383 = arith.index_cast %341 : i32 to index
    %c0_200 = arith.constant 0 : index
    %384 = vector.load %arg6[%c0_199, %383, %c0_200] : memref<1x64x128xbf16, #tpu.memory_space<vmem>>, vector<1x8x128xbf16>
    %385 = vector.shape_cast %384 : vector<1x8x128xbf16> to vector<8x128xbf16>
    %386 = vector.shape_cast %380 : vector<8x128xbf16> to vector<1x8x128xbf16>
    tpu.vector_store %arg6[%c0_199, %383, %c0_200], %386 {strides = array<i32>} : memref<1x64x128xbf16, #tpu.memory_space<vmem>>, vector<1x8x128xbf16>,
    %c8_i32_201 = arith.constant 8 : i32
    return
  }
  func.func @transform_0(%arg0: i32, %arg1: i32) -> (i32, i32, i32) {
    %c0_i32 = arith.constant 0 : i32
    %c0_i32_0 = arith.constant 0 : i32
    return %arg0, %arg1, %c0_i32 : i32, i32, i32
  }
  func.func @transform_1(%arg0: i32, %arg1: i32) -> (i32, i32) {
    %c0_i32 = arith.constant 0 : i32
    %c0_i32_0 = arith.constant 0 : i32
    %c0_i32_1 = arith.constant 0 : i32
    return %c0_i32, %c0_i32_0 : i32, i32
  }
  func.func @transform_2(%arg0: i32, %arg1: i32) -> (i32, i32) {
    %c0_i32 = arith.constant 0 : i32
    %c0_i32_0 = arith.constant 0 : i32
    %c0_i32_1 = arith.constant 0 : i32
    return %c0_i32, %c0_i32_0 : i32, i32
  }
  func.func @transform_3(%arg0: i32, %arg1: i32) -> (i32, i32) {
    %c0_i32 = arith.constant 0 : i32
    %c0_i32_0 = arith.constant 0 : i32
    %c0_i32_1 = arith.constant 0 : i32
    return %c0_i32, %c0_i32_0 : i32, i32
  }
  func.func @transform_4(%arg0: i32, %arg1: i32) -> (i32, i32, i32) {
    %c0_i32 = arith.constant 0 : i32
    %c0_i32_0 = arith.constant 0 : i32
    return %arg0, %arg1, %c0_i32 : i32, i32, i32
  }
}

module attributes {stable_mosaic.version = 11 : i64} {
  func.func @_lstm_layer_kernel(%arg0: i32, %arg1: i32, %arg2: memref<1x64x128xbf16, #tpu.memory_space<vmem>>, %arg3: memref<128x512xbf16, #tpu.memory_space<vmem>>, %arg4: memref<128x512xbf16, #tpu.memory_space<vmem>>, %arg5: memref<1x512xf32, #tpu.memory_space<vmem>>, %arg6: memref<128x128xbf16, #tpu.memory_space<vmem>>, %arg7: memref<1x128xf32, #tpu.memory_space<vmem>>, %arg8: memref<1x8x128xf32, #tpu.memory_space<vmem>>, %arg9: memref<64x512xf32, #tpu.memory_space<vmem>>, %arg10: memref<8x128xbf16, #tpu.memory_space<vmem>>, %arg11: memref<8x128xf32, #tpu.memory_space<vmem>>) attributes {dimension_semantics = [#tpu.dimension_semantics<parallel>, #tpu.dimension_semantics<arbitrary>], iteration_bounds = array<i64: 1, 1>, scalar_prefetch = 0 : i64, scratch_operands = 3 : i64, tpu.core_type = #tpu.core_type<tc>, window_params = [{transform_indices = @transform_0, window_bounds = array<i64: 1, 64, 128>}, {pipeline_mode = #tpu.pipeline_mode<synchronous>, transform_indices = @transform_1, window_bounds = array<i64: 128, 512>}, {pipeline_mode = #tpu.pipeline_mode<synchronous>, transform_indices = @transform_2, window_bounds = array<i64: 128, 512>}, {pipeline_mode = #tpu.pipeline_mode<synchronous>, transform_indices = @transform_3, window_bounds = array<i64: 1, 512>}, {pipeline_mode = #tpu.pipeline_mode<synchronous>, transform_indices = @transform_4, window_bounds = array<i64: 128, 128>}, {pipeline_mode = #tpu.pipeline_mode<synchronous>, transform_indices = @transform_5, window_bounds = array<i64: 1, 128>}, {transform_indices = @transform_6, window_bounds = array<i64: 1, 8, 128>}]} {
    %c0_i32 = arith.constant 0 : i32
    %0 = arith.cmpi eq, %arg1, %c0_i32 : i32
    %1 = arith.extui %0 : i1 to i32
    %c0_i32_0 = arith.constant 0 : i32
    %2 = arith.cmpi ne, %1, %c0_i32_0 : i32
    scf.if %2 {
      %cst_188 = arith.constant 0.000000e+00 : bf16
      %358 = vector.broadcast %cst_188 : bf16 to vector<8x128xbf16>
      %c0_189 = arith.constant 0 : index
      %c0_190 = arith.constant 0 : index
      %359 = vector.load %arg10[%c0_189, %c0_190] : memref<8x128xbf16, #tpu.memory_space<vmem>>, vector<8x128xbf16>
      tpu.vector_store %arg10[%c0_189, %c0_190], %358 {strides = array<i32>} : memref<8x128xbf16, #tpu.memory_space<vmem>>, vector<8x128xbf16>,
      %cst_191 = arith.constant 0.000000e+00 : f32
      %360 = vector.broadcast %cst_191 : f32 to vector<8x128xf32>
      %c0_192 = arith.constant 0 : index
      %c0_193 = arith.constant 0 : index
      %361 = vector.load %arg11[%c0_192, %c0_193] : memref<8x128xf32, #tpu.memory_space<vmem>>, vector<8x128xf32>
      tpu.vector_store %arg11[%c0_192, %c0_193], %360 {strides = array<i32>} : memref<8x128xf32, #tpu.memory_space<vmem>>, vector<8x128xf32>,
    } else {
    }
    %c0 = arith.constant 0 : index
    %c0_1 = arith.constant 0 : index
    %c0_2 = arith.constant 0 : index
    %3 = vector.load %arg2[%c0, %c0_1, %c0_2] : memref<1x64x128xbf16, #tpu.memory_space<vmem>>, vector<1x64x128xbf16>
    %4 = vector.shape_cast %3 : vector<1x64x128xbf16> to vector<64x128xbf16>
    %c0_3 = arith.constant 0 : index
    %c0_4 = arith.constant 0 : index
    %5 = vector.load %arg3[%c0_3, %c0_4] : memref<128x512xbf16, #tpu.memory_space<vmem>>, vector<128x512xbf16>
    %cst = arith.constant dense<0.000000e+00> : vector<64x512xf32>
    %6 = tpu.matmul %4, %5, %cst {dimension_numbers = #tpu.dot_dimension_numbers<[1], [0], [0], [1], [0, 0, 1, 1], [], []>} : vector<64x128xbf16>, vector<128x512xbf16>, vector<64x512xf32> -> vector<64x512xf32>
    %c0_5 = arith.constant 0 : index
    %c0_6 = arith.constant 0 : index
    %7 = vector.load %arg5[%c0_5, %c0_6] : memref<1x512xf32, #tpu.memory_space<vmem>>, vector<1x512xf32>
    %8 = vector.broadcast %7 : vector<1x512xf32> to vector<64x512xf32>
    %9 = arith.addf %6, %8 : vector<64x512xf32>
    %c0_7 = arith.constant 0 : index
    %c0_8 = arith.constant 0 : index
    %10 = vector.load %arg9[%c0_7, %c0_8] : memref<64x512xf32, #tpu.memory_space<vmem>>, vector<64x512xf32>
    tpu.vector_store %arg9[%c0_7, %c0_8], %9 {strides = array<i32>} : memref<64x512xf32, #tpu.memory_space<vmem>>, vector<64x512xf32>,
    %c0_i32_9 = arith.constant 0 : i32
    %c8_i32 = arith.constant 8 : i32
    %11 = arith.muli %c0_i32_9, %c8_i32 : i32
    %12 = tpu.assume_multiple %11, 8 : i32
    %13 = arith.index_cast %12 : i32 to index
    %c0_10 = arith.constant 0 : index
    %14 = vector.load %arg9[%13, %c0_10] : memref<64x512xf32, #tpu.memory_space<vmem>>, vector<8x512xf32>
    %c0_11 = arith.constant 0 : index
    %c0_12 = arith.constant 0 : index
    %15 = vector.load %arg10[%c0_11, %c0_12] : memref<8x128xbf16, #tpu.memory_space<vmem>>, vector<8x128xbf16>
    %c0_13 = arith.constant 0 : index
    %c0_14 = arith.constant 0 : index
    %16 = vector.load %arg4[%c0_13, %c0_14] : memref<128x512xbf16, #tpu.memory_space<vmem>>, vector<128x512xbf16>
    %cst_15 = arith.constant dense<0.000000e+00> : vector<8x512xf32>
    %17 = tpu.matmul %15, %16, %cst_15 {dimension_numbers = #tpu.dot_dimension_numbers<[1], [0], [0], [1], [0, 0, 1, 1], [], []>} : vector<8x128xbf16>, vector<128x512xbf16>, vector<8x512xf32> -> vector<8x512xf32>
    %18 = arith.addf %14, %17 : vector<8x512xf32>
    %19 = vector.extract_strided_slice %18 {offsets = [0, 0], sizes = [8, 128], strides = [1, 1]} : vector<8x512xf32> to vector<8x128xf32>
    %cst_16 = arith.constant 5.000000e-01 : f32
    %20 = vector.broadcast %cst_16 : f32 to vector<8x128xf32>
    %21 = arith.mulf %20, %19 : vector<8x128xf32>
    %22 = math.tanh %21 : vector<8x128xf32>
    %cst_17 = arith.constant 5.000000e-01 : f32
    %23 = vector.broadcast %cst_17 : f32 to vector<8x128xf32>
    %24 = arith.mulf %23, %22 : vector<8x128xf32>
    %cst_18 = arith.constant 5.000000e-01 : f32
    %25 = vector.broadcast %cst_18 : f32 to vector<8x128xf32>
    %26 = arith.addf %24, %25 : vector<8x128xf32>
    %27 = vector.extract_strided_slice %18 {offsets = [0, 128], sizes = [8, 128], strides = [1, 1]} : vector<8x512xf32> to vector<8x128xf32>
    %cst_19 = arith.constant 5.000000e-01 : f32
    %28 = vector.broadcast %cst_19 : f32 to vector<8x128xf32>
    %29 = arith.mulf %28, %27 : vector<8x128xf32>
    %30 = math.tanh %29 : vector<8x128xf32>
    %cst_20 = arith.constant 5.000000e-01 : f32
    %31 = vector.broadcast %cst_20 : f32 to vector<8x128xf32>
    %32 = arith.mulf %31, %30 : vector<8x128xf32>
    %cst_21 = arith.constant 5.000000e-01 : f32
    %33 = vector.broadcast %cst_21 : f32 to vector<8x128xf32>
    %34 = arith.addf %32, %33 : vector<8x128xf32>
    %35 = vector.extract_strided_slice %18 {offsets = [0, 256], sizes = [8, 128], strides = [1, 1]} : vector<8x512xf32> to vector<8x128xf32>
    %36 = math.tanh %35 : vector<8x128xf32>
    %37 = vector.extract_strided_slice %18 {offsets = [0, 384], sizes = [8, 128], strides = [1, 1]} : vector<8x512xf32> to vector<8x128xf32>
    %cst_22 = arith.constant 5.000000e-01 : f32
    %38 = vector.broadcast %cst_22 : f32 to vector<8x128xf32>
    %39 = arith.mulf %38, %37 : vector<8x128xf32>
    %40 = math.tanh %39 : vector<8x128xf32>
    %cst_23 = arith.constant 5.000000e-01 : f32
    %41 = vector.broadcast %cst_23 : f32 to vector<8x128xf32>
    %42 = arith.mulf %41, %40 : vector<8x128xf32>
    %cst_24 = arith.constant 5.000000e-01 : f32
    %43 = vector.broadcast %cst_24 : f32 to vector<8x128xf32>
    %44 = arith.addf %42, %43 : vector<8x128xf32>
    %c0_25 = arith.constant 0 : index
    %c0_26 = arith.constant 0 : index
    %45 = vector.load %arg11[%c0_25, %c0_26] : memref<8x128xf32, #tpu.memory_space<vmem>>, vector<8x128xf32>
    %46 = arith.mulf %34, %45 : vector<8x128xf32>
    %47 = arith.mulf %26, %36 : vector<8x128xf32>
    %48 = arith.addf %46, %47 : vector<8x128xf32>
    %49 = math.tanh %48 : vector<8x128xf32>
    %50 = arith.mulf %44, %49 : vector<8x128xf32>
    %51 = arith.truncf %50 : vector<8x128xf32> to vector<8x128xbf16>
    %c0_27 = arith.constant 0 : index
    %c0_28 = arith.constant 0 : index
    %52 = vector.load %arg11[%c0_27, %c0_28] : memref<8x128xf32, #tpu.memory_space<vmem>>, vector<8x128xf32>
    tpu.vector_store %arg11[%c0_27, %c0_28], %48 {strides = array<i32>} : memref<8x128xf32, #tpu.memory_space<vmem>>, vector<8x128xf32>,
    %c0_29 = arith.constant 0 : index
    %c0_30 = arith.constant 0 : index
    %53 = vector.load %arg10[%c0_29, %c0_30] : memref<8x128xbf16, #tpu.memory_space<vmem>>, vector<8x128xbf16>
    tpu.vector_store %arg10[%c0_29, %c0_30], %51 {strides = array<i32>} : memref<8x128xbf16, #tpu.memory_space<vmem>>, vector<8x128xbf16>,
    %c1_i32 = arith.constant 1 : i32
    %c8_i32_31 = arith.constant 8 : i32
    %54 = arith.muli %c1_i32, %c8_i32_31 : i32
    %55 = tpu.assume_multiple %54, 8 : i32
    %56 = arith.index_cast %55 : i32 to index
    %c0_32 = arith.constant 0 : index
    %57 = vector.load %arg9[%56, %c0_32] : memref<64x512xf32, #tpu.memory_space<vmem>>, vector<8x512xf32>
    %c0_33 = arith.constant 0 : index
    %c0_34 = arith.constant 0 : index
    %58 = vector.load %arg10[%c0_33, %c0_34] : memref<8x128xbf16, #tpu.memory_space<vmem>>, vector<8x128xbf16>
    %c0_35 = arith.constant 0 : index
    %c0_36 = arith.constant 0 : index
    %59 = vector.load %arg4[%c0_35, %c0_36] : memref<128x512xbf16, #tpu.memory_space<vmem>>, vector<128x512xbf16>
    %cst_37 = arith.constant dense<0.000000e+00> : vector<8x512xf32>
    %60 = tpu.matmul %58, %59, %cst_37 {dimension_numbers = #tpu.dot_dimension_numbers<[1], [0], [0], [1], [0, 0, 1, 1], [], []>} : vector<8x128xbf16>, vector<128x512xbf16>, vector<8x512xf32> -> vector<8x512xf32>
    %61 = arith.addf %57, %60 : vector<8x512xf32>
    %62 = vector.extract_strided_slice %61 {offsets = [0, 0], sizes = [8, 128], strides = [1, 1]} : vector<8x512xf32> to vector<8x128xf32>
    %cst_38 = arith.constant 5.000000e-01 : f32
    %63 = vector.broadcast %cst_38 : f32 to vector<8x128xf32>
    %64 = arith.mulf %63, %62 : vector<8x128xf32>
    %65 = math.tanh %64 : vector<8x128xf32>
    %cst_39 = arith.constant 5.000000e-01 : f32
    %66 = vector.broadcast %cst_39 : f32 to vector<8x128xf32>
    %67 = arith.mulf %66, %65 : vector<8x128xf32>
    %cst_40 = arith.constant 5.000000e-01 : f32
    %68 = vector.broadcast %cst_40 : f32 to vector<8x128xf32>
    %69 = arith.addf %67, %68 : vector<8x128xf32>
    %70 = vector.extract_strided_slice %61 {offsets = [0, 128], sizes = [8, 128], strides = [1, 1]} : vector<8x512xf32> to vector<8x128xf32>
    %cst_41 = arith.constant 5.000000e-01 : f32
    %71 = vector.broadcast %cst_41 : f32 to vector<8x128xf32>
    %72 = arith.mulf %71, %70 : vector<8x128xf32>
    %73 = math.tanh %72 : vector<8x128xf32>
    %cst_42 = arith.constant 5.000000e-01 : f32
    %74 = vector.broadcast %cst_42 : f32 to vector<8x128xf32>
    %75 = arith.mulf %74, %73 : vector<8x128xf32>
    %cst_43 = arith.constant 5.000000e-01 : f32
    %76 = vector.broadcast %cst_43 : f32 to vector<8x128xf32>
    %77 = arith.addf %75, %76 : vector<8x128xf32>
    %78 = vector.extract_strided_slice %61 {offsets = [0, 256], sizes = [8, 128], strides = [1, 1]} : vector<8x512xf32> to vector<8x128xf32>
    %79 = math.tanh %78 : vector<8x128xf32>
    %80 = vector.extract_strided_slice %61 {offsets = [0, 384], sizes = [8, 128], strides = [1, 1]} : vector<8x512xf32> to vector<8x128xf32>
    %cst_44 = arith.constant 5.000000e-01 : f32
    %81 = vector.broadcast %cst_44 : f32 to vector<8x128xf32>
    %82 = arith.mulf %81, %80 : vector<8x128xf32>
    %83 = math.tanh %82 : vector<8x128xf32>
    %cst_45 = arith.constant 5.000000e-01 : f32
    %84 = vector.broadcast %cst_45 : f32 to vector<8x128xf32>
    %85 = arith.mulf %84, %83 : vector<8x128xf32>
    %cst_46 = arith.constant 5.000000e-01 : f32
    %86 = vector.broadcast %cst_46 : f32 to vector<8x128xf32>
    %87 = arith.addf %85, %86 : vector<8x128xf32>
    %c0_47 = arith.constant 0 : index
    %c0_48 = arith.constant 0 : index
    %88 = vector.load %arg11[%c0_47, %c0_48] : memref<8x128xf32, #tpu.memory_space<vmem>>, vector<8x128xf32>
    %89 = arith.mulf %77, %88 : vector<8x128xf32>
    %90 = arith.mulf %69, %79 : vector<8x128xf32>
    %91 = arith.addf %89, %90 : vector<8x128xf32>
    %92 = math.tanh %91 : vector<8x128xf32>
    %93 = arith.mulf %87, %92 : vector<8x128xf32>
    %94 = arith.truncf %93 : vector<8x128xf32> to vector<8x128xbf16>
    %c0_49 = arith.constant 0 : index
    %c0_50 = arith.constant 0 : index
    %95 = vector.load %arg11[%c0_49, %c0_50] : memref<8x128xf32, #tpu.memory_space<vmem>>, vector<8x128xf32>
    tpu.vector_store %arg11[%c0_49, %c0_50], %91 {strides = array<i32>} : memref<8x128xf32, #tpu.memory_space<vmem>>, vector<8x128xf32>,
    %c0_51 = arith.constant 0 : index
    %c0_52 = arith.constant 0 : index
    %96 = vector.load %arg10[%c0_51, %c0_52] : memref<8x128xbf16, #tpu.memory_space<vmem>>, vector<8x128xbf16>
    tpu.vector_store %arg10[%c0_51, %c0_52], %94 {strides = array<i32>} : memref<8x128xbf16, #tpu.memory_space<vmem>>, vector<8x128xbf16>,
    %c2_i32 = arith.constant 2 : i32
    %c8_i32_53 = arith.constant 8 : i32
    %97 = arith.muli %c2_i32, %c8_i32_53 : i32
    %98 = tpu.assume_multiple %97, 8 : i32
    %99 = arith.index_cast %98 : i32 to index
    %c0_54 = arith.constant 0 : index
    %100 = vector.load %arg9[%99, %c0_54] : memref<64x512xf32, #tpu.memory_space<vmem>>, vector<8x512xf32>
    %c0_55 = arith.constant 0 : index
    %c0_56 = arith.constant 0 : index
    %101 = vector.load %arg10[%c0_55, %c0_56] : memref<8x128xbf16, #tpu.memory_space<vmem>>, vector<8x128xbf16>
    %c0_57 = arith.constant 0 : index
    %c0_58 = arith.constant 0 : index
    %102 = vector.load %arg4[%c0_57, %c0_58] : memref<128x512xbf16, #tpu.memory_space<vmem>>, vector<128x512xbf16>
    %cst_59 = arith.constant dense<0.000000e+00> : vector<8x512xf32>
    %103 = tpu.matmul %101, %102, %cst_59 {dimension_numbers = #tpu.dot_dimension_numbers<[1], [0], [0], [1], [0, 0, 1, 1], [], []>} : vector<8x128xbf16>, vector<128x512xbf16>, vector<8x512xf32> -> vector<8x512xf32>
    %104 = arith.addf %100, %103 : vector<8x512xf32>
    %105 = vector.extract_strided_slice %104 {offsets = [0, 0], sizes = [8, 128], strides = [1, 1]} : vector<8x512xf32> to vector<8x128xf32>
    %cst_60 = arith.constant 5.000000e-01 : f32
    %106 = vector.broadcast %cst_60 : f32 to vector<8x128xf32>
    %107 = arith.mulf %106, %105 : vector<8x128xf32>
    %108 = math.tanh %107 : vector<8x128xf32>
    %cst_61 = arith.constant 5.000000e-01 : f32
    %109 = vector.broadcast %cst_61 : f32 to vector<8x128xf32>
    %110 = arith.mulf %109, %108 : vector<8x128xf32>
    %cst_62 = arith.constant 5.000000e-01 : f32
    %111 = vector.broadcast %cst_62 : f32 to vector<8x128xf32>
    %112 = arith.addf %110, %111 : vector<8x128xf32>
    %113 = vector.extract_strided_slice %104 {offsets = [0, 128], sizes = [8, 128], strides = [1, 1]} : vector<8x512xf32> to vector<8x128xf32>
    %cst_63 = arith.constant 5.000000e-01 : f32
    %114 = vector.broadcast %cst_63 : f32 to vector<8x128xf32>
    %115 = arith.mulf %114, %113 : vector<8x128xf32>
    %116 = math.tanh %115 : vector<8x128xf32>
    %cst_64 = arith.constant 5.000000e-01 : f32
    %117 = vector.broadcast %cst_64 : f32 to vector<8x128xf32>
    %118 = arith.mulf %117, %116 : vector<8x128xf32>
    %cst_65 = arith.constant 5.000000e-01 : f32
    %119 = vector.broadcast %cst_65 : f32 to vector<8x128xf32>
    %120 = arith.addf %118, %119 : vector<8x128xf32>
    %121 = vector.extract_strided_slice %104 {offsets = [0, 256], sizes = [8, 128], strides = [1, 1]} : vector<8x512xf32> to vector<8x128xf32>
    %122 = math.tanh %121 : vector<8x128xf32>
    %123 = vector.extract_strided_slice %104 {offsets = [0, 384], sizes = [8, 128], strides = [1, 1]} : vector<8x512xf32> to vector<8x128xf32>
    %cst_66 = arith.constant 5.000000e-01 : f32
    %124 = vector.broadcast %cst_66 : f32 to vector<8x128xf32>
    %125 = arith.mulf %124, %123 : vector<8x128xf32>
    %126 = math.tanh %125 : vector<8x128xf32>
    %cst_67 = arith.constant 5.000000e-01 : f32
    %127 = vector.broadcast %cst_67 : f32 to vector<8x128xf32>
    %128 = arith.mulf %127, %126 : vector<8x128xf32>
    %cst_68 = arith.constant 5.000000e-01 : f32
    %129 = vector.broadcast %cst_68 : f32 to vector<8x128xf32>
    %130 = arith.addf %128, %129 : vector<8x128xf32>
    %c0_69 = arith.constant 0 : index
    %c0_70 = arith.constant 0 : index
    %131 = vector.load %arg11[%c0_69, %c0_70] : memref<8x128xf32, #tpu.memory_space<vmem>>, vector<8x128xf32>
    %132 = arith.mulf %120, %131 : vector<8x128xf32>
    %133 = arith.mulf %112, %122 : vector<8x128xf32>
    %134 = arith.addf %132, %133 : vector<8x128xf32>
    %135 = math.tanh %134 : vector<8x128xf32>
    %136 = arith.mulf %130, %135 : vector<8x128xf32>
    %137 = arith.truncf %136 : vector<8x128xf32> to vector<8x128xbf16>
    %c0_71 = arith.constant 0 : index
    %c0_72 = arith.constant 0 : index
    %138 = vector.load %arg11[%c0_71, %c0_72] : memref<8x128xf32, #tpu.memory_space<vmem>>, vector<8x128xf32>
    tpu.vector_store %arg11[%c0_71, %c0_72], %134 {strides = array<i32>} : memref<8x128xf32, #tpu.memory_space<vmem>>, vector<8x128xf32>,
    %c0_73 = arith.constant 0 : index
    %c0_74 = arith.constant 0 : index
    %139 = vector.load %arg10[%c0_73, %c0_74] : memref<8x128xbf16, #tpu.memory_space<vmem>>, vector<8x128xbf16>
    tpu.vector_store %arg10[%c0_73, %c0_74], %137 {strides = array<i32>} : memref<8x128xbf16, #tpu.memory_space<vmem>>, vector<8x128xbf16>,
    %c3_i32 = arith.constant 3 : i32
    %c8_i32_75 = arith.constant 8 : i32
    %140 = arith.muli %c3_i32, %c8_i32_75 : i32
    %141 = tpu.assume_multiple %140, 8 : i32
    %142 = arith.index_cast %141 : i32 to index
    %c0_76 = arith.constant 0 : index
    %143 = vector.load %arg9[%142, %c0_76] : memref<64x512xf32, #tpu.memory_space<vmem>>, vector<8x512xf32>
    %c0_77 = arith.constant 0 : index
    %c0_78 = arith.constant 0 : index
    %144 = vector.load %arg10[%c0_77, %c0_78] : memref<8x128xbf16, #tpu.memory_space<vmem>>, vector<8x128xbf16>
    %c0_79 = arith.constant 0 : index
    %c0_80 = arith.constant 0 : index
    %145 = vector.load %arg4[%c0_79, %c0_80] : memref<128x512xbf16, #tpu.memory_space<vmem>>, vector<128x512xbf16>
    %cst_81 = arith.constant dense<0.000000e+00> : vector<8x512xf32>
    %146 = tpu.matmul %144, %145, %cst_81 {dimension_numbers = #tpu.dot_dimension_numbers<[1], [0], [0], [1], [0, 0, 1, 1], [], []>} : vector<8x128xbf16>, vector<128x512xbf16>, vector<8x512xf32> -> vector<8x512xf32>
    %147 = arith.addf %143, %146 : vector<8x512xf32>
    %148 = vector.extract_strided_slice %147 {offsets = [0, 0], sizes = [8, 128], strides = [1, 1]} : vector<8x512xf32> to vector<8x128xf32>
    %cst_82 = arith.constant 5.000000e-01 : f32
    %149 = vector.broadcast %cst_82 : f32 to vector<8x128xf32>
    %150 = arith.mulf %149, %148 : vector<8x128xf32>
    %151 = math.tanh %150 : vector<8x128xf32>
    %cst_83 = arith.constant 5.000000e-01 : f32
    %152 = vector.broadcast %cst_83 : f32 to vector<8x128xf32>
    %153 = arith.mulf %152, %151 : vector<8x128xf32>
    %cst_84 = arith.constant 5.000000e-01 : f32
    %154 = vector.broadcast %cst_84 : f32 to vector<8x128xf32>
    %155 = arith.addf %153, %154 : vector<8x128xf32>
    %156 = vector.extract_strided_slice %147 {offsets = [0, 128], sizes = [8, 128], strides = [1, 1]} : vector<8x512xf32> to vector<8x128xf32>
    %cst_85 = arith.constant 5.000000e-01 : f32
    %157 = vector.broadcast %cst_85 : f32 to vector<8x128xf32>
    %158 = arith.mulf %157, %156 : vector<8x128xf32>
    %159 = math.tanh %158 : vector<8x128xf32>
    %cst_86 = arith.constant 5.000000e-01 : f32
    %160 = vector.broadcast %cst_86 : f32 to vector<8x128xf32>
    %161 = arith.mulf %160, %159 : vector<8x128xf32>
    %cst_87 = arith.constant 5.000000e-01 : f32
    %162 = vector.broadcast %cst_87 : f32 to vector<8x128xf32>
    %163 = arith.addf %161, %162 : vector<8x128xf32>
    %164 = vector.extract_strided_slice %147 {offsets = [0, 256], sizes = [8, 128], strides = [1, 1]} : vector<8x512xf32> to vector<8x128xf32>
    %165 = math.tanh %164 : vector<8x128xf32>
    %166 = vector.extract_strided_slice %147 {offsets = [0, 384], sizes = [8, 128], strides = [1, 1]} : vector<8x512xf32> to vector<8x128xf32>
    %cst_88 = arith.constant 5.000000e-01 : f32
    %167 = vector.broadcast %cst_88 : f32 to vector<8x128xf32>
    %168 = arith.mulf %167, %166 : vector<8x128xf32>
    %169 = math.tanh %168 : vector<8x128xf32>
    %cst_89 = arith.constant 5.000000e-01 : f32
    %170 = vector.broadcast %cst_89 : f32 to vector<8x128xf32>
    %171 = arith.mulf %170, %169 : vector<8x128xf32>
    %cst_90 = arith.constant 5.000000e-01 : f32
    %172 = vector.broadcast %cst_90 : f32 to vector<8x128xf32>
    %173 = arith.addf %171, %172 : vector<8x128xf32>
    %c0_91 = arith.constant 0 : index
    %c0_92 = arith.constant 0 : index
    %174 = vector.load %arg11[%c0_91, %c0_92] : memref<8x128xf32, #tpu.memory_space<vmem>>, vector<8x128xf32>
    %175 = arith.mulf %163, %174 : vector<8x128xf32>
    %176 = arith.mulf %155, %165 : vector<8x128xf32>
    %177 = arith.addf %175, %176 : vector<8x128xf32>
    %178 = math.tanh %177 : vector<8x128xf32>
    %179 = arith.mulf %173, %178 : vector<8x128xf32>
    %180 = arith.truncf %179 : vector<8x128xf32> to vector<8x128xbf16>
    %c0_93 = arith.constant 0 : index
    %c0_94 = arith.constant 0 : index
    %181 = vector.load %arg11[%c0_93, %c0_94] : memref<8x128xf32, #tpu.memory_space<vmem>>, vector<8x128xf32>
    tpu.vector_store %arg11[%c0_93, %c0_94], %177 {strides = array<i32>} : memref<8x128xf32, #tpu.memory_space<vmem>>, vector<8x128xf32>,
    %c0_95 = arith.constant 0 : index
    %c0_96 = arith.constant 0 : index
    %182 = vector.load %arg10[%c0_95, %c0_96] : memref<8x128xbf16, #tpu.memory_space<vmem>>, vector<8x128xbf16>
    tpu.vector_store %arg10[%c0_95, %c0_96], %180 {strides = array<i32>} : memref<8x128xbf16, #tpu.memory_space<vmem>>, vector<8x128xbf16>,
    %c4_i32 = arith.constant 4 : i32
    %c8_i32_97 = arith.constant 8 : i32
    %183 = arith.muli %c4_i32, %c8_i32_97 : i32
    %184 = tpu.assume_multiple %183, 8 : i32
    %185 = arith.index_cast %184 : i32 to index
    %c0_98 = arith.constant 0 : index
    %186 = vector.load %arg9[%185, %c0_98] : memref<64x512xf32, #tpu.memory_space<vmem>>, vector<8x512xf32>
    %c0_99 = arith.constant 0 : index
    %c0_100 = arith.constant 0 : index
    %187 = vector.load %arg10[%c0_99, %c0_100] : memref<8x128xbf16, #tpu.memory_space<vmem>>, vector<8x128xbf16>
    %c0_101 = arith.constant 0 : index
    %c0_102 = arith.constant 0 : index
    %188 = vector.load %arg4[%c0_101, %c0_102] : memref<128x512xbf16, #tpu.memory_space<vmem>>, vector<128x512xbf16>
    %cst_103 = arith.constant dense<0.000000e+00> : vector<8x512xf32>
    %189 = tpu.matmul %187, %188, %cst_103 {dimension_numbers = #tpu.dot_dimension_numbers<[1], [0], [0], [1], [0, 0, 1, 1], [], []>} : vector<8x128xbf16>, vector<128x512xbf16>, vector<8x512xf32> -> vector<8x512xf32>
    %190 = arith.addf %186, %189 : vector<8x512xf32>
    %191 = vector.extract_strided_slice %190 {offsets = [0, 0], sizes = [8, 128], strides = [1, 1]} : vector<8x512xf32> to vector<8x128xf32>
    %cst_104 = arith.constant 5.000000e-01 : f32
    %192 = vector.broadcast %cst_104 : f32 to vector<8x128xf32>
    %193 = arith.mulf %192, %191 : vector<8x128xf32>
    %194 = math.tanh %193 : vector<8x128xf32>
    %cst_105 = arith.constant 5.000000e-01 : f32
    %195 = vector.broadcast %cst_105 : f32 to vector<8x128xf32>
    %196 = arith.mulf %195, %194 : vector<8x128xf32>
    %cst_106 = arith.constant 5.000000e-01 : f32
    %197 = vector.broadcast %cst_106 : f32 to vector<8x128xf32>
    %198 = arith.addf %196, %197 : vector<8x128xf32>
    %199 = vector.extract_strided_slice %190 {offsets = [0, 128], sizes = [8, 128], strides = [1, 1]} : vector<8x512xf32> to vector<8x128xf32>
    %cst_107 = arith.constant 5.000000e-01 : f32
    %200 = vector.broadcast %cst_107 : f32 to vector<8x128xf32>
    %201 = arith.mulf %200, %199 : vector<8x128xf32>
    %202 = math.tanh %201 : vector<8x128xf32>
    %cst_108 = arith.constant 5.000000e-01 : f32
    %203 = vector.broadcast %cst_108 : f32 to vector<8x128xf32>
    %204 = arith.mulf %203, %202 : vector<8x128xf32>
    %cst_109 = arith.constant 5.000000e-01 : f32
    %205 = vector.broadcast %cst_109 : f32 to vector<8x128xf32>
    %206 = arith.addf %204, %205 : vector<8x128xf32>
    %207 = vector.extract_strided_slice %190 {offsets = [0, 256], sizes = [8, 128], strides = [1, 1]} : vector<8x512xf32> to vector<8x128xf32>
    %208 = math.tanh %207 : vector<8x128xf32>
    %209 = vector.extract_strided_slice %190 {offsets = [0, 384], sizes = [8, 128], strides = [1, 1]} : vector<8x512xf32> to vector<8x128xf32>
    %cst_110 = arith.constant 5.000000e-01 : f32
    %210 = vector.broadcast %cst_110 : f32 to vector<8x128xf32>
    %211 = arith.mulf %210, %209 : vector<8x128xf32>
    %212 = math.tanh %211 : vector<8x128xf32>
    %cst_111 = arith.constant 5.000000e-01 : f32
    %213 = vector.broadcast %cst_111 : f32 to vector<8x128xf32>
    %214 = arith.mulf %213, %212 : vector<8x128xf32>
    %cst_112 = arith.constant 5.000000e-01 : f32
    %215 = vector.broadcast %cst_112 : f32 to vector<8x128xf32>
    %216 = arith.addf %214, %215 : vector<8x128xf32>
    %c0_113 = arith.constant 0 : index
    %c0_114 = arith.constant 0 : index
    %217 = vector.load %arg11[%c0_113, %c0_114] : memref<8x128xf32, #tpu.memory_space<vmem>>, vector<8x128xf32>
    %218 = arith.mulf %206, %217 : vector<8x128xf32>
    %219 = arith.mulf %198, %208 : vector<8x128xf32>
    %220 = arith.addf %218, %219 : vector<8x128xf32>
    %221 = math.tanh %220 : vector<8x128xf32>
    %222 = arith.mulf %216, %221 : vector<8x128xf32>
    %223 = arith.truncf %222 : vector<8x128xf32> to vector<8x128xbf16>
    %c0_115 = arith.constant 0 : index
    %c0_116 = arith.constant 0 : index
    %224 = vector.load %arg11[%c0_115, %c0_116] : memref<8x128xf32, #tpu.memory_space<vmem>>, vector<8x128xf32>
    tpu.vector_store %arg11[%c0_115, %c0_116], %220 {strides = array<i32>} : memref<8x128xf32, #tpu.memory_space<vmem>>, vector<8x128xf32>,
    %c0_117 = arith.constant 0 : index
    %c0_118 = arith.constant 0 : index
    %225 = vector.load %arg10[%c0_117, %c0_118] : memref<8x128xbf16, #tpu.memory_space<vmem>>, vector<8x128xbf16>
    tpu.vector_store %arg10[%c0_117, %c0_118], %223 {strides = array<i32>} : memref<8x128xbf16, #tpu.memory_space<vmem>>, vector<8x128xbf16>,
    %c5_i32 = arith.constant 5 : i32
    %c8_i32_119 = arith.constant 8 : i32
    %226 = arith.muli %c5_i32, %c8_i32_119 : i32
    %227 = tpu.assume_multiple %226, 8 : i32
    %228 = arith.index_cast %227 : i32 to index
    %c0_120 = arith.constant 0 : index
    %229 = vector.load %arg9[%228, %c0_120] : memref<64x512xf32, #tpu.memory_space<vmem>>, vector<8x512xf32>
    %c0_121 = arith.constant 0 : index
    %c0_122 = arith.constant 0 : index
    %230 = vector.load %arg10[%c0_121, %c0_122] : memref<8x128xbf16, #tpu.memory_space<vmem>>, vector<8x128xbf16>
    %c0_123 = arith.constant 0 : index
    %c0_124 = arith.constant 0 : index
    %231 = vector.load %arg4[%c0_123, %c0_124] : memref<128x512xbf16, #tpu.memory_space<vmem>>, vector<128x512xbf16>
    %cst_125 = arith.constant dense<0.000000e+00> : vector<8x512xf32>
    %232 = tpu.matmul %230, %231, %cst_125 {dimension_numbers = #tpu.dot_dimension_numbers<[1], [0], [0], [1], [0, 0, 1, 1], [], []>} : vector<8x128xbf16>, vector<128x512xbf16>, vector<8x512xf32> -> vector<8x512xf32>
    %233 = arith.addf %229, %232 : vector<8x512xf32>
    %234 = vector.extract_strided_slice %233 {offsets = [0, 0], sizes = [8, 128], strides = [1, 1]} : vector<8x512xf32> to vector<8x128xf32>
    %cst_126 = arith.constant 5.000000e-01 : f32
    %235 = vector.broadcast %cst_126 : f32 to vector<8x128xf32>
    %236 = arith.mulf %235, %234 : vector<8x128xf32>
    %237 = math.tanh %236 : vector<8x128xf32>
    %cst_127 = arith.constant 5.000000e-01 : f32
    %238 = vector.broadcast %cst_127 : f32 to vector<8x128xf32>
    %239 = arith.mulf %238, %237 : vector<8x128xf32>
    %cst_128 = arith.constant 5.000000e-01 : f32
    %240 = vector.broadcast %cst_128 : f32 to vector<8x128xf32>
    %241 = arith.addf %239, %240 : vector<8x128xf32>
    %242 = vector.extract_strided_slice %233 {offsets = [0, 128], sizes = [8, 128], strides = [1, 1]} : vector<8x512xf32> to vector<8x128xf32>
    %cst_129 = arith.constant 5.000000e-01 : f32
    %243 = vector.broadcast %cst_129 : f32 to vector<8x128xf32>
    %244 = arith.mulf %243, %242 : vector<8x128xf32>
    %245 = math.tanh %244 : vector<8x128xf32>
    %cst_130 = arith.constant 5.000000e-01 : f32
    %246 = vector.broadcast %cst_130 : f32 to vector<8x128xf32>
    %247 = arith.mulf %246, %245 : vector<8x128xf32>
    %cst_131 = arith.constant 5.000000e-01 : f32
    %248 = vector.broadcast %cst_131 : f32 to vector<8x128xf32>
    %249 = arith.addf %247, %248 : vector<8x128xf32>
    %250 = vector.extract_strided_slice %233 {offsets = [0, 256], sizes = [8, 128], strides = [1, 1]} : vector<8x512xf32> to vector<8x128xf32>
    %251 = math.tanh %250 : vector<8x128xf32>
    %252 = vector.extract_strided_slice %233 {offsets = [0, 384], sizes = [8, 128], strides = [1, 1]} : vector<8x512xf32> to vector<8x128xf32>
    %cst_132 = arith.constant 5.000000e-01 : f32
    %253 = vector.broadcast %cst_132 : f32 to vector<8x128xf32>
    %254 = arith.mulf %253, %252 : vector<8x128xf32>
    %255 = math.tanh %254 : vector<8x128xf32>
    %cst_133 = arith.constant 5.000000e-01 : f32
    %256 = vector.broadcast %cst_133 : f32 to vector<8x128xf32>
    %257 = arith.mulf %256, %255 : vector<8x128xf32>
    %cst_134 = arith.constant 5.000000e-01 : f32
    %258 = vector.broadcast %cst_134 : f32 to vector<8x128xf32>
    %259 = arith.addf %257, %258 : vector<8x128xf32>
    %c0_135 = arith.constant 0 : index
    %c0_136 = arith.constant 0 : index
    %260 = vector.load %arg11[%c0_135, %c0_136] : memref<8x128xf32, #tpu.memory_space<vmem>>, vector<8x128xf32>
    %261 = arith.mulf %249, %260 : vector<8x128xf32>
    %262 = arith.mulf %241, %251 : vector<8x128xf32>
    %263 = arith.addf %261, %262 : vector<8x128xf32>
    %264 = math.tanh %263 : vector<8x128xf32>
    %265 = arith.mulf %259, %264 : vector<8x128xf32>
    %266 = arith.truncf %265 : vector<8x128xf32> to vector<8x128xbf16>
    %c0_137 = arith.constant 0 : index
    %c0_138 = arith.constant 0 : index
    %267 = vector.load %arg11[%c0_137, %c0_138] : memref<8x128xf32, #tpu.memory_space<vmem>>, vector<8x128xf32>
    tpu.vector_store %arg11[%c0_137, %c0_138], %263 {strides = array<i32>} : memref<8x128xf32, #tpu.memory_space<vmem>>, vector<8x128xf32>,
    %c0_139 = arith.constant 0 : index
    %c0_140 = arith.constant 0 : index
    %268 = vector.load %arg10[%c0_139, %c0_140] : memref<8x128xbf16, #tpu.memory_space<vmem>>, vector<8x128xbf16>
    tpu.vector_store %arg10[%c0_139, %c0_140], %266 {strides = array<i32>} : memref<8x128xbf16, #tpu.memory_space<vmem>>, vector<8x128xbf16>,
    %c6_i32 = arith.constant 6 : i32
    %c8_i32_141 = arith.constant 8 : i32
    %269 = arith.muli %c6_i32, %c8_i32_141 : i32
    %270 = tpu.assume_multiple %269, 8 : i32
    %271 = arith.index_cast %270 : i32 to index
    %c0_142 = arith.constant 0 : index
    %272 = vector.load %arg9[%271, %c0_142] : memref<64x512xf32, #tpu.memory_space<vmem>>, vector<8x512xf32>
    %c0_143 = arith.constant 0 : index
    %c0_144 = arith.constant 0 : index
    %273 = vector.load %arg10[%c0_143, %c0_144] : memref<8x128xbf16, #tpu.memory_space<vmem>>, vector<8x128xbf16>
    %c0_145 = arith.constant 0 : index
    %c0_146 = arith.constant 0 : index
    %274 = vector.load %arg4[%c0_145, %c0_146] : memref<128x512xbf16, #tpu.memory_space<vmem>>, vector<128x512xbf16>
    %cst_147 = arith.constant dense<0.000000e+00> : vector<8x512xf32>
    %275 = tpu.matmul %273, %274, %cst_147 {dimension_numbers = #tpu.dot_dimension_numbers<[1], [0], [0], [1], [0, 0, 1, 1], [], []>} : vector<8x128xbf16>, vector<128x512xbf16>, vector<8x512xf32> -> vector<8x512xf32>
    %276 = arith.addf %272, %275 : vector<8x512xf32>
    %277 = vector.extract_strided_slice %276 {offsets = [0, 0], sizes = [8, 128], strides = [1, 1]} : vector<8x512xf32> to vector<8x128xf32>
    %cst_148 = arith.constant 5.000000e-01 : f32
    %278 = vector.broadcast %cst_148 : f32 to vector<8x128xf32>
    %279 = arith.mulf %278, %277 : vector<8x128xf32>
    %280 = math.tanh %279 : vector<8x128xf32>
    %cst_149 = arith.constant 5.000000e-01 : f32
    %281 = vector.broadcast %cst_149 : f32 to vector<8x128xf32>
    %282 = arith.mulf %281, %280 : vector<8x128xf32>
    %cst_150 = arith.constant 5.000000e-01 : f32
    %283 = vector.broadcast %cst_150 : f32 to vector<8x128xf32>
    %284 = arith.addf %282, %283 : vector<8x128xf32>
    %285 = vector.extract_strided_slice %276 {offsets = [0, 128], sizes = [8, 128], strides = [1, 1]} : vector<8x512xf32> to vector<8x128xf32>
    %cst_151 = arith.constant 5.000000e-01 : f32
    %286 = vector.broadcast %cst_151 : f32 to vector<8x128xf32>
    %287 = arith.mulf %286, %285 : vector<8x128xf32>
    %288 = math.tanh %287 : vector<8x128xf32>
    %cst_152 = arith.constant 5.000000e-01 : f32
    %289 = vector.broadcast %cst_152 : f32 to vector<8x128xf32>
    %290 = arith.mulf %289, %288 : vector<8x128xf32>
    %cst_153 = arith.constant 5.000000e-01 : f32
    %291 = vector.broadcast %cst_153 : f32 to vector<8x128xf32>
    %292 = arith.addf %290, %291 : vector<8x128xf32>
    %293 = vector.extract_strided_slice %276 {offsets = [0, 256], sizes = [8, 128], strides = [1, 1]} : vector<8x512xf32> to vector<8x128xf32>
    %294 = math.tanh %293 : vector<8x128xf32>
    %295 = vector.extract_strided_slice %276 {offsets = [0, 384], sizes = [8, 128], strides = [1, 1]} : vector<8x512xf32> to vector<8x128xf32>
    %cst_154 = arith.constant 5.000000e-01 : f32
    %296 = vector.broadcast %cst_154 : f32 to vector<8x128xf32>
    %297 = arith.mulf %296, %295 : vector<8x128xf32>
    %298 = math.tanh %297 : vector<8x128xf32>
    %cst_155 = arith.constant 5.000000e-01 : f32
    %299 = vector.broadcast %cst_155 : f32 to vector<8x128xf32>
    %300 = arith.mulf %299, %298 : vector<8x128xf32>
    %cst_156 = arith.constant 5.000000e-01 : f32
    %301 = vector.broadcast %cst_156 : f32 to vector<8x128xf32>
    %302 = arith.addf %300, %301 : vector<8x128xf32>
    %c0_157 = arith.constant 0 : index
    %c0_158 = arith.constant 0 : index
    %303 = vector.load %arg11[%c0_157, %c0_158] : memref<8x128xf32, #tpu.memory_space<vmem>>, vector<8x128xf32>
    %304 = arith.mulf %292, %303 : vector<8x128xf32>
    %305 = arith.mulf %284, %294 : vector<8x128xf32>
    %306 = arith.addf %304, %305 : vector<8x128xf32>
    %307 = math.tanh %306 : vector<8x128xf32>
    %308 = arith.mulf %302, %307 : vector<8x128xf32>
    %309 = arith.truncf %308 : vector<8x128xf32> to vector<8x128xbf16>
    %c0_159 = arith.constant 0 : index
    %c0_160 = arith.constant 0 : index
    %310 = vector.load %arg11[%c0_159, %c0_160] : memref<8x128xf32, #tpu.memory_space<vmem>>, vector<8x128xf32>
    tpu.vector_store %arg11[%c0_159, %c0_160], %306 {strides = array<i32>} : memref<8x128xf32, #tpu.memory_space<vmem>>, vector<8x128xf32>,
    %c0_161 = arith.constant 0 : index
    %c0_162 = arith.constant 0 : index
    %311 = vector.load %arg10[%c0_161, %c0_162] : memref<8x128xbf16, #tpu.memory_space<vmem>>, vector<8x128xbf16>
    tpu.vector_store %arg10[%c0_161, %c0_162], %309 {strides = array<i32>} : memref<8x128xbf16, #tpu.memory_space<vmem>>, vector<8x128xbf16>,
    %c7_i32 = arith.constant 7 : i32
    %c8_i32_163 = arith.constant 8 : i32
    %312 = arith.muli %c7_i32, %c8_i32_163 : i32
    %313 = tpu.assume_multiple %312, 8 : i32
    %314 = arith.index_cast %313 : i32 to index
    %c0_164 = arith.constant 0 : index
    %315 = vector.load %arg9[%314, %c0_164] : memref<64x512xf32, #tpu.memory_space<vmem>>, vector<8x512xf32>
    %c0_165 = arith.constant 0 : index
    %c0_166 = arith.constant 0 : index
    %316 = vector.load %arg10[%c0_165, %c0_166] : memref<8x128xbf16, #tpu.memory_space<vmem>>, vector<8x128xbf16>
    %c0_167 = arith.constant 0 : index
    %c0_168 = arith.constant 0 : index
    %317 = vector.load %arg4[%c0_167, %c0_168] : memref<128x512xbf16, #tpu.memory_space<vmem>>, vector<128x512xbf16>
    %cst_169 = arith.constant dense<0.000000e+00> : vector<8x512xf32>
    %318 = tpu.matmul %316, %317, %cst_169 {dimension_numbers = #tpu.dot_dimension_numbers<[1], [0], [0], [1], [0, 0, 1, 1], [], []>} : vector<8x128xbf16>, vector<128x512xbf16>, vector<8x512xf32> -> vector<8x512xf32>
    %319 = arith.addf %315, %318 : vector<8x512xf32>
    %320 = vector.extract_strided_slice %319 {offsets = [0, 0], sizes = [8, 128], strides = [1, 1]} : vector<8x512xf32> to vector<8x128xf32>
    %cst_170 = arith.constant 5.000000e-01 : f32
    %321 = vector.broadcast %cst_170 : f32 to vector<8x128xf32>
    %322 = arith.mulf %321, %320 : vector<8x128xf32>
    %323 = math.tanh %322 : vector<8x128xf32>
    %cst_171 = arith.constant 5.000000e-01 : f32
    %324 = vector.broadcast %cst_171 : f32 to vector<8x128xf32>
    %325 = arith.mulf %324, %323 : vector<8x128xf32>
    %cst_172 = arith.constant 5.000000e-01 : f32
    %326 = vector.broadcast %cst_172 : f32 to vector<8x128xf32>
    %327 = arith.addf %325, %326 : vector<8x128xf32>
    %328 = vector.extract_strided_slice %319 {offsets = [0, 128], sizes = [8, 128], strides = [1, 1]} : vector<8x512xf32> to vector<8x128xf32>
    %cst_173 = arith.constant 5.000000e-01 : f32
    %329 = vector.broadcast %cst_173 : f32 to vector<8x128xf32>
    %330 = arith.mulf %329, %328 : vector<8x128xf32>
    %331 = math.tanh %330 : vector<8x128xf32>
    %cst_174 = arith.constant 5.000000e-01 : f32
    %332 = vector.broadcast %cst_174 : f32 to vector<8x128xf32>
    %333 = arith.mulf %332, %331 : vector<8x128xf32>
    %cst_175 = arith.constant 5.000000e-01 : f32
    %334 = vector.broadcast %cst_175 : f32 to vector<8x128xf32>
    %335 = arith.addf %333, %334 : vector<8x128xf32>
    %336 = vector.extract_strided_slice %319 {offsets = [0, 256], sizes = [8, 128], strides = [1, 1]} : vector<8x512xf32> to vector<8x128xf32>
    %337 = math.tanh %336 : vector<8x128xf32>
    %338 = vector.extract_strided_slice %319 {offsets = [0, 384], sizes = [8, 128], strides = [1, 1]} : vector<8x512xf32> to vector<8x128xf32>
    %cst_176 = arith.constant 5.000000e-01 : f32
    %339 = vector.broadcast %cst_176 : f32 to vector<8x128xf32>
    %340 = arith.mulf %339, %338 : vector<8x128xf32>
    %341 = math.tanh %340 : vector<8x128xf32>
    %cst_177 = arith.constant 5.000000e-01 : f32
    %342 = vector.broadcast %cst_177 : f32 to vector<8x128xf32>
    %343 = arith.mulf %342, %341 : vector<8x128xf32>
    %cst_178 = arith.constant 5.000000e-01 : f32
    %344 = vector.broadcast %cst_178 : f32 to vector<8x128xf32>
    %345 = arith.addf %343, %344 : vector<8x128xf32>
    %c0_179 = arith.constant 0 : index
    %c0_180 = arith.constant 0 : index
    %346 = vector.load %arg11[%c0_179, %c0_180] : memref<8x128xf32, #tpu.memory_space<vmem>>, vector<8x128xf32>
    %347 = arith.mulf %335, %346 : vector<8x128xf32>
    %348 = arith.mulf %327, %337 : vector<8x128xf32>
    %349 = arith.addf %347, %348 : vector<8x128xf32>
    %350 = math.tanh %349 : vector<8x128xf32>
    %351 = arith.mulf %345, %350 : vector<8x128xf32>
    %352 = arith.truncf %351 : vector<8x128xf32> to vector<8x128xbf16>
    %c0_181 = arith.constant 0 : index
    %c0_182 = arith.constant 0 : index
    %353 = vector.load %arg11[%c0_181, %c0_182] : memref<8x128xf32, #tpu.memory_space<vmem>>, vector<8x128xf32>
    tpu.vector_store %arg11[%c0_181, %c0_182], %349 {strides = array<i32>} : memref<8x128xf32, #tpu.memory_space<vmem>>, vector<8x128xf32>,
    %c0_183 = arith.constant 0 : index
    %c0_184 = arith.constant 0 : index
    %354 = vector.load %arg10[%c0_183, %c0_184] : memref<8x128xbf16, #tpu.memory_space<vmem>>, vector<8x128xbf16>
    tpu.vector_store %arg10[%c0_183, %c0_184], %352 {strides = array<i32>} : memref<8x128xbf16, #tpu.memory_space<vmem>>, vector<8x128xbf16>,
    %c8_i32_185 = arith.constant 8 : i32
    %c0_i32_186 = arith.constant 0 : i32
    %355 = arith.cmpi eq, %arg1, %c0_i32_186 : i32
    %356 = arith.extui %355 : i1 to i32
    %c0_i32_187 = arith.constant 0 : i32
    %357 = arith.cmpi ne, %356, %c0_i32_187 : i32
    scf.if %357 {
      %c0_188 = arith.constant 0 : index
      %c0_189 = arith.constant 0 : index
      %358 = vector.load %arg10[%c0_188, %c0_189] : memref<8x128xbf16, #tpu.memory_space<vmem>>, vector<8x128xbf16>
      %c0_190 = arith.constant 0 : index
      %c0_191 = arith.constant 0 : index
      %359 = vector.load %arg6[%c0_190, %c0_191] : memref<128x128xbf16, #tpu.memory_space<vmem>>, vector<128x128xbf16>
      %cst_192 = arith.constant dense<0.000000e+00> : vector<8x128xf32>
      %360 = tpu.matmul %358, %359, %cst_192 {dimension_numbers = #tpu.dot_dimension_numbers<[1], [0], [0], [1], [0, 0, 1, 1], [], []>} : vector<8x128xbf16>, vector<128x128xbf16>, vector<8x128xf32> -> vector<8x128xf32>
      %c0_193 = arith.constant 0 : index
      %c0_194 = arith.constant 0 : index
      %361 = vector.load %arg7[%c0_193, %c0_194] : memref<1x128xf32, #tpu.memory_space<vmem>>, vector<1x128xf32>
      %362 = vector.broadcast %361 : vector<1x128xf32> to vector<8x128xf32>
      %363 = arith.addf %360, %362 : vector<8x128xf32>
      %c0_195 = arith.constant 0 : index
      %c0_196 = arith.constant 0 : index
      %c0_197 = arith.constant 0 : index
      %364 = vector.load %arg8[%c0_195, %c0_196, %c0_197] : memref<1x8x128xf32, #tpu.memory_space<vmem>>, vector<1x8x128xf32>
      %365 = vector.shape_cast %364 : vector<1x8x128xf32> to vector<8x128xf32>
      %366 = vector.shape_cast %363 : vector<8x128xf32> to vector<1x8x128xf32>
      tpu.vector_store %arg8[%c0_195, %c0_196, %c0_197], %366 {strides = array<i32>} : memref<1x8x128xf32, #tpu.memory_space<vmem>>, vector<1x8x128xf32>,
    } else {
    }
    return
  }
  func.func @transform_0(%arg0: i32, %arg1: i32) -> (i32, i32, i32) {
    %c0_i32 = arith.constant 0 : i32
    %c0_i32_0 = arith.constant 0 : i32
    return %arg0, %arg1, %c0_i32 : i32, i32, i32
  }
  func.func @transform_1(%arg0: i32, %arg1: i32) -> (i32, i32) {
    %c0_i32 = arith.constant 0 : i32
    %c0_i32_0 = arith.constant 0 : i32
    %c0_i32_1 = arith.constant 0 : i32
    return %c0_i32, %c0_i32_0 : i32, i32
  }
  func.func @transform_2(%arg0: i32, %arg1: i32) -> (i32, i32) {
    %c0_i32 = arith.constant 0 : i32
    %c0_i32_0 = arith.constant 0 : i32
    %c0_i32_1 = arith.constant 0 : i32
    return %c0_i32, %c0_i32_0 : i32, i32
  }
  func.func @transform_3(%arg0: i32, %arg1: i32) -> (i32, i32) {
    %c0_i32 = arith.constant 0 : i32
    %c0_i32_0 = arith.constant 0 : i32
    %c0_i32_1 = arith.constant 0 : i32
    return %c0_i32, %c0_i32_0 : i32, i32
  }
  func.func @transform_4(%arg0: i32, %arg1: i32) -> (i32, i32) {
    %c0_i32 = arith.constant 0 : i32
    %c0_i32_0 = arith.constant 0 : i32
    %c0_i32_1 = arith.constant 0 : i32
    return %c0_i32, %c0_i32_0 : i32, i32
  }
  func.func @transform_5(%arg0: i32, %arg1: i32) -> (i32, i32) {
    %c0_i32 = arith.constant 0 : i32
    %c0_i32_0 = arith.constant 0 : i32
    %c0_i32_1 = arith.constant 0 : i32
    return %c0_i32, %c0_i32_0 : i32, i32
  }
  func.func @transform_6(%arg0: i32, %arg1: i32) -> (i32, i32, i32) {
    %c0_i32 = arith.constant 0 : i32
    %c0_i32_0 = arith.constant 0 : i32
    %c0_i32_1 = arith.constant 0 : i32
    return %arg0, %c0_i32, %c0_i32_0 : i32, i32, i32
  }
}

</mosaic_0001>

<llo_original>
// kernel: _lambda_.2
$region0: #{_lambda_.2}
  #allocation0 [shape = 'u32[]', space=smem, size = 0x4, offset = 0x4, fixed_abs, tag = 'smem constant byte address 0x4 - core index']
  #allocation1 [shape = 'u32[144,128]{1,0:T(1,128)}', space=vmem, size = 0x12000, scoped, tag = 'internal scratch']
  #allocation2 [shape = 'f32[64,512]{1,0:T(8,128)}', space=vmem, size = 0x20000, scoped, tag = 'scratch operand']
  #allocation3 [shape = 'bf16[8,128]{1,0:T(8,128)(2,1)}', space=vmem, size = 0x800, scoped, tag = 'scratch operand']
  #allocation4 [shape = 'f32[8,128]{1,0:T(8,128)}', space=vmem, size = 0x1000, scoped, tag = 'scratch operand']
  %s0 = inlined_call_operand.hbm [shape: bf16[1,64,8], index: 0, kind: input, shape index: {}]
  %s1 = inlined_call_operand.hbm [shape: bf16[8,512], index: 1, kind: input, shape index: {}]
  %s2 = inlined_call_operand.hbm [shape: bf16[128,512], index: 2, kind: input, shape index: {}]
  %s3 = inlined_call_operand.hbm [shape: f32[1,512], index: 3, kind: input, shape index: {}]
  %s4 = inlined_call_operand.hbm [shape: bf16[1,64,128], index: 4, kind: output, shape index: {}]
  %s5 = sld [smem:[#allocation0]]
  $region46: #{_lambda_.2} parent=0
    _
  %s7 = ssub.s32 1, %s5
  %s8 = scalar_select 0, %s7, %s5
  $region1: #{_lambda_.2} parent=0
    #allocation5 [shape = 'u8[16384]{0}', space=vmem, size = 0x4000, scoped, tag = 'input window, operand 0, single buffered']
    #allocation6 [shape = 's32[1]{0}', space=sflag, size = 0x4, scoped, tag = 'scoped memory for _lambda_.2']
    #allocation7 [shape = 's32[1]{0}', space=sflag, size = 0x4, scoped, tag = 'scoped memory for _lambda_.2']
    #allocation8 [shape = 'u8[8192]{0}', space=vmem, size = 0x2000, scoped, tag = 'input window, operand 1, single buffered']
    #allocation9 [shape = 's32[1]{0}', space=sflag, size = 0x4, scoped, tag = 'scoped memory for _lambda_.2']
    #allocation10 [shape = 'u8[131072]{0}', space=vmem, size = 0x20000, scoped, tag = 'input window, operand 2, single buffered']
    #allocation11 [shape = 'u8[2048]{0}', space=vmem, size = 0x800, scoped, tag = 'input window, operand 3, single buffered']
    #allocation12 [shape = 's32[1]{0}', space=sflag, size = 0x4, scoped, tag = 'scoped memory for _lambda_.2']
    #allocation13 [shape = 'u8[16384]{0}', space=vmem, size = 0x4000, scoped, tag = 'output window, operand 0, single buffered']
    %9 = vsyncpa [#allocation6], 0
    %10 = vsyncpa [#allocation9], 0
    %11 = vsyncpa [#allocation12], 0
    %12 = vsyncpa [#allocation7], 0
    // Predicated region
    $region2: #{_lambda_.2} parent=1 // pred_check
      _
    $region3: #{_lambda_.2} parent=1 // pred_check_branch
      %14 = sbr.rel (0) target = $region5
    $region4: #{_lambda_.2} parent=1 // pred_region
      %s16 = ssub.s32 512, 512
      %17 = vsyncadd [#allocation6], %s16
      %s18 = sshll.u32 [#allocation5], 4
      %s19 = int_to_ptr.vmem [resolvable:$true] %s18
      %24 = dma.hbm_to_vmem [thread:$0]  %s0, 512, %s19, [#allocation6], 64, 64, 4
    $region5: #{_lambda_.2} parent=1 // pred_fallthru
      _
    // Predicated region
    $region6: #{_lambda_.2} parent=1 // pred_check
      _
    $region7: #{_lambda_.2} parent=1 // pred_check_branch
      %26 = sbr.rel (0) target = $region9
    $region8: #{_lambda_.2} parent=1 // pred_region
      %s28 = ssub.s32 256, 256
      %29 = vsyncadd [#allocation9], %s28
      %s31 = sshll.u32 [#allocation8], 4
      %s32 = int_to_ptr.vmem [resolvable:$true] %s31
      %34 = dma.hbm_to_vmem [thread:$0]  %s1, 256, %s32, [#allocation9]
    $region9: #{_lambda_.2} parent=1 // pred_fallthru
      _
    // Predicated region
    $region10: #{_lambda_.2} parent=1 // pred_check
      _
    $region11: #{_lambda_.2} parent=1 // pred_check_branch
      %36 = sbr.rel (0) target = $region13
    $region12: #{_lambda_.2} parent=1 // pred_region
      %s38 = ssub.s32 4096, 4096
      %39 = vsyncadd [#allocation9], %s38
      %s40 = sshll.u32 [#allocation10], 4
      %s41 = int_to_ptr.vmem [resolvable:$true] %s40
      %46 = dma.hbm_to_vmem [thread:$0]  %s2, 4096, %s41, [#allocation9], 256, 256, 16
    $region13: #{_lambda_.2} parent=1 // pred_fallthru
      _
    // Predicated region
    $region14: #{_lambda_.2} parent=1 // pred_check
      _
    $region15: #{_lambda_.2} parent=1 // pred_check_branch
      %48 = sbr.rel (0) target = $region17
    $region16: #{_lambda_.2} parent=1 // pred_region
      %s50 = ssub.s32 64, 64
      %51 = vsyncadd [#allocation12], %s50
      %s53 = sshll.u32 [#allocation11], 4
      %s54 = int_to_ptr.vmem [resolvable:$true] %s53
      %56 = dma.hbm_to_vmem [thread:$0]  %s3, 64, %s54, [#allocation12]
    $region17: #{_lambda_.2} parent=1 // pred_fallthru
      _
    // Predicated region
    $region18: #{_lambda_.2} parent=1 // pred_check
      _
    $region19: #{_lambda_.2} parent=1 // pred_check_branch
      %58 = sbr.rel (0) target = $region21
    $region20: #{_lambda_.2} parent=1 // pred_region
      %59 = dma.done [#allocation6], 512
    $region21: #{_lambda_.2} parent=1 // pred_fallthru
      _
    // Predicated region
    $region22: #{_lambda_.2} parent=1 // pred_check
      _
    $region23: #{_lambda_.2} parent=1 // pred_check_branch
      %61 = sbr.rel (0) target = $region25
    $region24: #{_lambda_.2} parent=1 // pred_region
      %62 = dma.done [#allocation9], 256
    $region25: #{_lambda_.2} parent=1 // pred_fallthru
      _
    // Predicated region
    $region26: #{_lambda_.2} parent=1 // pred_check
      _
    $region27: #{_lambda_.2} parent=1 // pred_check_branch
      %64 = sbr.rel (0) target = $region29
    $region28: #{_lambda_.2} parent=1 // pred_region
      %65 = dma.done [#allocation9], 4096
    $region29: #{_lambda_.2} parent=1 // pred_fallthru
      _
    // Predicated region
    $region30: #{_lambda_.2} parent=1 // pred_check
      _
    $region31: #{_lambda_.2} parent=1 // pred_check_branch
      %67 = sbr.rel (0) target = $region33
    $region32: #{_lambda_.2} parent=1 // pred_region
      %68 = dma.done [#allocation12], 64
    $region33: #{_lambda_.2} parent=1 // pred_fallthru
      _
    %p70 = scmp.eq.s32.totalorder 0, 0
    // Predicated region
    $region34: #{_lambda_.2} parent=1 // pred_check
      %p71 = pneg %p70
    $region35: #{_lambda_.2} parent=1 // pred_check_branch
      %73 = sbr.rel (%p71) target = $region37
    $region36: #{_lambda_.2} parent=1 // pred_region
      %74 = vst [vmem:[#allocation3] sm:$0xf] 0
      %75 = vst [vmem:[#allocation4] sm:$0xff] 0.0
    $region37: #{_lambda_.2} parent=1 // pred_fallthru
      _
    %v76 = vld [vmem:[#allocation5] sm:$0xf]
    %v77 = vld [vmem:[#allocation5 + $0x4] sm:$0xf]
    %v78 = vld [vmem:[#allocation5 + $0x8] sm:$0xf]
    %v79 = vld [vmem:[#allocation5 + $0xc] sm:$0xf]
    %v80 = vld [vmem:[#allocation5 + $0x10] sm:$0xf]
    %v81 = vld [vmem:[#allocation5 + $0x14] sm:$0xf]
    %v82 = vld [vmem:[#allocation5 + $0x18] sm:$0xf]
    %v83 = vld [vmem:[#allocation5 + $0x1c] sm:$0xf]
    %v84 = vld [vmem:[#allocation8] sm:$0xff]
    %v85 = vld [vmem:[#allocation8 + $0x8] sm:$0xff]
    %v86 = vld [vmem:[#allocation11] sm:$0xf]
    %v88 = vlaneseq
    %v89 = vshrl.u32 %v88, 7
    %v90 = vsub.s32 0, %v89
    %v91 = vrot.slane %v86, %v90
    %v92 = vlaneseq
    %v93 = vshrl.u32 %v92, 7
    %v94 = vsub.s32 1, %v93
    %v95 = vrot.slane %v86, %v94
    %v96 = vlaneseq
    %v97 = vshrl.u32 %v96, 7
    %v98 = vsub.s32 2, %v97
    %v99 = vrot.slane %v86, %v98
    %v100 = vlaneseq
    %v101 = vshrl.u32 %v100, 7
    %v102 = vsub.s32 3, %v101
    %v103 = vrot.slane %v86, %v102
    %v116 = vunpack.c.l.b16 %v76
    %v117 = vunpack.c.l.b16 %v77
    %v118 = vunpack.c.l.b16 %v78
    %v119 = vunpack.c.l.b16 %v79
    %v120 = vunpack.c.l.b16 %v80
    %v121 = vunpack.c.l.b16 %v81
    %v122 = vunpack.c.l.b16 %v82
    %v123 = vunpack.c.l.b16 %v83
    %v124 = vpack.c.b16 %v117, %v116
    %v125 = vpack.c.b16 %v119, %v118
    %v126 = vpack.c.b16 %v121, %v120
    %v127 = vpack.c.b16 %v123, %v122
    %v130 = vunpack.c.l.b16 %v84
    %v131 = vunpack.c.h.b16 %v84
    %v132 = vunpack.c.l.b16 %v85
    %v133 = vunpack.c.h.b16 %v85
    %v134 = vpack.c.b16 %v130, %v130
    %v135 = vpack.c.b16 %v131, %v131
    %v136 = vpack.c.b16 %v132, %v132
    %v137 = vpack.c.b16 %v133, %v133
    %vm138 = vcmask 64512
    %v140 = vsel %vm138, %v124, 0
    %v143 = vsel %vm138, %v125, 0
    %v146 = vsel %vm138, %v126, 0
    %v149 = vsel %vm138, %v127, 0
    %vm151 = vcmask 1043456
    %v153 = vsel %vm151, %v134, 0
    %v156 = vsel %vm151, %v135, 0
    %v159 = vsel %vm151, %v136, 0
    %v162 = vsel %vm151, %v137, 0
    %164 = vmatprep.subr.bf16.mxu0 %v156
    %165 = vmatpush1.bf16.msra.mxu0 %v153
    %166 = vmatprep.subr.bf16.mxu0 0
    %167 = vmatpush1.bf16.msra.mxu0 0
    %168 = vmatprep.subr.bf16.mxu0 0
    %169 = vmatpush1.bf16.msra.mxu0 0
    %170 = vmatprep.subr.bf16.mxu0 0
    %171 = vmatpush1.bf16.msra.mxu0 0
    %172 = vmatprep.subr.bf16.mxu0 0
    %173 = vmatpush1.bf16.msra.mxu0 0
    %174 = vmatprep.subr.bf16.mxu0 0
    %175 = vmatpush1.bf16.msra.mxu0 0
    %176 = vmatprep.subr.bf16.mxu0 0
    %177 = vmatpush1.bf16.msra.mxu0 0
    %178 = vmatprep.subr.bf16.mxu0 0
    %179 = vmatpush1.bf16.msra.mxu0 0
    %180 = vmatprep.subr.bf16.mxu0 0
    %181 = vmatpush1.bf16.msra.mxu0 0
    %182 = vmatprep.subr.bf16.mxu0 0
    %183 = vmatpush1.bf16.msra.mxu0 0
    %184 = vmatprep.subr.bf16.mxu0 0
    %185 = vmatpush1.bf16.msra.mxu0 0
    %186 = vmatprep.subr.bf16.mxu0 0
    %187 = vmatpush1.bf16.msra.mxu0 0
    %188 = vmatprep.subr.bf16.mxu0 0
    %189 = vmatpush1.bf16.msra.mxu0 0
    %190 = vmatprep.subr.bf16.mxu0 0
    %191 = vmatpush1.bf16.msra.mxu0 0
    %192 = vmatprep.subr.bf16.mxu0 0
    %193 = vmatpush1.bf16.msra.mxu0 0
    %194 = vmatprep.subr.bf16.mxu0 0
    %195 = vmatpush1.bf16.msra.mxu0 0
    %196 = vmatprep.mubr.bf16.mxu0 0
    %197 = vmatmul.mubr.bf16.gmra.mrb[0].mxu0 %v140
    %v198 = vpop.f32.mrb[0].mxu0
    %v199 = vadd.f32 %v91, %v198
    %v200 = vpop.f32.mrb[0].mxu0
    %v201 = vadd.f32 %v95, %v200
    %v202 = vpop.f32.mrb[0].mxu0
    %v203 = vadd.f32 %v91, %v202
    %v204 = vpop.f32.mrb[0].mxu0
    %v205 = vadd.f32 %v95, %v204
    %206 = vmatprep.mubr.bf16.mxu0 0
    %207 = vmatmul.mubr.bf16.gmra.mrb[0].mxu0 %v143
    %v208 = vpop.f32.mrb[0].mxu0
    %v209 = vadd.f32 %v91, %v208
    %v210 = vpop.f32.mrb[0].mxu0
    %v211 = vadd.f32 %v95, %v210
    %v212 = vpop.f32.mrb[0].mxu0
    %v213 = vadd.f32 %v91, %v212
    %v214 = vpop.f32.mrb[0].mxu0
    %v215 = vadd.f32 %v95, %v214
    %216 = vmatprep.mubr.bf16.mxu0 0
    %217 = vmatmul.mubr.bf16.gmra.mrb[0].mxu0 %v146
    %v218 = vpop.f32.mrb[0].mxu0
    %v219 = vadd.f32 %v91, %v218
    %v220 = vpop.f32.mrb[0].mxu0
    %v221 = vadd.f32 %v95, %v220
    %v222 = vpop.f32.mrb[0].mxu0
    %v223 = vadd.f32 %v91, %v222
    %v224 = vpop.f32.mrb[0].mxu0
    %v225 = vadd.f32 %v95, %v224
    %226 = vmatprep.mubr.bf16.mxu0 0
    %227 = vmatmul.mubr.bf16.gmra.mrb[0].mxu0 %v149
    %v228 = vpop.f32.mrb[0].mxu0
    %v229 = vadd.f32 %v91, %v228
    %v230 = vpop.f32.mrb[0].mxu0
    %v231 = vadd.f32 %v95, %v230
    %v232 = vpop.f32.mrb[0].mxu0
    %v233 = vadd.f32 %v91, %v232
    %v234 = vpop.f32.mrb[0].mxu0
    %v235 = vadd.f32 %v95, %v234
    %236 = vdwg.mxu0
    %237 = vmatprep.subr.bf16.mxu0 %v162
    %238 = vmatpush1.bf16.msra.mxu0 %v159
    %239 = vmatprep.subr.bf16.mxu0 0
    %240 = vmatpush1.bf16.msra.mxu0 0
    %241 = vmatprep.subr.bf16.mxu0 0
    %242 = vmatpush1.bf16.msra.mxu0 0
    %243 = vmatprep.subr.bf16.mxu0 0
    %244 = vmatpush1.bf16.msra.mxu0 0
    %245 = vmatprep.subr.bf16.mxu0 0
    %246 = vmatpush1.bf16.msra.mxu0 0
    %247 = vmatprep.subr.bf16.mxu0 0
    %248 = vmatpush1.bf16.msra.mxu0 0
    %249 = vmatprep.subr.bf16.mxu0 0
    %250 = vmatpush1.bf16.msra.mxu0 0
    %251 = vmatprep.subr.bf16.mxu0 0
    %252 = vmatpush1.bf16.msra.mxu0 0
    %253 = vmatprep.subr.bf16.mxu0 0
    %254 = vmatpush1.bf16.msra.mxu0 0
    %255 = vmatprep.subr.bf16.mxu0 0
    %256 = vmatpush1.bf16.msra.mxu0 0
    %257 = vmatprep.subr.bf16.mxu0 0
    %258 = vmatpush1.bf16.msra.mxu0 0
    %259 = vmatprep.subr.bf16.mxu0 0
    %260 = vmatpush1.bf16.msra.mxu0 0
    %261 = vmatprep.subr.bf16.mxu0 0
    %262 = vmatpush1.bf16.msra.mxu0 0
    %263 = vmatprep.subr.bf16.mxu0 0
    %264 = vmatpush1.bf16.msra.mxu0 0
    %265 = vmatprep.subr.bf16.mxu0 0
    %266 = vmatpush1.bf16.msra.mxu0 0
    %267 = vmatprep.subr.bf16.mxu0 0
    %268 = vmatpush1.bf16.msra.mxu0 0
    %269 = vmatprep.mubr.bf16.mxu0 0
    %270 = vmatmul.mubr.bf16.gmra.mrb[0].mxu0 %v140
    %v271 = vpop.f32.mrb[0].mxu0
    %v272 = vadd.f32 %v99, %v271
    %v273 = vpop.f32.mrb[0].mxu0
    %v274 = vadd.f32 %v103, %v273
    %v275 = vpop.f32.mrb[0].mxu0
    %v276 = vadd.f32 %v99, %v275
    %v277 = vpop.f32.mrb[0].mxu0
    %v278 = vadd.f32 %v103, %v277
    %279 = vmatprep.mubr.bf16.mxu0 0
    %280 = vmatmul.mubr.bf16.gmra.mrb[0].mxu0 %v143
    %v281 = vpop.f32.mrb[0].mxu0
    %v282 = vadd.f32 %v99, %v281
    %v283 = vpop.f32.mrb[0].mxu0
    %v284 = vadd.f32 %v103, %v283
    %v285 = vpop.f32.mrb[0].mxu0
    %v286 = vadd.f32 %v99, %v285
    %v287 = vpop.f32.mrb[0].mxu0
    %v288 = vadd.f32 %v103, %v287
    %289 = vmatprep.mubr.bf16.mxu0 0
    %290 = vmatmul.mubr.bf16.gmra.mrb[0].mxu0 %v146
    %v291 = vpop.f32.mrb[0].mxu0
    %v292 = vadd.f32 %v99, %v291
    %v293 = vpop.f32.mrb[0].mxu0
    %v294 = vadd.f32 %v103, %v293
    %v295 = vpop.f32.mrb[0].mxu0
    %v296 = vadd.f32 %v99, %v295
    %v297 = vpop.f32.mrb[0].mxu0
    %v298 = vadd.f32 %v103, %v297
    %299 = vmatprep.mubr.bf16.mxu0 0
    %300 = vmatmul.mubr.bf16.gmra.mrb[0].mxu0 %v149
    %v301 = vpop.f32.mrb[0].mxu0
    %v302 = vadd.f32 %v99, %v301
    %v303 = vpop.f32.mrb[0].mxu0
    %v304 = vadd.f32 %v103, %v303
    %v305 = vpop.f32.mrb[0].mxu0
    %v306 = vadd.f32 %v99, %v305
    %v307 = vpop.f32.mrb[0].mxu0
    %v308 = vadd.f32 %v103, %v307
    %309 = vdwg.mxu0
    %310 = vst [vmem:[#allocation2] sm:$0xff] %v199
    %311 = vst [vmem:[#allocation2 + $0x8] sm:$0xff] %v201
    %312 = vst [vmem:[#allocation2 + $0x10] sm:$0xff] %v272
    %313 = vst [vmem:[#allocation2 + $0x18] sm:$0xff] %v274
    %314 = vst [vmem:[#allocation2 + $0x20] sm:$0xff] %v203
    %315 = vst [vmem:[#allocation2 + $0x28] sm:$0xff] %v205
    %316 = vst [vmem:[#allocation2 + $0x30] sm:$0xff] %v276
    %317 = vst [vmem:[#allocation2 + $0x38] sm:$0xff] %v278
    %318 = vst [vmem:[#allocation2 + $0x40] sm:$0xff] %v209
    %319 = vst [vmem:[#allocation2 + $0x48] sm:$0xff] %v211
    %320 = vst [vmem:[#allocation2 + $0x50] sm:$0xff] %v282
    %321 = vst [vmem:[#allocation2 + $0x58] sm:$0xff] %v284
    %322 = vst [vmem:[#allocation2 + $0x60] sm:$0xff] %v213
    %323 = vst [vmem:[#allocation2 + $0x68] sm:$0xff] %v215
    %324 = vst [vmem:[#allocation2 + $0x70] sm:$0xff] %v286
    %325 = vst [vmem:[#allocation2 + $0x78] sm:$0xff] %v288
    %326 = vst [vmem:[#allocation2 + $0x80] sm:$0xff] %v219
    %327 = vst [vmem:[#allocation2 + $0x88] sm:$0xff] %v221
    %328 = vst [vmem:[#allocation2 + $0x90] sm:$0xff] %v292
    %329 = vst [vmem:[#allocation2 + $0x98] sm:$0xff] %v294
    %330 = vst [vmem:[#allocation2 + $0xa0] sm:$0xff] %v223
    %331 = vst [vmem:[#allocation2 + $0xa8] sm:$0xff] %v225
    %332 = vst [vmem:[#allocation2 + $0xb0] sm:$0xff] %v296
    %333 = vst [vmem:[#allocation2 + $0xb8] sm:$0xff] %v298
    %334 = vst [vmem:[#allocation2 + $0xc0] sm:$0xff] %v229
    %335 = vst [vmem:[#allocation2 + $0xc8] sm:$0xff] %v231
    %336 = vst [vmem:[#allocation2 + $0xd0] sm:$0xff] %v302
    %337 = vst [vmem:[#allocation2 + $0xd8] sm:$0xff] %v304
    %338 = vst [vmem:[#allocation2 + $0xe0] sm:$0xff] %v233
    %339 = vst [vmem:[#allocation2 + $0xe8] sm:$0xff] %v235
    %340 = vst [vmem:[#allocation2 + $0xf0] sm:$0xff] %v306
    %341 = vst [vmem:[#allocation2 + $0xf8] sm:$0xff] %v308
    %s342 = smul.u32 0, 4
    %s343 = smul.addr %s342, 8
    %s344 = scalar_lea.vmem [#allocation2], %s343
    %v345 = vld [vmem:[%s344] sm:$0xff]
    %v346 = vld [vmem:[%s344 + $0x8] sm:$0xff]
    %v347 = vld [vmem:[%s344 + $0x10] sm:$0xff]
    %v348 = vld [vmem:[%s344 + $0x18] sm:$0xff]
    %v349 = vld [vmem:[#allocation3] sm:$0xf]
    %v350 = vld [vmem:[#allocation10] sm:$0xff]
    %v351 = vld [vmem:[#allocation10 + $0x8] sm:$0xff]
    %v352 = vld [vmem:[#allocation10 + $0x10] sm:$0xff]
    %v353 = vld [vmem:[#allocation10 + $0x18] sm:$0xff]
    %v354 = vld [vmem:[#allocation10 + $0x20] sm:$0xff]
    %v355 = vld [vmem:[#allocation10 + $0x28] sm:$0xff]
    %v356 = vld [vmem:[#allocation10 + $0x30] sm:$0xff]
    %v357 = vld [vmem:[#allocation10 + $0x38] sm:$0xff]
    %v358 = vld [vmem:[#allocation10 + $0x40] sm:$0xff]
    %v359 = vld [vmem:[#allocation10 + $0x48] sm:$0xff]
    %v360 = vld [vmem:[#allocation10 + $0x50] sm:$0xff]
    %v361 = vld [vmem:[#allocation10 + $0x58] sm:$0xff]
    %v362 = vld [vmem:[#allocation10 + $0x60] sm:$0xff]
    %v363 = vld [vmem:[#allocation10 + $0x68] sm:$0xff]
    %v364 = vld [vmem:[#allocation10 + $0x70] sm:$0xff]
    %v365 = vld [vmem:[#allocation10 + $0x78] sm:$0xff]
    %v366 = vld [vmem:[#allocation10 + $0x80] sm:$0xff]
    %v367 = vld [vmem:[#allocation10 + $0x88] sm:$0xff]
    %v368 = vld [vmem:[#allocation10 + $0x90] sm:$0xff]
    %v369 = vld [vmem:[#allocation10 + $0x98] sm:$0xff]
    %v370 = vld [vmem:[#allocation10 + $0xa0] sm:$0xff]
    %v371 = vld [vmem:[#allocation10 + $0xa8] sm:$0xff]
    %v372 = vld [vmem:[#allocation10 + $0xb0] sm:$0xff]
    %v373 = vld [vmem:[#allocation10 + $0xb8] sm:$0xff]
    %v374 = vld [vmem:[#allocation10 + $0xc0] sm:$0xff]
    %v375 = vld [vmem:[#allocation10 + $0xc8] sm:$0xff]
    %v376 = vld [vmem:[#allocation10 + $0xd0] sm:$0xff]
    %v377 = vld [vmem:[#allocation10 + $0xd8] sm:$0xff]
    %v378 = vld [vmem:[#allocation10 + $0xe0] sm:$0xff]
    %v379 = vld [vmem:[#allocation10 + $0xe8] sm:$0xff]
    %v380 = vld [vmem:[#allocation10 + $0xf0] sm:$0xff]
    %v381 = vld [vmem:[#allocation10 + $0xf8] sm:$0xff]
    %v414 = vunpack.c.l.b16 %v350
    %v415 = vunpack.c.h.b16 %v350
    %v416 = vunpack.c.l.b16 %v351
    %v417 = vunpack.c.h.b16 %v351
    %v418 = vunpack.c.l.b16 %v352
    %v419 = vunpack.c.h.b16 %v352
    %v420 = vunpack.c.l.b16 %v353
    %v421 = vunpack.c.h.b16 %v353
    %v422 = vunpack.c.l.b16 %v354
    %v423 = vunpack.c.h.b16 %v354
    %v424 = vunpack.c.l.b16 %v355
    %v425 = vunpack.c.h.b16 %v355
    %v426 = vunpack.c.l.b16 %v356
    %v427 = vunpack.c.h.b16 %v356
    %v428 = vunpack.c.l.b16 %v357
    %v429 = vunpack.c.h.b16 %v357
    %v430 = vunpack.c.l.b16 %v358
    %v431 = vunpack.c.h.b16 %v358
    %v432 = vunpack.c.l.b16 %v359
    %v433 = vunpack.c.h.b16 %v359
    %v434 = vunpack.c.l.b16 %v360
    %v435 = vunpack.c.h.b16 %v360
    %v436 = vunpack.c.l.b16 %v361
    %v437 = vunpack.c.h.b16 %v361
    %v438 = vunpack.c.l.b16 %v362
    %v439 = vunpack.c.h.b16 %v362
    %v440 = vunpack.c.l.b16 %v363
    %v441 = vunpack.c.h.b16 %v363
    %v442 = vunpack.c.l.b16 %v364
    %v443 = vunpack.c.h.b16 %v364
    %v444 = vunpack.c.l.b16 %v365
    %v445 = vunpack.c.h.b16 %v365
    %v446 = vunpack.c.l.b16 %v366
    %v447 = vunpack.c.h.b16 %v366
    %v448 = vunpack.c.l.b16 %v367
    %v449 = vunpack.c.h.b16 %v367
    %v450 = vunpack.c.l.b16 %v368
    %v451 = vunpack.c.h.b16 %v368
    %v452 = vunpack.c.l.b16 %v369
    %v453 = vunpack.c.h.b16 %v369
    %v454 = vunpack.c.l.b16 %v370
    %v455 = vunpack.c.h.b16 %v370
    %v456 = vunpack.c.l.b16 %v371
    %v457 = vunpack.c.h.b16 %v371
    %v458 = vunpack.c.l.b16 %v372
    %v459 = vunpack.c.h.b16 %v372
    %v460 = vunpack.c.l.b16 %v373
    %v461 = vunpack.c.h.b16 %v373
    %v462 = vunpack.c.l.b16 %v374
    %v463 = vunpack.c.h.b16 %v374
    %v464 = vunpack.c.l.b16 %v375
    %v465 = vunpack.c.h.b16 %v375
    %v466 = vunpack.c.l.b16 %v376
    %v467 = vunpack.c.h.b16 %v376
    %v468 = vunpack.c.l.b16 %v377
    %v469 = vunpack.c.h.b16 %v377
    %v470 = vunpack.c.l.b16 %v378
    %v471 = vunpack.c.h.b16 %v378
    %v472 = vunpack.c.l.b16 %v379
    %v473 = vunpack.c.h.b16 %v379
    %v474 = vunpack.c.l.b16 %v380
    %v475 = vunpack.c.h.b16 %v380
    %v476 = vunpack.c.l.b16 %v381
    %v477 = vunpack.c.h.b16 %v381
    %v478 = vpack.c.b16 %v418, %v414
    %v479 = vpack.c.b16 %v419, %v415
    %v480 = vpack.c.b16 %v420, %v416
    %v481 = vpack.c.b16 %v421, %v417
    %v482 = vpack.c.b16 %v426, %v422
    %v483 = vpack.c.b16 %v427, %v423
    %v484 = vpack.c.b16 %v428, %v424
    %v485 = vpack.c.b16 %v429, %v425
    %v486 = vpack.c.b16 %v434, %v430
    %v487 = vpack.c.b16 %v435, %v431
    %v488 = vpack.c.b16 %v436, %v432
    %v489 = vpack.c.b16 %v437, %v433
    %v490 = vpack.c.b16 %v442, %v438
    %v491 = vpack.c.b16 %v443, %v439
    %v492 = vpack.c.b16 %v444, %v440
    %v493 = vpack.c.b16 %v445, %v441
    %v494 = vpack.c.b16 %v450, %v446
    %v495 = vpack.c.b16 %v451, %v447
    %v496 = vpack.c.b16 %v452, %v448
    %v497 = vpack.c.b16 %v453, %v449
    %v498 = vpack.c.b16 %v458, %v454
    %v499 = vpack.c.b16 %v459, %v455
    %v500 = vpack.c.b16 %v460, %v456
    %v501 = vpack.c.b16 %v461, %v457
    %v502 = vpack.c.b16 %v466, %v462
    %v503 = vpack.c.b16 %v467, %v463
    %v504 = vpack.c.b16 %v468, %v464
    %v505 = vpack.c.b16 %v469, %v465
    %v506 = vpack.c.b16 %v474, %v470
    %v507 = vpack.c.b16 %v475, %v471
    %v508 = vpack.c.b16 %v476, %v472
    %v509 = vpack.c.b16 %v477, %v473
    %542 = vmatprep.subr.bf16.mxu0 %v479
    %543 = vmatpush1.bf16.msra.mxu0 %v478
    %544 = vmatprep.subr.bf16.mxu0 %v483
    %545 = vmatpush1.bf16.msra.mxu0 %v482
    %546 = vmatprep.subr.bf16.mxu0 %v487
    %547 = vmatpush1.bf16.msra.mxu0 %v486
    %548 = vmatprep.subr.bf16.mxu0 %v491
    %549 = vmatpush1.bf16.msra.mxu0 %v490
    %550 = vmatprep.subr.bf16.mxu0 %v495
    %551 = vmatpush1.bf16.msra.mxu0 %v494
    %552 = vmatprep.subr.bf16.mxu0 %v499
    %553 = vmatpush1.bf16.msra.mxu0 %v498
    %554 = vmatprep.subr.bf16.mxu0 %v503
    %555 = vmatpush1.bf16.msra.mxu0 %v502
    %556 = vmatprep.subr.bf16.mxu0 %v507
    %557 = vmatpush1.bf16.msra.mxu0 %v506
    %558 = vmatprep.subr.bf16.mxu0 0
    %559 = vmatpush1.bf16.msra.mxu0 0
    %560 = vmatprep.subr.bf16.mxu0 0
    %561 = vmatpush1.bf16.msra.mxu0 0
    %562 = vmatprep.subr.bf16.mxu0 0
    %563 = vmatpush1.bf16.msra.mxu0 0
    %564 = vmatprep.subr.bf16.mxu0 0
    %565 = vmatpush1.bf16.msra.mxu0 0
    %566 = vmatprep.subr.bf16.mxu0 0
    %567 = vmatpush1.bf16.msra.mxu0 0
    %568 = vmatprep.subr.bf16.mxu0 0
    %569 = vmatpush1.bf16.msra.mxu0 0
    %570 = vmatprep.subr.bf16.mxu0 0
    %571 = vmatpush1.bf16.msra.mxu0 0
    %572 = vmatprep.subr.bf16.mxu0 0
    %573 = vmatpush1.bf16.msra.mxu0 0
    %574 = vmatprep.mubr.bf16.mxu0 0
    %575 = vmatmul.mubr.bf16.gmra.mrb[0].mxu0 %v349
    %v576 = vpop.f32.mrb[0].mxu0
    %v577 = vadd.f32 0.0, %v576
    %v578 = vpop.f32.mrb[0].mxu0
    %v579 = vadd.f32 0.0, %v578
    %v580 = vpop.f32.mrb[0].mxu0
    %v581 = vpop.f32.mrb[0].mxu0
    %582 = vdwg.mxu0
    %583 = vmatprep.subr.bf16.mxu0 %v481
    %584 = vmatpush1.bf16.msra.mxu0 %v480
    %585 = vmatprep.subr.bf16.mxu0 %v485
    %586 = vmatpush1.bf16.msra.mxu0 %v484
    %587 = vmatprep.subr.bf16.mxu0 %v489
    %588 = vmatpush1.bf16.msra.mxu0 %v488
    %589 = vmatprep.subr.bf16.mxu0 %v493
    %590 = vmatpush1.bf16.msra.mxu0 %v492
    %591 = vmatprep.subr.bf16.mxu0 %v497
    %592 = vmatpush1.bf16.msra.mxu0 %v496
    %593 = vmatprep.subr.bf16.mxu0 %v501
    %594 = vmatpush1.bf16.msra.mxu0 %v500
    %595 = vmatprep.subr.bf16.mxu0 %v505
    %596 = vmatpush1.bf16.msra.mxu0 %v504
    %597 = vmatprep.subr.bf16.mxu0 %v509
    %598 = vmatpush1.bf16.msra.mxu0 %v508
    %599 = vmatprep.subr.bf16.mxu0 0
    %600 = vmatpush1.bf16.msra.mxu0 0
    %601 = vmatprep.subr.bf16.mxu0 0
    %602 = vmatpush1.bf16.msra.mxu0 0
    %603 = vmatprep.subr.bf16.mxu0 0
    %604 = vmatpush1.bf16.msra.mxu0 0
    %605 = vmatprep.subr.bf16.mxu0 0
    %606 = vmatpush1.bf16.msra.mxu0 0
    %607 = vmatprep.subr.bf16.mxu0 0
    %608 = vmatpush1.bf16.msra.mxu0 0
    %609 = vmatprep.subr.bf16.mxu0 0
    %610 = vmatpush1.bf16.msra.mxu0 0
    %611 = vmatprep.subr.bf16.mxu0 0
    %612 = vmatpush1.bf16.msra.mxu0 0
    %613 = vmatprep.subr.bf16.mxu0 0
    %614 = vmatpush1.bf16.msra.mxu0 0
    %615 = vmatprep.mubr.bf16.mxu0 0
    %616 = vmatmul.mubr.bf16.gmra.mrb[0].mxu0 %v349
    %v617 = vpop.f32.mrb[0].mxu0
    %v618 = vadd.f32 0.0, %v617
    %v619 = vpop.f32.mrb[0].mxu0
    %v620 = vadd.f32 0.0, %v619
    %v621 = vpop.f32.mrb[0].mxu0
    %v622 = vpop.f32.mrb[0].mxu0
    %623 = vdwg.mxu0
    %v624 = vadd.f32 %v345, %v577
    %v625 = vadd.f32 %v346, %v579
    %v626 = vadd.f32 %v347, %v618
    %v627 = vadd.f32 %v348, %v620
    %v628 = vmul.f32 %v624, 0.5
    %v629 = vtanh.pop %v628
    %v630 = vmul.f32 %v629, 0.5
    %v631 = vadd.f32 %v630, 0.5
    %v632 = vmul.f32 %v625, 0.5
    %v633 = vtanh.pop %v632
    %v634 = vmul.f32 %v633, 0.5
    %v635 = vadd.f32 %v634, 0.5
    %v636 = vtanh.pop %v626
    %v637 = vmul.f32 %v627, 0.5
    %v638 = vtanh.pop %v637
    %v639 = vmul.f32 %v638, 0.5
    %v640 = vadd.f32 %v639, 0.5
    %v641 = vld [vmem:[#allocation4] sm:$0xff]
    %v642 = vmul.f32 %v635, %v641
    %v643 = vmul.f32 %v631, %v636
    %v644 = vadd.f32 %v642, %v643
    %v645 = vtanh.pop %v644
    %v646 = vmul.f32 %v640, %v645
    %v647 = vpack.c.bf16 %v646, %v646
    %648 = vst [vmem:[#allocation4] sm:$0xff] %v644
    %649 = vst [vmem:[#allocation3] sm:$0xf] %v647
    %650 = vst [vmem:[#allocation13] sm:$0xf] %v647
    %s651 = smul.u32 1, 4
    %s652 = smul.addr %s651, 8
    %s653 = scalar_lea.vmem [#allocation2], %s652
    %v654 = vld [vmem:[%s653] sm:$0xff]
    %v655 = vld [vmem:[%s653 + $0x8] sm:$0xff]
    %v656 = vld [vmem:[%s653 + $0x10] sm:$0xff]
    %v657 = vld [vmem:[%s653 + $0x18] sm:$0xff]
    %v658 = vld [vmem:[#allocation3] sm:$0xf]
    %v659 = vld [vmem:[#allocation10] sm:$0xff]
    %v660 = vld [vmem:[#allocation10 + $0x8] sm:$0xff]
    %v661 = vld [vmem:[#allocation10 + $0x10] sm:$0xff]
    %v662 = vld [vmem:[#allocation10 + $0x18] sm:$0xff]
    %v663 = vld [vmem:[#allocation10 + $0x20] sm:$0xff]
    %v664 = vld [vmem:[#allocation10 + $0x28] sm:$0xff]
    %v665 = vld [vmem:[#allocation10 + $0x30] sm:$0xff]
    %v666 = vld [vmem:[#allocation10 + $0x38] sm:$0xff]
    %v667 = vld [vmem:[#allocation10 + $0x40] sm:$0xff]
    %v668 = vld [vmem:[#allocation10 + $0x48] sm:$0xff]
    %v669 = vld [vmem:[#allocation10 + $0x50] sm:$0xff]
    %v670 = vld [vmem:[#allocation10 + $0x58] sm:$0xff]
    %v671 = vld [vmem:[#allocation10 + $0x60] sm:$0xff]
    %v672 = vld [vmem:[#allocation10 + $0x68] sm:$0xff]
    %v673 = vld [vmem:[#allocation10 + $0x70] sm:$0xff]
    %v674 = vld [vmem:[#allocation10 + $0x78] sm:$0xff]
    %v675 = vld [vmem:[#allocation10 + $0x80] sm:$0xff]
    %v676 = vld [vmem:[#allocation10 + $0x88] sm:$0xff]
    %v677 = vld [vmem:[#allocation10 + $0x90] sm:$0xff]
    %v678 = vld [vmem:[#allocation10 + $0x98] sm:$0xff]
    %v679 = vld [vmem:[#allocation10 + $0xa0] sm:$0xff]
    %v680 = vld [vmem:[#allocation10 + $0xa8] sm:$0xff]
    %v681 = vld [vmem:[#allocation10 + $0xb0] sm:$0xff]
    %v682 = vld [vmem:[#allocation10 + $0xb8] sm:$0xff]
    %v683 = vld [vmem:[#allocation10 + $0xc0] sm:$0xff]
    %v684 = vld [vmem:[#allocation10 + $0xc8] sm:$0xff]
    %v685 = vld [vmem:[#allocation10 + $0xd0] sm:$0xff]
    %v686 = vld [vmem:[#allocation10 + $0xd8] sm:$0xff]
    %v687 = vld [vmem:[#allocation10 + $0xe0] sm:$0xff]
    %v688 = vld [vmem:[#allocation10 + $0xe8] sm:$0xff]
    %v689 = vld [vmem:[#allocation10 + $0xf0] sm:$0xff]
    %v690 = vld [vmem:[#allocation10 + $0xf8] sm:$0xff]
    %v723 = vunpack.c.l.b16 %v659
    %v724 = vunpack.c.h.b16 %v659
    %v725 = vunpack.c.l.b16 %v660
    %v726 = vunpack.c.h.b16 %v660
    %v727 = vunpack.c.l.b16 %v661
    %v728 = vunpack.c.h.b16 %v661
    %v729 = vunpack.c.l.b16 %v662
    %v730 = vunpack.c.h.b16 %v662
    %v731 = vunpack.c.l.b16 %v663
    %v732 = vunpack.c.h.b16 %v663
    %v733 = vunpack.c.l.b16 %v664
    %v734 = vunpack.c.h.b16 %v664
    %v735 = vunpack.c.l.b16 %v665
    %v736 = vunpack.c.h.b16 %v665
    %v737 = vunpack.c.l.b16 %v666
    %v738 = vunpack.c.h.b16 %v666
    %v739 = vunpack.c.l.b16 %v667
    %v740 = vunpack.c.h.b16 %v667
    %v741 = vunpack.c.l.b16 %v668
    %v742 = vunpack.c.h.b16 %v668
    %v743 = vunpack.c.l.b16 %v669
    %v744 = vunpack.c.h.b16 %v669
    %v745 = vunpack.c.l.b16 %v670
    %v746 = vunpack.c.h.b16 %v670
    %v747 = vunpack.c.l.b16 %v671
    %v748 = vunpack.c.h.b16 %v671
    %v749 = vunpack.c.l.b16 %v672
    %v750 = vunpack.c.h.b16 %v672
    %v751 = vunpack.c.l.b16 %v673
    %v752 = vunpack.c.h.b16 %v673
    %v753 = vunpack.c.l.b16 %v674
    %v754 = vunpack.c.h.b16 %v674
    %v755 = vunpack.c.l.b16 %v675
    %v756 = vunpack.c.h.b16 %v675
    %v757 = vunpack.c.l.b16 %v676
    %v758 = vunpack.c.h.b16 %v676
    %v759 = vunpack.c.l.b16 %v677
    %v760 = vunpack.c.h.b16 %v677
    %v761 = vunpack.c.l.b16 %v678
    %v762 = vunpack.c.h.b16 %v678
    %v763 = vunpack.c.l.b16 %v679
    %v764 = vunpack.c.h.b16 %v679
    %v765 = vunpack.c.l.b16 %v680
    %v766 = vunpack.c.h.b16 %v680
    %v767 = vunpack.c.l.b16 %v681
    %v768 = vunpack.c.h.b16 %v681
    %v769 = vunpack.c.l.b16 %v682
    %v770 = vunpack.c.h.b16 %v682
    %v771 = vunpack.c.l.b16 %v683
    %v772 = vunpack.c.h.b16 %v683
    %v773 = vunpack.c.l.b16 %v684
    %v774 = vunpack.c.h.b16 %v684
    %v775 = vunpack.c.l.b16 %v685
    %v776 = vunpack.c.h.b16 %v685
    %v777 = vunpack.c.l.b16 %v686
    %v778 = vunpack.c.h.b16 %v686
    %v779 = vunpack.c.l.b16 %v687
    %v780 = vunpack.c.h.b16 %v687
    %v781 = vunpack.c.l.b16 %v688
    %v782 = vunpack.c.h.b16 %v688
    %v783 = vunpack.c.l.b16 %v689
    %v784 = vunpack.c.h.b16 %v689
    %v785 = vunpack.c.l.b16 %v690
    %v786 = vunpack.c.h.b16 %v690
    %v787 = vpack.c.b16 %v727, %v723
    %v788 = vpack.c.b16 %v728, %v724
    %v789 = vpack.c.b16 %v729, %v725
    %v790 = vpack.c.b16 %v730, %v726
    %v791 = vpack.c.b16 %v735, %v731
    %v792 = vpack.c.b16 %v736, %v732
    %v793 = vpack.c.b16 %v737, %v733
    %v794 = vpack.c.b16 %v738, %v734
    %v795 = vpack.c.b16 %v743, %v739
    %v796 = vpack.c.b16 %v744, %v740
    %v797 = vpack.c.b16 %v745, %v741
    %v798 = vpack.c.b16 %v746, %v742
    %v799 = vpack.c.b16 %v751, %v747
    %v800 = vpack.c.b16 %v752, %v748
    %v801 = vpack.c.b16 %v753, %v749
    %v802 = vpack.c.b16 %v754, %v750
    %v803 = vpack.c.b16 %v759, %v755
    %v804 = vpack.c.b16 %v760, %v756
    %v805 = vpack.c.b16 %v761, %v757
    %v806 = vpack.c.b16 %v762, %v758
    %v807 = vpack.c.b16 %v767, %v763
    %v808 = vpack.c.b16 %v768, %v764
    %v809 = vpack.c.b16 %v769, %v765
    %v810 = vpack.c.b16 %v770, %v766
    %v811 = vpack.c.b16 %v775, %v771
    %v812 = vpack.c.b16 %v776, %v772
    %v813 = vpack.c.b16 %v777, %v773
    %v814 = vpack.c.b16 %v778, %v774
    %v815 = vpack.c.b16 %v783, %v779
    %v816 = vpack.c.b16 %v784, %v780
    %v817 = vpack.c.b16 %v785, %v781
    %v818 = vpack.c.b16 %v786, %v782
    %851 = vmatprep.subr.bf16.mxu0 %v788
    %852 = vmatpush1.bf16.msra.mxu0 %v787
    %853 = vmatprep.subr.bf16.mxu0 %v792
    %854 = vmatpush1.bf16.msra.mxu0 %v791
    %855 = vmatprep.subr.bf16.mxu0 %v796
    %856 = vmatpush1.bf16.msra.mxu0 %v795
    %857 = vmatprep.subr.bf16.mxu0 %v800
    %858 = vmatpush1.bf16.msra.mxu0 %v799
    %859 = vmatprep.subr.bf16.mxu0 %v804
    %860 = vmatpush1.bf16.msra.mxu0 %v803
    %861 = vmatprep.subr.bf16.mxu0 %v808
    %862 = vmatpush1.bf16.msra.mxu0 %v807
    %863 = vmatprep.subr.bf16.mxu0 %v812
    %864 = vmatpush1.bf16.msra.mxu0 %v811
    %865 = vmatprep.subr.bf16.mxu0 %v816
    %866 = vmatpush1.bf16.msra.mxu0 %v815
    %867 = vmatprep.subr.bf16.mxu0 0
    %868 = vmatpush1.bf16.msra.mxu0 0
    %869 = vmatprep.subr.bf16.mxu0 0
    %870 = vmatpush1.bf16.msra.mxu0 0
    %871 = vmatprep.subr.bf16.mxu0 0
    %872 = vmatpush1.bf16.msra.mxu0 0
    %873 = vmatprep.subr.bf16.mxu0 0
    %874 = vmatpush1.bf16.msra.mxu0 0
    %875 = vmatprep.subr.bf16.mxu0 0
    %876 = vmatpush1.bf16.msra.mxu0 0
    %877 = vmatprep.subr.bf16.mxu0 0
    %878 = vmatpush1.bf16.msra.mxu0 0
    %879 = vmatprep.subr.bf16.mxu0 0
    %880 = vmatpush1.bf16.msra.mxu0 0
    %881 = vmatprep.subr.bf16.mxu0 0
    %882 = vmatpush1.bf16.msra.mxu0 0
    %883 = vmatprep.mubr.bf16.mxu0 0
    %884 = vmatmul.mubr.bf16.gmra.mrb[0].mxu0 %v658
    %v885 = vpop.f32.mrb[0].mxu0
    %v886 = vadd.f32 0.0, %v885
    %v887 = vpop.f32.mrb[0].mxu0
    %v888 = vadd.f32 0.0, %v887
    %v889 = vpop.f32.mrb[0].mxu0
    %v890 = vpop.f32.mrb[0].mxu0
    %891 = vdwg.mxu0
    %892 = vmatprep.subr.bf16.mxu0 %v790
    %893 = vmatpush1.bf16.msra.mxu0 %v789
    %894 = vmatprep.subr.bf16.mxu0 %v794
    %895 = vmatpush1.bf16.msra.mxu0 %v793
    %896 = vmatprep.subr.bf16.mxu0 %v798
    %897 = vmatpush1.bf16.msra.mxu0 %v797
    %898 = vmatprep.subr.bf16.mxu0 %v802
    %899 = vmatpush1.bf16.msra.mxu0 %v801
    %900 = vmatprep.subr.bf16.mxu0 %v806
    %901 = vmatpush1.bf16.msra.mxu0 %v805
    %902 = vmatprep.subr.bf16.mxu0 %v810
    %903 = vmatpush1.bf16.msra.mxu0 %v809
    %904 = vmatprep.subr.bf16.mxu0 %v814
    %905 = vmatpush1.bf16.msra.mxu0 %v813
    %906 = vmatprep.subr.bf16.mxu0 %v818
    %907 = vmatpush1.bf16.msra.mxu0 %v817
    %908 = vmatprep.subr.bf16.mxu0 0
    %909 = vmatpush1.bf16.msra.mxu0 0
    %910 = vmatprep.subr.bf16.mxu0 0
    %911 = vmatpush1.bf16.msra.mxu0 0
    %912 = vmatprep.subr.bf16.mxu0 0
    %913 = vmatpush1.bf16.msra.mxu0 0
    %914 = vmatprep.subr.bf16.mxu0 0
    %915 = vmatpush1.bf16.msra.mxu0 0
    %916 = vmatprep.subr.bf16.mxu0 0
    %917 = vmatpush1.bf16.msra.mxu0 0
    %918 = vmatprep.subr.bf16.mxu0 0
    %919 = vmatpush1.bf16.msra.mxu0 0
    %920 = vmatprep.subr.bf16.mxu0 0
    %921 = vmatpush1.bf16.msra.mxu0 0
    %922 = vmatprep.subr.bf16.mxu0 0
    %923 = vmatpush1.bf16.msra.mxu0 0
    %924 = vmatprep.mubr.bf16.mxu0 0
    %925 = vmatmul.mubr.bf16.gmra.mrb[0].mxu0 %v658
    %v926 = vpop.f32.mrb[0].mxu0
    %v927 = vadd.f32 0.0, %v926
    %v928 = vpop.f32.mrb[0].mxu0
    %v929 = vadd.f32 0.0, %v928
    %v930 = vpop.f32.mrb[0].mxu0
    %v931 = vpop.f32.mrb[0].mxu0
    %932 = vdwg.mxu0
    %v933 = vadd.f32 %v654, %v886
    %v934 = vadd.f32 %v655, %v888
    %v935 = vadd.f32 %v656, %v927
    %v936 = vadd.f32 %v657, %v929
    %v937 = vmul.f32 %v933, 0.5
    %v938 = vtanh.pop %v937
    %v939 = vmul.f32 %v938, 0.5
    %v940 = vadd.f32 %v939, 0.5
    %v941 = vmul.f32 %v934, 0.5
    %v942 = vtanh.pop %v941
    %v943 = vmul.f32 %v942, 0.5
    %v944 = vadd.f32 %v943, 0.5
    %v945 = vtanh.pop %v935
    %v946 = vmul.f32 %v936, 0.5
    %v947 = vtanh.pop %v946
    %v948 = vmul.f32 %v947, 0.5
    %v949 = vadd.f32 %v948, 0.5
    %v950 = vld [vmem:[#allocation4] sm:$0xff]
    %v951 = vmul.f32 %v944, %v950
    %v952 = vmul.f32 %v940, %v945
    %v953 = vadd.f32 %v951, %v952
    %v954 = vtanh.pop %v953
    %v955 = vmul.f32 %v949, %v954
    %v956 = vpack.c.bf16 %v955, %v955
    %957 = vst [vmem:[#allocation4] sm:$0xff] %v953
    %958 = vst [vmem:[#allocation3] sm:$0xf] %v956
    %s959 = scalar_lea.vmem [#allocation13], 4
    %960 = vst [vmem:[%s959] sm:$0xf] %v956
    %s961 = smul.u32 2, 4
    %s962 = smul.addr %s961, 8
    %s963 = scalar_lea.vmem [#allocation2], %s962
    %v964 = vld [vmem:[%s963] sm:$0xff]
    %v965 = vld [vmem:[%s963 + $0x8] sm:$0xff]
    %v966 = vld [vmem:[%s963 + $0x10] sm:$0xff]
    %v967 = vld [vmem:[%s963 + $0x18] sm:$0xff]
    %v968 = vld [vmem:[#allocation3] sm:$0xf]
    %v969 = vld [vmem:[#allocation10] sm:$0xff]
    %v970 = vld [vmem:[#allocation10 + $0x8] sm:$0xff]
    %v971 = vld [vmem:[#allocation10 + $0x10] sm:$0xff]
    %v972 = vld [vmem:[#allocation10 + $0x18] sm:$0xff]
    %v973 = vld [vmem:[#allocation10 + $0x20] sm:$0xff]
    %v974 = vld [vmem:[#allocation10 + $0x28] sm:$0xff]
    %v975 = vld [vmem:[#allocation10 + $0x30] sm:$0xff]
    %v976 = vld [vmem:[#allocation10 + $0x38] sm:$0xff]
    %v977 = vld [vmem:[#allocation10 + $0x40] sm:$0xff]
    %v978 = vld [vmem:[#allocation10 + $0x48] sm:$0xff]
    %v979 = vld [vmem:[#allocation10 + $0x50] sm:$0xff]
    %v980 = vld [vmem:[#allocation10 + $0x58] sm:$0xff]
    %v981 = vld [vmem:[#allocation10 + $0x60] sm:$0xff]
    %v982 = vld [vmem:[#allocation10 + $0x68] sm:$0xff]
    %v983 = vld [vmem:[#allocation10 + $0x70] sm:$0xff]
    %v984 = vld [vmem:[#allocation10 + $0x78] sm:$0xff]
    %v985 = vld [vmem:[#allocation10 + $0x80] sm:$0xff]
    %v986 = vld [vmem:[#allocation10 + $0x88] sm:$0xff]
    %v987 = vld [vmem:[#allocation10 + $0x90] sm:$0xff]
    %v988 = vld [vmem:[#allocation10 + $0x98] sm:$0xff]
    %v989 = vld [vmem:[#allocation10 + $0xa0] sm:$0xff]
    %v990 = vld [vmem:[#allocation10 + $0xa8] sm:$0xff]
    %v991 = vld [vmem:[#allocation10 + $0xb0] sm:$0xff]
    %v992 = vld [vmem:[#allocation10 + $0xb8] sm:$0xff]
    %v993 = vld [vmem:[#allocation10 + $0xc0] sm:$0xff]
    %v994 = vld [vmem:[#allocation10 + $0xc8] sm:$0xff]
    %v995 = vld [vmem:[#allocation10 + $0xd0] sm:$0xff]
    %v996 = vld [vmem:[#allocation10 + $0xd8] sm:$0xff]
    %v997 = vld [vmem:[#allocation10 + $0xe0] sm:$0xff]
    %v998 = vld [vmem:[#allocation10 + $0xe8] sm:$0xff]
    %v999 = vld [vmem:[#allocation10 + $0xf0] sm:$0xff]
    %v1000 = vld [vmem:[#allocation10 + $0xf8] sm:$0xff]
    %v1033 = vunpack.c.l.b16 %v969
    %v1034 = vunpack.c.h.b16 %v969
    %v1035 = vunpack.c.l.b16 %v970
    %v1036 = vunpack.c.h.b16 %v970
    %v1037 = vunpack.c.l.b16 %v971
    %v1038 = vunpack.c.h.b16 %v971
    %v1039 = vunpack.c.l.b16 %v972
    %v1040 = vunpack.c.h.b16 %v972
    %v1041 = vunpack.c.l.b16 %v973
    %v1042 = vunpack.c.h.b16 %v973
    %v1043 = vunpack.c.l.b16 %v974
    %v1044 = vunpack.c.h.b16 %v974
    %v1045 = vunpack.c.l.b16 %v975
    %v1046 = vunpack.c.h.b16 %v975
    %v1047 = vunpack.c.l.b16 %v976
    %v1048 = vunpack.c.h.b16 %v976
    %v1049 = vunpack.c.l.b16 %v977
    %v1050 = vunpack.c.h.b16 %v977
    %v1051 = vunpack.c.l.b16 %v978
    %v1052 = vunpack.c.h.b16 %v978
    %v1053 = vunpack.c.l.b16 %v979
    %v1054 = vunpack.c.h.b16 %v979
    %v1055 = vunpack.c.l.b16 %v980
    %v1056 = vunpack.c.h.b16 %v980
    %v1057 = vunpack.c.l.b16 %v981
    %v1058 = vunpack.c.h.b16 %v981
    %v1059 = vunpack.c.l.b16 %v982
    %v1060 = vunpack.c.h.b16 %v982
    %v1061 = vunpack.c.l.b16 %v983
    %v1062 = vunpack.c.h.b16 %v983
    %v1063 = vunpack.c.l.b16 %v984
    %v1064 = vunpack.c.h.b16 %v984
    %v1065 = vunpack.c.l.b16 %v985
    %v1066 = vunpack.c.h.b16 %v985
    %v1067 = vunpack.c.l.b16 %v986
    %v1068 = vunpack.c.h.b16 %v986
    %v1069 = vunpack.c.l.b16 %v987
    %v1070 = vunpack.c.h.b16 %v987
    %v1071 = vunpack.c.l.b16 %v988
    %v1072 = vunpack.c.h.b16 %v988
    %v1073 = vunpack.c.l.b16 %v989
    %v1074 = vunpack.c.h.b16 %v989
    %v1075 = vunpack.c.l.b16 %v990
    %v1076 = vunpack.c.h.b16 %v990
    %v1077 = vunpack.c.l.b16 %v991
    %v1078 = vunpack.c.h.b16 %v991
    %v1079 = vunpack.c.l.b16 %v992
    %v1080 = vunpack.c.h.b16 %v992
    %v1081 = vunpack.c.l.b16 %v993
    %v1082 = vunpack.c.h.b16 %v993
    %v1083 = vunpack.c.l.b16 %v994
    %v1084 = vunpack.c.h.b16 %v994
    %v1085 = vunpack.c.l.b16 %v995
    %v1086 = vunpack.c.h.b16 %v995
    %v1087 = vunpack.c.l.b16 %v996
    %v1088 = vunpack.c.h.b16 %v996
    %v1089 = vunpack.c.l.b16 %v997
    %v1090 = vunpack.c.h.b16 %v997
    %v1091 = vunpack.c.l.b16 %v998
    %v1092 = vunpack.c.h.b16 %v998
    %v1093 = vunpack.c.l.b16 %v999
    %v1094 = vunpack.c.h.b16 %v999
    %v1095 = vunpack.c.l.b16 %v1000
    %v1096 = vunpack.c.h.b16 %v1000
    %v1097 = vpack.c.b16 %v1037, %v1033
    %v1098 = vpack.c.b16 %v1038, %v1034
    %v1099 = vpack.c.b16 %v1039, %v1035
    %v1100 = vpack.c.b16 %v1040, %v1036
    %v1101 = vpack.c.b16 %v1045, %v1041
    %v1102 = vpack.c.b16 %v1046, %v1042
    %v1103 = vpack.c.b16 %v1047, %v1043
    %v1104 = vpack.c.b16 %v1048, %v1044
    %v1105 = vpack.c.b16 %v1053, %v1049
    %v1106 = vpack.c.b16 %v1054, %v1050
    %v1107 = vpack.c.b16 %v1055, %v1051
    %v1108 = vpack.c.b16 %v1056, %v1052
    %v1109 = vpack.c.b16 %v1061, %v1057
    %v1110 = vpack.c.b16 %v1062, %v1058
    %v1111 = vpack.c.b16 %v1063, %v1059
    %v1112 = vpack.c.b16 %v1064, %v1060
    %v1113 = vpack.c.b16 %v1069, %v1065
    %v1114 = vpack.c.b16 %v1070, %v1066
    %v1115 = vpack.c.b16 %v1071, %v1067
    %v1116 = vpack.c.b16 %v1072, %v1068
    %v1117 = vpack.c.b16 %v1077, %v1073
    %v1118 = vpack.c.b16 %v1078, %v1074
    %v1119 = vpack.c.b16 %v1079, %v1075
    %v1120 = vpack.c.b16 %v1080, %v1076
    %v1121 = vpack.c.b16 %v1085, %v1081
    %v1122 = vpack.c.b16 %v1086, %v1082
    %v1123 = vpack.c.b16 %v1087, %v1083
    %v1124 = vpack.c.b16 %v1088, %v1084
    %v1125 = vpack.c.b16 %v1093, %v1089
    %v1126 = vpack.c.b16 %v1094, %v1090
    %v1127 = vpack.c.b16 %v1095, %v1091
    %v1128 = vpack.c.b16 %v1096, %v1092
    %1161 = vmatprep.subr.bf16.mxu0 %v1098
    %1162 = vmatpush1.bf16.msra.mxu0 %v1097
    %1163 = vmatprep.subr.bf16.mxu0 %v1102
    %1164 = vmatpush1.bf16.msra.mxu0 %v1101
    %1165 = vmatprep.subr.bf16.mxu0 %v1106
    %1166 = vmatpush1.bf16.msra.mxu0 %v1105
    %1167 = vmatprep.subr.bf16.mxu0 %v1110
    %1168 = vmatpush1.bf16.msra.mxu0 %v1109
    %1169 = vmatprep.subr.bf16.mxu0 %v1114
    %1170 = vmatpush1.bf16.msra.mxu0 %v1113
    %1171 = vmatprep.subr.bf16.mxu0 %v1118
    %1172 = vmatpush1.bf16.msra.mxu0 %v1117
    %1173 = vmatprep.subr.bf16.mxu0 %v1122
    %1174 = vmatpush1.bf16.msra.mxu0 %v1121
    %1175 = vmatprep.subr.bf16.mxu0 %v1126
    %1176 = vmatpush1.bf16.msra.mxu0 %v1125
    %1177 = vmatprep.subr.bf16.mxu0 0
    %1178 = vmatpush1.bf16.msra.mxu0 0
    %1179 = vmatprep.subr.bf16.mxu0 0
    %1180 = vmatpush1.bf16.msra.mxu0 0
    %1181 = vmatprep.subr.bf16.mxu0 0
    %1182 = vmatpush1.bf16.msra.mxu0 0
    %1183 = vmatprep.subr.bf16.mxu0 0
    %1184 = vmatpush1.bf16.msra.mxu0 0
    %1185 = vmatprep.subr.bf16.mxu0 0
    %1186 = vmatpush1.bf16.msra.mxu0 0
    %1187 = vmatprep.subr.bf16.mxu0 0
    %1188 = vmatpush1.bf16.msra.mxu0 0
    %1189 = vmatprep.subr.bf16.mxu0 0
    %1190 = vmatpush1.bf16.msra.mxu0 0
    %1191 = vmatprep.subr.bf16.mxu0 0
    %1192 = vmatpush1.bf16.msra.mxu0 0
    %1193 = vmatprep.mubr.bf16.mxu0 0
    %1194 = vmatmul.mubr.bf16.gmra.mrb[0].mxu0 %v968
    %v1195 = vpop.f32.mrb[0].mxu0
    %v1196 = vadd.f32 0.0, %v1195
    %v1197 = vpop.f32.mrb[0].mxu0
    %v1198 = vadd.f32 0.0, %v1197
    %v1199 = vpop.f32.mrb[0].mxu0
    %v1200 = vpop.f32.mrb[0].mxu0
    %1201 = vdwg.mxu0
    %1202 = vmatprep.subr.bf16.mxu0 %v1100
    %1203 = vmatpush1.bf16.msra.mxu0 %v1099
    %1204 = vmatprep.subr.bf16.mxu0 %v1104
    %1205 = vmatpush1.bf16.msra.mxu0 %v1103
    %1206 = vmatprep.subr.bf16.mxu0 %v1108
    %1207 = vmatpush1.bf16.msra.mxu0 %v1107
    %1208 = vmatprep.subr.bf16.mxu0 %v1112
    %1209 = vmatpush1.bf16.msra.mxu0 %v1111
    %1210 = vmatprep.subr.bf16.mxu0 %v1116
    %1211 = vmatpush1.bf16.msra.mxu0 %v1115
    %1212 = vmatprep.subr.bf16.mxu0 %v1120
    %1213 = vmatpush1.bf16.msra.mxu0 %v1119
    %1214 = vmatprep.subr.bf16.mxu0 %v1124
    %1215 = vmatpush1.bf16.msra.mxu0 %v1123
    %1216 = vmatprep.subr.bf16.mxu0 %v1128
    %1217 = vmatpush1.bf16.msra.mxu0 %v1127
    %1218 = vmatprep.subr.bf16.mxu0 0
    %1219 = vmatpush1.bf16.msra.mxu0 0
    %1220 = vmatprep.subr.bf16.mxu0 0
    %1221 = vmatpush1.bf16.msra.mxu0 0
    %1222 = vmatprep.subr.bf16.mxu0 0
    %1223 = vmatpush1.bf16.msra.mxu0 0
    %1224 = vmatprep.subr.bf16.mxu0 0
    %1225 = vmatpush1.bf16.msra.mxu0 0
    %1226 = vmatprep.subr.bf16.mxu0 0
    %1227 = vmatpush1.bf16.msra.mxu0 0
    %1228 = vmatprep.subr.bf16.mxu0 0
    %1229 = vmatpush1.bf16.msra.mxu0 0
    %1230 = vmatprep.subr.bf16.mxu0 0
    %1231 = vmatpush1.bf16.msra.mxu0 0
    %1232 = vmatprep.subr.bf16.mxu0 0
    %1233 = vmatpush1.bf16.msra.mxu0 0
    %1234 = vmatprep.mubr.bf16.mxu0 0
    %1235 = vmatmul.mubr.bf16.gmra.mrb[0].mxu0 %v968
    %v1236 = vpop.f32.mrb[0].mxu0
    %v1237 = vadd.f32 0.0, %v1236
    %v1238 = vpop.f32.mrb[0].mxu0
    %v1239 = vadd.f32 0.0, %v1238
    %v1240 = vpop.f32.mrb[0].mxu0
    %v1241 = vpop.f32.mrb[0].mxu0
    %1242 = vdwg.mxu0
    %v1243 = vadd.f32 %v964, %v1196
    %v1244 = vadd.f32 %v965, %v1198
    %v1245 = vadd.f32 %v966, %v1237
    %v1246 = vadd.f32 %v967, %v1239
    %v1247 = vmul.f32 %v1243, 0.5
    %v1248 = vtanh.pop %v1247
    %v1249 = vmul.f32 %v1248, 0.5
    %v1250 = vadd.f32 %v1249, 0.5
    %v1251 = vmul.f32 %v1244, 0.5
    %v1252 = vtanh.pop %v1251
    %v1253 = vmul.f32 %v1252, 0.5
    %v1254 = vadd.f32 %v1253, 0.5
    %v1255 = vtanh.pop %v1245
    %v1256 = vmul.f32 %v1246, 0.5
    %v1257 = vtanh.pop %v1256
    %v1258 = vmul.f32 %v1257, 0.5
    %v1259 = vadd.f32 %v1258, 0.5
    %v1260 = vld [vmem:[#allocation4] sm:$0xff]
    %v1261 = vmul.f32 %v1254, %v1260
    %v1262 = vmul.f32 %v1250, %v1255
    %v1263 = vadd.f32 %v1261, %v1262
    %v1264 = vtanh.pop %v1263
    %v1265 = vmul.f32 %v1259, %v1264
    %v1266 = vpack.c.bf16 %v1265, %v1265
    %1267 = vst [vmem:[#allocation4] sm:$0xff] %v1263
    %1268 = vst [vmem:[#allocation3] sm:$0xf] %v1266
    %s1269 = scalar_lea.vmem [#allocation13], 8
    %1270 = vst [vmem:[%s1269] sm:$0xf] %v1266
    %s1271 = smul.u32 3, 4
    %s1272 = smul.addr %s1271, 8
    %s1273 = scalar_lea.vmem [#allocation2], %s1272
    %v1274 = vld [vmem:[%s1273] sm:$0xff]
    %v1275 = vld [vmem:[%s1273 + $0x8] sm:$0xff]
    %v1276 = vld [vmem:[%s1273 + $0x10] sm:$0xff]
    %v1277 = vld [vmem:[%s1273 + $0x18] sm:$0xff]
    %v1278 = vld [vmem:[#allocation3] sm:$0xf]
    %v1279 = vld [vmem:[#allocation10] sm:$0xff]
    %v1280 = vld [vmem:[#allocation10 + $0x8] sm:$0xff]
    %v1281 = vld [vmem:[#allocation10 + $0x10] sm:$0xff]
    %v1282 = vld [vmem:[#allocation10 + $0x18] sm:$0xff]
    %v1283 = vld [vmem:[#allocation10 + $0x20] sm:$0xff]
    %v1284 = vld [vmem:[#allocation10 + $0x28] sm:$0xff]
    %v1285 = vld [vmem:[#allocation10 + $0x30] sm:$0xff]
    %v1286 = vld [vmem:[#allocation10 + $0x38] sm:$0xff]
    %v1287 = vld [vmem:[#allocation10 + $0x40] sm:$0xff]
    %v1288 = vld [vmem:[#allocation10 + $0x48] sm:$0xff]
    %v1289 = vld [vmem:[#allocation10 + $0x50] sm:$0xff]
    %v1290 = vld [vmem:[#allocation10 + $0x58] sm:$0xff]
    %v1291 = vld [vmem:[#allocation10 + $0x60] sm:$0xff]
    %v1292 = vld [vmem:[#allocation10 + $0x68] sm:$0xff]
    %v1293 = vld [vmem:[#allocation10 + $0x70] sm:$0xff]
    %v1294 = vld [vmem:[#allocation10 + $0x78] sm:$0xff]
    %v1295 = vld [vmem:[#allocation10 + $0x80] sm:$0xff]
    %v1296 = vld [vmem:[#allocation10 + $0x88] sm:$0xff]
    %v1297 = vld [vmem:[#allocation10 + $0x90] sm:$0xff]
    %v1298 = vld [vmem:[#allocation10 + $0x98] sm:$0xff]
    %v1299 = vld [vmem:[#allocation10 + $0xa0] sm:$0xff]
    %v1300 = vld [vmem:[#allocation10 + $0xa8] sm:$0xff]
    %v1301 = vld [vmem:[#allocation10 + $0xb0] sm:$0xff]
    %v1302 = vld [vmem:[#allocation10 + $0xb8] sm:$0xff]
    %v1303 = vld [vmem:[#allocation10 + $0xc0] sm:$0xff]
    %v1304 = vld [vmem:[#allocation10 + $0xc8] sm:$0xff]
    %v1305 = vld [vmem:[#allocation10 + $0xd0] sm:$0xff]
    %v1306 = vld [vmem:[#allocation10 + $0xd8] sm:$0xff]
    %v1307 = vld [vmem:[#allocation10 + $0xe0] sm:$0xff]
    %v1308 = vld [vmem:[#allocation10 + $0xe8] sm:$0xff]
    %v1309 = vld [vmem:[#allocation10 + $0xf0] sm:$0xff]
    %v1310 = vld [vmem:[#allocation10 + $0xf8] sm:$0xff]
    %v1343 = vunpack.c.l.b16 %v1279
    %v1344 = vunpack.c.h.b16 %v1279
    %v1345 = vunpack.c.l.b16 %v1280
    %v1346 = vunpack.c.h.b16 %v1280
    %v1347 = vunpack.c.l.b16 %v1281
    %v1348 = vunpack.c.h.b16 %v1281
    %v1349 = vunpack.c.l.b16 %v1282
    %v1350 = vunpack.c.h.b16 %v1282
    %v1351 = vunpack.c.l.b16 %v1283
    %v1352 = vunpack.c.h.b16 %v1283
    %v1353 = vunpack.c.l.b16 %v1284
    %v1354 = vunpack.c.h.b16 %v1284
    %v1355 = vunpack.c.l.b16 %v1285
    %v1356 = vunpack.c.h.b16 %v1285
    %v1357 = vunpack.c.l.b16 %v1286
    %v1358 = vunpack.c.h.b16 %v1286
    %v1359 = vunpack.c.l.b16 %v1287
    %v1360 = vunpack.c.h.b16 %v1287
    %v1361 = vunpack.c.l.b16 %v1288
    %v1362 = vunpack.c.h.b16 %v1288
    %v1363 = vunpack.c.l.b16 %v1289
    %v1364 = vunpack.c.h.b16 %v1289
    %v1365 = vunpack.c.l.b16 %v1290
    %v1366 = vunpack.c.h.b16 %v1290
    %v1367 = vunpack.c.l.b16 %v1291
    %v1368 = vunpack.c.h.b16 %v1291
    %v1369 = vunpack.c.l.b16 %v1292
    %v1370 = vunpack.c.h.b16 %v1292
    %v1371 = vunpack.c.l.b16 %v1293
    %v1372 = vunpack.c.h.b16 %v1293
    %v1373 = vunpack.c.l.b16 %v1294
    %v1374 = vunpack.c.h.b16 %v1294
    %v1375 = vunpack.c.l.b16 %v1295
    %v1376 = vunpack.c.h.b16 %v1295
    %v1377 = vunpack.c.l.b16 %v1296
    %v1378 = vunpack.c.h.b16 %v1296
    %v1379 = vunpack.c.l.b16 %v1297
    %v1380 = vunpack.c.h.b16 %v1297
    %v1381 = vunpack.c.l.b16 %v1298
    %v1382 = vunpack.c.h.b16 %v1298
    %v1383 = vunpack.c.l.b16 %v1299
    %v1384 = vunpack.c.h.b16 %v1299
    %v1385 = vunpack.c.l.b16 %v1300
    %v1386 = vunpack.c.h.b16 %v1300
    %v1387 = vunpack.c.l.b16 %v1301
    %v1388 = vunpack.c.h.b16 %v1301
    %v1389 = vunpack.c.l.b16 %v1302
    %v1390 = vunpack.c.h.b16 %v1302
    %v1391 = vunpack.c.l.b16 %v1303
    %v1392 = vunpack.c.h.b16 %v1303
    %v1393 = vunpack.c.l.b16 %v1304
    %v1394 = vunpack.c.h.b16 %v1304
    %v1395 = vunpack.c.l.b16 %v1305
    %v1396 = vunpack.c.h.b16 %v1305
    %v1397 = vunpack.c.l.b16 %v1306
    %v1398 = vunpack.c.h.b16 %v1306
    %v1399 = vunpack.c.l.b16 %v1307
    %v1400 = vunpack.c.h.b16 %v1307
    %v1401 = vunpack.c.l.b16 %v1308
    %v1402 = vunpack.c.h.b16 %v1308
    %v1403 = vunpack.c.l.b16 %v1309
    %v1404 = vunpack.c.h.b16 %v1309
    %v1405 = vunpack.c.l.b16 %v1310
    %v1406 = vunpack.c.h.b16 %v1310
    %v1407 = vpack.c.b16 %v1347, %v1343
    %v1408 = vpack.c.b16 %v1348, %v1344
    %v1409 = vpack.c.b16 %v1349, %v1345
    %v1410 = vpack.c.b16 %v1350, %v1346
    %v1411 = vpack.c.b16 %v1355, %v1351
    %v1412 = vpack.c.b16 %v1356, %v1352
    %v1413 = vpack.c.b16 %v1357, %v1353
    %v1414 = vpack.c.b16 %v1358, %v1354
    %v1415 = vpack.c.b16 %v1363, %v1359
    %v1416 = vpack.c.b16 %v1364, %v1360
    %v1417 = vpack.c.b16 %v1365, %v1361
    %v1418 = vpack.c.b16 %v1366, %v1362
    %v1419 = vpack.c.b16 %v1371, %v1367
    %v1420 = vpack.c.b16 %v1372, %v1368
    %v1421 = vpack.c.b16 %v1373, %v1369
    %v1422 = vpack.c.b16 %v1374, %v1370
    %v1423 = vpack.c.b16 %v1379, %v1375
    %v1424 = vpack.c.b16 %v1380, %v1376
    %v1425 = vpack.c.b16 %v1381, %v1377
    %v1426 = vpack.c.b16 %v1382, %v1378
    %v1427 = vpack.c.b16 %v1387, %v1383
    %v1428 = vpack.c.b16 %v1388, %v1384
    %v1429 = vpack.c.b16 %v1389, %v1385
    %v1430 = vpack.c.b16 %v1390, %v1386
    %v1431 = vpack.c.b16 %v1395, %v1391
    %v1432 = vpack.c.b16 %v1396, %v1392
    %v1433 = vpack.c.b16 %v1397, %v1393
    %v1434 = vpack.c.b16 %v1398, %v1394
    %v1435 = vpack.c.b16 %v1403, %v1399
    %v1436 = vpack.c.b16 %v1404, %v1400
    %v1437 = vpack.c.b16 %v1405, %v1401
    %v1438 = vpack.c.b16 %v1406, %v1402
    %1471 = vmatprep.subr.bf16.mxu0 %v1408
    %1472 = vmatpush1.bf16.msra.mxu0 %v1407
    %1473 = vmatprep.subr.bf16.mxu0 %v1412
    %1474 = vmatpush1.bf16.msra.mxu0 %v1411
    %1475 = vmatprep.subr.bf16.mxu0 %v1416
    %1476 = vmatpush1.bf16.msra.mxu0 %v1415
    %1477 = vmatprep.subr.bf16.mxu0 %v1420
    %1478 = vmatpush1.bf16.msra.mxu0 %v1419
    %1479 = vmatprep.subr.bf16.mxu0 %v1424
    %1480 = vmatpush1.bf16.msra.mxu0 %v1423
    %1481 = vmatprep.subr.bf16.mxu0 %v1428
    %1482 = vmatpush1.bf16.msra.mxu0 %v1427
    %1483 = vmatprep.subr.bf16.mxu0 %v1432
    %1484 = vmatpush1.bf16.msra.mxu0 %v1431
    %1485 = vmatprep.subr.bf16.mxu0 %v1436
    %1486 = vmatpush1.bf16.msra.mxu0 %v1435
    %1487 = vmatprep.subr.bf16.mxu0 0
    %1488 = vmatpush1.bf16.msra.mxu0 0
    %1489 = vmatprep.subr.bf16.mxu0 0
    %1490 = vmatpush1.bf16.msra.mxu0 0
    %1491 = vmatprep.subr.bf16.mxu0 0
    %1492 = vmatpush1.bf16.msra.mxu0 0
    %1493 = vmatprep.subr.bf16.mxu0 0
    %1494 = vmatpush1.bf16.msra.mxu0 0
    %1495 = vmatprep.subr.bf16.mxu0 0
    %1496 = vmatpush1.bf16.msra.mxu0 0
    %1497 = vmatprep.subr.bf16.mxu0 0
    %1498 = vmatpush1.bf16.msra.mxu0 0
    %1499 = vmatprep.subr.bf16.mxu0 0
    %1500 = vmatpush1.bf16.msra.mxu0 0
    %1501 = vmatprep.subr.bf16.mxu0 0
    %1502 = vmatpush1.bf16.msra.mxu0 0
    %1503 = vmatprep.mubr.bf16.mxu0 0
    %1504 = vmatmul.mubr.bf16.gmra.mrb[0].mxu0 %v1278
    %v1505 = vpop.f32.mrb[0].mxu0
    %v1506 = vadd.f32 0.0, %v1505
    %v1507 = vpop.f32.mrb[0].mxu0
    %v1508 = vadd.f32 0.0, %v1507
    %v1509 = vpop.f32.mrb[0].mxu0
    %v1510 = vpop.f32.mrb[0].mxu0
    %1511 = vdwg.mxu0
    %1512 = vmatprep.subr.bf16.mxu0 %v1410
    %1513 = vmatpush1.bf16.msra.mxu0 %v1409
    %1514 = vmatprep.subr.bf16.mxu0 %v1414
    %1515 = vmatpush1.bf16.msra.mxu0 %v1413
    %1516 = vmatprep.subr.bf16.mxu0 %v1418
    %1517 = vmatpush1.bf16.msra.mxu0 %v1417
    %1518 = vmatprep.subr.bf16.mxu0 %v1422
    %1519 = vmatpush1.bf16.msra.mxu0 %v1421
    %1520 = vmatprep.subr.bf16.mxu0 %v1426
    %1521 = vmatpush1.bf16.msra.mxu0 %v1425
    %1522 = vmatprep.subr.bf16.mxu0 %v1430
    %1523 = vmatpush1.bf16.msra.mxu0 %v1429
    %1524 = vmatprep.subr.bf16.mxu0 %v1434
    %1525 = vmatpush1.bf16.msra.mxu0 %v1433
    %1526 = vmatprep.subr.bf16.mxu0 %v1438
    %1527 = vmatpush1.bf16.msra.mxu0 %v1437
    %1528 = vmatprep.subr.bf16.mxu0 0
    %1529 = vmatpush1.bf16.msra.mxu0 0
    %1530 = vmatprep.subr.bf16.mxu0 0
    %1531 = vmatpush1.bf16.msra.mxu0 0
    %1532 = vmatprep.subr.bf16.mxu0 0
    %1533 = vmatpush1.bf16.msra.mxu0 0
    %1534 = vmatprep.subr.bf16.mxu0 0
    %1535 = vmatpush1.bf16.msra.mxu0 0
    %1536 = vmatprep.subr.bf16.mxu0 0
    %1537 = vmatpush1.bf16.msra.mxu0 0
    %1538 = vmatprep.subr.bf16.mxu0 0
    %1539 = vmatpush1.bf16.msra.mxu0 0
    %1540 = vmatprep.subr.bf16.mxu0 0
    %1541 = vmatpush1.bf16.msra.mxu0 0
    %1542 = vmatprep.subr.bf16.mxu0 0
    %1543 = vmatpush1.bf16.msra.mxu0 0
    %1544 = vmatprep.mubr.bf16.mxu0 0
    %1545 = vmatmul.mubr.bf16.gmra.mrb[0].mxu0 %v1278
    %v1546 = vpop.f32.mrb[0].mxu0
    %v1547 = vadd.f32 0.0, %v1546
    %v1548 = vpop.f32.mrb[0].mxu0
    %v1549 = vadd.f32 0.0, %v1548
    %v1550 = vpop.f32.mrb[0].mxu0
    %v1551 = vpop.f32.mrb[0].mxu0
    %1552 = vdwg.mxu0
    %v1553 = vadd.f32 %v1274, %v1506
    %v1554 = vadd.f32 %v1275, %v1508
    %v1555 = vadd.f32 %v1276, %v1547
    %v1556 = vadd.f32 %v1277, %v1549
    %v1557 = vmul.f32 %v1553, 0.5
    %v1558 = vtanh.pop %v1557
    %v1559 = vmul.f32 %v1558, 0.5
    %v1560 = vadd.f32 %v1559, 0.5
    %v1561 = vmul.f32 %v1554, 0.5
    %v1562 = vtanh.pop %v1561
    %v1563 = vmul.f32 %v1562, 0.5
    %v1564 = vadd.f32 %v1563, 0.5
    %v1565 = vtanh.pop %v1555
    %v1566 = vmul.f32 %v1556, 0.5
    %v1567 = vtanh.pop %v1566
    %v1568 = vmul.f32 %v1567, 0.5
    %v1569 = vadd.f32 %v1568, 0.5
    %v1570 = vld [vmem:[#allocation4] sm:$0xff]
    %v1571 = vmul.f32 %v1564, %v1570
    %v1572 = vmul.f32 %v1560, %v1565
    %v1573 = vadd.f32 %v1571, %v1572
    %v1574 = vtanh.pop %v1573
    %v1575 = vmul.f32 %v1569, %v1574
    %v1576 = vpack.c.bf16 %v1575, %v1575
    %1577 = vst [vmem:[#allocation4] sm:$0xff] %v1573
    %1578 = vst [vmem:[#allocation3] sm:$0xf] %v1576
    %s1579 = scalar_lea.vmem [#allocation13], 12
    %1580 = vst [vmem:[%s1579] sm:$0xf] %v1576
    %s1581 = smul.u32 4, 4
    %s1582 = smul.addr %s1581, 8
    %s1583 = scalar_lea.vmem [#allocation2], %s1582
    %v1584 = vld [vmem:[%s1583] sm:$0xff]
    %v1585 = vld [vmem:[%s1583 + $0x8] sm:$0xff]
    %v1586 = vld [vmem:[%s1583 + $0x10] sm:$0xff]
    %v1587 = vld [vmem:[%s1583 + $0x18] sm:$0xff]
    %v1588 = vld [vmem:[#allocation3] sm:$0xf]
    %v1589 = vld [vmem:[#allocation10] sm:$0xff]
    %v1590 = vld [vmem:[#allocation10 + $0x8] sm:$0xff]
    %v1591 = vld [vmem:[#allocation10 + $0x10] sm:$0xff]
    %v1592 = vld [vmem:[#allocation10 + $0x18] sm:$0xff]
    %v1593 = vld [vmem:[#allocation10 + $0x20] sm:$0xff]
    %v1594 = vld [vmem:[#allocation10 + $0x28] sm:$0xff]
    %v1595 = vld [vmem:[#allocation10 + $0x30] sm:$0xff]
    %v1596 = vld [vmem:[#allocation10 + $0x38] sm:$0xff]
    %v1597 = vld [vmem:[#allocation10 + $0x40] sm:$0xff]
    %v1598 = vld [vmem:[#allocation10 + $0x48] sm:$0xff]
    %v1599 = vld [vmem:[#allocation10 + $0x50] sm:$0xff]
    %v1600 = vld [vmem:[#allocation10 + $0x58] sm:$0xff]
    %v1601 = vld [vmem:[#allocation10 + $0x60] sm:$0xff]
    %v1602 = vld [vmem:[#allocation10 + $0x68] sm:$0xff]
    %v1603 = vld [vmem:[#allocation10 + $0x70] sm:$0xff]
    %v1604 = vld [vmem:[#allocation10 + $0x78] sm:$0xff]
    %v1605 = vld [vmem:[#allocation10 + $0x80] sm:$0xff]
    %v1606 = vld [vmem:[#allocation10 + $0x88] sm:$0xff]
    %v1607 = vld [vmem:[#allocation10 + $0x90] sm:$0xff]
    %v1608 = vld [vmem:[#allocation10 + $0x98] sm:$0xff]
    %v1609 = vld [vmem:[#allocation10 + $0xa0] sm:$0xff]
    %v1610 = vld [vmem:[#allocation10 + $0xa8] sm:$0xff]
    %v1611 = vld [vmem:[#allocation10 + $0xb0] sm:$0xff]
    %v1612 = vld [vmem:[#allocation10 + $0xb8] sm:$0xff]
    %v1613 = vld [vmem:[#allocation10 + $0xc0] sm:$0xff]
    %v1614 = vld [vmem:[#allocation10 + $0xc8] sm:$0xff]
    %v1615 = vld [vmem:[#allocation10 + $0xd0] sm:$0xff]
    %v1616 = vld [vmem:[#allocation10 + $0xd8] sm:$0xff]
    %v1617 = vld [vmem:[#allocation10 + $0xe0] sm:$0xff]
    %v1618 = vld [vmem:[#allocation10 + $0xe8] sm:$0xff]
    %v1619 = vld [vmem:[#allocation10 + $0xf0] sm:$0xff]
    %v1620 = vld [vmem:[#allocation10 + $0xf8] sm:$0xff]
    %v1653 = vunpack.c.l.b16 %v1589
    %v1654 = vunpack.c.h.b16 %v1589
    %v1655 = vunpack.c.l.b16 %v1590
    %v1656 = vunpack.c.h.b16 %v1590
    %v1657 = vunpack.c.l.b16 %v1591
    %v1658 = vunpack.c.h.b16 %v1591
    %v1659 = vunpack.c.l.b16 %v1592
    %v1660 = vunpack.c.h.b16 %v1592
    %v1661 = vunpack.c.l.b16 %v1593
    %v1662 = vunpack.c.h.b16 %v1593
    %v1663 = vunpack.c.l.b16 %v1594
    %v1664 = vunpack.c.h.b16 %v1594
    %v1665 = vunpack.c.l.b16 %v1595
    %v1666 = vunpack.c.h.b16 %v1595
    %v1667 = vunpack.c.l.b16 %v1596
    %v1668 = vunpack.c.h.b16 %v1596
    %v1669 = vunpack.c.l.b16 %v1597
    %v1670 = vunpack.c.h.b16 %v1597
    %v1671 = vunpack.c.l.b16 %v1598
    %v1672 = vunpack.c.h.b16 %v1598
    %v1673 = vunpack.c.l.b16 %v1599
    %v1674 = vunpack.c.h.b16 %v1599
    %v1675 = vunpack.c.l.b16 %v1600
    %v1676 = vunpack.c.h.b16 %v1600
    %v1677 = vunpack.c.l.b16 %v1601
    %v1678 = vunpack.c.h.b16 %v1601
    %v1679 = vunpack.c.l.b16 %v1602
    %v1680 = vunpack.c.h.b16 %v1602
    %v1681 = vunpack.c.l.b16 %v1603
    %v1682 = vunpack.c.h.b16 %v1603
    %v1683 = vunpack.c.l.b16 %v1604
    %v1684 = vunpack.c.h.b16 %v1604
    %v1685 = vunpack.c.l.b16 %v1605
    %v1686 = vunpack.c.h.b16 %v1605
    %v1687 = vunpack.c.l.b16 %v1606
    %v1688 = vunpack.c.h.b16 %v1606
    %v1689 = vunpack.c.l.b16 %v1607
    %v1690 = vunpack.c.h.b16 %v1607
    %v1691 = vunpack.c.l.b16 %v1608
    %v1692 = vunpack.c.h.b16 %v1608
    %v1693 = vunpack.c.l.b16 %v1609
    %v1694 = vunpack.c.h.b16 %v1609
    %v1695 = vunpack.c.l.b16 %v1610
    %v1696 = vunpack.c.h.b16 %v1610
    %v1697 = vunpack.c.l.b16 %v1611
    %v1698 = vunpack.c.h.b16 %v1611
    %v1699 = vunpack.c.l.b16 %v1612
    %v1700 = vunpack.c.h.b16 %v1612
    %v1701 = vunpack.c.l.b16 %v1613
    %v1702 = vunpack.c.h.b16 %v1613
    %v1703 = vunpack.c.l.b16 %v1614
    %v1704 = vunpack.c.h.b16 %v1614
    %v1705 = vunpack.c.l.b16 %v1615
    %v1706 = vunpack.c.h.b16 %v1615
    %v1707 = vunpack.c.l.b16 %v1616
    %v1708 = vunpack.c.h.b16 %v1616
    %v1709 = vunpack.c.l.b16 %v1617
    %v1710 = vunpack.c.h.b16 %v1617
    %v1711 = vunpack.c.l.b16 %v1618
    %v1712 = vunpack.c.h.b16 %v1618
    %v1713 = vunpack.c.l.b16 %v1619
    %v1714 = vunpack.c.h.b16 %v1619
    %v1715 = vunpack.c.l.b16 %v1620
    %v1716 = vunpack.c.h.b16 %v1620
    %v1717 = vpack.c.b16 %v1657, %v1653
    %v1718 = vpack.c.b16 %v1658, %v1654
    %v1719 = vpack.c.b16 %v1659, %v1655
    %v1720 = vpack.c.b16 %v1660, %v1656
    %v1721 = vpack.c.b16 %v1665, %v1661
    %v1722 = vpack.c.b16 %v1666, %v1662
    %v1723 = vpack.c.b16 %v1667, %v1663
    %v1724 = vpack.c.b16 %v1668, %v1664
    %v1725 = vpack.c.b16 %v1673, %v1669
    %v1726 = vpack.c.b16 %v1674, %v1670
    %v1727 = vpack.c.b16 %v1675, %v1671
    %v1728 = vpack.c.b16 %v1676, %v1672
    %v1729 = vpack.c.b16 %v1681, %v1677
    %v1730 = vpack.c.b16 %v1682, %v1678
    %v1731 = vpack.c.b16 %v1683, %v1679
    %v1732 = vpack.c.b16 %v1684, %v1680
    %v1733 = vpack.c.b16 %v1689, %v1685
    %v1734 = vpack.c.b16 %v1690, %v1686
    %v1735 = vpack.c.b16 %v1691, %v1687
    %v1736 = vpack.c.b16 %v1692, %v1688
    %v1737 = vpack.c.b16 %v1697, %v1693
    %v1738 = vpack.c.b16 %v1698, %v1694
    %v1739 = vpack.c.b16 %v1699, %v1695
    %v1740 = vpack.c.b16 %v1700, %v1696
    %v1741 = vpack.c.b16 %v1705, %v1701
    %v1742 = vpack.c.b16 %v1706, %v1702
    %v1743 = vpack.c.b16 %v1707, %v1703
    %v1744 = vpack.c.b16 %v1708, %v1704
    %v1745 = vpack.c.b16 %v1713, %v1709
    %v1746 = vpack.c.b16 %v1714, %v1710
    %v1747 = vpack.c.b16 %v1715, %v1711
    %v1748 = vpack.c.b16 %v1716, %v1712
    %1781 = vmatprep.subr.bf16.mxu0 %v1718
    %1782 = vmatpush1.bf16.msra.mxu0 %v1717
    %1783 = vmatprep.subr.bf16.mxu0 %v1722
    %1784 = vmatpush1.bf16.msra.mxu0 %v1721
    %1785 = vmatprep.subr.bf16.mxu0 %v1726
    %1786 = vmatpush1.bf16.msra.mxu0 %v1725
    %1787 = vmatprep.subr.bf16.mxu0 %v1730
    %1788 = vmatpush1.bf16.msra.mxu0 %v1729
    %1789 = vmatprep.subr.bf16.mxu0 %v1734
    %1790 = vmatpush1.bf16.msra.mxu0 %v1733
    %1791 = vmatprep.subr.bf16.mxu0 %v1738
    %1792 = vmatpush1.bf16.msra.mxu0 %v1737
    %1793 = vmatprep.subr.bf16.mxu0 %v1742
    %1794 = vmatpush1.bf16.msra.mxu0 %v1741
    %1795 = vmatprep.subr.bf16.mxu0 %v1746
    %1796 = vmatpush1.bf16.msra.mxu0 %v1745
    %1797 = vmatprep.subr.bf16.mxu0 0
    %1798 = vmatpush1.bf16.msra.mxu0 0
    %1799 = vmatprep.subr.bf16.mxu0 0
    %1800 = vmatpush1.bf16.msra.mxu0 0
    %1801 = vmatprep.subr.bf16.mxu0 0
    %1802 = vmatpush1.bf16.msra.mxu0 0
    %1803 = vmatprep.subr.bf16.mxu0 0
    %1804 = vmatpush1.bf16.msra.mxu0 0
    %1805 = vmatprep.subr.bf16.mxu0 0
    %1806 = vmatpush1.bf16.msra.mxu0 0
    %1807 = vmatprep.subr.bf16.mxu0 0
    %1808 = vmatpush1.bf16.msra.mxu0 0
    %1809 = vmatprep.subr.bf16.mxu0 0
    %1810 = vmatpush1.bf16.msra.mxu0 0
    %1811 = vmatprep.subr.bf16.mxu0 0
    %1812 = vmatpush1.bf16.msra.mxu0 0
    %1813 = vmatprep.mubr.bf16.mxu0 0
    %1814 = vmatmul.mubr.bf16.gmra.mrb[0].mxu0 %v1588
    %v1815 = vpop.f32.mrb[0].mxu0
    %v1816 = vadd.f32 0.0, %v1815
    %v1817 = vpop.f32.mrb[0].mxu0
    %v1818 = vadd.f32 0.0, %v1817
    %v1819 = vpop.f32.mrb[0].mxu0
    %v1820 = vpop.f32.mrb[0].mxu0
    %1821 = vdwg.mxu0
    %1822 = vmatprep.subr.bf16.mxu0 %v1720
    %1823 = vmatpush1.bf16.msra.mxu0 %v1719
    %1824 = vmatprep.subr.bf16.mxu0 %v1724
    %1825 = vmatpush1.bf16.msra.mxu0 %v1723
    %1826 = vmatprep.subr.bf16.mxu0 %v1728
    %1827 = vmatpush1.bf16.msra.mxu0 %v1727
    %1828 = vmatprep.subr.bf16.mxu0 %v1732
    %1829 = vmatpush1.bf16.msra.mxu0 %v1731
    %1830 = vmatprep.subr.bf16.mxu0 %v1736
    %1831 = vmatpush1.bf16.msra.mxu0 %v1735
    %1832 = vmatprep.subr.bf16.mxu0 %v1740
    %1833 = vmatpush1.bf16.msra.mxu0 %v1739
    %1834 = vmatprep.subr.bf16.mxu0 %v1744
    %1835 = vmatpush1.bf16.msra.mxu0 %v1743
    %1836 = vmatprep.subr.bf16.mxu0 %v1748
    %1837 = vmatpush1.bf16.msra.mxu0 %v1747
    %1838 = vmatprep.subr.bf16.mxu0 0
    %1839 = vmatpush1.bf16.msra.mxu0 0
    %1840 = vmatprep.subr.bf16.mxu0 0
    %1841 = vmatpush1.bf16.msra.mxu0 0
    %1842 = vmatprep.subr.bf16.mxu0 0
    %1843 = vmatpush1.bf16.msra.mxu0 0
    %1844 = vmatprep.subr.bf16.mxu0 0
    %1845 = vmatpush1.bf16.msra.mxu0 0
    %1846 = vmatprep.subr.bf16.mxu0 0
    %1847 = vmatpush1.bf16.msra.mxu0 0
    %1848 = vmatprep.subr.bf16.mxu0 0
    %1849 = vmatpush1.bf16.msra.mxu0 0
    %1850 = vmatprep.subr.bf16.mxu0 0
    %1851 = vmatpush1.bf16.msra.mxu0 0
    %1852 = vmatprep.subr.bf16.mxu0 0
    %1853 = vmatpush1.bf16.msra.mxu0 0
    %1854 = vmatprep.mubr.bf16.mxu0 0
    %1855 = vmatmul.mubr.bf16.gmra.mrb[0].mxu0 %v1588
    %v1856 = vpop.f32.mrb[0].mxu0
    %v1857 = vadd.f32 0.0, %v1856
    %v1858 = vpop.f32.mrb[0].mxu0
    %v1859 = vadd.f32 0.0, %v1858
    %v1860 = vpop.f32.mrb[0].mxu0
    %v1861 = vpop.f32.mrb[0].mxu0
    %1862 = vdwg.mxu0
    %v1863 = vadd.f32 %v1584, %v1816
    %v1864 = vadd.f32 %v1585, %v1818
    %v1865 = vadd.f32 %v1586, %v1857
    %v1866 = vadd.f32 %v1587, %v1859
    %v1867 = vmul.f32 %v1863, 0.5
    %v1868 = vtanh.pop %v1867
    %v1869 = vmul.f32 %v1868, 0.5
    %v1870 = vadd.f32 %v1869, 0.5
    %v1871 = vmul.f32 %v1864, 0.5
    %v1872 = vtanh.pop %v1871
    %v1873 = vmul.f32 %v1872, 0.5
    %v1874 = vadd.f32 %v1873, 0.5
    %v1875 = vtanh.pop %v1865
    %v1876 = vmul.f32 %v1866, 0.5
    %v1877 = vtanh.pop %v1876
    %v1878 = vmul.f32 %v1877, 0.5
    %v1879 = vadd.f32 %v1878, 0.5
    %v1880 = vld [vmem:[#allocation4] sm:$0xff]
    %v1881 = vmul.f32 %v1874, %v1880
    %v1882 = vmul.f32 %v1870, %v1875
    %v1883 = vadd.f32 %v1881, %v1882
    %v1884 = vtanh.pop %v1883
    %v1885 = vmul.f32 %v1879, %v1884
    %v1886 = vpack.c.bf16 %v1885, %v1885
    %1887 = vst [vmem:[#allocation4] sm:$0xff] %v1883
    %1888 = vst [vmem:[#allocation3] sm:$0xf] %v1886
    %s1889 = scalar_lea.vmem [#allocation13], 16
    %1890 = vst [vmem:[%s1889] sm:$0xf] %v1886
    %s1891 = smul.u32 5, 4
    %s1892 = smul.addr %s1891, 8
    %s1893 = scalar_lea.vmem [#allocation2], %s1892
    %v1894 = vld [vmem:[%s1893] sm:$0xff]
    %v1895 = vld [vmem:[%s1893 + $0x8] sm:$0xff]
    %v1896 = vld [vmem:[%s1893 + $0x10] sm:$0xff]
    %v1897 = vld [vmem:[%s1893 + $0x18] sm:$0xff]
    %v1898 = vld [vmem:[#allocation3] sm:$0xf]
    %v1899 = vld [vmem:[#allocation10] sm:$0xff]
    %v1900 = vld [vmem:[#allocation10 + $0x8] sm:$0xff]
    %v1901 = vld [vmem:[#allocation10 + $0x10] sm:$0xff]
    %v1902 = vld [vmem:[#allocation10 + $0x18] sm:$0xff]
    %v1903 = vld [vmem:[#allocation10 + $0x20] sm:$0xff]
    %v1904 = vld [vmem:[#allocation10 + $0x28] sm:$0xff]
    %v1905 = vld [vmem:[#allocation10 + $0x30] sm:$0xff]
    %v1906 = vld [vmem:[#allocation10 + $0x38] sm:$0xff]
    %v1907 = vld [vmem:[#allocation10 + $0x40] sm:$0xff]
    %v1908 = vld [vmem:[#allocation10 + $0x48] sm:$0xff]
    %v1909 = vld [vmem:[#allocation10 + $0x50] sm:$0xff]
    %v1910 = vld [vmem:[#allocation10 + $0x58] sm:$0xff]
    %v1911 = vld [vmem:[#allocation10 + $0x60] sm:$0xff]
    %v1912 = vld [vmem:[#allocation10 + $0x68] sm:$0xff]
    %v1913 = vld [vmem:[#allocation10 + $0x70] sm:$0xff]
    %v1914 = vld [vmem:[#allocation10 + $0x78] sm:$0xff]
    %v1915 = vld [vmem:[#allocation10 + $0x80] sm:$0xff]
    %v1916 = vld [vmem:[#allocation10 + $0x88] sm:$0xff]
    %v1917 = vld [vmem:[#allocation10 + $0x90] sm:$0xff]
    %v1918 = vld [vmem:[#allocation10 + $0x98] sm:$0xff]
    %v1919 = vld [vmem:[#allocation10 + $0xa0] sm:$0xff]
    %v1920 = vld [vmem:[#allocation10 + $0xa8] sm:$0xff]
    %v1921 = vld [vmem:[#allocation10 + $0xb0] sm:$0xff]
    %v1922 = vld [vmem:[#allocation10 + $0xb8] sm:$0xff]
    %v1923 = vld [vmem:[#allocation10 + $0xc0] sm:$0xff]
    %v1924 = vld [vmem:[#allocation10 + $0xc8] sm:$0xff]
    %v1925 = vld [vmem:[#allocation10 + $0xd0] sm:$0xff]
    %v1926 = vld [vmem:[#allocation10 + $0xd8] sm:$0xff]
    %v1927 = vld [vmem:[#allocation10 + $0xe0] sm:$0xff]
    %v1928 = vld [vmem:[#allocation10 + $0xe8] sm:$0xff]
    %v1929 = vld [vmem:[#allocation10 + $0xf0] sm:$0xff]
    %v1930 = vld [vmem:[#allocation10 + $0xf8] sm:$0xff]
    %v1963 = vunpack.c.l.b16 %v1899
    %v1964 = vunpack.c.h.b16 %v1899
    %v1965 = vunpack.c.l.b16 %v1900
    %v1966 = vunpack.c.h.b16 %v1900
    %v1967 = vunpack.c.l.b16 %v1901
    %v1968 = vunpack.c.h.b16 %v1901
    %v1969 = vunpack.c.l.b16 %v1902
    %v1970 = vunpack.c.h.b16 %v1902
    %v1971 = vunpack.c.l.b16 %v1903
    %v1972 = vunpack.c.h.b16 %v1903
    %v1973 = vunpack.c.l.b16 %v1904
    %v1974 = vunpack.c.h.b16 %v1904
    %v1975 = vunpack.c.l.b16 %v1905
    %v1976 = vunpack.c.h.b16 %v1905
    %v1977 = vunpack.c.l.b16 %v1906
    %v1978 = vunpack.c.h.b16 %v1906
    %v1979 = vunpack.c.l.b16 %v1907
    %v1980 = vunpack.c.h.b16 %v1907
    %v1981 = vunpack.c.l.b16 %v1908
    %v1982 = vunpack.c.h.b16 %v1908
    %v1983 = vunpack.c.l.b16 %v1909
    %v1984 = vunpack.c.h.b16 %v1909
    %v1985 = vunpack.c.l.b16 %v1910
    %v1986 = vunpack.c.h.b16 %v1910
    %v1987 = vunpack.c.l.b16 %v1911
    %v1988 = vunpack.c.h.b16 %v1911
    %v1989 = vunpack.c.l.b16 %v1912
    %v1990 = vunpack.c.h.b16 %v1912
    %v1991 = vunpack.c.l.b16 %v1913
    %v1992 = vunpack.c.h.b16 %v1913
    %v1993 = vunpack.c.l.b16 %v1914
    %v1994 = vunpack.c.h.b16 %v1914
    %v1995 = vunpack.c.l.b16 %v1915
    %v1996 = vunpack.c.h.b16 %v1915
    %v1997 = vunpack.c.l.b16 %v1916
    %v1998 = vunpack.c.h.b16 %v1916
    %v1999 = vunpack.c.l.b16 %v1917
    %v2000 = vunpack.c.h.b16 %v1917
    %v2001 = vunpack.c.l.b16 %v1918
    %v2002 = vunpack.c.h.b16 %v1918
    %v2003 = vunpack.c.l.b16 %v1919
    %v2004 = vunpack.c.h.b16 %v1919
    %v2005 = vunpack.c.l.b16 %v1920
    %v2006 = vunpack.c.h.b16 %v1920
    %v2007 = vunpack.c.l.b16 %v1921
    %v2008 = vunpack.c.h.b16 %v1921
    %v2009 = vunpack.c.l.b16 %v1922
    %v2010 = vunpack.c.h.b16 %v1922
    %v2011 = vunpack.c.l.b16 %v1923
    %v2012 = vunpack.c.h.b16 %v1923
    %v2013 = vunpack.c.l.b16 %v1924
    %v2014 = vunpack.c.h.b16 %v1924
    %v2015 = vunpack.c.l.b16 %v1925
    %v2016 = vunpack.c.h.b16 %v1925
    %v2017 = vunpack.c.l.b16 %v1926
    %v2018 = vunpack.c.h.b16 %v1926
    %v2019 = vunpack.c.l.b16 %v1927
    %v2020 = vunpack.c.h.b16 %v1927
    %v2021 = vunpack.c.l.b16 %v1928
    %v2022 = vunpack.c.h.b16 %v1928
    %v2023 = vunpack.c.l.b16 %v1929
    %v2024 = vunpack.c.h.b16 %v1929
    %v2025 = vunpack.c.l.b16 %v1930
    %v2026 = vunpack.c.h.b16 %v1930
    %v2027 = vpack.c.b16 %v1967, %v1963
    %v2028 = vpack.c.b16 %v1968, %v1964
    %v2029 = vpack.c.b16 %v1969, %v1965
    %v2030 = vpack.c.b16 %v1970, %v1966
    %v2031 = vpack.c.b16 %v1975, %v1971
    %v2032 = vpack.c.b16 %v1976, %v1972
    %v2033 = vpack.c.b16 %v1977, %v1973
    %v2034 = vpack.c.b16 %v1978, %v1974
    %v2035 = vpack.c.b16 %v1983, %v1979
    %v2036 = vpack.c.b16 %v1984, %v1980
    %v2037 = vpack.c.b16 %v1985, %v1981
    %v2038 = vpack.c.b16 %v1986, %v1982
    %v2039 = vpack.c.b16 %v1991, %v1987
    %v2040 = vpack.c.b16 %v1992, %v1988
    %v2041 = vpack.c.b16 %v1993, %v1989
    %v2042 = vpack.c.b16 %v1994, %v1990
    %v2043 = vpack.c.b16 %v1999, %v1995
    %v2044 = vpack.c.b16 %v2000, %v1996
    %v2045 = vpack.c.b16 %v2001, %v1997
    %v2046 = vpack.c.b16 %v2002, %v1998
    %v2047 = vpack.c.b16 %v2007, %v2003
    %v2048 = vpack.c.b16 %v2008, %v2004
    %v2049 = vpack.c.b16 %v2009, %v2005
    %v2050 = vpack.c.b16 %v2010, %v2006
    %v2051 = vpack.c.b16 %v2015, %v2011
    %v2052 = vpack.c.b16 %v2016, %v2012
    %v2053 = vpack.c.b16 %v2017, %v2013
    %v2054 = vpack.c.b16 %v2018, %v2014
    %v2055 = vpack.c.b16 %v2023, %v2019
    %v2056 = vpack.c.b16 %v2024, %v2020
    %v2057 = vpack.c.b16 %v2025, %v2021
    %v2058 = vpack.c.b16 %v2026, %v2022
    %2091 = vmatprep.subr.bf16.mxu0 %v2028
    %2092 = vmatpush1.bf16.msra.mxu0 %v2027
    %2093 = vmatprep.subr.bf16.mxu0 %v2032
    %2094 = vmatpush1.bf16.msra.mxu0 %v2031
    %2095 = vmatprep.subr.bf16.mxu0 %v2036
    %2096 = vmatpush1.bf16.msra.mxu0 %v2035
    %2097 = vmatprep.subr.bf16.mxu0 %v2040
    %2098 = vmatpush1.bf16.msra.mxu0 %v2039
    %2099 = vmatprep.subr.bf16.mxu0 %v2044
    %2100 = vmatpush1.bf16.msra.mxu0 %v2043
    %2101 = vmatprep.subr.bf16.mxu0 %v2048
    %2102 = vmatpush1.bf16.msra.mxu0 %v2047
    %2103 = vmatprep.subr.bf16.mxu0 %v2052
    %2104 = vmatpush1.bf16.msra.mxu0 %v2051
    %2105 = vmatprep.subr.bf16.mxu0 %v2056
    %2106 = vmatpush1.bf16.msra.mxu0 %v2055
    %2107 = vmatprep.subr.bf16.mxu0 0
    %2108 = vmatpush1.bf16.msra.mxu0 0
    %2109 = vmatprep.subr.bf16.mxu0 0
    %2110 = vmatpush1.bf16.msra.mxu0 0
    %2111 = vmatprep.subr.bf16.mxu0 0
    %2112 = vmatpush1.bf16.msra.mxu0 0
    %2113 = vmatprep.subr.bf16.mxu0 0
    %2114 = vmatpush1.bf16.msra.mxu0 0
    %2115 = vmatprep.subr.bf16.mxu0 0
    %2116 = vmatpush1.bf16.msra.mxu0 0
    %2117 = vmatprep.subr.bf16.mxu0 0
    %2118 = vmatpush1.bf16.msra.mxu0 0
    %2119 = vmatprep.subr.bf16.mxu0 0
    %2120 = vmatpush1.bf16.msra.mxu0 0
    %2121 = vmatprep.subr.bf16.mxu0 0
    %2122 = vmatpush1.bf16.msra.mxu0 0
    %2123 = vmatprep.mubr.bf16.mxu0 0
    %2124 = vmatmul.mubr.bf16.gmra.mrb[0].mxu0 %v1898
    %v2125 = vpop.f32.mrb[0].mxu0
    %v2126 = vadd.f32 0.0, %v2125
    %v2127 = vpop.f32.mrb[0].mxu0
    %v2128 = vadd.f32 0.0, %v2127
    %v2129 = vpop.f32.mrb[0].mxu0
    %v2130 = vpop.f32.mrb[0].mxu0
    %2131 = vdwg.mxu0
    %2132 = vmatprep.subr.bf16.mxu0 %v2030
    %2133 = vmatpush1.bf16.msra.mxu0 %v2029
    %2134 = vmatprep.subr.bf16.mxu0 %v2034
    %2135 = vmatpush1.bf16.msra.mxu0 %v2033
    %2136 = vmatprep.subr.bf16.mxu0 %v2038
    %2137 = vmatpush1.bf16.msra.mxu0 %v2037
    %2138 = vmatprep.subr.bf16.mxu0 %v2042
    %2139 = vmatpush1.bf16.msra.mxu0 %v2041
    %2140 = vmatprep.subr.bf16.mxu0 %v2046
    %2141 = vmatpush1.bf16.msra.mxu0 %v2045
    %2142 = vmatprep.subr.bf16.mxu0 %v2050
    %2143 = vmatpush1.bf16.msra.mxu0 %v2049
    %2144 = vmatprep.subr.bf16.mxu0 %v2054
    %2145 = vmatpush1.bf16.msra.mxu0 %v2053
    %2146 = vmatprep.subr.bf16.mxu0 %v2058
    %2147 = vmatpush1.bf16.msra.mxu0 %v2057
    %2148 = vmatprep.subr.bf16.mxu0 0
    %2149 = vmatpush1.bf16.msra.mxu0 0
    %2150 = vmatprep.subr.bf16.mxu0 0
    %2151 = vmatpush1.bf16.msra.mxu0 0
    %2152 = vmatprep.subr.bf16.mxu0 0
    %2153 = vmatpush1.bf16.msra.mxu0 0
    %2154 = vmatprep.subr.bf16.mxu0 0
    %2155 = vmatpush1.bf16.msra.mxu0 0
    %2156 = vmatprep.subr.bf16.mxu0 0
    %2157 = vmatpush1.bf16.msra.mxu0 0
    %2158 = vmatprep.subr.bf16.mxu0 0
    %2159 = vmatpush1.bf16.msra.mxu0 0
    %2160 = vmatprep.subr.bf16.mxu0 0
    %2161 = vmatpush1.bf16.msra.mxu0 0
    %2162 = vmatprep.subr.bf16.mxu0 0
    %2163 = vmatpush1.bf16.msra.mxu0 0
    %2164 = vmatprep.mubr.bf16.mxu0 0
    %2165 = vmatmul.mubr.bf16.gmra.mrb[0].mxu0 %v1898
    %v2166 = vpop.f32.mrb[0].mxu0
    %v2167 = vadd.f32 0.0, %v2166
    %v2168 = vpop.f32.mrb[0].mxu0
    %v2169 = vadd.f32 0.0, %v2168
    %v2170 = vpop.f32.mrb[0].mxu0
    %v2171 = vpop.f32.mrb[0].mxu0
    %2172 = vdwg.mxu0
    %v2173 = vadd.f32 %v1894, %v2126
    %v2174 = vadd.f32 %v1895, %v2128
    %v2175 = vadd.f32 %v1896, %v2167
    %v2176 = vadd.f32 %v1897, %v2169
    %v2177 = vmul.f32 %v2173, 0.5
    %v2178 = vtanh.pop %v2177
    %v2179 = vmul.f32 %v2178, 0.5
    %v2180 = vadd.f32 %v2179, 0.5
    %v2181 = vmul.f32 %v2174, 0.5
    %v2182 = vtanh.pop %v2181
    %v2183 = vmul.f32 %v2182, 0.5
    %v2184 = vadd.f32 %v2183, 0.5
    %v2185 = vtanh.pop %v2175
    %v2186 = vmul.f32 %v2176, 0.5
    %v2187 = vtanh.pop %v2186
    %v2188 = vmul.f32 %v2187, 0.5
    %v2189 = vadd.f32 %v2188, 0.5
    %v2190 = vld [vmem:[#allocation4] sm:$0xff]
    %v2191 = vmul.f32 %v2184, %v2190
    %v2192 = vmul.f32 %v2180, %v2185
    %v2193 = vadd.f32 %v2191, %v2192
    %v2194 = vtanh.pop %v2193
    %v2195 = vmul.f32 %v2189, %v2194
    %v2196 = vpack.c.bf16 %v2195, %v2195
    %2197 = vst [vmem:[#allocation4] sm:$0xff] %v2193
    %2198 = vst [vmem:[#allocation3] sm:$0xf] %v2196
    %s2199 = scalar_lea.vmem [#allocation13], 20
    %2200 = vst [vmem:[%s2199] sm:$0xf] %v2196
    %s2201 = smul.u32 6, 4
    %s2202 = smul.addr %s2201, 8
    %s2203 = scalar_lea.vmem [#allocation2], %s2202
    %v2204 = vld [vmem:[%s2203] sm:$0xff]
    %v2205 = vld [vmem:[%s2203 + $0x8] sm:$0xff]
    %v2206 = vld [vmem:[%s2203 + $0x10] sm:$0xff]
    %v2207 = vld [vmem:[%s2203 + $0x18] sm:$0xff]
    %v2208 = vld [vmem:[#allocation3] sm:$0xf]
    %v2209 = vld [vmem:[#allocation10] sm:$0xff]
    %v2210 = vld [vmem:[#allocation10 + $0x8] sm:$0xff]
    %v2211 = vld [vmem:[#allocation10 + $0x10] sm:$0xff]
    %v2212 = vld [vmem:[#allocation10 + $0x18] sm:$0xff]
    %v2213 = vld [vmem:[#allocation10 + $0x20] sm:$0xff]
    %v2214 = vld [vmem:[#allocation10 + $0x28] sm:$0xff]
    %v2215 = vld [vmem:[#allocation10 + $0x30] sm:$0xff]
    %v2216 = vld [vmem:[#allocation10 + $0x38] sm:$0xff]
    %v2217 = vld [vmem:[#allocation10 + $0x40] sm:$0xff]
    %v2218 = vld [vmem:[#allocation10 + $0x48] sm:$0xff]
    %v2219 = vld [vmem:[#allocation10 + $0x50] sm:$0xff]
    %v2220 = vld [vmem:[#allocation10 + $0x58] sm:$0xff]
    %v2221 = vld [vmem:[#allocation10 + $0x60] sm:$0xff]
    %v2222 = vld [vmem:[#allocation10 + $0x68] sm:$0xff]
    %v2223 = vld [vmem:[#allocation10 + $0x70] sm:$0xff]
    %v2224 = vld [vmem:[#allocation10 + $0x78] sm:$0xff]
    %v2225 = vld [vmem:[#allocation10 + $0x80] sm:$0xff]
    %v2226 = vld [vmem:[#allocation10 + $0x88] sm:$0xff]
    %v2227 = vld [vmem:[#allocation10 + $0x90] sm:$0xff]
    %v2228 = vld [vmem:[#allocation10 + $0x98] sm:$0xff]
    %v2229 = vld [vmem:[#allocation10 + $0xa0] sm:$0xff]
    %v2230 = vld [vmem:[#allocation10 + $0xa8] sm:$0xff]
    %v2231 = vld [vmem:[#allocation10 + $0xb0] sm:$0xff]
    %v2232 = vld [vmem:[#allocation10 + $0xb8] sm:$0xff]
    %v2233 = vld [vmem:[#allocation10 + $0xc0] sm:$0xff]
    %v2234 = vld [vmem:[#allocation10 + $0xc8] sm:$0xff]
    %v2235 = vld [vmem:[#allocation10 + $0xd0] sm:$0xff]
    %v2236 = vld [vmem:[#allocation10 + $0xd8] sm:$0xff]
    %v2237 = vld [vmem:[#allocation10 + $0xe0] sm:$0xff]
    %v2238 = vld [vmem:[#allocation10 + $0xe8] sm:$0xff]
    %v2239 = vld [vmem:[#allocation10 + $0xf0] sm:$0xff]
    %v2240 = vld [vmem:[#allocation10 + $0xf8] sm:$0xff]
    %v2273 = vunpack.c.l.b16 %v2209
    %v2274 = vunpack.c.h.b16 %v2209
    %v2275 = vunpack.c.l.b16 %v2210
    %v2276 = vunpack.c.h.b16 %v2210
    %v2277 = vunpack.c.l.b16 %v2211
    %v2278 = vunpack.c.h.b16 %v2211
    %v2279 = vunpack.c.l.b16 %v2212
    %v2280 = vunpack.c.h.b16 %v2212
    %v2281 = vunpack.c.l.b16 %v2213
    %v2282 = vunpack.c.h.b16 %v2213
    %v2283 = vunpack.c.l.b16 %v2214
    %v2284 = vunpack.c.h.b16 %v2214
    %v2285 = vunpack.c.l.b16 %v2215
    %v2286 = vunpack.c.h.b16 %v2215
    %v2287 = vunpack.c.l.b16 %v2216
    %v2288 = vunpack.c.h.b16 %v2216
    %v2289 = vunpack.c.l.b16 %v2217
    %v2290 = vunpack.c.h.b16 %v2217
    %v2291 = vunpack.c.l.b16 %v2218
    %v2292 = vunpack.c.h.b16 %v2218
    %v2293 = vunpack.c.l.b16 %v2219
    %v2294 = vunpack.c.h.b16 %v2219
    %v2295 = vunpack.c.l.b16 %v2220
    %v2296 = vunpack.c.h.b16 %v2220
    %v2297 = vunpack.c.l.b16 %v2221
    %v2298 = vunpack.c.h.b16 %v2221
    %v2299 = vunpack.c.l.b16 %v2222
    %v2300 = vunpack.c.h.b16 %v2222
    %v2301 = vunpack.c.l.b16 %v2223
    %v2302 = vunpack.c.h.b16 %v2223
    %v2303 = vunpack.c.l.b16 %v2224
    %v2304 = vunpack.c.h.b16 %v2224
    %v2305 = vunpack.c.l.b16 %v2225
    %v2306 = vunpack.c.h.b16 %v2225
    %v2307 = vunpack.c.l.b16 %v2226
    %v2308 = vunpack.c.h.b16 %v2226
    %v2309 = vunpack.c.l.b16 %v2227
    %v2310 = vunpack.c.h.b16 %v2227
    %v2311 = vunpack.c.l.b16 %v2228
    %v2312 = vunpack.c.h.b16 %v2228
    %v2313 = vunpack.c.l.b16 %v2229
    %v2314 = vunpack.c.h.b16 %v2229
    %v2315 = vunpack.c.l.b16 %v2230
    %v2316 = vunpack.c.h.b16 %v2230
    %v2317 = vunpack.c.l.b16 %v2231
    %v2318 = vunpack.c.h.b16 %v2231
    %v2319 = vunpack.c.l.b16 %v2232
    %v2320 = vunpack.c.h.b16 %v2232
    %v2321 = vunpack.c.l.b16 %v2233
    %v2322 = vunpack.c.h.b16 %v2233
    %v2323 = vunpack.c.l.b16 %v2234
    %v2324 = vunpack.c.h.b16 %v2234
    %v2325 = vunpack.c.l.b16 %v2235
    %v2326 = vunpack.c.h.b16 %v2235
    %v2327 = vunpack.c.l.b16 %v2236
    %v2328 = vunpack.c.h.b16 %v2236
    %v2329 = vunpack.c.l.b16 %v2237
    %v2330 = vunpack.c.h.b16 %v2237
    %v2331 = vunpack.c.l.b16 %v2238
    %v2332 = vunpack.c.h.b16 %v2238
    %v2333 = vunpack.c.l.b16 %v2239
    %v2334 = vunpack.c.h.b16 %v2239
    %v2335 = vunpack.c.l.b16 %v2240
    %v2336 = vunpack.c.h.b16 %v2240
    %v2337 = vpack.c.b16 %v2277, %v2273
    %v2338 = vpack.c.b16 %v2278, %v2274
    %v2339 = vpack.c.b16 %v2279, %v2275
    %v2340 = vpack.c.b16 %v2280, %v2276
    %v2341 = vpack.c.b16 %v2285, %v2281
    %v2342 = vpack.c.b16 %v2286, %v2282
    %v2343 = vpack.c.b16 %v2287, %v2283
    %v2344 = vpack.c.b16 %v2288, %v2284
    %v2345 = vpack.c.b16 %v2293, %v2289
    %v2346 = vpack.c.b16 %v2294, %v2290
    %v2347 = vpack.c.b16 %v2295, %v2291
    %v2348 = vpack.c.b16 %v2296, %v2292
    %v2349 = vpack.c.b16 %v2301, %v2297
    %v2350 = vpack.c.b16 %v2302, %v2298
    %v2351 = vpack.c.b16 %v2303, %v2299
    %v2352 = vpack.c.b16 %v2304, %v2300
    %v2353 = vpack.c.b16 %v2309, %v2305
    %v2354 = vpack.c.b16 %v2310, %v2306
    %v2355 = vpack.c.b16 %v2311, %v2307
    %v2356 = vpack.c.b16 %v2312, %v2308
    %v2357 = vpack.c.b16 %v2317, %v2313
    %v2358 = vpack.c.b16 %v2318, %v2314
    %v2359 = vpack.c.b16 %v2319, %v2315
    %v2360 = vpack.c.b16 %v2320, %v2316
    %v2361 = vpack.c.b16 %v2325, %v2321
    %v2362 = vpack.c.b16 %v2326, %v2322
    %v2363 = vpack.c.b16 %v2327, %v2323
    %v2364 = vpack.c.b16 %v2328, %v2324
    %v2365 = vpack.c.b16 %v2333, %v2329
    %v2366 = vpack.c.b16 %v2334, %v2330
    %v2367 = vpack.c.b16 %v2335, %v2331
    %v2368 = vpack.c.b16 %v2336, %v2332
    %2401 = vmatprep.subr.bf16.mxu0 %v2338
    %2402 = vmatpush1.bf16.msra.mxu0 %v2337
    %2403 = vmatprep.subr.bf16.mxu0 %v2342
    %2404 = vmatpush1.bf16.msra.mxu0 %v2341
    %2405 = vmatprep.subr.bf16.mxu0 %v2346
    %2406 = vmatpush1.bf16.msra.mxu0 %v2345
    %2407 = vmatprep.subr.bf16.mxu0 %v2350
    %2408 = vmatpush1.bf16.msra.mxu0 %v2349
    %2409 = vmatprep.subr.bf16.mxu0 %v2354
    %2410 = vmatpush1.bf16.msra.mxu0 %v2353
    %2411 = vmatprep.subr.bf16.mxu0 %v2358
    %2412 = vmatpush1.bf16.msra.mxu0 %v2357
    %2413 = vmatprep.subr.bf16.mxu0 %v2362
    %2414 = vmatpush1.bf16.msra.mxu0 %v2361
    %2415 = vmatprep.subr.bf16.mxu0 %v2366
    %2416 = vmatpush1.bf16.msra.mxu0 %v2365
    %2417 = vmatprep.subr.bf16.mxu0 0
    %2418 = vmatpush1.bf16.msra.mxu0 0
    %2419 = vmatprep.subr.bf16.mxu0 0
    %2420 = vmatpush1.bf16.msra.mxu0 0
    %2421 = vmatprep.subr.bf16.mxu0 0
    %2422 = vmatpush1.bf16.msra.mxu0 0
    %2423 = vmatprep.subr.bf16.mxu0 0
    %2424 = vmatpush1.bf16.msra.mxu0 0
    %2425 = vmatprep.subr.bf16.mxu0 0
    %2426 = vmatpush1.bf16.msra.mxu0 0
    %2427 = vmatprep.subr.bf16.mxu0 0
    %2428 = vmatpush1.bf16.msra.mxu0 0
    %2429 = vmatprep.subr.bf16.mxu0 0
    %2430 = vmatpush1.bf16.msra.mxu0 0
    %2431 = vmatprep.subr.bf16.mxu0 0
    %2432 = vmatpush1.bf16.msra.mxu0 0
    %2433 = vmatprep.mubr.bf16.mxu0 0
    %2434 = vmatmul.mubr.bf16.gmra.mrb[0].mxu0 %v2208
    %v2435 = vpop.f32.mrb[0].mxu0
    %v2436 = vadd.f32 0.0, %v2435
    %v2437 = vpop.f32.mrb[0].mxu0
    %v2438 = vadd.f32 0.0, %v2437
    %v2439 = vpop.f32.mrb[0].mxu0
    %v2440 = vpop.f32.mrb[0].mxu0
    %2441 = vdwg.mxu0
    %2442 = vmatprep.subr.bf16.mxu0 %v2340
    %2443 = vmatpush1.bf16.msra.mxu0 %v2339
    %2444 = vmatprep.subr.bf16.mxu0 %v2344
    %2445 = vmatpush1.bf16.msra.mxu0 %v2343
    %2446 = vmatprep.subr.bf16.mxu0 %v2348
    %2447 = vmatpush1.bf16.msra.mxu0 %v2347
    %2448 = vmatprep.subr.bf16.mxu0 %v2352
    %2449 = vmatpush1.bf16.msra.mxu0 %v2351
    %2450 = vmatprep.subr.bf16.mxu0 %v2356
    %2451 = vmatpush1.bf16.msra.mxu0 %v2355
    %2452 = vmatprep.subr.bf16.mxu0 %v2360
    %2453 = vmatpush1.bf16.msra.mxu0 %v2359
    %2454 = vmatprep.subr.bf16.mxu0 %v2364
    %2455 = vmatpush1.bf16.msra.mxu0 %v2363
    %2456 = vmatprep.subr.bf16.mxu0 %v2368
    %2457 = vmatpush1.bf16.msra.mxu0 %v2367
    %2458 = vmatprep.subr.bf16.mxu0 0
    %2459 = vmatpush1.bf16.msra.mxu0 0
    %2460 = vmatprep.subr.bf16.mxu0 0
    %2461 = vmatpush1.bf16.msra.mxu0 0
    %2462 = vmatprep.subr.bf16.mxu0 0
    %2463 = vmatpush1.bf16.msra.mxu0 0
    %2464 = vmatprep.subr.bf16.mxu0 0
    %2465 = vmatpush1.bf16.msra.mxu0 0
    %2466 = vmatprep.subr.bf16.mxu0 0
    %2467 = vmatpush1.bf16.msra.mxu0 0
    %2468 = vmatprep.subr.bf16.mxu0 0
    %2469 = vmatpush1.bf16.msra.mxu0 0
    %2470 = vmatprep.subr.bf16.mxu0 0
    %2471 = vmatpush1.bf16.msra.mxu0 0
    %2472 = vmatprep.subr.bf16.mxu0 0
    %2473 = vmatpush1.bf16.msra.mxu0 0
    %2474 = vmatprep.mubr.bf16.mxu0 0
    %2475 = vmatmul.mubr.bf16.gmra.mrb[0].mxu0 %v2208
    %v2476 = vpop.f32.mrb[0].mxu0
    %v2477 = vadd.f32 0.0, %v2476
    %v2478 = vpop.f32.mrb[0].mxu0
    %v2479 = vadd.f32 0.0, %v2478
    %v2480 = vpop.f32.mrb[0].mxu0
    %v2481 = vpop.f32.mrb[0].mxu0
    %2482 = vdwg.mxu0
    %v2483 = vadd.f32 %v2204, %v2436
    %v2484 = vadd.f32 %v2205, %v2438
    %v2485 = vadd.f32 %v2206, %v2477
    %v2486 = vadd.f32 %v2207, %v2479
    %v2487 = vmul.f32 %v2483, 0.5
    %v2488 = vtanh.pop %v2487
    %v2489 = vmul.f32 %v2488, 0.5
    %v2490 = vadd.f32 %v2489, 0.5
    %v2491 = vmul.f32 %v2484, 0.5
    %v2492 = vtanh.pop %v2491
    %v2493 = vmul.f32 %v2492, 0.5
    %v2494 = vadd.f32 %v2493, 0.5
    %v2495 = vtanh.pop %v2485
    %v2496 = vmul.f32 %v2486, 0.5
    %v2497 = vtanh.pop %v2496
    %v2498 = vmul.f32 %v2497, 0.5
    %v2499 = vadd.f32 %v2498, 0.5
    %v2500 = vld [vmem:[#allocation4] sm:$0xff]
    %v2501 = vmul.f32 %v2494, %v2500
    %v2502 = vmul.f32 %v2490, %v2495
    %v2503 = vadd.f32 %v2501, %v2502
    %v2504 = vtanh.pop %v2503
    %v2505 = vmul.f32 %v2499, %v2504
    %v2506 = vpack.c.bf16 %v2505, %v2505
    %2507 = vst [vmem:[#allocation4] sm:$0xff] %v2503
    %2508 = vst [vmem:[#allocation3] sm:$0xf] %v2506
    %s2509 = scalar_lea.vmem [#allocation13], 24
    %2510 = vst [vmem:[%s2509] sm:$0xf] %v2506
    %s2511 = smul.u32 7, 4
    %s2512 = smul.addr %s2511, 8
    %s2513 = scalar_lea.vmem [#allocation2], %s2512
    %v2514 = vld [vmem:[%s2513] sm:$0xff]
    %v2515 = vld [vmem:[%s2513 + $0x8] sm:$0xff]
    %v2516 = vld [vmem:[%s2513 + $0x10] sm:$0xff]
    %v2517 = vld [vmem:[%s2513 + $0x18] sm:$0xff]
    %v2518 = vld [vmem:[#allocation3] sm:$0xf]
    %v2519 = vld [vmem:[#allocation10] sm:$0xff]
    %v2520 = vld [vmem:[#allocation10 + $0x8] sm:$0xff]
    %v2521 = vld [vmem:[#allocation10 + $0x10] sm:$0xff]
    %v2522 = vld [vmem:[#allocation10 + $0x18] sm:$0xff]
    %v2523 = vld [vmem:[#allocation10 + $0x20] sm:$0xff]
    %v2524 = vld [vmem:[#allocation10 + $0x28] sm:$0xff]
    %v2525 = vld [vmem:[#allocation10 + $0x30] sm:$0xff]
    %v2526 = vld [vmem:[#allocation10 + $0x38] sm:$0xff]
    %v2527 = vld [vmem:[#allocation10 + $0x40] sm:$0xff]
    %v2528 = vld [vmem:[#allocation10 + $0x48] sm:$0xff]
    %v2529 = vld [vmem:[#allocation10 + $0x50] sm:$0xff]
    %v2530 = vld [vmem:[#allocation10 + $0x58] sm:$0xff]
    %v2531 = vld [vmem:[#allocation10 + $0x60] sm:$0xff]
    %v2532 = vld [vmem:[#allocation10 + $0x68] sm:$0xff]
    %v2533 = vld [vmem:[#allocation10 + $0x70] sm:$0xff]
    %v2534 = vld [vmem:[#allocation10 + $0x78] sm:$0xff]
    %v2535 = vld [vmem:[#allocation10 + $0x80] sm:$0xff]
    %v2536 = vld [vmem:[#allocation10 + $0x88] sm:$0xff]
    %v2537 = vld [vmem:[#allocation10 + $0x90] sm:$0xff]
    %v2538 = vld [vmem:[#allocation10 + $0x98] sm:$0xff]
    %v2539 = vld [vmem:[#allocation10 + $0xa0] sm:$0xff]
    %v2540 = vld [vmem:[#allocation10 + $0xa8] sm:$0xff]
    %v2541 = vld [vmem:[#allocation10 + $0xb0] sm:$0xff]
    %v2542 = vld [vmem:[#allocation10 + $0xb8] sm:$0xff]
    %v2543 = vld [vmem:[#allocation10 + $0xc0] sm:$0xff]
    %v2544 = vld [vmem:[#allocation10 + $0xc8] sm:$0xff]
    %v2545 = vld [vmem:[#allocation10 + $0xd0] sm:$0xff]
    %v2546 = vld [vmem:[#allocation10 + $0xd8] sm:$0xff]
    %v2547 = vld [vmem:[#allocation10 + $0xe0] sm:$0xff]
    %v2548 = vld [vmem:[#allocation10 + $0xe8] sm:$0xff]
    %v2549 = vld [vmem:[#allocation10 + $0xf0] sm:$0xff]
    %v2550 = vld [vmem:[#allocation10 + $0xf8] sm:$0xff]
    %v2583 = vunpack.c.l.b16 %v2519
    %v2584 = vunpack.c.h.b16 %v2519
    %v2585 = vunpack.c.l.b16 %v2520
    %v2586 = vunpack.c.h.b16 %v2520
    %v2587 = vunpack.c.l.b16 %v2521
    %v2588 = vunpack.c.h.b16 %v2521
    %v2589 = vunpack.c.l.b16 %v2522
    %v2590 = vunpack.c.h.b16 %v2522
    %v2591 = vunpack.c.l.b16 %v2523
    %v2592 = vunpack.c.h.b16 %v2523
    %v2593 = vunpack.c.l.b16 %v2524
    %v2594 = vunpack.c.h.b16 %v2524
    %v2595 = vunpack.c.l.b16 %v2525
    %v2596 = vunpack.c.h.b16 %v2525
    %v2597 = vunpack.c.l.b16 %v2526
    %v2598 = vunpack.c.h.b16 %v2526
    %v2599 = vunpack.c.l.b16 %v2527
    %v2600 = vunpack.c.h.b16 %v2527
    %v2601 = vunpack.c.l.b16 %v2528
    %v2602 = vunpack.c.h.b16 %v2528
    %v2603 = vunpack.c.l.b16 %v2529
    %v2604 = vunpack.c.h.b16 %v2529
    %v2605 = vunpack.c.l.b16 %v2530
    %v2606 = vunpack.c.h.b16 %v2530
    %v2607 = vunpack.c.l.b16 %v2531
    %v2608 = vunpack.c.h.b16 %v2531
    %v2609 = vunpack.c.l.b16 %v2532
    %v2610 = vunpack.c.h.b16 %v2532
    %v2611 = vunpack.c.l.b16 %v2533
    %v2612 = vunpack.c.h.b16 %v2533
    %v2613 = vunpack.c.l.b16 %v2534
    %v2614 = vunpack.c.h.b16 %v2534
    %v2615 = vunpack.c.l.b16 %v2535
    %v2616 = vunpack.c.h.b16 %v2535
    %v2617 = vunpack.c.l.b16 %v2536
    %v2618 = vunpack.c.h.b16 %v2536
    %v2619 = vunpack.c.l.b16 %v2537
    %v2620 = vunpack.c.h.b16 %v2537
    %v2621 = vunpack.c.l.b16 %v2538
    %v2622 = vunpack.c.h.b16 %v2538
    %v2623 = vunpack.c.l.b16 %v2539
    %v2624 = vunpack.c.h.b16 %v2539
    %v2625 = vunpack.c.l.b16 %v2540
    %v2626 = vunpack.c.h.b16 %v2540
    %v2627 = vunpack.c.l.b16 %v2541
    %v2628 = vunpack.c.h.b16 %v2541
    %v2629 = vunpack.c.l.b16 %v2542
    %v2630 = vunpack.c.h.b16 %v2542
    %v2631 = vunpack.c.l.b16 %v2543
    %v2632 = vunpack.c.h.b16 %v2543
    %v2633 = vunpack.c.l.b16 %v2544
    %v2634 = vunpack.c.h.b16 %v2544
    %v2635 = vunpack.c.l.b16 %v2545
    %v2636 = vunpack.c.h.b16 %v2545
    %v2637 = vunpack.c.l.b16 %v2546
    %v2638 = vunpack.c.h.b16 %v2546
    %v2639 = vunpack.c.l.b16 %v2547
    %v2640 = vunpack.c.h.b16 %v2547
    %v2641 = vunpack.c.l.b16 %v2548
    %v2642 = vunpack.c.h.b16 %v2548
    %v2643 = vunpack.c.l.b16 %v2549
    %v2644 = vunpack.c.h.b16 %v2549
    %v2645 = vunpack.c.l.b16 %v2550
    %v2646 = vunpack.c.h.b16 %v2550
    %v2647 = vpack.c.b16 %v2587, %v2583
    %v2648 = vpack.c.b16 %v2588, %v2584
    %v2649 = vpack.c.b16 %v2589, %v2585
    %v2650 = vpack.c.b16 %v2590, %v2586
    %v2651 = vpack.c.b16 %v2595, %v2591
    %v2652 = vpack.c.b16 %v2596, %v2592
    %v2653 = vpack.c.b16 %v2597, %v2593
    %v2654 = vpack.c.b16 %v2598, %v2594
    %v2655 = vpack.c.b16 %v2603, %v2599
    %v2656 = vpack.c.b16 %v2604, %v2600
    %v2657 = vpack.c.b16 %v2605, %v2601
    %v2658 = vpack.c.b16 %v2606, %v2602
    %v2659 = vpack.c.b16 %v2611, %v2607
    %v2660 = vpack.c.b16 %v2612, %v2608
    %v2661 = vpack.c.b16 %v2613, %v2609
    %v2662 = vpack.c.b16 %v2614, %v2610
    %v2663 = vpack.c.b16 %v2619, %v2615
    %v2664 = vpack.c.b16 %v2620, %v2616
    %v2665 = vpack.c.b16 %v2621, %v2617
    %v2666 = vpack.c.b16 %v2622, %v2618
    %v2667 = vpack.c.b16 %v2627, %v2623
    %v2668 = vpack.c.b16 %v2628, %v2624
    %v2669 = vpack.c.b16 %v2629, %v2625
    %v2670 = vpack.c.b16 %v2630, %v2626
    %v2671 = vpack.c.b16 %v2635, %v2631
    %v2672 = vpack.c.b16 %v2636, %v2632
    %v2673 = vpack.c.b16 %v2637, %v2633
    %v2674 = vpack.c.b16 %v2638, %v2634
    %v2675 = vpack.c.b16 %v2643, %v2639
    %v2676 = vpack.c.b16 %v2644, %v2640
    %v2677 = vpack.c.b16 %v2645, %v2641
    %v2678 = vpack.c.b16 %v2646, %v2642
    %2711 = vmatprep.subr.bf16.mxu0 %v2648
    %2712 = vmatpush1.bf16.msra.mxu0 %v2647
    %2713 = vmatprep.subr.bf16.mxu0 %v2652
    %2714 = vmatpush1.bf16.msra.mxu0 %v2651
    %2715 = vmatprep.subr.bf16.mxu0 %v2656
    %2716 = vmatpush1.bf16.msra.mxu0 %v2655
    %2717 = vmatprep.subr.bf16.mxu0 %v2660
    %2718 = vmatpush1.bf16.msra.mxu0 %v2659
    %2719 = vmatprep.subr.bf16.mxu0 %v2664
    %2720 = vmatpush1.bf16.msra.mxu0 %v2663
    %2721 = vmatprep.subr.bf16.mxu0 %v2668
    %2722 = vmatpush1.bf16.msra.mxu0 %v2667
    %2723 = vmatprep.subr.bf16.mxu0 %v2672
    %2724 = vmatpush1.bf16.msra.mxu0 %v2671
    %2725 = vmatprep.subr.bf16.mxu0 %v2676
    %2726 = vmatpush1.bf16.msra.mxu0 %v2675
    %2727 = vmatprep.subr.bf16.mxu0 0
    %2728 = vmatpush1.bf16.msra.mxu0 0
    %2729 = vmatprep.subr.bf16.mxu0 0
    %2730 = vmatpush1.bf16.msra.mxu0 0
    %2731 = vmatprep.subr.bf16.mxu0 0
    %2732 = vmatpush1.bf16.msra.mxu0 0
    %2733 = vmatprep.subr.bf16.mxu0 0
    %2734 = vmatpush1.bf16.msra.mxu0 0
    %2735 = vmatprep.subr.bf16.mxu0 0
    %2736 = vmatpush1.bf16.msra.mxu0 0
    %2737 = vmatprep.subr.bf16.mxu0 0
    %2738 = vmatpush1.bf16.msra.mxu0 0
    %2739 = vmatprep.subr.bf16.mxu0 0
    %2740 = vmatpush1.bf16.msra.mxu0 0
    %2741 = vmatprep.subr.bf16.mxu0 0
    %2742 = vmatpush1.bf16.msra.mxu0 0
    %2743 = vmatprep.mubr.bf16.mxu0 0
    %2744 = vmatmul.mubr.bf16.gmra.mrb[0].mxu0 %v2518
    %v2745 = vpop.f32.mrb[0].mxu0
    %v2746 = vadd.f32 0.0, %v2745
    %v2747 = vpop.f32.mrb[0].mxu0
    %v2748 = vadd.f32 0.0, %v2747
    %v2749 = vpop.f32.mrb[0].mxu0
    %v2750 = vpop.f32.mrb[0].mxu0
    %2751 = vdwg.mxu0
    %2752 = vmatprep.subr.bf16.mxu0 %v2650
    %2753 = vmatpush1.bf16.msra.mxu0 %v2649
    %2754 = vmatprep.subr.bf16.mxu0 %v2654
    %2755 = vmatpush1.bf16.msra.mxu0 %v2653
    %2756 = vmatprep.subr.bf16.mxu0 %v2658
    %2757 = vmatpush1.bf16.msra.mxu0 %v2657
    %2758 = vmatprep.subr.bf16.mxu0 %v2662
    %2759 = vmatpush1.bf16.msra.mxu0 %v2661
    %2760 = vmatprep.subr.bf16.mxu0 %v2666
    %2761 = vmatpush1.bf16.msra.mxu0 %v2665
    %2762 = vmatprep.subr.bf16.mxu0 %v2670
    %2763 = vmatpush1.bf16.msra.mxu0 %v2669
    %2764 = vmatprep.subr.bf16.mxu0 %v2674
    %2765 = vmatpush1.bf16.msra.mxu0 %v2673
    %2766 = vmatprep.subr.bf16.mxu0 %v2678
    %2767 = vmatpush1.bf16.msra.mxu0 %v2677
    %2768 = vmatprep.subr.bf16.mxu0 0
    %2769 = vmatpush1.bf16.msra.mxu0 0
    %2770 = vmatprep.subr.bf16.mxu0 0
    %2771 = vmatpush1.bf16.msra.mxu0 0
    %2772 = vmatprep.subr.bf16.mxu0 0
    %2773 = vmatpush1.bf16.msra.mxu0 0
    %2774 = vmatprep.subr.bf16.mxu0 0
    %2775 = vmatpush1.bf16.msra.mxu0 0
    %2776 = vmatprep.subr.bf16.mxu0 0
    %2777 = vmatpush1.bf16.msra.mxu0 0
    %2778 = vmatprep.subr.bf16.mxu0 0
    %2779 = vmatpush1.bf16.msra.mxu0 0
    %2780 = vmatprep.subr.bf16.mxu0 0
    %2781 = vmatpush1.bf16.msra.mxu0 0
    %2782 = vmatprep.subr.bf16.mxu0 0
    %2783 = vmatpush1.bf16.msra.mxu0 0
    %2784 = vmatprep.mubr.bf16.mxu0 0
    %2785 = vmatmul.mubr.bf16.gmra.mrb[0].mxu0 %v2518
    %v2786 = vpop.f32.mrb[0].mxu0
    %v2787 = vadd.f32 0.0, %v2786
    %v2788 = vpop.f32.mrb[0].mxu0
    %v2789 = vadd.f32 0.0, %v2788
    %v2790 = vpop.f32.mrb[0].mxu0
    %v2791 = vpop.f32.mrb[0].mxu0
    %2792 = vdwg.mxu0
    %v2793 = vadd.f32 %v2514, %v2746
    %v2794 = vadd.f32 %v2515, %v2748
    %v2795 = vadd.f32 %v2516, %v2787
    %v2796 = vadd.f32 %v2517, %v2789
    %v2797 = vmul.f32 %v2793, 0.5
    %v2798 = vtanh.pop %v2797
    %v2799 = vmul.f32 %v2798, 0.5
    %v2800 = vadd.f32 %v2799, 0.5
    %v2801 = vmul.f32 %v2794, 0.5
    %v2802 = vtanh.pop %v2801
    %v2803 = vmul.f32 %v2802, 0.5
    %v2804 = vadd.f32 %v2803, 0.5
    %v2805 = vtanh.pop %v2795
    %v2806 = vmul.f32 %v2796, 0.5
    %v2807 = vtanh.pop %v2806
    %v2808 = vmul.f32 %v2807, 0.5
    %v2809 = vadd.f32 %v2808, 0.5
    %v2810 = vld [vmem:[#allocation4] sm:$0xff]
    %v2811 = vmul.f32 %v2804, %v2810
    %v2812 = vmul.f32 %v2800, %v2805
    %v2813 = vadd.f32 %v2811, %v2812
    %v2814 = vtanh.pop %v2813
    %v2815 = vmul.f32 %v2809, %v2814
    %v2816 = vpack.c.bf16 %v2815, %v2815
    %2817 = vst [vmem:[#allocation4] sm:$0xff] %v2813
    %2818 = vst [vmem:[#allocation3] sm:$0xf] %v2816
    %s2819 = scalar_lea.vmem [#allocation13], 28
    %2820 = vst [vmem:[%s2819] sm:$0xf] %v2816
    // Predicated region
    $region38: #{_lambda_.2} parent=1 // pred_check
      _
    $region39: #{_lambda_.2} parent=1 // pred_check_branch
      %2822 = sbr.rel (0) target = $region41
    $region40: #{_lambda_.2} parent=1 // pred_region
      %s2824 = ssub.s32 512, 512
      %2825 = vsyncadd [#allocation7], %s2824
      %s2826 = sshll.u32 [#allocation13], 4
      %s2827 = int_to_ptr.vmem [resolvable:$true] %s2826
      %2832 = dma.vmem_to_hbm [thread:$0]  %s2827, 512, %s4, [#allocation7], 64, 64, 4
    $region41: #{_lambda_.2} parent=1 // pred_fallthru
      _
    // Predicated region
    $region42: #{_lambda_.2} parent=1 // pred_check
      _
    $region43: #{_lambda_.2} parent=1 // pred_check_branch
      %2834 = sbr.rel (0) target = $region45
    $region44: #{_lambda_.2} parent=1 // pred_region
      %2835 = dma.done [#allocation7], 512
    $region45: #{_lambda_.2} parent=1 // pred_fallthru
      _
    %2836 = vsyncpa [#allocation6], 1
    %2837 = vsyncpa [#allocation9], 1
    %2838 = vsyncpa [#allocation12], 1
    %2839 = vsyncpa [#allocation7], 1

// kernel: _lambda_.3
$region0: #{_lambda_.3}
  #allocation0 [shape = 'u32[]', space=smem, size = 0x4, offset = 0x4, fixed_abs, tag = 'smem constant byte address 0x4 - core index']
  #allocation1 [shape = 'u32[144,128]{1,0:T(1,128)}', space=vmem, size = 0x12000, scoped, tag = 'internal scratch']
  #allocation2 [shape = 'f32[64,512]{1,0:T(8,128)}', space=vmem, size = 0x20000, scoped, tag = 'scratch operand']
  #allocation3 [shape = 'bf16[8,128]{1,0:T(8,128)(2,1)}', space=vmem, size = 0x800, scoped, tag = 'scratch operand']
  #allocation4 [shape = 'f32[8,128]{1,0:T(8,128)}', space=vmem, size = 0x1000, scoped, tag = 'scratch operand']
  %s0 = inlined_call_operand.hbm [shape: bf16[1,64,128], index: 0, kind: input, shape index: {}]
  %s1 = inlined_call_operand.hbm [shape: bf16[128,512], index: 1, kind: input, shape index: {}]
  %s2 = inlined_call_operand.hbm [shape: bf16[128,512], index: 2, kind: input, shape index: {}]
  %s3 = inlined_call_operand.hbm [shape: f32[1,512], index: 3, kind: input, shape index: {}]
  %s4 = inlined_call_operand.hbm [shape: bf16[128,128], index: 4, kind: input, shape index: {}]
  %s5 = inlined_call_operand.hbm [shape: f32[1,128], index: 5, kind: input, shape index: {}]
  %s6 = inlined_call_operand.hbm [shape: f32[1,8,128], index: 6, kind: output, shape index: {}]
  %s7 = sld [smem:[#allocation0]]
  $region66: #{_lambda_.3} parent=0
    _
  %s9 = ssub.s32 1, %s7
  %s10 = scalar_select 0, %s9, %s7
  $region1: #{_lambda_.3} parent=0
    #allocation5 [shape = 'u8[16384]{0}', space=vmem, size = 0x4000, scoped, tag = 'input window, operand 0, single buffered']
    #allocation6 [shape = 's32[1]{0}', space=sflag, size = 0x4, scoped, tag = 'scoped memory for _lambda_.3']
    #allocation7 [shape = 's32[1]{0}', space=sflag, size = 0x4, scoped, tag = 'scoped memory for _lambda_.3']
    #allocation8 [shape = 'u8[131072]{0}', space=vmem, size = 0x20000, scoped, tag = 'input window, operand 1, single buffered']
    #allocation9 [shape = 's32[1]{0}', space=sflag, size = 0x4, scoped, tag = 'scoped memory for _lambda_.3']
    #allocation10 [shape = 'u8[131072]{0}', space=vmem, size = 0x20000, scoped, tag = 'input window, operand 2, single buffered']
    #allocation11 [shape = 'u8[2048]{0}', space=vmem, size = 0x800, scoped, tag = 'input window, operand 3, single buffered']
    #allocation12 [shape = 's32[1]{0}', space=sflag, size = 0x4, scoped, tag = 'scoped memory for _lambda_.3']
    #allocation13 [shape = 'u8[32768]{0}', space=vmem, size = 0x8000, scoped, tag = 'input window, operand 4, single buffered']
    #allocation14 [shape = 'u8[512]{0}', space=vmem, size = 0x400, scoped, tag = 'input window, operand 5, single buffered']
    #allocation15 [shape = 's32[1]{0}', space=sflag, size = 0x4, scoped, tag = 'scoped memory for _lambda_.3']
    #allocation16 [shape = 'u8[4096]{0}', space=vmem, size = 0x1000, scoped, tag = 'output window, operand 0, single buffered']
    %11 = vsyncpa [#allocation6], 0
    %12 = vsyncpa [#allocation9], 0
    %13 = vsyncpa [#allocation12], 0
    %14 = vsyncpa [#allocation15], 0
    %15 = vsyncpa [#allocation7], 0
    // Predicated region
    $region2: #{_lambda_.3} parent=1 // pred_check
      _
    $region3: #{_lambda_.3} parent=1 // pred_check_branch
      %17 = sbr.rel (0) target = $region5
    $region4: #{_lambda_.3} parent=1 // pred_region
      %s19 = ssub.s32 512, 512
      %20 = vsyncadd [#allocation6], %s19
      %s21 = sshll.u32 [#allocation5], 4
      %s22 = int_to_ptr.vmem [resolvable:$true] %s21
      %27 = dma.hbm_to_vmem [thread:$0]  %s0, 512, %s22, [#allocation6], 64, 64, 4
    $region5: #{_lambda_.3} parent=1 // pred_fallthru
      _
    // Predicated region
    $region6: #{_lambda_.3} parent=1 // pred_check
      _
    $region7: #{_lambda_.3} parent=1 // pred_check_branch
      %29 = sbr.rel (0) target = $region9
    $region8: #{_lambda_.3} parent=1 // pred_region
      %s31 = ssub.s32 4096, 4096
      %32 = vsyncadd [#allocation9], %s31
      %s33 = sshll.u32 [#allocation8], 4
      %s34 = int_to_ptr.vmem [resolvable:$true] %s33
      %39 = dma.hbm_to_vmem [thread:$0]  %s1, 4096, %s34, [#allocation9], 256, 256, 16
    $region9: #{_lambda_.3} parent=1 // pred_fallthru
      _
    // Predicated region
    $region10: #{_lambda_.3} parent=1 // pred_check
      _
    $region11: #{_lambda_.3} parent=1 // pred_check_branch
      %41 = sbr.rel (0) target = $region13
    $region12: #{_lambda_.3} parent=1 // pred_region
      %s43 = ssub.s32 4096, 4096
      %44 = vsyncadd [#allocation9], %s43
      %s45 = sshll.u32 [#allocation10], 4
      %s46 = int_to_ptr.vmem [resolvable:$true] %s45
      %51 = dma.hbm_to_vmem [thread:$0]  %s2, 4096, %s46, [#allocation9], 256, 256, 16
    $region13: #{_lambda_.3} parent=1 // pred_fallthru
      _
    // Predicated region
    $region14: #{_lambda_.3} parent=1 // pred_check
      _
    $region15: #{_lambda_.3} parent=1 // pred_check_branch
      %53 = sbr.rel (0) target = $region17
    $region16: #{_lambda_.3} parent=1 // pred_region
      %s55 = ssub.s32 64, 64
      %56 = vsyncadd [#allocation12], %s55
      %s58 = sshll.u32 [#allocation11], 4
      %s59 = int_to_ptr.vmem [resolvable:$true] %s58
      %61 = dma.hbm_to_vmem [thread:$0]  %s3, 64, %s59, [#allocation12]
    $region17: #{_lambda_.3} parent=1 // pred_fallthru
      _
    // Predicated region
    $region18: #{_lambda_.3} parent=1 // pred_check
      _
    $region19: #{_lambda_.3} parent=1 // pred_check_branch
      %63 = sbr.rel (0) target = $region21
    $region20: #{_lambda_.3} parent=1 // pred_region
      %s65 = ssub.s32 1024, 1024
      %66 = vsyncadd [#allocation12], %s65
      %s67 = sshll.u32 [#allocation13], 4
      %s68 = int_to_ptr.vmem [resolvable:$true] %s67
      %73 = dma.hbm_to_vmem [thread:$0]  %s4, 1024, %s68, [#allocation12], 64, 64, 4
    $region21: #{_lambda_.3} parent=1 // pred_fallthru
      _
    // Predicated region
    $region22: #{_lambda_.3} parent=1 // pred_check
      _
    $region23: #{_lambda_.3} parent=1 // pred_check_branch
      %75 = sbr.rel (0) target = $region25
    $region24: #{_lambda_.3} parent=1 // pred_region
      %s77 = ssub.s32 16, 16
      %78 = vsyncadd [#allocation15], %s77
      %s80 = sshll.u32 [#allocation14], 4
      %s81 = int_to_ptr.vmem [resolvable:$true] %s80
      %83 = dma.hbm_to_vmem [thread:$0]  %s5, 16, %s81, [#allocation15]
    $region25: #{_lambda_.3} parent=1 // pred_fallthru
      _
    // Predicated region
    $region26: #{_lambda_.3} parent=1 // pred_check
      _
    $region27: #{_lambda_.3} parent=1 // pred_check_branch
      %85 = sbr.rel (0) target = $region29
    $region28: #{_lambda_.3} parent=1 // pred_region
      %86 = dma.done [#allocation6], 512
    $region29: #{_lambda_.3} parent=1 // pred_fallthru
      _
    // Predicated region
    $region30: #{_lambda_.3} parent=1 // pred_check
      _
    $region31: #{_lambda_.3} parent=1 // pred_check_branch
      %88 = sbr.rel (0) target = $region33
    $region32: #{_lambda_.3} parent=1 // pred_region
      %89 = dma.done [#allocation9], 4096
    $region33: #{_lambda_.3} parent=1 // pred_fallthru
      _
    // Predicated region
    $region34: #{_lambda_.3} parent=1 // pred_check
      _
    $region35: #{_lambda_.3} parent=1 // pred_check_branch
      %91 = sbr.rel (0) target = $region37
    $region36: #{_lambda_.3} parent=1 // pred_region
      %92 = dma.done [#allocation9], 4096
    $region37: #{_lambda_.3} parent=1 // pred_fallthru
      _
    // Predicated region
    $region38: #{_lambda_.3} parent=1 // pred_check
      _
    $region39: #{_lambda_.3} parent=1 // pred_check_branch
      %94 = sbr.rel (0) target = $region41
    $region40: #{_lambda_.3} parent=1 // pred_region
      %95 = dma.done [#allocation12], 64
    $region41: #{_lambda_.3} parent=1 // pred_fallthru
      _
    // Predicated region
    $region42: #{_lambda_.3} parent=1 // pred_check
      _
    $region43: #{_lambda_.3} parent=1 // pred_check_branch
      %97 = sbr.rel (0) target = $region45
    $region44: #{_lambda_.3} parent=1 // pred_region
      %98 = dma.done [#allocation12], 1024
    $region45: #{_lambda_.3} parent=1 // pred_fallthru
      _
    // Predicated region
    $region46: #{_lambda_.3} parent=1 // pred_check
      _
    $region47: #{_lambda_.3} parent=1 // pred_check_branch
      %100 = sbr.rel (0) target = $region49
    $region48: #{_lambda_.3} parent=1 // pred_region
      %101 = dma.done [#allocation15], 16
    $region49: #{_lambda_.3} parent=1 // pred_fallthru
      _
    %p103 = scmp.eq.s32.totalorder 0, 0
    // Predicated region
    $region50: #{_lambda_.3} parent=1 // pred_check
      %p104 = pneg %p103
    $region51: #{_lambda_.3} parent=1 // pred_check_branch
      %106 = sbr.rel (%p104) target = $region53
    $region52: #{_lambda_.3} parent=1 // pred_region
      %107 = vst [vmem:[#allocation3] sm:$0xf] 0
      %108 = vst [vmem:[#allocation4] sm:$0xff] 0.0
    $region53: #{_lambda_.3} parent=1 // pred_fallthru
      _
    %v109 = vld [vmem:[#allocation5] sm:$0xf]
    %v110 = vld [vmem:[#allocation5 + $0x4] sm:$0xf]
    %v111 = vld [vmem:[#allocation5 + $0x8] sm:$0xf]
    %v112 = vld [vmem:[#allocation5 + $0xc] sm:$0xf]
    %v113 = vld [vmem:[#allocation5 + $0x10] sm:$0xf]
    %v114 = vld [vmem:[#allocation5 + $0x14] sm:$0xf]
    %v115 = vld [vmem:[#allocation5 + $0x18] sm:$0xf]
    %v116 = vld [vmem:[#allocation5 + $0x1c] sm:$0xf]
    %v117 = vld [vmem:[#allocation8] sm:$0xff]
    %v118 = vld [vmem:[#allocation8 + $0x8] sm:$0xff]
    %v119 = vld [vmem:[#allocation8 + $0x10] sm:$0xff]
    %v120 = vld [vmem:[#allocation8 + $0x18] sm:$0xff]
    %v121 = vld [vmem:[#allocation8 + $0x20] sm:$0xff]
    %v122 = vld [vmem:[#allocation8 + $0x28] sm:$0xff]
    %v123 = vld [vmem:[#allocation8 + $0x30] sm:$0xff]
    %v124 = vld [vmem:[#allocation8 + $0x38] sm:$0xff]
    %v125 = vld [vmem:[#allocation8 + $0x40] sm:$0xff]
    %v126 = vld [vmem:[#allocation8 + $0x48] sm:$0xff]
    %v127 = vld [vmem:[#allocation8 + $0x50] sm:$0xff]
    %v128 = vld [vmem:[#allocation8 + $0x58] sm:$0xff]
    %v129 = vld [vmem:[#allocation8 + $0x60] sm:$0xff]
    %v130 = vld [vmem:[#allocation8 + $0x68] sm:$0xff]
    %v131 = vld [vmem:[#allocation8 + $0x70] sm:$0xff]
    %v132 = vld [vmem:[#allocation8 + $0x78] sm:$0xff]
    %v133 = vld [vmem:[#allocation8 + $0x80] sm:$0xff]
    %v134 = vld [vmem:[#allocation8 + $0x88] sm:$0xff]
    %v135 = vld [vmem:[#allocation8 + $0x90] sm:$0xff]
    %v136 = vld [vmem:[#allocation8 + $0x98] sm:$0xff]
    %v137 = vld [vmem:[#allocation8 + $0xa0] sm:$0xff]
    %v138 = vld [vmem:[#allocation8 + $0xa8] sm:$0xff]
    %v139 = vld [vmem:[#allocation8 + $0xb0] sm:$0xff]
    %v140 = vld [vmem:[#allocation8 + $0xb8] sm:$0xff]
    %v141 = vld [vmem:[#allocation8 + $0xc0] sm:$0xff]
    %v142 = vld [vmem:[#allocation8 + $0xc8] sm:$0xff]
    %v143 = vld [vmem:[#allocation8 + $0xd0] sm:$0xff]
    %v144 = vld [vmem:[#allocation8 + $0xd8] sm:$0xff]
    %v145 = vld [vmem:[#allocation8 + $0xe0] sm:$0xff]
    %v146 = vld [vmem:[#allocation8 + $0xe8] sm:$0xff]
    %v147 = vld [vmem:[#allocation8 + $0xf0] sm:$0xff]
    %v148 = vld [vmem:[#allocation8 + $0xf8] sm:$0xff]
    %v149 = vld [vmem:[#allocation11] sm:$0xf]
    %v151 = vlaneseq
    %v152 = vshrl.u32 %v151, 7
    %v153 = vsub.s32 0, %v152
    %v154 = vrot.slane %v149, %v153
    %v155 = vlaneseq
    %v156 = vshrl.u32 %v155, 7
    %v157 = vsub.s32 1, %v156
    %v158 = vrot.slane %v149, %v157
    %v159 = vlaneseq
    %v160 = vshrl.u32 %v159, 7
    %v161 = vsub.s32 2, %v160
    %v162 = vrot.slane %v149, %v161
    %v163 = vlaneseq
    %v164 = vshrl.u32 %v163, 7
    %v165 = vsub.s32 3, %v164
    %v166 = vrot.slane %v149, %v165
    %v179 = vunpack.c.l.b16 %v109
    %v180 = vunpack.c.l.b16 %v110
    %v181 = vunpack.c.l.b16 %v111
    %v182 = vunpack.c.l.b16 %v112
    %v183 = vunpack.c.l.b16 %v113
    %v184 = vunpack.c.l.b16 %v114
    %v185 = vunpack.c.l.b16 %v115
    %v186 = vunpack.c.l.b16 %v116
    %v187 = vpack.c.b16 %v180, %v179
    %v188 = vpack.c.b16 %v182, %v181
    %v189 = vpack.c.b16 %v184, %v183
    %v190 = vpack.c.b16 %v186, %v185
    %v227 = vunpack.c.l.b16 %v117
    %v228 = vunpack.c.h.b16 %v117
    %v229 = vunpack.c.l.b16 %v118
    %v230 = vunpack.c.h.b16 %v118
    %v231 = vunpack.c.l.b16 %v119
    %v232 = vunpack.c.h.b16 %v119
    %v233 = vunpack.c.l.b16 %v120
    %v234 = vunpack.c.h.b16 %v120
    %v235 = vunpack.c.l.b16 %v121
    %v236 = vunpack.c.h.b16 %v121
    %v237 = vunpack.c.l.b16 %v122
    %v238 = vunpack.c.h.b16 %v122
    %v239 = vunpack.c.l.b16 %v123
    %v240 = vunpack.c.h.b16 %v123
    %v241 = vunpack.c.l.b16 %v124
    %v242 = vunpack.c.h.b16 %v124
    %v243 = vunpack.c.l.b16 %v125
    %v244 = vunpack.c.h.b16 %v125
    %v245 = vunpack.c.l.b16 %v126
    %v246 = vunpack.c.h.b16 %v126
    %v247 = vunpack.c.l.b16 %v127
    %v248 = vunpack.c.h.b16 %v127
    %v249 = vunpack.c.l.b16 %v128
    %v250 = vunpack.c.h.b16 %v128
    %v251 = vunpack.c.l.b16 %v129
    %v252 = vunpack.c.h.b16 %v129
    %v253 = vunpack.c.l.b16 %v130
    %v254 = vunpack.c.h.b16 %v130
    %v255 = vunpack.c.l.b16 %v131
    %v256 = vunpack.c.h.b16 %v131
    %v257 = vunpack.c.l.b16 %v132
    %v258 = vunpack.c.h.b16 %v132
    %v259 = vunpack.c.l.b16 %v133
    %v260 = vunpack.c.h.b16 %v133
    %v261 = vunpack.c.l.b16 %v134
    %v262 = vunpack.c.h.b16 %v134
    %v263 = vunpack.c.l.b16 %v135
    %v264 = vunpack.c.h.b16 %v135
    %v265 = vunpack.c.l.b16 %v136
    %v266 = vunpack.c.h.b16 %v136
    %v267 = vunpack.c.l.b16 %v137
    %v268 = vunpack.c.h.b16 %v137
    %v269 = vunpack.c.l.b16 %v138
    %v270 = vunpack.c.h.b16 %v138
    %v271 = vunpack.c.l.b16 %v139
    %v272 = vunpack.c.h.b16 %v139
    %v273 = vunpack.c.l.b16 %v140
    %v274 = vunpack.c.h.b16 %v140
    %v275 = vunpack.c.l.b16 %v141
    %v276 = vunpack.c.h.b16 %v141
    %v277 = vunpack.c.l.b16 %v142
    %v278 = vunpack.c.h.b16 %v142
    %v279 = vunpack.c.l.b16 %v143
    %v280 = vunpack.c.h.b16 %v143
    %v281 = vunpack.c.l.b16 %v144
    %v282 = vunpack.c.h.b16 %v144
    %v283 = vunpack.c.l.b16 %v145
    %v284 = vunpack.c.h.b16 %v145
    %v285 = vunpack.c.l.b16 %v146
    %v286 = vunpack.c.h.b16 %v146
    %v287 = vunpack.c.l.b16 %v147
    %v288 = vunpack.c.h.b16 %v147
    %v289 = vunpack.c.l.b16 %v148
    %v290 = vunpack.c.h.b16 %v148
    %v291 = vpack.c.b16 %v231, %v227
    %v292 = vpack.c.b16 %v232, %v228
    %v293 = vpack.c.b16 %v233, %v229
    %v294 = vpack.c.b16 %v234, %v230
    %v295 = vpack.c.b16 %v239, %v235
    %v296 = vpack.c.b16 %v240, %v236
    %v297 = vpack.c.b16 %v241, %v237
    %v298 = vpack.c.b16 %v242, %v238
    %v299 = vpack.c.b16 %v247, %v243
    %v300 = vpack.c.b16 %v248, %v244
    %v301 = vpack.c.b16 %v249, %v245
    %v302 = vpack.c.b16 %v250, %v246
    %v303 = vpack.c.b16 %v255, %v251
    %v304 = vpack.c.b16 %v256, %v252
    %v305 = vpack.c.b16 %v257, %v253
    %v306 = vpack.c.b16 %v258, %v254
    %v307 = vpack.c.b16 %v263, %v259
    %v308 = vpack.c.b16 %v264, %v260
    %v309 = vpack.c.b16 %v265, %v261
    %v310 = vpack.c.b16 %v266, %v262
    %v311 = vpack.c.b16 %v271, %v267
    %v312 = vpack.c.b16 %v272, %v268
    %v313 = vpack.c.b16 %v273, %v269
    %v314 = vpack.c.b16 %v274, %v270
    %v315 = vpack.c.b16 %v279, %v275
    %v316 = vpack.c.b16 %v280, %v276
    %v317 = vpack.c.b16 %v281, %v277
    %v318 = vpack.c.b16 %v282, %v278
    %v319 = vpack.c.b16 %v287, %v283
    %v320 = vpack.c.b16 %v288, %v284
    %v321 = vpack.c.b16 %v289, %v285
    %v322 = vpack.c.b16 %v290, %v286
    %355 = vmatprep.subr.bf16.mxu0 %v292
    %356 = vmatpush1.bf16.msra.mxu0 %v291
    %357 = vmatprep.subr.bf16.mxu0 %v296
    %358 = vmatpush1.bf16.msra.mxu0 %v295
    %359 = vmatprep.subr.bf16.mxu0 %v300
    %360 = vmatpush1.bf16.msra.mxu0 %v299
    %361 = vmatprep.subr.bf16.mxu0 %v304
    %362 = vmatpush1.bf16.msra.mxu0 %v303
    %363 = vmatprep.subr.bf16.mxu0 %v308
    %364 = vmatpush1.bf16.msra.mxu0 %v307
    %365 = vmatprep.subr.bf16.mxu0 %v312
    %366 = vmatpush1.bf16.msra.mxu0 %v311
    %367 = vmatprep.subr.bf16.mxu0 %v316
    %368 = vmatpush1.bf16.msra.mxu0 %v315
    %369 = vmatprep.subr.bf16.mxu0 %v320
    %370 = vmatpush1.bf16.msra.mxu0 %v319
    %371 = vmatprep.subr.bf16.mxu0 0
    %372 = vmatpush1.bf16.msra.mxu0 0
    %373 = vmatprep.subr.bf16.mxu0 0
    %374 = vmatpush1.bf16.msra.mxu0 0
    %375 = vmatprep.subr.bf16.mxu0 0
    %376 = vmatpush1.bf16.msra.mxu0 0
    %377 = vmatprep.subr.bf16.mxu0 0
    %378 = vmatpush1.bf16.msra.mxu0 0
    %379 = vmatprep.subr.bf16.mxu0 0
    %380 = vmatpush1.bf16.msra.mxu0 0
    %381 = vmatprep.subr.bf16.mxu0 0
    %382 = vmatpush1.bf16.msra.mxu0 0
    %383 = vmatprep.subr.bf16.mxu0 0
    %384 = vmatpush1.bf16.msra.mxu0 0
    %385 = vmatprep.subr.bf16.mxu0 0
    %386 = vmatpush1.bf16.msra.mxu0 0
    %387 = vmatprep.mubr.bf16.mxu0 0
    %388 = vmatmul.mubr.bf16.gmra.mrb[0].mxu0 %v187
    %v389 = vpop.f32.mrb[0].mxu0
    %v390 = vadd.f32 %v154, %v389
    %v391 = vpop.f32.mrb[0].mxu0
    %v392 = vadd.f32 %v158, %v391
    %v393 = vpop.f32.mrb[0].mxu0
    %v394 = vadd.f32 %v154, %v393
    %v395 = vpop.f32.mrb[0].mxu0
    %v396 = vadd.f32 %v158, %v395
    %397 = vmatprep.mubr.bf16.mxu0 0
    %398 = vmatmul.mubr.bf16.gmra.mrb[0].mxu0 %v188
    %v399 = vpop.f32.mrb[0].mxu0
    %v400 = vadd.f32 %v154, %v399
    %v401 = vpop.f32.mrb[0].mxu0
    %v402 = vadd.f32 %v158, %v401
    %v403 = vpop.f32.mrb[0].mxu0
    %v404 = vadd.f32 %v154, %v403
    %v405 = vpop.f32.mrb[0].mxu0
    %v406 = vadd.f32 %v158, %v405
    %407 = vmatprep.mubr.bf16.mxu0 0
    %408 = vmatmul.mubr.bf16.gmra.mrb[0].mxu0 %v189
    %v409 = vpop.f32.mrb[0].mxu0
    %v410 = vadd.f32 %v154, %v409
    %v411 = vpop.f32.mrb[0].mxu0
    %v412 = vadd.f32 %v158, %v411
    %v413 = vpop.f32.mrb[0].mxu0
    %v414 = vadd.f32 %v154, %v413
    %v415 = vpop.f32.mrb[0].mxu0
    %v416 = vadd.f32 %v158, %v415
    %417 = vmatprep.mubr.bf16.mxu0 0
    %418 = vmatmul.mubr.bf16.gmra.mrb[0].mxu0 %v190
    %v419 = vpop.f32.mrb[0].mxu0
    %v420 = vadd.f32 %v154, %v419
    %v421 = vpop.f32.mrb[0].mxu0
    %v422 = vadd.f32 %v158, %v421
    %v423 = vpop.f32.mrb[0].mxu0
    %v424 = vadd.f32 %v154, %v423
    %v425 = vpop.f32.mrb[0].mxu0
    %v426 = vadd.f32 %v158, %v425
    %427 = vdwg.mxu0
    %428 = vmatprep.subr.bf16.mxu0 %v294
    %429 = vmatpush1.bf16.msra.mxu0 %v293
    %430 = vmatprep.subr.bf16.mxu0 %v298
    %431 = vmatpush1.bf16.msra.mxu0 %v297
    %432 = vmatprep.subr.bf16.mxu0 %v302
    %433 = vmatpush1.bf16.msra.mxu0 %v301
    %434 = vmatprep.subr.bf16.mxu0 %v306
    %435 = vmatpush1.bf16.msra.mxu0 %v305
    %436 = vmatprep.subr.bf16.mxu0 %v310
    %437 = vmatpush1.bf16.msra.mxu0 %v309
    %438 = vmatprep.subr.bf16.mxu0 %v314
    %439 = vmatpush1.bf16.msra.mxu0 %v313
    %440 = vmatprep.subr.bf16.mxu0 %v318
    %441 = vmatpush1.bf16.msra.mxu0 %v317
    %442 = vmatprep.subr.bf16.mxu0 %v322
    %443 = vmatpush1.bf16.msra.mxu0 %v321
    %444 = vmatprep.subr.bf16.mxu0 0
    %445 = vmatpush1.bf16.msra.mxu0 0
    %446 = vmatprep.subr.bf16.mxu0 0
    %447 = vmatpush1.bf16.msra.mxu0 0
    %448 = vmatprep.subr.bf16.mxu0 0
    %449 = vmatpush1.bf16.msra.mxu0 0
    %450 = vmatprep.subr.bf16.mxu0 0
    %451 = vmatpush1.bf16.msra.mxu0 0
    %452 = vmatprep.subr.bf16.mxu0 0
    %453 = vmatpush1.bf16.msra.mxu0 0
    %454 = vmatprep.subr.bf16.mxu0 0
    %455 = vmatpush1.bf16.msra.mxu0 0
    %456 = vmatprep.subr.bf16.mxu0 0
    %457 = vmatpush1.bf16.msra.mxu0 0
    %458 = vmatprep.subr.bf16.mxu0 0
    %459 = vmatpush1.bf16.msra.mxu0 0
    %460 = vmatprep.mubr.bf16.mxu0 0
    %461 = vmatmul.mubr.bf16.gmra.mrb[0].mxu0 %v187
    %v462 = vpop.f32.mrb[0].mxu0
    %v463 = vadd.f32 %v162, %v462
    %v464 = vpop.f32.mrb[0].mxu0
    %v465 = vadd.f32 %v166, %v464
    %v466 = vpop.f32.mrb[0].mxu0
    %v467 = vadd.f32 %v162, %v466
    %v468 = vpop.f32.mrb[0].mxu0
    %v469 = vadd.f32 %v166, %v468
    %470 = vmatprep.mubr.bf16.mxu0 0
    %471 = vmatmul.mubr.bf16.gmra.mrb[0].mxu0 %v188
    %v472 = vpop.f32.mrb[0].mxu0
    %v473 = vadd.f32 %v162, %v472
    %v474 = vpop.f32.mrb[0].mxu0
    %v475 = vadd.f32 %v166, %v474
    %v476 = vpop.f32.mrb[0].mxu0
    %v477 = vadd.f32 %v162, %v476
    %v478 = vpop.f32.mrb[0].mxu0
    %v479 = vadd.f32 %v166, %v478
    %480 = vmatprep.mubr.bf16.mxu0 0
    %481 = vmatmul.mubr.bf16.gmra.mrb[0].mxu0 %v189
    %v482 = vpop.f32.mrb[0].mxu0
    %v483 = vadd.f32 %v162, %v482
    %v484 = vpop.f32.mrb[0].mxu0
    %v485 = vadd.f32 %v166, %v484
    %v486 = vpop.f32.mrb[0].mxu0
    %v487 = vadd.f32 %v162, %v486
    %v488 = vpop.f32.mrb[0].mxu0
    %v489 = vadd.f32 %v166, %v488
    %490 = vmatprep.mubr.bf16.mxu0 0
    %491 = vmatmul.mubr.bf16.gmra.mrb[0].mxu0 %v190
    %v492 = vpop.f32.mrb[0].mxu0
    %v493 = vadd.f32 %v162, %v492
    %v494 = vpop.f32.mrb[0].mxu0
    %v495 = vadd.f32 %v166, %v494
    %v496 = vpop.f32.mrb[0].mxu0
    %v497 = vadd.f32 %v162, %v496
    %v498 = vpop.f32.mrb[0].mxu0
    %v499 = vadd.f32 %v166, %v498
    %500 = vdwg.mxu0
    %501 = vst [vmem:[#allocation2] sm:$0xff] %v390
    %502 = vst [vmem:[#allocation2 + $0x8] sm:$0xff] %v392
    %503 = vst [vmem:[#allocation2 + $0x10] sm:$0xff] %v463
    %504 = vst [vmem:[#allocation2 + $0x18] sm:$0xff] %v465
    %505 = vst [vmem:[#allocation2 + $0x20] sm:$0xff] %v394
    %506 = vst [vmem:[#allocation2 + $0x28] sm:$0xff] %v396
    %507 = vst [vmem:[#allocation2 + $0x30] sm:$0xff] %v467
    %508 = vst [vmem:[#allocation2 + $0x38] sm:$0xff] %v469
    %509 = vst [vmem:[#allocation2 + $0x40] sm:$0xff] %v400
    %510 = vst [vmem:[#allocation2 + $0x48] sm:$0xff] %v402
    %511 = vst [vmem:[#allocation2 + $0x50] sm:$0xff] %v473
    %512 = vst [vmem:[#allocation2 + $0x58] sm:$0xff] %v475
    %513 = vst [vmem:[#allocation2 + $0x60] sm:$0xff] %v404
    %514 = vst [vmem:[#allocation2 + $0x68] sm:$0xff] %v406
    %515 = vst [vmem:[#allocation2 + $0x70] sm:$0xff] %v477
    %516 = vst [vmem:[#allocation2 + $0x78] sm:$0xff] %v479
    %517 = vst [vmem:[#allocation2 + $0x80] sm:$0xff] %v410
    %518 = vst [vmem:[#allocation2 + $0x88] sm:$0xff] %v412
    %519 = vst [vmem:[#allocation2 + $0x90] sm:$0xff] %v483
    %520 = vst [vmem:[#allocation2 + $0x98] sm:$0xff] %v485
    %521 = vst [vmem:[#allocation2 + $0xa0] sm:$0xff] %v414
    %522 = vst [vmem:[#allocation2 + $0xa8] sm:$0xff] %v416
    %523 = vst [vmem:[#allocation2 + $0xb0] sm:$0xff] %v487
    %524 = vst [vmem:[#allocation2 + $0xb8] sm:$0xff] %v489
    %525 = vst [vmem:[#allocation2 + $0xc0] sm:$0xff] %v420
    %526 = vst [vmem:[#allocation2 + $0xc8] sm:$0xff] %v422
    %527 = vst [vmem:[#allocation2 + $0xd0] sm:$0xff] %v493
    %528 = vst [vmem:[#allocation2 + $0xd8] sm:$0xff] %v495
    %529 = vst [vmem:[#allocation2 + $0xe0] sm:$0xff] %v424
    %530 = vst [vmem:[#allocation2 + $0xe8] sm:$0xff] %v426
    %531 = vst [vmem:[#allocation2 + $0xf0] sm:$0xff] %v497
    %532 = vst [vmem:[#allocation2 + $0xf8] sm:$0xff] %v499
    %s533 = smul.u32 0, 4
    %s534 = smul.addr %s533, 8
    %s535 = scalar_lea.vmem [#allocation2], %s534
    %v536 = vld [vmem:[%s535] sm:$0xff]
    %v537 = vld [vmem:[%s535 + $0x8] sm:$0xff]
    %v538 = vld [vmem:[%s535 + $0x10] sm:$0xff]
    %v539 = vld [vmem:[%s535 + $0x18] sm:$0xff]
    %v540 = vld [vmem:[#allocation3] sm:$0xf]
    %v541 = vld [vmem:[#allocation10] sm:$0xff]
    %v542 = vld [vmem:[#allocation10 + $0x8] sm:$0xff]
    %v543 = vld [vmem:[#allocation10 + $0x10] sm:$0xff]
    %v544 = vld [vmem:[#allocation10 + $0x18] sm:$0xff]
    %v545 = vld [vmem:[#allocation10 + $0x20] sm:$0xff]
    %v546 = vld [vmem:[#allocation10 + $0x28] sm:$0xff]
    %v547 = vld [vmem:[#allocation10 + $0x30] sm:$0xff]
    %v548 = vld [vmem:[#allocation10 + $0x38] sm:$0xff]
    %v549 = vld [vmem:[#allocation10 + $0x40] sm:$0xff]
    %v550 = vld [vmem:[#allocation10 + $0x48] sm:$0xff]
    %v551 = vld [vmem:[#allocation10 + $0x50] sm:$0xff]
    %v552 = vld [vmem:[#allocation10 + $0x58] sm:$0xff]
    %v553 = vld [vmem:[#allocation10 + $0x60] sm:$0xff]
    %v554 = vld [vmem:[#allocation10 + $0x68] sm:$0xff]
    %v555 = vld [vmem:[#allocation10 + $0x70] sm:$0xff]
    %v556 = vld [vmem:[#allocation10 + $0x78] sm:$0xff]
    %v557 = vld [vmem:[#allocation10 + $0x80] sm:$0xff]
    %v558 = vld [vmem:[#allocation10 + $0x88] sm:$0xff]
    %v559 = vld [vmem:[#allocation10 + $0x90] sm:$0xff]
    %v560 = vld [vmem:[#allocation10 + $0x98] sm:$0xff]
    %v561 = vld [vmem:[#allocation10 + $0xa0] sm:$0xff]
    %v562 = vld [vmem:[#allocation10 + $0xa8] sm:$0xff]
    %v563 = vld [vmem:[#allocation10 + $0xb0] sm:$0xff]
    %v564 = vld [vmem:[#allocation10 + $0xb8] sm:$0xff]
    %v565 = vld [vmem:[#allocation10 + $0xc0] sm:$0xff]
    %v566 = vld [vmem:[#allocation10 + $0xc8] sm:$0xff]
    %v567 = vld [vmem:[#allocation10 + $0xd0] sm:$0xff]
    %v568 = vld [vmem:[#allocation10 + $0xd8] sm:$0xff]
    %v569 = vld [vmem:[#allocation10 + $0xe0] sm:$0xff]
    %v570 = vld [vmem:[#allocation10 + $0xe8] sm:$0xff]
    %v571 = vld [vmem:[#allocation10 + $0xf0] sm:$0xff]
    %v572 = vld [vmem:[#allocation10 + $0xf8] sm:$0xff]
    %v605 = vunpack.c.l.b16 %v541
    %v606 = vunpack.c.h.b16 %v541
    %v607 = vunpack.c.l.b16 %v542
    %v608 = vunpack.c.h.b16 %v542
    %v609 = vunpack.c.l.b16 %v543
    %v610 = vunpack.c.h.b16 %v543
    %v611 = vunpack.c.l.b16 %v544
    %v612 = vunpack.c.h.b16 %v544
    %v613 = vunpack.c.l.b16 %v545
    %v614 = vunpack.c.h.b16 %v545
    %v615 = vunpack.c.l.b16 %v546
    %v616 = vunpack.c.h.b16 %v546
    %v617 = vunpack.c.l.b16 %v547
    %v618 = vunpack.c.h.b16 %v547
    %v619 = vunpack.c.l.b16 %v548
    %v620 = vunpack.c.h.b16 %v548
    %v621 = vunpack.c.l.b16 %v549
    %v622 = vunpack.c.h.b16 %v549
    %v623 = vunpack.c.l.b16 %v550
    %v624 = vunpack.c.h.b16 %v550
    %v625 = vunpack.c.l.b16 %v551
    %v626 = vunpack.c.h.b16 %v551
    %v627 = vunpack.c.l.b16 %v552
    %v628 = vunpack.c.h.b16 %v552
    %v629 = vunpack.c.l.b16 %v553
    %v630 = vunpack.c.h.b16 %v553
    %v631 = vunpack.c.l.b16 %v554
    %v632 = vunpack.c.h.b16 %v554
    %v633 = vunpack.c.l.b16 %v555
    %v634 = vunpack.c.h.b16 %v555
    %v635 = vunpack.c.l.b16 %v556
    %v636 = vunpack.c.h.b16 %v556
    %v637 = vunpack.c.l.b16 %v557
    %v638 = vunpack.c.h.b16 %v557
    %v639 = vunpack.c.l.b16 %v558
    %v640 = vunpack.c.h.b16 %v558
    %v641 = vunpack.c.l.b16 %v559
    %v642 = vunpack.c.h.b16 %v559
    %v643 = vunpack.c.l.b16 %v560
    %v644 = vunpack.c.h.b16 %v560
    %v645 = vunpack.c.l.b16 %v561
    %v646 = vunpack.c.h.b16 %v561
    %v647 = vunpack.c.l.b16 %v562
    %v648 = vunpack.c.h.b16 %v562
    %v649 = vunpack.c.l.b16 %v563
    %v650 = vunpack.c.h.b16 %v563
    %v651 = vunpack.c.l.b16 %v564
    %v652 = vunpack.c.h.b16 %v564
    %v653 = vunpack.c.l.b16 %v565
    %v654 = vunpack.c.h.b16 %v565
    %v655 = vunpack.c.l.b16 %v566
    %v656 = vunpack.c.h.b16 %v566
    %v657 = vunpack.c.l.b16 %v567
    %v658 = vunpack.c.h.b16 %v567
    %v659 = vunpack.c.l.b16 %v568
    %v660 = vunpack.c.h.b16 %v568
    %v661 = vunpack.c.l.b16 %v569
    %v662 = vunpack.c.h.b16 %v569
    %v663 = vunpack.c.l.b16 %v570
    %v664 = vunpack.c.h.b16 %v570
    %v665 = vunpack.c.l.b16 %v571
    %v666 = vunpack.c.h.b16 %v571
    %v667 = vunpack.c.l.b16 %v572
    %v668 = vunpack.c.h.b16 %v572
    %v669 = vpack.c.b16 %v609, %v605
    %v670 = vpack.c.b16 %v610, %v606
    %v671 = vpack.c.b16 %v611, %v607
    %v672 = vpack.c.b16 %v612, %v608
    %v673 = vpack.c.b16 %v617, %v613
    %v674 = vpack.c.b16 %v618, %v614
    %v675 = vpack.c.b16 %v619, %v615
    %v676 = vpack.c.b16 %v620, %v616
    %v677 = vpack.c.b16 %v625, %v621
    %v678 = vpack.c.b16 %v626, %v622
    %v679 = vpack.c.b16 %v627, %v623
    %v680 = vpack.c.b16 %v628, %v624
    %v681 = vpack.c.b16 %v633, %v629
    %v682 = vpack.c.b16 %v634, %v630
    %v683 = vpack.c.b16 %v635, %v631
    %v684 = vpack.c.b16 %v636, %v632
    %v685 = vpack.c.b16 %v641, %v637
    %v686 = vpack.c.b16 %v642, %v638
    %v687 = vpack.c.b16 %v643, %v639
    %v688 = vpack.c.b16 %v644, %v640
    %v689 = vpack.c.b16 %v649, %v645
    %v690 = vpack.c.b16 %v650, %v646
    %v691 = vpack.c.b16 %v651, %v647
    %v692 = vpack.c.b16 %v652, %v648
    %v693 = vpack.c.b16 %v657, %v653
    %v694 = vpack.c.b16 %v658, %v654
    %v695 = vpack.c.b16 %v659, %v655
    %v696 = vpack.c.b16 %v660, %v656
    %v697 = vpack.c.b16 %v665, %v661
    %v698 = vpack.c.b16 %v666, %v662
    %v699 = vpack.c.b16 %v667, %v663
    %v700 = vpack.c.b16 %v668, %v664
    %733 = vmatprep.subr.bf16.mxu0 %v670
    %734 = vmatpush1.bf16.msra.mxu0 %v669
    %735 = vmatprep.subr.bf16.mxu0 %v674
    %736 = vmatpush1.bf16.msra.mxu0 %v673
    %737 = vmatprep.subr.bf16.mxu0 %v678
    %738 = vmatpush1.bf16.msra.mxu0 %v677
    %739 = vmatprep.subr.bf16.mxu0 %v682
    %740 = vmatpush1.bf16.msra.mxu0 %v681
    %741 = vmatprep.subr.bf16.mxu0 %v686
    %742 = vmatpush1.bf16.msra.mxu0 %v685
    %743 = vmatprep.subr.bf16.mxu0 %v690
    %744 = vmatpush1.bf16.msra.mxu0 %v689
    %745 = vmatprep.subr.bf16.mxu0 %v694
    %746 = vmatpush1.bf16.msra.mxu0 %v693
    %747 = vmatprep.subr.bf16.mxu0 %v698
    %748 = vmatpush1.bf16.msra.mxu0 %v697
    %749 = vmatprep.subr.bf16.mxu0 0
    %750 = vmatpush1.bf16.msra.mxu0 0
    %751 = vmatprep.subr.bf16.mxu0 0
    %752 = vmatpush1.bf16.msra.mxu0 0
    %753 = vmatprep.subr.bf16.mxu0 0
    %754 = vmatpush1.bf16.msra.mxu0 0
    %755 = vmatprep.subr.bf16.mxu0 0
    %756 = vmatpush1.bf16.msra.mxu0 0
    %757 = vmatprep.subr.bf16.mxu0 0
    %758 = vmatpush1.bf16.msra.mxu0 0
    %759 = vmatprep.subr.bf16.mxu0 0
    %760 = vmatpush1.bf16.msra.mxu0 0
    %761 = vmatprep.subr.bf16.mxu0 0
    %762 = vmatpush1.bf16.msra.mxu0 0
    %763 = vmatprep.subr.bf16.mxu0 0
    %764 = vmatpush1.bf16.msra.mxu0 0
    %765 = vmatprep.mubr.bf16.mxu0 0
    %766 = vmatmul.mubr.bf16.gmra.mrb[0].mxu0 %v540
    %v767 = vpop.f32.mrb[0].mxu0
    %v768 = vadd.f32 0.0, %v767
    %v769 = vpop.f32.mrb[0].mxu0
    %v770 = vadd.f32 0.0, %v769
    %v771 = vpop.f32.mrb[0].mxu0
    %v772 = vpop.f32.mrb[0].mxu0
    %773 = vdwg.mxu0
    %774 = vmatprep.subr.bf16.mxu0 %v672
    %775 = vmatpush1.bf16.msra.mxu0 %v671
    %776 = vmatprep.subr.bf16.mxu0 %v676
    %777 = vmatpush1.bf16.msra.mxu0 %v675
    %778 = vmatprep.subr.bf16.mxu0 %v680
    %779 = vmatpush1.bf16.msra.mxu0 %v679
    %780 = vmatprep.subr.bf16.mxu0 %v684
    %781 = vmatpush1.bf16.msra.mxu0 %v683
    %782 = vmatprep.subr.bf16.mxu0 %v688
    %783 = vmatpush1.bf16.msra.mxu0 %v687
    %784 = vmatprep.subr.bf16.mxu0 %v692
    %785 = vmatpush1.bf16.msra.mxu0 %v691
    %786 = vmatprep.subr.bf16.mxu0 %v696
    %787 = vmatpush1.bf16.msra.mxu0 %v695
    %788 = vmatprep.subr.bf16.mxu0 %v700
    %789 = vmatpush1.bf16.msra.mxu0 %v699
    %790 = vmatprep.subr.bf16.mxu0 0
    %791 = vmatpush1.bf16.msra.mxu0 0
    %792 = vmatprep.subr.bf16.mxu0 0
    %793 = vmatpush1.bf16.msra.mxu0 0
    %794 = vmatprep.subr.bf16.mxu0 0
    %795 = vmatpush1.bf16.msra.mxu0 0
    %796 = vmatprep.subr.bf16.mxu0 0
    %797 = vmatpush1.bf16.msra.mxu0 0
    %798 = vmatprep.subr.bf16.mxu0 0
    %799 = vmatpush1.bf16.msra.mxu0 0
    %800 = vmatprep.subr.bf16.mxu0 0
    %801 = vmatpush1.bf16.msra.mxu0 0
    %802 = vmatprep.subr.bf16.mxu0 0
    %803 = vmatpush1.bf16.msra.mxu0 0
    %804 = vmatprep.subr.bf16.mxu0 0
    %805 = vmatpush1.bf16.msra.mxu0 0
    %806 = vmatprep.mubr.bf16.mxu0 0
    %807 = vmatmul.mubr.bf16.gmra.mrb[0].mxu0 %v540
    %v808 = vpop.f32.mrb[0].mxu0
    %v809 = vadd.f32 0.0, %v808
    %v810 = vpop.f32.mrb[0].mxu0
    %v811 = vadd.f32 0.0, %v810
    %v812 = vpop.f32.mrb[0].mxu0
    %v813 = vpop.f32.mrb[0].mxu0
    %814 = vdwg.mxu0
    %v815 = vadd.f32 %v536, %v768
    %v816 = vadd.f32 %v537, %v770
    %v817 = vadd.f32 %v538, %v809
    %v818 = vadd.f32 %v539, %v811
    %v819 = vmul.f32 %v815, 0.5
    %v820 = vtanh.pop %v819
    %v821 = vmul.f32 %v820, 0.5
    %v822 = vadd.f32 %v821, 0.5
    %v823 = vmul.f32 %v816, 0.5
    %v824 = vtanh.pop %v823
    %v825 = vmul.f32 %v824, 0.5
    %v826 = vadd.f32 %v825, 0.5
    %v827 = vtanh.pop %v817
    %v828 = vmul.f32 %v818, 0.5
    %v829 = vtanh.pop %v828
    %v830 = vmul.f32 %v829, 0.5
    %v831 = vadd.f32 %v830, 0.5
    %v832 = vld [vmem:[#allocation4] sm:$0xff]
    %v833 = vmul.f32 %v826, %v832
    %v834 = vmul.f32 %v822, %v827
    %v835 = vadd.f32 %v833, %v834
    %v836 = vtanh.pop %v835
    %v837 = vmul.f32 %v831, %v836
    %v838 = vpack.c.bf16 %v837, %v837
    %839 = vst [vmem:[#allocation4] sm:$0xff] %v835
    %840 = vst [vmem:[#allocation3] sm:$0xf] %v838
    %s841 = smul.u32 1, 4
    %s842 = smul.addr %s841, 8
    %s843 = scalar_lea.vmem [#allocation2], %s842
    %v844 = vld [vmem:[%s843] sm:$0xff]
    %v845 = vld [vmem:[%s843 + $0x8] sm:$0xff]
    %v846 = vld [vmem:[%s843 + $0x10] sm:$0xff]
    %v847 = vld [vmem:[%s843 + $0x18] sm:$0xff]
    %v848 = vld [vmem:[#allocation3] sm:$0xf]
    %v849 = vld [vmem:[#allocation10] sm:$0xff]
    %v850 = vld [vmem:[#allocation10 + $0x8] sm:$0xff]
    %v851 = vld [vmem:[#allocation10 + $0x10] sm:$0xff]
    %v852 = vld [vmem:[#allocation10 + $0x18] sm:$0xff]
    %v853 = vld [vmem:[#allocation10 + $0x20] sm:$0xff]
    %v854 = vld [vmem:[#allocation10 + $0x28] sm:$0xff]
    %v855 = vld [vmem:[#allocation10 + $0x30] sm:$0xff]
    %v856 = vld [vmem:[#allocation10 + $0x38] sm:$0xff]
    %v857 = vld [vmem:[#allocation10 + $0x40] sm:$0xff]
    %v858 = vld [vmem:[#allocation10 + $0x48] sm:$0xff]
    %v859 = vld [vmem:[#allocation10 + $0x50] sm:$0xff]
    %v860 = vld [vmem:[#allocation10 + $0x58] sm:$0xff]
    %v861 = vld [vmem:[#allocation10 + $0x60] sm:$0xff]
    %v862 = vld [vmem:[#allocation10 + $0x68] sm:$0xff]
    %v863 = vld [vmem:[#allocation10 + $0x70] sm:$0xff]
    %v864 = vld [vmem:[#allocation10 + $0x78] sm:$0xff]
    %v865 = vld [vmem:[#allocation10 + $0x80] sm:$0xff]
    %v866 = vld [vmem:[#allocation10 + $0x88] sm:$0xff]
    %v867 = vld [vmem:[#allocation10 + $0x90] sm:$0xff]
    %v868 = vld [vmem:[#allocation10 + $0x98] sm:$0xff]
    %v869 = vld [vmem:[#allocation10 + $0xa0] sm:$0xff]
    %v870 = vld [vmem:[#allocation10 + $0xa8] sm:$0xff]
    %v871 = vld [vmem:[#allocation10 + $0xb0] sm:$0xff]
    %v872 = vld [vmem:[#allocation10 + $0xb8] sm:$0xff]
    %v873 = vld [vmem:[#allocation10 + $0xc0] sm:$0xff]
    %v874 = vld [vmem:[#allocation10 + $0xc8] sm:$0xff]
    %v875 = vld [vmem:[#allocation10 + $0xd0] sm:$0xff]
    %v876 = vld [vmem:[#allocation10 + $0xd8] sm:$0xff]
    %v877 = vld [vmem:[#allocation10 + $0xe0] sm:$0xff]
    %v878 = vld [vmem:[#allocation10 + $0xe8] sm:$0xff]
    %v879 = vld [vmem:[#allocation10 + $0xf0] sm:$0xff]
    %v880 = vld [vmem:[#allocation10 + $0xf8] sm:$0xff]
    %v913 = vunpack.c.l.b16 %v849
    %v914 = vunpack.c.h.b16 %v849
    %v915 = vunpack.c.l.b16 %v850
    %v916 = vunpack.c.h.b16 %v850
    %v917 = vunpack.c.l.b16 %v851
    %v918 = vunpack.c.h.b16 %v851
    %v919 = vunpack.c.l.b16 %v852
    %v920 = vunpack.c.h.b16 %v852
    %v921 = vunpack.c.l.b16 %v853
    %v922 = vunpack.c.h.b16 %v853
    %v923 = vunpack.c.l.b16 %v854
    %v924 = vunpack.c.h.b16 %v854
    %v925 = vunpack.c.l.b16 %v855
    %v926 = vunpack.c.h.b16 %v855
    %v927 = vunpack.c.l.b16 %v856
    %v928 = vunpack.c.h.b16 %v856
    %v929 = vunpack.c.l.b16 %v857
    %v930 = vunpack.c.h.b16 %v857
    %v931 = vunpack.c.l.b16 %v858
    %v932 = vunpack.c.h.b16 %v858
    %v933 = vunpack.c.l.b16 %v859
    %v934 = vunpack.c.h.b16 %v859
    %v935 = vunpack.c.l.b16 %v860
    %v936 = vunpack.c.h.b16 %v860
    %v937 = vunpack.c.l.b16 %v861
    %v938 = vunpack.c.h.b16 %v861
    %v939 = vunpack.c.l.b16 %v862
    %v940 = vunpack.c.h.b16 %v862
    %v941 = vunpack.c.l.b16 %v863
    %v942 = vunpack.c.h.b16 %v863
    %v943 = vunpack.c.l.b16 %v864
    %v944 = vunpack.c.h.b16 %v864
    %v945 = vunpack.c.l.b16 %v865
    %v946 = vunpack.c.h.b16 %v865
    %v947 = vunpack.c.l.b16 %v866
    %v948 = vunpack.c.h.b16 %v866
    %v949 = vunpack.c.l.b16 %v867
    %v950 = vunpack.c.h.b16 %v867
    %v951 = vunpack.c.l.b16 %v868
    %v952 = vunpack.c.h.b16 %v868
    %v953 = vunpack.c.l.b16 %v869
    %v954 = vunpack.c.h.b16 %v869
    %v955 = vunpack.c.l.b16 %v870
    %v956 = vunpack.c.h.b16 %v870
    %v957 = vunpack.c.l.b16 %v871
    %v958 = vunpack.c.h.b16 %v871
    %v959 = vunpack.c.l.b16 %v872
    %v960 = vunpack.c.h.b16 %v872
    %v961 = vunpack.c.l.b16 %v873
    %v962 = vunpack.c.h.b16 %v873
    %v963 = vunpack.c.l.b16 %v874
    %v964 = vunpack.c.h.b16 %v874
    %v965 = vunpack.c.l.b16 %v875
    %v966 = vunpack.c.h.b16 %v875
    %v967 = vunpack.c.l.b16 %v876
    %v968 = vunpack.c.h.b16 %v876
    %v969 = vunpack.c.l.b16 %v877
    %v970 = vunpack.c.h.b16 %v877
    %v971 = vunpack.c.l.b16 %v878
    %v972 = vunpack.c.h.b16 %v878
    %v973 = vunpack.c.l.b16 %v879
    %v974 = vunpack.c.h.b16 %v879
    %v975 = vunpack.c.l.b16 %v880
    %v976 = vunpack.c.h.b16 %v880
    %v977 = vpack.c.b16 %v917, %v913
    %v978 = vpack.c.b16 %v918, %v914
    %v979 = vpack.c.b16 %v919, %v915
    %v980 = vpack.c.b16 %v920, %v916
    %v981 = vpack.c.b16 %v925, %v921
    %v982 = vpack.c.b16 %v926, %v922
    %v983 = vpack.c.b16 %v927, %v923
    %v984 = vpack.c.b16 %v928, %v924
    %v985 = vpack.c.b16 %v933, %v929
    %v986 = vpack.c.b16 %v934, %v930
    %v987 = vpack.c.b16 %v935, %v931
    %v988 = vpack.c.b16 %v936, %v932
    %v989 = vpack.c.b16 %v941, %v937
    %v990 = vpack.c.b16 %v942, %v938
    %v991 = vpack.c.b16 %v943, %v939
    %v992 = vpack.c.b16 %v944, %v940
    %v993 = vpack.c.b16 %v949, %v945
    %v994 = vpack.c.b16 %v950, %v946
    %v995 = vpack.c.b16 %v951, %v947
    %v996 = vpack.c.b16 %v952, %v948
    %v997 = vpack.c.b16 %v957, %v953
    %v998 = vpack.c.b16 %v958, %v954
    %v999 = vpack.c.b16 %v959, %v955
    %v1000 = vpack.c.b16 %v960, %v956
    %v1001 = vpack.c.b16 %v965, %v961
    %v1002 = vpack.c.b16 %v966, %v962
    %v1003 = vpack.c.b16 %v967, %v963
    %v1004 = vpack.c.b16 %v968, %v964
    %v1005 = vpack.c.b16 %v973, %v969
    %v1006 = vpack.c.b16 %v974, %v970
    %v1007 = vpack.c.b16 %v975, %v971
    %v1008 = vpack.c.b16 %v976, %v972
    %1041 = vmatprep.subr.bf16.mxu0 %v978
    %1042 = vmatpush1.bf16.msra.mxu0 %v977
    %1043 = vmatprep.subr.bf16.mxu0 %v982
    %1044 = vmatpush1.bf16.msra.mxu0 %v981
    %1045 = vmatprep.subr.bf16.mxu0 %v986
    %1046 = vmatpush1.bf16.msra.mxu0 %v985
    %1047 = vmatprep.subr.bf16.mxu0 %v990
    %1048 = vmatpush1.bf16.msra.mxu0 %v989
    %1049 = vmatprep.subr.bf16.mxu0 %v994
    %1050 = vmatpush1.bf16.msra.mxu0 %v993
    %1051 = vmatprep.subr.bf16.mxu0 %v998
    %1052 = vmatpush1.bf16.msra.mxu0 %v997
    %1053 = vmatprep.subr.bf16.mxu0 %v1002
    %1054 = vmatpush1.bf16.msra.mxu0 %v1001
    %1055 = vmatprep.subr.bf16.mxu0 %v1006
    %1056 = vmatpush1.bf16.msra.mxu0 %v1005
    %1057 = vmatprep.subr.bf16.mxu0 0
    %1058 = vmatpush1.bf16.msra.mxu0 0
    %1059 = vmatprep.subr.bf16.mxu0 0
    %1060 = vmatpush1.bf16.msra.mxu0 0
    %1061 = vmatprep.subr.bf16.mxu0 0
    %1062 = vmatpush1.bf16.msra.mxu0 0
    %1063 = vmatprep.subr.bf16.mxu0 0
    %1064 = vmatpush1.bf16.msra.mxu0 0
    %1065 = vmatprep.subr.bf16.mxu0 0
    %1066 = vmatpush1.bf16.msra.mxu0 0
    %1067 = vmatprep.subr.bf16.mxu0 0
    %1068 = vmatpush1.bf16.msra.mxu0 0
    %1069 = vmatprep.subr.bf16.mxu0 0
    %1070 = vmatpush1.bf16.msra.mxu0 0
    %1071 = vmatprep.subr.bf16.mxu0 0
    %1072 = vmatpush1.bf16.msra.mxu0 0
    %1073 = vmatprep.mubr.bf16.mxu0 0
    %1074 = vmatmul.mubr.bf16.gmra.mrb[0].mxu0 %v848
    %v1075 = vpop.f32.mrb[0].mxu0
    %v1076 = vadd.f32 0.0, %v1075
    %v1077 = vpop.f32.mrb[0].mxu0
    %v1078 = vadd.f32 0.0, %v1077
    %v1079 = vpop.f32.mrb[0].mxu0
    %v1080 = vpop.f32.mrb[0].mxu0
    %1081 = vdwg.mxu0
    %1082 = vmatprep.subr.bf16.mxu0 %v980
    %1083 = vmatpush1.bf16.msra.mxu0 %v979
    %1084 = vmatprep.subr.bf16.mxu0 %v984
    %1085 = vmatpush1.bf16.msra.mxu0 %v983
    %1086 = vmatprep.subr.bf16.mxu0 %v988
    %1087 = vmatpush1.bf16.msra.mxu0 %v987
    %1088 = vmatprep.subr.bf16.mxu0 %v992
    %1089 = vmatpush1.bf16.msra.mxu0 %v991
    %1090 = vmatprep.subr.bf16.mxu0 %v996
    %1091 = vmatpush1.bf16.msra.mxu0 %v995
    %1092 = vmatprep.subr.bf16.mxu0 %v1000
    %1093 = vmatpush1.bf16.msra.mxu0 %v999
    %1094 = vmatprep.subr.bf16.mxu0 %v1004
    %1095 = vmatpush1.bf16.msra.mxu0 %v1003
    %1096 = vmatprep.subr.bf16.mxu0 %v1008
    %1097 = vmatpush1.bf16.msra.mxu0 %v1007
    %1098 = vmatprep.subr.bf16.mxu0 0
    %1099 = vmatpush1.bf16.msra.mxu0 0
    %1100 = vmatprep.subr.bf16.mxu0 0
    %1101 = vmatpush1.bf16.msra.mxu0 0
    %1102 = vmatprep.subr.bf16.mxu0 0
    %1103 = vmatpush1.bf16.msra.mxu0 0
    %1104 = vmatprep.subr.bf16.mxu0 0
    %1105 = vmatpush1.bf16.msra.mxu0 0
    %1106 = vmatprep.subr.bf16.mxu0 0
    %1107 = vmatpush1.bf16.msra.mxu0 0
    %1108 = vmatprep.subr.bf16.mxu0 0
    %1109 = vmatpush1.bf16.msra.mxu0 0
    %1110 = vmatprep.subr.bf16.mxu0 0
    %1111 = vmatpush1.bf16.msra.mxu0 0
    %1112 = vmatprep.subr.bf16.mxu0 0
    %1113 = vmatpush1.bf16.msra.mxu0 0
    %1114 = vmatprep.mubr.bf16.mxu0 0
    %1115 = vmatmul.mubr.bf16.gmra.mrb[0].mxu0 %v848
    %v1116 = vpop.f32.mrb[0].mxu0
    %v1117 = vadd.f32 0.0, %v1116
    %v1118 = vpop.f32.mrb[0].mxu0
    %v1119 = vadd.f32 0.0, %v1118
    %v1120 = vpop.f32.mrb[0].mxu0
    %v1121 = vpop.f32.mrb[0].mxu0
    %1122 = vdwg.mxu0
    %v1123 = vadd.f32 %v844, %v1076
    %v1124 = vadd.f32 %v845, %v1078
    %v1125 = vadd.f32 %v846, %v1117
    %v1126 = vadd.f32 %v847, %v1119
    %v1127 = vmul.f32 %v1123, 0.5
    %v1128 = vtanh.pop %v1127
    %v1129 = vmul.f32 %v1128, 0.5
    %v1130 = vadd.f32 %v1129, 0.5
    %v1131 = vmul.f32 %v1124, 0.5
    %v1132 = vtanh.pop %v1131
    %v1133 = vmul.f32 %v1132, 0.5
    %v1134 = vadd.f32 %v1133, 0.5
    %v1135 = vtanh.pop %v1125
    %v1136 = vmul.f32 %v1126, 0.5
    %v1137 = vtanh.pop %v1136
    %v1138 = vmul.f32 %v1137, 0.5
    %v1139 = vadd.f32 %v1138, 0.5
    %v1140 = vld [vmem:[#allocation4] sm:$0xff]
    %v1141 = vmul.f32 %v1134, %v1140
    %v1142 = vmul.f32 %v1130, %v1135
    %v1143 = vadd.f32 %v1141, %v1142
    %v1144 = vtanh.pop %v1143
    %v1145 = vmul.f32 %v1139, %v1144
    %v1146 = vpack.c.bf16 %v1145, %v1145
    %1147 = vst [vmem:[#allocation4] sm:$0xff] %v1143
    %1148 = vst [vmem:[#allocation3] sm:$0xf] %v1146
    %s1149 = smul.u32 2, 4
    %s1150 = smul.addr %s1149, 8
    %s1151 = scalar_lea.vmem [#allocation2], %s1150
    %v1152 = vld [vmem:[%s1151] sm:$0xff]
    %v1153 = vld [vmem:[%s1151 + $0x8] sm:$0xff]
    %v1154 = vld [vmem:[%s1151 + $0x10] sm:$0xff]
    %v1155 = vld [vmem:[%s1151 + $0x18] sm:$0xff]
    %v1156 = vld [vmem:[#allocation3] sm:$0xf]
    %v1157 = vld [vmem:[#allocation10] sm:$0xff]
    %v1158 = vld [vmem:[#allocation10 + $0x8] sm:$0xff]
    %v1159 = vld [vmem:[#allocation10 + $0x10] sm:$0xff]
    %v1160 = vld [vmem:[#allocation10 + $0x18] sm:$0xff]
    %v1161 = vld [vmem:[#allocation10 + $0x20] sm:$0xff]
    %v1162 = vld [vmem:[#allocation10 + $0x28] sm:$0xff]
    %v1163 = vld [vmem:[#allocation10 + $0x30] sm:$0xff]
    %v1164 = vld [vmem:[#allocation10 + $0x38] sm:$0xff]
    %v1165 = vld [vmem:[#allocation10 + $0x40] sm:$0xff]
    %v1166 = vld [vmem:[#allocation10 + $0x48] sm:$0xff]
    %v1167 = vld [vmem:[#allocation10 + $0x50] sm:$0xff]
    %v1168 = vld [vmem:[#allocation10 + $0x58] sm:$0xff]
    %v1169 = vld [vmem:[#allocation10 + $0x60] sm:$0xff]
    %v1170 = vld [vmem:[#allocation10 + $0x68] sm:$0xff]
    %v1171 = vld [vmem:[#allocation10 + $0x70] sm:$0xff]
    %v1172 = vld [vmem:[#allocation10 + $0x78] sm:$0xff]
    %v1173 = vld [vmem:[#allocation10 + $0x80] sm:$0xff]
    %v1174 = vld [vmem:[#allocation10 + $0x88] sm:$0xff]
    %v1175 = vld [vmem:[#allocation10 + $0x90] sm:$0xff]
    %v1176 = vld [vmem:[#allocation10 + $0x98] sm:$0xff]
    %v1177 = vld [vmem:[#allocation10 + $0xa0] sm:$0xff]
    %v1178 = vld [vmem:[#allocation10 + $0xa8] sm:$0xff]
    %v1179 = vld [vmem:[#allocation10 + $0xb0] sm:$0xff]
    %v1180 = vld [vmem:[#allocation10 + $0xb8] sm:$0xff]
    %v1181 = vld [vmem:[#allocation10 + $0xc0] sm:$0xff]
    %v1182 = vld [vmem:[#allocation10 + $0xc8] sm:$0xff]
    %v1183 = vld [vmem:[#allocation10 + $0xd0] sm:$0xff]
    %v1184 = vld [vmem:[#allocation10 + $0xd8] sm:$0xff]
    %v1185 = vld [vmem:[#allocation10 + $0xe0] sm:$0xff]
    %v1186 = vld [vmem:[#allocation10 + $0xe8] sm:$0xff]
    %v1187 = vld [vmem:[#allocation10 + $0xf0] sm:$0xff]
    %v1188 = vld [vmem:[#allocation10 + $0xf8] sm:$0xff]
    %v1221 = vunpack.c.l.b16 %v1157
    %v1222 = vunpack.c.h.b16 %v1157
    %v1223 = vunpack.c.l.b16 %v1158
    %v1224 = vunpack.c.h.b16 %v1158
    %v1225 = vunpack.c.l.b16 %v1159
    %v1226 = vunpack.c.h.b16 %v1159
    %v1227 = vunpack.c.l.b16 %v1160
    %v1228 = vunpack.c.h.b16 %v1160
    %v1229 = vunpack.c.l.b16 %v1161
    %v1230 = vunpack.c.h.b16 %v1161
    %v1231 = vunpack.c.l.b16 %v1162
    %v1232 = vunpack.c.h.b16 %v1162
    %v1233 = vunpack.c.l.b16 %v1163
    %v1234 = vunpack.c.h.b16 %v1163
    %v1235 = vunpack.c.l.b16 %v1164
    %v1236 = vunpack.c.h.b16 %v1164
    %v1237 = vunpack.c.l.b16 %v1165
    %v1238 = vunpack.c.h.b16 %v1165
    %v1239 = vunpack.c.l.b16 %v1166
    %v1240 = vunpack.c.h.b16 %v1166
    %v1241 = vunpack.c.l.b16 %v1167
    %v1242 = vunpack.c.h.b16 %v1167
    %v1243 = vunpack.c.l.b16 %v1168
    %v1244 = vunpack.c.h.b16 %v1168
    %v1245 = vunpack.c.l.b16 %v1169
    %v1246 = vunpack.c.h.b16 %v1169
    %v1247 = vunpack.c.l.b16 %v1170
    %v1248 = vunpack.c.h.b16 %v1170
    %v1249 = vunpack.c.l.b16 %v1171
    %v1250 = vunpack.c.h.b16 %v1171
    %v1251 = vunpack.c.l.b16 %v1172
    %v1252 = vunpack.c.h.b16 %v1172
    %v1253 = vunpack.c.l.b16 %v1173
    %v1254 = vunpack.c.h.b16 %v1173
    %v1255 = vunpack.c.l.b16 %v1174
    %v1256 = vunpack.c.h.b16 %v1174
    %v1257 = vunpack.c.l.b16 %v1175
    %v1258 = vunpack.c.h.b16 %v1175
    %v1259 = vunpack.c.l.b16 %v1176
    %v1260 = vunpack.c.h.b16 %v1176
    %v1261 = vunpack.c.l.b16 %v1177
    %v1262 = vunpack.c.h.b16 %v1177
    %v1263 = vunpack.c.l.b16 %v1178
    %v1264 = vunpack.c.h.b16 %v1178
    %v1265 = vunpack.c.l.b16 %v1179
    %v1266 = vunpack.c.h.b16 %v1179
    %v1267 = vunpack.c.l.b16 %v1180
    %v1268 = vunpack.c.h.b16 %v1180
    %v1269 = vunpack.c.l.b16 %v1181
    %v1270 = vunpack.c.h.b16 %v1181
    %v1271 = vunpack.c.l.b16 %v1182
    %v1272 = vunpack.c.h.b16 %v1182
    %v1273 = vunpack.c.l.b16 %v1183
    %v1274 = vunpack.c.h.b16 %v1183
    %v1275 = vunpack.c.l.b16 %v1184
    %v1276 = vunpack.c.h.b16 %v1184
    %v1277 = vunpack.c.l.b16 %v1185
    %v1278 = vunpack.c.h.b16 %v1185
    %v1279 = vunpack.c.l.b16 %v1186
    %v1280 = vunpack.c.h.b16 %v1186
    %v1281 = vunpack.c.l.b16 %v1187
    %v1282 = vunpack.c.h.b16 %v1187
    %v1283 = vunpack.c.l.b16 %v1188
    %v1284 = vunpack.c.h.b16 %v1188
    %v1285 = vpack.c.b16 %v1225, %v1221
    %v1286 = vpack.c.b16 %v1226, %v1222
    %v1287 = vpack.c.b16 %v1227, %v1223
    %v1288 = vpack.c.b16 %v1228, %v1224
    %v1289 = vpack.c.b16 %v1233, %v1229
    %v1290 = vpack.c.b16 %v1234, %v1230
    %v1291 = vpack.c.b16 %v1235, %v1231
    %v1292 = vpack.c.b16 %v1236, %v1232
    %v1293 = vpack.c.b16 %v1241, %v1237
    %v1294 = vpack.c.b16 %v1242, %v1238
    %v1295 = vpack.c.b16 %v1243, %v1239
    %v1296 = vpack.c.b16 %v1244, %v1240
    %v1297 = vpack.c.b16 %v1249, %v1245
    %v1298 = vpack.c.b16 %v1250, %v1246
    %v1299 = vpack.c.b16 %v1251, %v1247
    %v1300 = vpack.c.b16 %v1252, %v1248
    %v1301 = vpack.c.b16 %v1257, %v1253
    %v1302 = vpack.c.b16 %v1258, %v1254
    %v1303 = vpack.c.b16 %v1259, %v1255
    %v1304 = vpack.c.b16 %v1260, %v1256
    %v1305 = vpack.c.b16 %v1265, %v1261
    %v1306 = vpack.c.b16 %v1266, %v1262
    %v1307 = vpack.c.b16 %v1267, %v1263
    %v1308 = vpack.c.b16 %v1268, %v1264
    %v1309 = vpack.c.b16 %v1273, %v1269
    %v1310 = vpack.c.b16 %v1274, %v1270
    %v1311 = vpack.c.b16 %v1275, %v1271
    %v1312 = vpack.c.b16 %v1276, %v1272
    %v1313 = vpack.c.b16 %v1281, %v1277
    %v1314 = vpack.c.b16 %v1282, %v1278
    %v1315 = vpack.c.b16 %v1283, %v1279
    %v1316 = vpack.c.b16 %v1284, %v1280
    %1349 = vmatprep.subr.bf16.mxu0 %v1286
    %1350 = vmatpush1.bf16.msra.mxu0 %v1285
    %1351 = vmatprep.subr.bf16.mxu0 %v1290
    %1352 = vmatpush1.bf16.msra.mxu0 %v1289
    %1353 = vmatprep.subr.bf16.mxu0 %v1294
    %1354 = vmatpush1.bf16.msra.mxu0 %v1293
    %1355 = vmatprep.subr.bf16.mxu0 %v1298
    %1356 = vmatpush1.bf16.msra.mxu0 %v1297
    %1357 = vmatprep.subr.bf16.mxu0 %v1302
    %1358 = vmatpush1.bf16.msra.mxu0 %v1301
    %1359 = vmatprep.subr.bf16.mxu0 %v1306
    %1360 = vmatpush1.bf16.msra.mxu0 %v1305
    %1361 = vmatprep.subr.bf16.mxu0 %v1310
    %1362 = vmatpush1.bf16.msra.mxu0 %v1309
    %1363 = vmatprep.subr.bf16.mxu0 %v1314
    %1364 = vmatpush1.bf16.msra.mxu0 %v1313
    %1365 = vmatprep.subr.bf16.mxu0 0
    %1366 = vmatpush1.bf16.msra.mxu0 0
    %1367 = vmatprep.subr.bf16.mxu0 0
    %1368 = vmatpush1.bf16.msra.mxu0 0
    %1369 = vmatprep.subr.bf16.mxu0 0
    %1370 = vmatpush1.bf16.msra.mxu0 0
    %1371 = vmatprep.subr.bf16.mxu0 0
    %1372 = vmatpush1.bf16.msra.mxu0 0
    %1373 = vmatprep.subr.bf16.mxu0 0
    %1374 = vmatpush1.bf16.msra.mxu0 0
    %1375 = vmatprep.subr.bf16.mxu0 0
    %1376 = vmatpush1.bf16.msra.mxu0 0
    %1377 = vmatprep.subr.bf16.mxu0 0
    %1378 = vmatpush1.bf16.msra.mxu0 0
    %1379 = vmatprep.subr.bf16.mxu0 0
    %1380 = vmatpush1.bf16.msra.mxu0 0
    %1381 = vmatprep.mubr.bf16.mxu0 0
    %1382 = vmatmul.mubr.bf16.gmra.mrb[0].mxu0 %v1156
    %v1383 = vpop.f32.mrb[0].mxu0
    %v1384 = vadd.f32 0.0, %v1383
    %v1385 = vpop.f32.mrb[0].mxu0
    %v1386 = vadd.f32 0.0, %v1385
    %v1387 = vpop.f32.mrb[0].mxu0
    %v1388 = vpop.f32.mrb[0].mxu0
    %1389 = vdwg.mxu0
    %1390 = vmatprep.subr.bf16.mxu0 %v1288
    %1391 = vmatpush1.bf16.msra.mxu0 %v1287
    %1392 = vmatprep.subr.bf16.mxu0 %v1292
    %1393 = vmatpush1.bf16.msra.mxu0 %v1291
    %1394 = vmatprep.subr.bf16.mxu0 %v1296
    %1395 = vmatpush1.bf16.msra.mxu0 %v1295
    %1396 = vmatprep.subr.bf16.mxu0 %v1300
    %1397 = vmatpush1.bf16.msra.mxu0 %v1299
    %1398 = vmatprep.subr.bf16.mxu0 %v1304
    %1399 = vmatpush1.bf16.msra.mxu0 %v1303
    %1400 = vmatprep.subr.bf16.mxu0 %v1308
    %1401 = vmatpush1.bf16.msra.mxu0 %v1307
    %1402 = vmatprep.subr.bf16.mxu0 %v1312
    %1403 = vmatpush1.bf16.msra.mxu0 %v1311
    %1404 = vmatprep.subr.bf16.mxu0 %v1316
    %1405 = vmatpush1.bf16.msra.mxu0 %v1315
    %1406 = vmatprep.subr.bf16.mxu0 0
    %1407 = vmatpush1.bf16.msra.mxu0 0
    %1408 = vmatprep.subr.bf16.mxu0 0
    %1409 = vmatpush1.bf16.msra.mxu0 0
    %1410 = vmatprep.subr.bf16.mxu0 0
    %1411 = vmatpush1.bf16.msra.mxu0 0
    %1412 = vmatprep.subr.bf16.mxu0 0
    %1413 = vmatpush1.bf16.msra.mxu0 0
    %1414 = vmatprep.subr.bf16.mxu0 0
    %1415 = vmatpush1.bf16.msra.mxu0 0
    %1416 = vmatprep.subr.bf16.mxu0 0
    %1417 = vmatpush1.bf16.msra.mxu0 0
    %1418 = vmatprep.subr.bf16.mxu0 0
    %1419 = vmatpush1.bf16.msra.mxu0 0
    %1420 = vmatprep.subr.bf16.mxu0 0
    %1421 = vmatpush1.bf16.msra.mxu0 0
    %1422 = vmatprep.mubr.bf16.mxu0 0
    %1423 = vmatmul.mubr.bf16.gmra.mrb[0].mxu0 %v1156
    %v1424 = vpop.f32.mrb[0].mxu0
    %v1425 = vadd.f32 0.0, %v1424
    %v1426 = vpop.f32.mrb[0].mxu0
    %v1427 = vadd.f32 0.0, %v1426
    %v1428 = vpop.f32.mrb[0].mxu0
    %v1429 = vpop.f32.mrb[0].mxu0
    %1430 = vdwg.mxu0
    %v1431 = vadd.f32 %v1152, %v1384
    %v1432 = vadd.f32 %v1153, %v1386
    %v1433 = vadd.f32 %v1154, %v1425
    %v1434 = vadd.f32 %v1155, %v1427
    %v1435 = vmul.f32 %v1431, 0.5
    %v1436 = vtanh.pop %v1435
    %v1437 = vmul.f32 %v1436, 0.5
    %v1438 = vadd.f32 %v1437, 0.5
    %v1439 = vmul.f32 %v1432, 0.5
    %v1440 = vtanh.pop %v1439
    %v1441 = vmul.f32 %v1440, 0.5
    %v1442 = vadd.f32 %v1441, 0.5
    %v1443 = vtanh.pop %v1433
    %v1444 = vmul.f32 %v1434, 0.5
    %v1445 = vtanh.pop %v1444
    %v1446 = vmul.f32 %v1445, 0.5
    %v1447 = vadd.f32 %v1446, 0.5
    %v1448 = vld [vmem:[#allocation4] sm:$0xff]
    %v1449 = vmul.f32 %v1442, %v1448
    %v1450 = vmul.f32 %v1438, %v1443
    %v1451 = vadd.f32 %v1449, %v1450
    %v1452 = vtanh.pop %v1451
    %v1453 = vmul.f32 %v1447, %v1452
    %v1454 = vpack.c.bf16 %v1453, %v1453
    %1455 = vst [vmem:[#allocation4] sm:$0xff] %v1451
    %1456 = vst [vmem:[#allocation3] sm:$0xf] %v1454
    %s1457 = smul.u32 3, 4
    %s1458 = smul.addr %s1457, 8
    %s1459 = scalar_lea.vmem [#allocation2], %s1458
    %v1460 = vld [vmem:[%s1459] sm:$0xff]
    %v1461 = vld [vmem:[%s1459 + $0x8] sm:$0xff]
    %v1462 = vld [vmem:[%s1459 + $0x10] sm:$0xff]
    %v1463 = vld [vmem:[%s1459 + $0x18] sm:$0xff]
    %v1464 = vld [vmem:[#allocation3] sm:$0xf]
    %v1465 = vld [vmem:[#allocation10] sm:$0xff]
    %v1466 = vld [vmem:[#allocation10 + $0x8] sm:$0xff]
    %v1467 = vld [vmem:[#allocation10 + $0x10] sm:$0xff]
    %v1468 = vld [vmem:[#allocation10 + $0x18] sm:$0xff]
    %v1469 = vld [vmem:[#allocation10 + $0x20] sm:$0xff]
    %v1470 = vld [vmem:[#allocation10 + $0x28] sm:$0xff]
    %v1471 = vld [vmem:[#allocation10 + $0x30] sm:$0xff]
    %v1472 = vld [vmem:[#allocation10 + $0x38] sm:$0xff]
    %v1473 = vld [vmem:[#allocation10 + $0x40] sm:$0xff]
    %v1474 = vld [vmem:[#allocation10 + $0x48] sm:$0xff]
    %v1475 = vld [vmem:[#allocation10 + $0x50] sm:$0xff]
    %v1476 = vld [vmem:[#allocation10 + $0x58] sm:$0xff]
    %v1477 = vld [vmem:[#allocation10 + $0x60] sm:$0xff]
    %v1478 = vld [vmem:[#allocation10 + $0x68] sm:$0xff]
    %v1479 = vld [vmem:[#allocation10 + $0x70] sm:$0xff]
    %v1480 = vld [vmem:[#allocation10 + $0x78] sm:$0xff]
    %v1481 = vld [vmem:[#allocation10 + $0x80] sm:$0xff]
    %v1482 = vld [vmem:[#allocation10 + $0x88] sm:$0xff]
    %v1483 = vld [vmem:[#allocation10 + $0x90] sm:$0xff]
    %v1484 = vld [vmem:[#allocation10 + $0x98] sm:$0xff]
    %v1485 = vld [vmem:[#allocation10 + $0xa0] sm:$0xff]
    %v1486 = vld [vmem:[#allocation10 + $0xa8] sm:$0xff]
    %v1487 = vld [vmem:[#allocation10 + $0xb0] sm:$0xff]
    %v1488 = vld [vmem:[#allocation10 + $0xb8] sm:$0xff]
    %v1489 = vld [vmem:[#allocation10 + $0xc0] sm:$0xff]
    %v1490 = vld [vmem:[#allocation10 + $0xc8] sm:$0xff]
    %v1491 = vld [vmem:[#allocation10 + $0xd0] sm:$0xff]
    %v1492 = vld [vmem:[#allocation10 + $0xd8] sm:$0xff]
    %v1493 = vld [vmem:[#allocation10 + $0xe0] sm:$0xff]
    %v1494 = vld [vmem:[#allocation10 + $0xe8] sm:$0xff]
    %v1495 = vld [vmem:[#allocation10 + $0xf0] sm:$0xff]
    %v1496 = vld [vmem:[#allocation10 + $0xf8] sm:$0xff]
    %v1529 = vunpack.c.l.b16 %v1465
    %v1530 = vunpack.c.h.b16 %v1465
    %v1531 = vunpack.c.l.b16 %v1466
    %v1532 = vunpack.c.h.b16 %v1466
    %v1533 = vunpack.c.l.b16 %v1467
    %v1534 = vunpack.c.h.b16 %v1467
    %v1535 = vunpack.c.l.b16 %v1468
    %v1536 = vunpack.c.h.b16 %v1468
    %v1537 = vunpack.c.l.b16 %v1469
    %v1538 = vunpack.c.h.b16 %v1469
    %v1539 = vunpack.c.l.b16 %v1470
    %v1540 = vunpack.c.h.b16 %v1470
    %v1541 = vunpack.c.l.b16 %v1471
    %v1542 = vunpack.c.h.b16 %v1471
    %v1543 = vunpack.c.l.b16 %v1472
    %v1544 = vunpack.c.h.b16 %v1472
    %v1545 = vunpack.c.l.b16 %v1473
    %v1546 = vunpack.c.h.b16 %v1473
    %v1547 = vunpack.c.l.b16 %v1474
    %v1548 = vunpack.c.h.b16 %v1474
    %v1549 = vunpack.c.l.b16 %v1475
    %v1550 = vunpack.c.h.b16 %v1475
    %v1551 = vunpack.c.l.b16 %v1476
    %v1552 = vunpack.c.h.b16 %v1476
    %v1553 = vunpack.c.l.b16 %v1477
    %v1554 = vunpack.c.h.b16 %v1477
    %v1555 = vunpack.c.l.b16 %v1478
    %v1556 = vunpack.c.h.b16 %v1478
    %v1557 = vunpack.c.l.b16 %v1479
    %v1558 = vunpack.c.h.b16 %v1479
    %v1559 = vunpack.c.l.b16 %v1480
    %v1560 = vunpack.c.h.b16 %v1480
    %v1561 = vunpack.c.l.b16 %v1481
    %v1562 = vunpack.c.h.b16 %v1481
    %v1563 = vunpack.c.l.b16 %v1482
    %v1564 = vunpack.c.h.b16 %v1482
    %v1565 = vunpack.c.l.b16 %v1483
    %v1566 = vunpack.c.h.b16 %v1483
    %v1567 = vunpack.c.l.b16 %v1484
    %v1568 = vunpack.c.h.b16 %v1484
    %v1569 = vunpack.c.l.b16 %v1485
    %v1570 = vunpack.c.h.b16 %v1485
    %v1571 = vunpack.c.l.b16 %v1486
    %v1572 = vunpack.c.h.b16 %v1486
    %v1573 = vunpack.c.l.b16 %v1487
    %v1574 = vunpack.c.h.b16 %v1487
    %v1575 = vunpack.c.l.b16 %v1488
    %v1576 = vunpack.c.h.b16 %v1488
    %v1577 = vunpack.c.l.b16 %v1489
    %v1578 = vunpack.c.h.b16 %v1489
    %v1579 = vunpack.c.l.b16 %v1490
    %v1580 = vunpack.c.h.b16 %v1490
    %v1581 = vunpack.c.l.b16 %v1491
    %v1582 = vunpack.c.h.b16 %v1491
    %v1583 = vunpack.c.l.b16 %v1492
    %v1584 = vunpack.c.h.b16 %v1492
    %v1585 = vunpack.c.l.b16 %v1493
    %v1586 = vunpack.c.h.b16 %v1493
    %v1587 = vunpack.c.l.b16 %v1494
    %v1588 = vunpack.c.h.b16 %v1494
    %v1589 = vunpack.c.l.b16 %v1495
    %v1590 = vunpack.c.h.b16 %v1495
    %v1591 = vunpack.c.l.b16 %v1496
    %v1592 = vunpack.c.h.b16 %v1496
    %v1593 = vpack.c.b16 %v1533, %v1529
    %v1594 = vpack.c.b16 %v1534, %v1530
    %v1595 = vpack.c.b16 %v1535, %v1531
    %v1596 = vpack.c.b16 %v1536, %v1532
    %v1597 = vpack.c.b16 %v1541, %v1537
    %v1598 = vpack.c.b16 %v1542, %v1538
    %v1599 = vpack.c.b16 %v1543, %v1539
    %v1600 = vpack.c.b16 %v1544, %v1540
    %v1601 = vpack.c.b16 %v1549, %v1545
    %v1602 = vpack.c.b16 %v1550, %v1546
    %v1603 = vpack.c.b16 %v1551, %v1547
    %v1604 = vpack.c.b16 %v1552, %v1548
    %v1605 = vpack.c.b16 %v1557, %v1553
    %v1606 = vpack.c.b16 %v1558, %v1554
    %v1607 = vpack.c.b16 %v1559, %v1555
    %v1608 = vpack.c.b16 %v1560, %v1556
    %v1609 = vpack.c.b16 %v1565, %v1561
    %v1610 = vpack.c.b16 %v1566, %v1562
    %v1611 = vpack.c.b16 %v1567, %v1563
    %v1612 = vpack.c.b16 %v1568, %v1564
    %v1613 = vpack.c.b16 %v1573, %v1569
    %v1614 = vpack.c.b16 %v1574, %v1570
    %v1615 = vpack.c.b16 %v1575, %v1571
    %v1616 = vpack.c.b16 %v1576, %v1572
    %v1617 = vpack.c.b16 %v1581, %v1577
    %v1618 = vpack.c.b16 %v1582, %v1578
    %v1619 = vpack.c.b16 %v1583, %v1579
    %v1620 = vpack.c.b16 %v1584, %v1580
    %v1621 = vpack.c.b16 %v1589, %v1585
    %v1622 = vpack.c.b16 %v1590, %v1586
    %v1623 = vpack.c.b16 %v1591, %v1587
    %v1624 = vpack.c.b16 %v1592, %v1588
    %1657 = vmatprep.subr.bf16.mxu0 %v1594
    %1658 = vmatpush1.bf16.msra.mxu0 %v1593
    %1659 = vmatprep.subr.bf16.mxu0 %v1598
    %1660 = vmatpush1.bf16.msra.mxu0 %v1597
    %1661 = vmatprep.subr.bf16.mxu0 %v1602
    %1662 = vmatpush1.bf16.msra.mxu0 %v1601
    %1663 = vmatprep.subr.bf16.mxu0 %v1606
    %1664 = vmatpush1.bf16.msra.mxu0 %v1605
    %1665 = vmatprep.subr.bf16.mxu0 %v1610
    %1666 = vmatpush1.bf16.msra.mxu0 %v1609
    %1667 = vmatprep.subr.bf16.mxu0 %v1614
    %1668 = vmatpush1.bf16.msra.mxu0 %v1613
    %1669 = vmatprep.subr.bf16.mxu0 %v1618
    %1670 = vmatpush1.bf16.msra.mxu0 %v1617
    %1671 = vmatprep.subr.bf16.mxu0 %v1622
    %1672 = vmatpush1.bf16.msra.mxu0 %v1621
    %1673 = vmatprep.subr.bf16.mxu0 0
    %1674 = vmatpush1.bf16.msra.mxu0 0
    %1675 = vmatprep.subr.bf16.mxu0 0
    %1676 = vmatpush1.bf16.msra.mxu0 0
    %1677 = vmatprep.subr.bf16.mxu0 0
    %1678 = vmatpush1.bf16.msra.mxu0 0
    %1679 = vmatprep.subr.bf16.mxu0 0
    %1680 = vmatpush1.bf16.msra.mxu0 0
    %1681 = vmatprep.subr.bf16.mxu0 0
    %1682 = vmatpush1.bf16.msra.mxu0 0
    %1683 = vmatprep.subr.bf16.mxu0 0
    %1684 = vmatpush1.bf16.msra.mxu0 0
    %1685 = vmatprep.subr.bf16.mxu0 0
    %1686 = vmatpush1.bf16.msra.mxu0 0
    %1687 = vmatprep.subr.bf16.mxu0 0
    %1688 = vmatpush1.bf16.msra.mxu0 0
    %1689 = vmatprep.mubr.bf16.mxu0 0
    %1690 = vmatmul.mubr.bf16.gmra.mrb[0].mxu0 %v1464
    %v1691 = vpop.f32.mrb[0].mxu0
    %v1692 = vadd.f32 0.0, %v1691
    %v1693 = vpop.f32.mrb[0].mxu0
    %v1694 = vadd.f32 0.0, %v1693
    %v1695 = vpop.f32.mrb[0].mxu0
    %v1696 = vpop.f32.mrb[0].mxu0
    %1697 = vdwg.mxu0
    %1698 = vmatprep.subr.bf16.mxu0 %v1596
    %1699 = vmatpush1.bf16.msra.mxu0 %v1595
    %1700 = vmatprep.subr.bf16.mxu0 %v1600
    %1701 = vmatpush1.bf16.msra.mxu0 %v1599
    %1702 = vmatprep.subr.bf16.mxu0 %v1604
    %1703 = vmatpush1.bf16.msra.mxu0 %v1603
    %1704 = vmatprep.subr.bf16.mxu0 %v1608
    %1705 = vmatpush1.bf16.msra.mxu0 %v1607
    %1706 = vmatprep.subr.bf16.mxu0 %v1612
    %1707 = vmatpush1.bf16.msra.mxu0 %v1611
    %1708 = vmatprep.subr.bf16.mxu0 %v1616
    %1709 = vmatpush1.bf16.msra.mxu0 %v1615
    %1710 = vmatprep.subr.bf16.mxu0 %v1620
    %1711 = vmatpush1.bf16.msra.mxu0 %v1619
    %1712 = vmatprep.subr.bf16.mxu0 %v1624
    %1713 = vmatpush1.bf16.msra.mxu0 %v1623
    %1714 = vmatprep.subr.bf16.mxu0 0
    %1715 = vmatpush1.bf16.msra.mxu0 0
    %1716 = vmatprep.subr.bf16.mxu0 0
    %1717 = vmatpush1.bf16.msra.mxu0 0
    %1718 = vmatprep.subr.bf16.mxu0 0
    %1719 = vmatpush1.bf16.msra.mxu0 0
    %1720 = vmatprep.subr.bf16.mxu0 0
    %1721 = vmatpush1.bf16.msra.mxu0 0
    %1722 = vmatprep.subr.bf16.mxu0 0
    %1723 = vmatpush1.bf16.msra.mxu0 0
    %1724 = vmatprep.subr.bf16.mxu0 0
    %1725 = vmatpush1.bf16.msra.mxu0 0
    %1726 = vmatprep.subr.bf16.mxu0 0
    %1727 = vmatpush1.bf16.msra.mxu0 0
    %1728 = vmatprep.subr.bf16.mxu0 0
    %1729 = vmatpush1.bf16.msra.mxu0 0
    %1730 = vmatprep.mubr.bf16.mxu0 0
    %1731 = vmatmul.mubr.bf16.gmra.mrb[0].mxu0 %v1464
    %v1732 = vpop.f32.mrb[0].mxu0
    %v1733 = vadd.f32 0.0, %v1732
    %v1734 = vpop.f32.mrb[0].mxu0
    %v1735 = vadd.f32 0.0, %v1734
    %v1736 = vpop.f32.mrb[0].mxu0
    %v1737 = vpop.f32.mrb[0].mxu0
    %1738 = vdwg.mxu0
    %v1739 = vadd.f32 %v1460, %v1692
    %v1740 = vadd.f32 %v1461, %v1694
    %v1741 = vadd.f32 %v1462, %v1733
    %v1742 = vadd.f32 %v1463, %v1735
    %v1743 = vmul.f32 %v1739, 0.5
    %v1744 = vtanh.pop %v1743
    %v1745 = vmul.f32 %v1744, 0.5
    %v1746 = vadd.f32 %v1745, 0.5
    %v1747 = vmul.f32 %v1740, 0.5
    %v1748 = vtanh.pop %v1747
    %v1749 = vmul.f32 %v1748, 0.5
    %v1750 = vadd.f32 %v1749, 0.5
    %v1751 = vtanh.pop %v1741
    %v1752 = vmul.f32 %v1742, 0.5
    %v1753 = vtanh.pop %v1752
    %v1754 = vmul.f32 %v1753, 0.5
    %v1755 = vadd.f32 %v1754, 0.5
    %v1756 = vld [vmem:[#allocation4] sm:$0xff]
    %v1757 = vmul.f32 %v1750, %v1756
    %v1758 = vmul.f32 %v1746, %v1751
    %v1759 = vadd.f32 %v1757, %v1758
    %v1760 = vtanh.pop %v1759
    %v1761 = vmul.f32 %v1755, %v1760
    %v1762 = vpack.c.bf16 %v1761, %v1761
    %1763 = vst [vmem:[#allocation4] sm:$0xff] %v1759
    %1764 = vst [vmem:[#allocation3] sm:$0xf] %v1762
    %s1765 = smul.u32 4, 4
    %s1766 = smul.addr %s1765, 8
    %s1767 = scalar_lea.vmem [#allocation2], %s1766
    %v1768 = vld [vmem:[%s1767] sm:$0xff]
    %v1769 = vld [vmem:[%s1767 + $0x8] sm:$0xff]
    %v1770 = vld [vmem:[%s1767 + $0x10] sm:$0xff]
    %v1771 = vld [vmem:[%s1767 + $0x18] sm:$0xff]
    %v1772 = vld [vmem:[#allocation3] sm:$0xf]
    %v1773 = vld [vmem:[#allocation10] sm:$0xff]
    %v1774 = vld [vmem:[#allocation10 + $0x8] sm:$0xff]
    %v1775 = vld [vmem:[#allocation10 + $0x10] sm:$0xff]
    %v1776 = vld [vmem:[#allocation10 + $0x18] sm:$0xff]
    %v1777 = vld [vmem:[#allocation10 + $0x20] sm:$0xff]
    %v1778 = vld [vmem:[#allocation10 + $0x28] sm:$0xff]
    %v1779 = vld [vmem:[#allocation10 + $0x30] sm:$0xff]
    %v1780 = vld [vmem:[#allocation10 + $0x38] sm:$0xff]
    %v1781 = vld [vmem:[#allocation10 + $0x40] sm:$0xff]
    %v1782 = vld [vmem:[#allocation10 + $0x48] sm:$0xff]
    %v1783 = vld [vmem:[#allocation10 + $0x50] sm:$0xff]
    %v1784 = vld [vmem:[#allocation10 + $0x58] sm:$0xff]
    %v1785 = vld [vmem:[#allocation10 + $0x60] sm:$0xff]
    %v1786 = vld [vmem:[#allocation10 + $0x68] sm:$0xff]
    %v1787 = vld [vmem:[#allocation10 + $0x70] sm:$0xff]
    %v1788 = vld [vmem:[#allocation10 + $0x78] sm:$0xff]
    %v1789 = vld [vmem:[#allocation10 + $0x80] sm:$0xff]
    %v1790 = vld [vmem:[#allocation10 + $0x88] sm:$0xff]
    %v1791 = vld [vmem:[#allocation10 + $0x90] sm:$0xff]
    %v1792 = vld [vmem:[#allocation10 + $0x98] sm:$0xff]
    %v1793 = vld [vmem:[#allocation10 + $0xa0] sm:$0xff]
    %v1794 = vld [vmem:[#allocation10 + $0xa8] sm:$0xff]
    %v1795 = vld [vmem:[#allocation10 + $0xb0] sm:$0xff]
    %v1796 = vld [vmem:[#allocation10 + $0xb8] sm:$0xff]
    %v1797 = vld [vmem:[#allocation10 + $0xc0] sm:$0xff]
    %v1798 = vld [vmem:[#allocation10 + $0xc8] sm:$0xff]
    %v1799 = vld [vmem:[#allocation10 + $0xd0] sm:$0xff]
    %v1800 = vld [vmem:[#allocation10 + $0xd8] sm:$0xff]
    %v1801 = vld [vmem:[#allocation10 + $0xe0] sm:$0xff]
    %v1802 = vld [vmem:[#allocation10 + $0xe8] sm:$0xff]
    %v1803 = vld [vmem:[#allocation10 + $0xf0] sm:$0xff]
    %v1804 = vld [vmem:[#allocation10 + $0xf8] sm:$0xff]
    %v1837 = vunpack.c.l.b16 %v1773
    %v1838 = vunpack.c.h.b16 %v1773
    %v1839 = vunpack.c.l.b16 %v1774
    %v1840 = vunpack.c.h.b16 %v1774
    %v1841 = vunpack.c.l.b16 %v1775
    %v1842 = vunpack.c.h.b16 %v1775
    %v1843 = vunpack.c.l.b16 %v1776
    %v1844 = vunpack.c.h.b16 %v1776
    %v1845 = vunpack.c.l.b16 %v1777
    %v1846 = vunpack.c.h.b16 %v1777
    %v1847 = vunpack.c.l.b16 %v1778
    %v1848 = vunpack.c.h.b16 %v1778
    %v1849 = vunpack.c.l.b16 %v1779
    %v1850 = vunpack.c.h.b16 %v1779
    %v1851 = vunpack.c.l.b16 %v1780
    %v1852 = vunpack.c.h.b16 %v1780
    %v1853 = vunpack.c.l.b16 %v1781
    %v1854 = vunpack.c.h.b16 %v1781
    %v1855 = vunpack.c.l.b16 %v1782
    %v1856 = vunpack.c.h.b16 %v1782
    %v1857 = vunpack.c.l.b16 %v1783
    %v1858 = vunpack.c.h.b16 %v1783
    %v1859 = vunpack.c.l.b16 %v1784
    %v1860 = vunpack.c.h.b16 %v1784
    %v1861 = vunpack.c.l.b16 %v1785
    %v1862 = vunpack.c.h.b16 %v1785
    %v1863 = vunpack.c.l.b16 %v1786
    %v1864 = vunpack.c.h.b16 %v1786
    %v1865 = vunpack.c.l.b16 %v1787
    %v1866 = vunpack.c.h.b16 %v1787
    %v1867 = vunpack.c.l.b16 %v1788
    %v1868 = vunpack.c.h.b16 %v1788
    %v1869 = vunpack.c.l.b16 %v1789
    %v1870 = vunpack.c.h.b16 %v1789
    %v1871 = vunpack.c.l.b16 %v1790
    %v1872 = vunpack.c.h.b16 %v1790
    %v1873 = vunpack.c.l.b16 %v1791
    %v1874 = vunpack.c.h.b16 %v1791
    %v1875 = vunpack.c.l.b16 %v1792
    %v1876 = vunpack.c.h.b16 %v1792
    %v1877 = vunpack.c.l.b16 %v1793
    %v1878 = vunpack.c.h.b16 %v1793
    %v1879 = vunpack.c.l.b16 %v1794
    %v1880 = vunpack.c.h.b16 %v1794
    %v1881 = vunpack.c.l.b16 %v1795
    %v1882 = vunpack.c.h.b16 %v1795
    %v1883 = vunpack.c.l.b16 %v1796
    %v1884 = vunpack.c.h.b16 %v1796
    %v1885 = vunpack.c.l.b16 %v1797
    %v1886 = vunpack.c.h.b16 %v1797
    %v1887 = vunpack.c.l.b16 %v1798
    %v1888 = vunpack.c.h.b16 %v1798
    %v1889 = vunpack.c.l.b16 %v1799
    %v1890 = vunpack.c.h.b16 %v1799
    %v1891 = vunpack.c.l.b16 %v1800
    %v1892 = vunpack.c.h.b16 %v1800
    %v1893 = vunpack.c.l.b16 %v1801
    %v1894 = vunpack.c.h.b16 %v1801
    %v1895 = vunpack.c.l.b16 %v1802
    %v1896 = vunpack.c.h.b16 %v1802
    %v1897 = vunpack.c.l.b16 %v1803
    %v1898 = vunpack.c.h.b16 %v1803
    %v1899 = vunpack.c.l.b16 %v1804
    %v1900 = vunpack.c.h.b16 %v1804
    %v1901 = vpack.c.b16 %v1841, %v1837
    %v1902 = vpack.c.b16 %v1842, %v1838
    %v1903 = vpack.c.b16 %v1843, %v1839
    %v1904 = vpack.c.b16 %v1844, %v1840
    %v1905 = vpack.c.b16 %v1849, %v1845
    %v1906 = vpack.c.b16 %v1850, %v1846
    %v1907 = vpack.c.b16 %v1851, %v1847
    %v1908 = vpack.c.b16 %v1852, %v1848
    %v1909 = vpack.c.b16 %v1857, %v1853
    %v1910 = vpack.c.b16 %v1858, %v1854
    %v1911 = vpack.c.b16 %v1859, %v1855
    %v1912 = vpack.c.b16 %v1860, %v1856
    %v1913 = vpack.c.b16 %v1865, %v1861
    %v1914 = vpack.c.b16 %v1866, %v1862
    %v1915 = vpack.c.b16 %v1867, %v1863
    %v1916 = vpack.c.b16 %v1868, %v1864
    %v1917 = vpack.c.b16 %v1873, %v1869
    %v1918 = vpack.c.b16 %v1874, %v1870
    %v1919 = vpack.c.b16 %v1875, %v1871
    %v1920 = vpack.c.b16 %v1876, %v1872
    %v1921 = vpack.c.b16 %v1881, %v1877
    %v1922 = vpack.c.b16 %v1882, %v1878
    %v1923 = vpack.c.b16 %v1883, %v1879
    %v1924 = vpack.c.b16 %v1884, %v1880
    %v1925 = vpack.c.b16 %v1889, %v1885
    %v1926 = vpack.c.b16 %v1890, %v1886
    %v1927 = vpack.c.b16 %v1891, %v1887
    %v1928 = vpack.c.b16 %v1892, %v1888
    %v1929 = vpack.c.b16 %v1897, %v1893
    %v1930 = vpack.c.b16 %v1898, %v1894
    %v1931 = vpack.c.b16 %v1899, %v1895
    %v1932 = vpack.c.b16 %v1900, %v1896
    %1965 = vmatprep.subr.bf16.mxu0 %v1902
    %1966 = vmatpush1.bf16.msra.mxu0 %v1901
    %1967 = vmatprep.subr.bf16.mxu0 %v1906
    %1968 = vmatpush1.bf16.msra.mxu0 %v1905
    %1969 = vmatprep.subr.bf16.mxu0 %v1910
    %1970 = vmatpush1.bf16.msra.mxu0 %v1909
    %1971 = vmatprep.subr.bf16.mxu0 %v1914
    %1972 = vmatpush1.bf16.msra.mxu0 %v1913
    %1973 = vmatprep.subr.bf16.mxu0 %v1918
    %1974 = vmatpush1.bf16.msra.mxu0 %v1917
    %1975 = vmatprep.subr.bf16.mxu0 %v1922
    %1976 = vmatpush1.bf16.msra.mxu0 %v1921
    %1977 = vmatprep.subr.bf16.mxu0 %v1926
    %1978 = vmatpush1.bf16.msra.mxu0 %v1925
    %1979 = vmatprep.subr.bf16.mxu0 %v1930
    %1980 = vmatpush1.bf16.msra.mxu0 %v1929
    %1981 = vmatprep.subr.bf16.mxu0 0
    %1982 = vmatpush1.bf16.msra.mxu0 0
    %1983 = vmatprep.subr.bf16.mxu0 0
    %1984 = vmatpush1.bf16.msra.mxu0 0
    %1985 = vmatprep.subr.bf16.mxu0 0
    %1986 = vmatpush1.bf16.msra.mxu0 0
    %1987 = vmatprep.subr.bf16.mxu0 0
    %1988 = vmatpush1.bf16.msra.mxu0 0
    %1989 = vmatprep.subr.bf16.mxu0 0
    %1990 = vmatpush1.bf16.msra.mxu0 0
    %1991 = vmatprep.subr.bf16.mxu0 0
    %1992 = vmatpush1.bf16.msra.mxu0 0
    %1993 = vmatprep.subr.bf16.mxu0 0
    %1994 = vmatpush1.bf16.msra.mxu0 0
    %1995 = vmatprep.subr.bf16.mxu0 0
    %1996 = vmatpush1.bf16.msra.mxu0 0
    %1997 = vmatprep.mubr.bf16.mxu0 0
    %1998 = vmatmul.mubr.bf16.gmra.mrb[0].mxu0 %v1772
    %v1999 = vpop.f32.mrb[0].mxu0
    %v2000 = vadd.f32 0.0, %v1999
    %v2001 = vpop.f32.mrb[0].mxu0
    %v2002 = vadd.f32 0.0, %v2001
    %v2003 = vpop.f32.mrb[0].mxu0
    %v2004 = vpop.f32.mrb[0].mxu0
    %2005 = vdwg.mxu0
    %2006 = vmatprep.subr.bf16.mxu0 %v1904
    %2007 = vmatpush1.bf16.msra.mxu0 %v1903
    %2008 = vmatprep.subr.bf16.mxu0 %v1908
    %2009 = vmatpush1.bf16.msra.mxu0 %v1907
    %2010 = vmatprep.subr.bf16.mxu0 %v1912
    %2011 = vmatpush1.bf16.msra.mxu0 %v1911
    %2012 = vmatprep.subr.bf16.mxu0 %v1916
    %2013 = vmatpush1.bf16.msra.mxu0 %v1915
    %2014 = vmatprep.subr.bf16.mxu0 %v1920
    %2015 = vmatpush1.bf16.msra.mxu0 %v1919
    %2016 = vmatprep.subr.bf16.mxu0 %v1924
    %2017 = vmatpush1.bf16.msra.mxu0 %v1923
    %2018 = vmatprep.subr.bf16.mxu0 %v1928
    %2019 = vmatpush1.bf16.msra.mxu0 %v1927
    %2020 = vmatprep.subr.bf16.mxu0 %v1932
    %2021 = vmatpush1.bf16.msra.mxu0 %v1931
    %2022 = vmatprep.subr.bf16.mxu0 0
    %2023 = vmatpush1.bf16.msra.mxu0 0
    %2024 = vmatprep.subr.bf16.mxu0 0
    %2025 = vmatpush1.bf16.msra.mxu0 0
    %2026 = vmatprep.subr.bf16.mxu0 0
    %2027 = vmatpush1.bf16.msra.mxu0 0
    %2028 = vmatprep.subr.bf16.mxu0 0
    %2029 = vmatpush1.bf16.msra.mxu0 0
    %2030 = vmatprep.subr.bf16.mxu0 0
    %2031 = vmatpush1.bf16.msra.mxu0 0
    %2032 = vmatprep.subr.bf16.mxu0 0
    %2033 = vmatpush1.bf16.msra.mxu0 0
    %2034 = vmatprep.subr.bf16.mxu0 0
    %2035 = vmatpush1.bf16.msra.mxu0 0
    %2036 = vmatprep.subr.bf16.mxu0 0
    %2037 = vmatpush1.bf16.msra.mxu0 0
    %2038 = vmatprep.mubr.bf16.mxu0 0
    %2039 = vmatmul.mubr.bf16.gmra.mrb[0].mxu0 %v1772
    %v2040 = vpop.f32.mrb[0].mxu0
    %v2041 = vadd.f32 0.0, %v2040
    %v2042 = vpop.f32.mrb[0].mxu0
    %v2043 = vadd.f32 0.0, %v2042
    %v2044 = vpop.f32.mrb[0].mxu0
    %v2045 = vpop.f32.mrb[0].mxu0
    %2046 = vdwg.mxu0
    %v2047 = vadd.f32 %v1768, %v2000
    %v2048 = vadd.f32 %v1769, %v2002
    %v2049 = vadd.f32 %v1770, %v2041
    %v2050 = vadd.f32 %v1771, %v2043
    %v2051 = vmul.f32 %v2047, 0.5
    %v2052 = vtanh.pop %v2051
    %v2053 = vmul.f32 %v2052, 0.5
    %v2054 = vadd.f32 %v2053, 0.5
    %v2055 = vmul.f32 %v2048, 0.5
    %v2056 = vtanh.pop %v2055
    %v2057 = vmul.f32 %v2056, 0.5
    %v2058 = vadd.f32 %v2057, 0.5
    %v2059 = vtanh.pop %v2049
    %v2060 = vmul.f32 %v2050, 0.5
    %v2061 = vtanh.pop %v2060
    %v2062 = vmul.f32 %v2061, 0.5
    %v2063 = vadd.f32 %v2062, 0.5
    %v2064 = vld [vmem:[#allocation4] sm:$0xff]
    %v2065 = vmul.f32 %v2058, %v2064
    %v2066 = vmul.f32 %v2054, %v2059
    %v2067 = vadd.f32 %v2065, %v2066
    %v2068 = vtanh.pop %v2067
    %v2069 = vmul.f32 %v2063, %v2068
    %v2070 = vpack.c.bf16 %v2069, %v2069
    %2071 = vst [vmem:[#allocation4] sm:$0xff] %v2067
    %2072 = vst [vmem:[#allocation3] sm:$0xf] %v2070
    %s2073 = smul.u32 5, 4
    %s2074 = smul.addr %s2073, 8
    %s2075 = scalar_lea.vmem [#allocation2], %s2074
    %v2076 = vld [vmem:[%s2075] sm:$0xff]
    %v2077 = vld [vmem:[%s2075 + $0x8] sm:$0xff]
    %v2078 = vld [vmem:[%s2075 + $0x10] sm:$0xff]
    %v2079 = vld [vmem:[%s2075 + $0x18] sm:$0xff]
    %v2080 = vld [vmem:[#allocation3] sm:$0xf]
    %v2081 = vld [vmem:[#allocation10] sm:$0xff]
    %v2082 = vld [vmem:[#allocation10 + $0x8] sm:$0xff]
    %v2083 = vld [vmem:[#allocation10 + $0x10] sm:$0xff]
    %v2084 = vld [vmem:[#allocation10 + $0x18] sm:$0xff]
    %v2085 = vld [vmem:[#allocation10 + $0x20] sm:$0xff]
    %v2086 = vld [vmem:[#allocation10 + $0x28] sm:$0xff]
    %v2087 = vld [vmem:[#allocation10 + $0x30] sm:$0xff]
    %v2088 = vld [vmem:[#allocation10 + $0x38] sm:$0xff]
    %v2089 = vld [vmem:[#allocation10 + $0x40] sm:$0xff]
    %v2090 = vld [vmem:[#allocation10 + $0x48] sm:$0xff]
    %v2091 = vld [vmem:[#allocation10 + $0x50] sm:$0xff]
    %v2092 = vld [vmem:[#allocation10 + $0x58] sm:$0xff]
    %v2093 = vld [vmem:[#allocation10 + $0x60] sm:$0xff]
    %v2094 = vld [vmem:[#allocation10 + $0x68] sm:$0xff]
    %v2095 = vld [vmem:[#allocation10 + $0x70] sm:$0xff]
    %v2096 = vld [vmem:[#allocation10 + $0x78] sm:$0xff]
    %v2097 = vld [vmem:[#allocation10 + $0x80] sm:$0xff]
    %v2098 = vld [vmem:[#allocation10 + $0x88] sm:$0xff]
    %v2099 = vld [vmem:[#allocation10 + $0x90] sm:$0xff]
    %v2100 = vld [vmem:[#allocation10 + $0x98] sm:$0xff]
    %v2101 = vld [vmem:[#allocation10 + $0xa0] sm:$0xff]
    %v2102 = vld [vmem:[#allocation10 + $0xa8] sm:$0xff]
    %v2103 = vld [vmem:[#allocation10 + $0xb0] sm:$0xff]
    %v2104 = vld [vmem:[#allocation10 + $0xb8] sm:$0xff]
    %v2105 = vld [vmem:[#allocation10 + $0xc0] sm:$0xff]
    %v2106 = vld [vmem:[#allocation10 + $0xc8] sm:$0xff]
    %v2107 = vld [vmem:[#allocation10 + $0xd0] sm:$0xff]
    %v2108 = vld [vmem:[#allocation10 + $0xd8] sm:$0xff]
    %v2109 = vld [vmem:[#allocation10 + $0xe0] sm:$0xff]
    %v2110 = vld [vmem:[#allocation10 + $0xe8] sm:$0xff]
    %v2111 = vld [vmem:[#allocation10 + $0xf0] sm:$0xff]
    %v2112 = vld [vmem:[#allocation10 + $0xf8] sm:$0xff]
    %v2145 = vunpack.c.l.b16 %v2081
    %v2146 = vunpack.c.h.b16 %v2081
    %v2147 = vunpack.c.l.b16 %v2082
    %v2148 = vunpack.c.h.b16 %v2082
    %v2149 = vunpack.c.l.b16 %v2083
    %v2150 = vunpack.c.h.b16 %v2083
    %v2151 = vunpack.c.l.b16 %v2084
    %v2152 = vunpack.c.h.b16 %v2084
    %v2153 = vunpack.c.l.b16 %v2085
    %v2154 = vunpack.c.h.b16 %v2085
    %v2155 = vunpack.c.l.b16 %v2086
    %v2156 = vunpack.c.h.b16 %v2086
    %v2157 = vunpack.c.l.b16 %v2087
    %v2158 = vunpack.c.h.b16 %v2087
    %v2159 = vunpack.c.l.b16 %v2088
    %v2160 = vunpack.c.h.b16 %v2088
    %v2161 = vunpack.c.l.b16 %v2089
    %v2162 = vunpack.c.h.b16 %v2089
    %v2163 = vunpack.c.l.b16 %v2090
    %v2164 = vunpack.c.h.b16 %v2090
    %v2165 = vunpack.c.l.b16 %v2091
    %v2166 = vunpack.c.h.b16 %v2091
    %v2167 = vunpack.c.l.b16 %v2092
    %v2168 = vunpack.c.h.b16 %v2092
    %v2169 = vunpack.c.l.b16 %v2093
    %v2170 = vunpack.c.h.b16 %v2093
    %v2171 = vunpack.c.l.b16 %v2094
    %v2172 = vunpack.c.h.b16 %v2094
    %v2173 = vunpack.c.l.b16 %v2095
    %v2174 = vunpack.c.h.b16 %v2095
    %v2175 = vunpack.c.l.b16 %v2096
    %v2176 = vunpack.c.h.b16 %v2096
    %v2177 = vunpack.c.l.b16 %v2097
    %v2178 = vunpack.c.h.b16 %v2097
    %v2179 = vunpack.c.l.b16 %v2098
    %v2180 = vunpack.c.h.b16 %v2098
    %v2181 = vunpack.c.l.b16 %v2099
    %v2182 = vunpack.c.h.b16 %v2099
    %v2183 = vunpack.c.l.b16 %v2100
    %v2184 = vunpack.c.h.b16 %v2100
    %v2185 = vunpack.c.l.b16 %v2101
    %v2186 = vunpack.c.h.b16 %v2101
    %v2187 = vunpack.c.l.b16 %v2102
    %v2188 = vunpack.c.h.b16 %v2102
    %v2189 = vunpack.c.l.b16 %v2103
    %v2190 = vunpack.c.h.b16 %v2103
    %v2191 = vunpack.c.l.b16 %v2104
    %v2192 = vunpack.c.h.b16 %v2104
    %v2193 = vunpack.c.l.b16 %v2105
    %v2194 = vunpack.c.h.b16 %v2105
    %v2195 = vunpack.c.l.b16 %v2106
    %v2196 = vunpack.c.h.b16 %v2106
    %v2197 = vunpack.c.l.b16 %v2107
    %v2198 = vunpack.c.h.b16 %v2107
    %v2199 = vunpack.c.l.b16 %v2108
    %v2200 = vunpack.c.h.b16 %v2108
    %v2201 = vunpack.c.l.b16 %v2109
    %v2202 = vunpack.c.h.b16 %v2109
    %v2203 = vunpack.c.l.b16 %v2110
    %v2204 = vunpack.c.h.b16 %v2110
    %v2205 = vunpack.c.l.b16 %v2111
    %v2206 = vunpack.c.h.b16 %v2111
    %v2207 = vunpack.c.l.b16 %v2112
    %v2208 = vunpack.c.h.b16 %v2112
    %v2209 = vpack.c.b16 %v2149, %v2145
    %v2210 = vpack.c.b16 %v2150, %v2146
    %v2211 = vpack.c.b16 %v2151, %v2147
    %v2212 = vpack.c.b16 %v2152, %v2148
    %v2213 = vpack.c.b16 %v2157, %v2153
    %v2214 = vpack.c.b16 %v2158, %v2154
    %v2215 = vpack.c.b16 %v2159, %v2155
    %v2216 = vpack.c.b16 %v2160, %v2156
    %v2217 = vpack.c.b16 %v2165, %v2161
    %v2218 = vpack.c.b16 %v2166, %v2162
    %v2219 = vpack.c.b16 %v2167, %v2163
    %v2220 = vpack.c.b16 %v2168, %v2164
    %v2221 = vpack.c.b16 %v2173, %v2169
    %v2222 = vpack.c.b16 %v2174, %v2170
    %v2223 = vpack.c.b16 %v2175, %v2171
    %v2224 = vpack.c.b16 %v2176, %v2172
    %v2225 = vpack.c.b16 %v2181, %v2177
    %v2226 = vpack.c.b16 %v2182, %v2178
    %v2227 = vpack.c.b16 %v2183, %v2179
    %v2228 = vpack.c.b16 %v2184, %v2180
    %v2229 = vpack.c.b16 %v2189, %v2185
    %v2230 = vpack.c.b16 %v2190, %v2186
    %v2231 = vpack.c.b16 %v2191, %v2187
    %v2232 = vpack.c.b16 %v2192, %v2188
    %v2233 = vpack.c.b16 %v2197, %v2193
    %v2234 = vpack.c.b16 %v2198, %v2194
    %v2235 = vpack.c.b16 %v2199, %v2195
    %v2236 = vpack.c.b16 %v2200, %v2196
    %v2237 = vpack.c.b16 %v2205, %v2201
    %v2238 = vpack.c.b16 %v2206, %v2202
    %v2239 = vpack.c.b16 %v2207, %v2203
    %v2240 = vpack.c.b16 %v2208, %v2204
    %2273 = vmatprep.subr.bf16.mxu0 %v2210
    %2274 = vmatpush1.bf16.msra.mxu0 %v2209
    %2275 = vmatprep.subr.bf16.mxu0 %v2214
    %2276 = vmatpush1.bf16.msra.mxu0 %v2213
    %2277 = vmatprep.subr.bf16.mxu0 %v2218
    %2278 = vmatpush1.bf16.msra.mxu0 %v2217
    %2279 = vmatprep.subr.bf16.mxu0 %v2222
    %2280 = vmatpush1.bf16.msra.mxu0 %v2221
    %2281 = vmatprep.subr.bf16.mxu0 %v2226
    %2282 = vmatpush1.bf16.msra.mxu0 %v2225
    %2283 = vmatprep.subr.bf16.mxu0 %v2230
    %2284 = vmatpush1.bf16.msra.mxu0 %v2229
    %2285 = vmatprep.subr.bf16.mxu0 %v2234
    %2286 = vmatpush1.bf16.msra.mxu0 %v2233
    %2287 = vmatprep.subr.bf16.mxu0 %v2238
    %2288 = vmatpush1.bf16.msra.mxu0 %v2237
    %2289 = vmatprep.subr.bf16.mxu0 0
    %2290 = vmatpush1.bf16.msra.mxu0 0
    %2291 = vmatprep.subr.bf16.mxu0 0
    %2292 = vmatpush1.bf16.msra.mxu0 0
    %2293 = vmatprep.subr.bf16.mxu0 0
    %2294 = vmatpush1.bf16.msra.mxu0 0
    %2295 = vmatprep.subr.bf16.mxu0 0
    %2296 = vmatpush1.bf16.msra.mxu0 0
    %2297 = vmatprep.subr.bf16.mxu0 0
    %2298 = vmatpush1.bf16.msra.mxu0 0
    %2299 = vmatprep.subr.bf16.mxu0 0
    %2300 = vmatpush1.bf16.msra.mxu0 0
    %2301 = vmatprep.subr.bf16.mxu0 0
    %2302 = vmatpush1.bf16.msra.mxu0 0
    %2303 = vmatprep.subr.bf16.mxu0 0
    %2304 = vmatpush1.bf16.msra.mxu0 0
    %2305 = vmatprep.mubr.bf16.mxu0 0
    %2306 = vmatmul.mubr.bf16.gmra.mrb[0].mxu0 %v2080
    %v2307 = vpop.f32.mrb[0].mxu0
    %v2308 = vadd.f32 0.0, %v2307
    %v2309 = vpop.f32.mrb[0].mxu0
    %v2310 = vadd.f32 0.0, %v2309
    %v2311 = vpop.f32.mrb[0].mxu0
    %v2312 = vpop.f32.mrb[0].mxu0
    %2313 = vdwg.mxu0
    %2314 = vmatprep.subr.bf16.mxu0 %v2212
    %2315 = vmatpush1.bf16.msra.mxu0 %v2211
    %2316 = vmatprep.subr.bf16.mxu0 %v2216
    %2317 = vmatpush1.bf16.msra.mxu0 %v2215
    %2318 = vmatprep.subr.bf16.mxu0 %v2220
    %2319 = vmatpush1.bf16.msra.mxu0 %v2219
    %2320 = vmatprep.subr.bf16.mxu0 %v2224
    %2321 = vmatpush1.bf16.msra.mxu0 %v2223
    %2322 = vmatprep.subr.bf16.mxu0 %v2228
    %2323 = vmatpush1.bf16.msra.mxu0 %v2227
    %2324 = vmatprep.subr.bf16.mxu0 %v2232
    %2325 = vmatpush1.bf16.msra.mxu0 %v2231
    %2326 = vmatprep.subr.bf16.mxu0 %v2236
    %2327 = vmatpush1.bf16.msra.mxu0 %v2235
    %2328 = vmatprep.subr.bf16.mxu0 %v2240
    %2329 = vmatpush1.bf16.msra.mxu0 %v2239
    %2330 = vmatprep.subr.bf16.mxu0 0
    %2331 = vmatpush1.bf16.msra.mxu0 0
    %2332 = vmatprep.subr.bf16.mxu0 0
    %2333 = vmatpush1.bf16.msra.mxu0 0
    %2334 = vmatprep.subr.bf16.mxu0 0
    %2335 = vmatpush1.bf16.msra.mxu0 0
    %2336 = vmatprep.subr.bf16.mxu0 0
    %2337 = vmatpush1.bf16.msra.mxu0 0
    %2338 = vmatprep.subr.bf16.mxu0 0
    %2339 = vmatpush1.bf16.msra.mxu0 0
    %2340 = vmatprep.subr.bf16.mxu0 0
    %2341 = vmatpush1.bf16.msra.mxu0 0
    %2342 = vmatprep.subr.bf16.mxu0 0
    %2343 = vmatpush1.bf16.msra.mxu0 0
    %2344 = vmatprep.subr.bf16.mxu0 0
    %2345 = vmatpush1.bf16.msra.mxu0 0
    %2346 = vmatprep.mubr.bf16.mxu0 0
    %2347 = vmatmul.mubr.bf16.gmra.mrb[0].mxu0 %v2080
    %v2348 = vpop.f32.mrb[0].mxu0
    %v2349 = vadd.f32 0.0, %v2348
    %v2350 = vpop.f32.mrb[0].mxu0
    %v2351 = vadd.f32 0.0, %v2350
    %v2352 = vpop.f32.mrb[0].mxu0
    %v2353 = vpop.f32.mrb[0].mxu0
    %2354 = vdwg.mxu0
    %v2355 = vadd.f32 %v2076, %v2308
    %v2356 = vadd.f32 %v2077, %v2310
    %v2357 = vadd.f32 %v2078, %v2349
    %v2358 = vadd.f32 %v2079, %v2351
    %v2359 = vmul.f32 %v2355, 0.5
    %v2360 = vtanh.pop %v2359
    %v2361 = vmul.f32 %v2360, 0.5
    %v2362 = vadd.f32 %v2361, 0.5
    %v2363 = vmul.f32 %v2356, 0.5
    %v2364 = vtanh.pop %v2363
    %v2365 = vmul.f32 %v2364, 0.5
    %v2366 = vadd.f32 %v2365, 0.5
    %v2367 = vtanh.pop %v2357
    %v2368 = vmul.f32 %v2358, 0.5
    %v2369 = vtanh.pop %v2368
    %v2370 = vmul.f32 %v2369, 0.5
    %v2371 = vadd.f32 %v2370, 0.5
    %v2372 = vld [vmem:[#allocation4] sm:$0xff]
    %v2373 = vmul.f32 %v2366, %v2372
    %v2374 = vmul.f32 %v2362, %v2367
    %v2375 = vadd.f32 %v2373, %v2374
    %v2376 = vtanh.pop %v2375
    %v2377 = vmul.f32 %v2371, %v2376
    %v2378 = vpack.c.bf16 %v2377, %v2377
    %2379 = vst [vmem:[#allocation4] sm:$0xff] %v2375
    %2380 = vst [vmem:[#allocation3] sm:$0xf] %v2378
    %s2381 = smul.u32 6, 4
    %s2382 = smul.addr %s2381, 8
    %s2383 = scalar_lea.vmem [#allocation2], %s2382
    %v2384 = vld [vmem:[%s2383] sm:$0xff]
    %v2385 = vld [vmem:[%s2383 + $0x8] sm:$0xff]
    %v2386 = vld [vmem:[%s2383 + $0x10] sm:$0xff]
    %v2387 = vld [vmem:[%s2383 + $0x18] sm:$0xff]
    %v2388 = vld [vmem:[#allocation3] sm:$0xf]
    %v2389 = vld [vmem:[#allocation10] sm:$0xff]
    %v2390 = vld [vmem:[#allocation10 + $0x8] sm:$0xff]
    %v2391 = vld [vmem:[#allocation10 + $0x10] sm:$0xff]
    %v2392 = vld [vmem:[#allocation10 + $0x18] sm:$0xff]
    %v2393 = vld [vmem:[#allocation10 + $0x20] sm:$0xff]
    %v2394 = vld [vmem:[#allocation10 + $0x28] sm:$0xff]
    %v2395 = vld [vmem:[#allocation10 + $0x30] sm:$0xff]
    %v2396 = vld [vmem:[#allocation10 + $0x38] sm:$0xff]
    %v2397 = vld [vmem:[#allocation10 + $0x40] sm:$0xff]
    %v2398 = vld [vmem:[#allocation10 + $0x48] sm:$0xff]
    %v2399 = vld [vmem:[#allocation10 + $0x50] sm:$0xff]
    %v2400 = vld [vmem:[#allocation10 + $0x58] sm:$0xff]
    %v2401 = vld [vmem:[#allocation10 + $0x60] sm:$0xff]
    %v2402 = vld [vmem:[#allocation10 + $0x68] sm:$0xff]
    %v2403 = vld [vmem:[#allocation10 + $0x70] sm:$0xff]
    %v2404 = vld [vmem:[#allocation10 + $0x78] sm:$0xff]
    %v2405 = vld [vmem:[#allocation10 + $0x80] sm:$0xff]
    %v2406 = vld [vmem:[#allocation10 + $0x88] sm:$0xff]
    %v2407 = vld [vmem:[#allocation10 + $0x90] sm:$0xff]
    %v2408 = vld [vmem:[#allocation10 + $0x98] sm:$0xff]
    %v2409 = vld [vmem:[#allocation10 + $0xa0] sm:$0xff]
    %v2410 = vld [vmem:[#allocation10 + $0xa8] sm:$0xff]
    %v2411 = vld [vmem:[#allocation10 + $0xb0] sm:$0xff]
    %v2412 = vld [vmem:[#allocation10 + $0xb8] sm:$0xff]
    %v2413 = vld [vmem:[#allocation10 + $0xc0] sm:$0xff]
    %v2414 = vld [vmem:[#allocation10 + $0xc8] sm:$0xff]
    %v2415 = vld [vmem:[#allocation10 + $0xd0] sm:$0xff]
    %v2416 = vld [vmem:[#allocation10 + $0xd8] sm:$0xff]
    %v2417 = vld [vmem:[#allocation10 + $0xe0] sm:$0xff]
    %v2418 = vld [vmem:[#allocation10 + $0xe8] sm:$0xff]
    %v2419 = vld [vmem:[#allocation10 + $0xf0] sm:$0xff]
    %v2420 = vld [vmem:[#allocation10 + $0xf8] sm:$0xff]
    %v2453 = vunpack.c.l.b16 %v2389
    %v2454 = vunpack.c.h.b16 %v2389
    %v2455 = vunpack.c.l.b16 %v2390
    %v2456 = vunpack.c.h.b16 %v2390
    %v2457 = vunpack.c.l.b16 %v2391
    %v2458 = vunpack.c.h.b16 %v2391
    %v2459 = vunpack.c.l.b16 %v2392
    %v2460 = vunpack.c.h.b16 %v2392
    %v2461 = vunpack.c.l.b16 %v2393
    %v2462 = vunpack.c.h.b16 %v2393
    %v2463 = vunpack.c.l.b16 %v2394
    %v2464 = vunpack.c.h.b16 %v2394
    %v2465 = vunpack.c.l.b16 %v2395
    %v2466 = vunpack.c.h.b16 %v2395
    %v2467 = vunpack.c.l.b16 %v2396
    %v2468 = vunpack.c.h.b16 %v2396
    %v2469 = vunpack.c.l.b16 %v2397
    %v2470 = vunpack.c.h.b16 %v2397
    %v2471 = vunpack.c.l.b16 %v2398
    %v2472 = vunpack.c.h.b16 %v2398
    %v2473 = vunpack.c.l.b16 %v2399
    %v2474 = vunpack.c.h.b16 %v2399
    %v2475 = vunpack.c.l.b16 %v2400
    %v2476 = vunpack.c.h.b16 %v2400
    %v2477 = vunpack.c.l.b16 %v2401
    %v2478 = vunpack.c.h.b16 %v2401
    %v2479 = vunpack.c.l.b16 %v2402
    %v2480 = vunpack.c.h.b16 %v2402
    %v2481 = vunpack.c.l.b16 %v2403
    %v2482 = vunpack.c.h.b16 %v2403
    %v2483 = vunpack.c.l.b16 %v2404
    %v2484 = vunpack.c.h.b16 %v2404
    %v2485 = vunpack.c.l.b16 %v2405
    %v2486 = vunpack.c.h.b16 %v2405
    %v2487 = vunpack.c.l.b16 %v2406
    %v2488 = vunpack.c.h.b16 %v2406
    %v2489 = vunpack.c.l.b16 %v2407
    %v2490 = vunpack.c.h.b16 %v2407
    %v2491 = vunpack.c.l.b16 %v2408
    %v2492 = vunpack.c.h.b16 %v2408
    %v2493 = vunpack.c.l.b16 %v2409
    %v2494 = vunpack.c.h.b16 %v2409
    %v2495 = vunpack.c.l.b16 %v2410
    %v2496 = vunpack.c.h.b16 %v2410
    %v2497 = vunpack.c.l.b16 %v2411
    %v2498 = vunpack.c.h.b16 %v2411
    %v2499 = vunpack.c.l.b16 %v2412
    %v2500 = vunpack.c.h.b16 %v2412
    %v2501 = vunpack.c.l.b16 %v2413
    %v2502 = vunpack.c.h.b16 %v2413
    %v2503 = vunpack.c.l.b16 %v2414
    %v2504 = vunpack.c.h.b16 %v2414
    %v2505 = vunpack.c.l.b16 %v2415
    %v2506 = vunpack.c.h.b16 %v2415
    %v2507 = vunpack.c.l.b16 %v2416
    %v2508 = vunpack.c.h.b16 %v2416
    %v2509 = vunpack.c.l.b16 %v2417
    %v2510 = vunpack.c.h.b16 %v2417
    %v2511 = vunpack.c.l.b16 %v2418
    %v2512 = vunpack.c.h.b16 %v2418
    %v2513 = vunpack.c.l.b16 %v2419
    %v2514 = vunpack.c.h.b16 %v2419
    %v2515 = vunpack.c.l.b16 %v2420
    %v2516 = vunpack.c.h.b16 %v2420
    %v2517 = vpack.c.b16 %v2457, %v2453
    %v2518 = vpack.c.b16 %v2458, %v2454
    %v2519 = vpack.c.b16 %v2459, %v2455
    %v2520 = vpack.c.b16 %v2460, %v2456
    %v2521 = vpack.c.b16 %v2465, %v2461
    %v2522 = vpack.c.b16 %v2466, %v2462
    %v2523 = vpack.c.b16 %v2467, %v2463
    %v2524 = vpack.c.b16 %v2468, %v2464
    %v2525 = vpack.c.b16 %v2473, %v2469
    %v2526 = vpack.c.b16 %v2474, %v2470
    %v2527 = vpack.c.b16 %v2475, %v2471
    %v2528 = vpack.c.b16 %v2476, %v2472
    %v2529 = vpack.c.b16 %v2481, %v2477
    %v2530 = vpack.c.b16 %v2482, %v2478
    %v2531 = vpack.c.b16 %v2483, %v2479
    %v2532 = vpack.c.b16 %v2484, %v2480
    %v2533 = vpack.c.b16 %v2489, %v2485
    %v2534 = vpack.c.b16 %v2490, %v2486
    %v2535 = vpack.c.b16 %v2491, %v2487
    %v2536 = vpack.c.b16 %v2492, %v2488
    %v2537 = vpack.c.b16 %v2497, %v2493
    %v2538 = vpack.c.b16 %v2498, %v2494
    %v2539 = vpack.c.b16 %v2499, %v2495
    %v2540 = vpack.c.b16 %v2500, %v2496
    %v2541 = vpack.c.b16 %v2505, %v2501
    %v2542 = vpack.c.b16 %v2506, %v2502
    %v2543 = vpack.c.b16 %v2507, %v2503
    %v2544 = vpack.c.b16 %v2508, %v2504
    %v2545 = vpack.c.b16 %v2513, %v2509
    %v2546 = vpack.c.b16 %v2514, %v2510
    %v2547 = vpack.c.b16 %v2515, %v2511
    %v2548 = vpack.c.b16 %v2516, %v2512
    %2581 = vmatprep.subr.bf16.mxu0 %v2518
    %2582 = vmatpush1.bf16.msra.mxu0 %v2517
    %2583 = vmatprep.subr.bf16.mxu0 %v2522
    %2584 = vmatpush1.bf16.msra.mxu0 %v2521
    %2585 = vmatprep.subr.bf16.mxu0 %v2526
    %2586 = vmatpush1.bf16.msra.mxu0 %v2525
    %2587 = vmatprep.subr.bf16.mxu0 %v2530
    %2588 = vmatpush1.bf16.msra.mxu0 %v2529
    %2589 = vmatprep.subr.bf16.mxu0 %v2534
    %2590 = vmatpush1.bf16.msra.mxu0 %v2533
    %2591 = vmatprep.subr.bf16.mxu0 %v2538
    %2592 = vmatpush1.bf16.msra.mxu0 %v2537
    %2593 = vmatprep.subr.bf16.mxu0 %v2542
    %2594 = vmatpush1.bf16.msra.mxu0 %v2541
    %2595 = vmatprep.subr.bf16.mxu0 %v2546
    %2596 = vmatpush1.bf16.msra.mxu0 %v2545
    %2597 = vmatprep.subr.bf16.mxu0 0
    %2598 = vmatpush1.bf16.msra.mxu0 0
    %2599 = vmatprep.subr.bf16.mxu0 0
    %2600 = vmatpush1.bf16.msra.mxu0 0
    %2601 = vmatprep.subr.bf16.mxu0 0
    %2602 = vmatpush1.bf16.msra.mxu0 0
    %2603 = vmatprep.subr.bf16.mxu0 0
    %2604 = vmatpush1.bf16.msra.mxu0 0
    %2605 = vmatprep.subr.bf16.mxu0 0
    %2606 = vmatpush1.bf16.msra.mxu0 0
    %2607 = vmatprep.subr.bf16.mxu0 0
    %2608 = vmatpush1.bf16.msra.mxu0 0
    %2609 = vmatprep.subr.bf16.mxu0 0
    %2610 = vmatpush1.bf16.msra.mxu0 0
    %2611 = vmatprep.subr.bf16.mxu0 0
    %2612 = vmatpush1.bf16.msra.mxu0 0
    %2613 = vmatprep.mubr.bf16.mxu0 0
    %2614 = vmatmul.mubr.bf16.gmra.mrb[0].mxu0 %v2388
    %v2615 = vpop.f32.mrb[0].mxu0
    %v2616 = vadd.f32 0.0, %v2615
    %v2617 = vpop.f32.mrb[0].mxu0
    %v2618 = vadd.f32 0.0, %v2617
    %v2619 = vpop.f32.mrb[0].mxu0
    %v2620 = vpop.f32.mrb[0].mxu0
    %2621 = vdwg.mxu0
    %2622 = vmatprep.subr.bf16.mxu0 %v2520
    %2623 = vmatpush1.bf16.msra.mxu0 %v2519
    %2624 = vmatprep.subr.bf16.mxu0 %v2524
    %2625 = vmatpush1.bf16.msra.mxu0 %v2523
    %2626 = vmatprep.subr.bf16.mxu0 %v2528
    %2627 = vmatpush1.bf16.msra.mxu0 %v2527
    %2628 = vmatprep.subr.bf16.mxu0 %v2532
    %2629 = vmatpush1.bf16.msra.mxu0 %v2531
    %2630 = vmatprep.subr.bf16.mxu0 %v2536
    %2631 = vmatpush1.bf16.msra.mxu0 %v2535
    %2632 = vmatprep.subr.bf16.mxu0 %v2540
    %2633 = vmatpush1.bf16.msra.mxu0 %v2539
    %2634 = vmatprep.subr.bf16.mxu0 %v2544
    %2635 = vmatpush1.bf16.msra.mxu0 %v2543
    %2636 = vmatprep.subr.bf16.mxu0 %v2548
    %2637 = vmatpush1.bf16.msra.mxu0 %v2547
    %2638 = vmatprep.subr.bf16.mxu0 0
    %2639 = vmatpush1.bf16.msra.mxu0 0
    %2640 = vmatprep.subr.bf16.mxu0 0
    %2641 = vmatpush1.bf16.msra.mxu0 0
    %2642 = vmatprep.subr.bf16.mxu0 0
    %2643 = vmatpush1.bf16.msra.mxu0 0
    %2644 = vmatprep.subr.bf16.mxu0 0
    %2645 = vmatpush1.bf16.msra.mxu0 0
    %2646 = vmatprep.subr.bf16.mxu0 0
    %2647 = vmatpush1.bf16.msra.mxu0 0
    %2648 = vmatprep.subr.bf16.mxu0 0
    %2649 = vmatpush1.bf16.msra.mxu0 0
    %2650 = vmatprep.subr.bf16.mxu0 0
    %2651 = vmatpush1.bf16.msra.mxu0 0
    %2652 = vmatprep.subr.bf16.mxu0 0
    %2653 = vmatpush1.bf16.msra.mxu0 0
    %2654 = vmatprep.mubr.bf16.mxu0 0
    %2655 = vmatmul.mubr.bf16.gmra.mrb[0].mxu0 %v2388
    %v2656 = vpop.f32.mrb[0].mxu0
    %v2657 = vadd.f32 0.0, %v2656
    %v2658 = vpop.f32.mrb[0].mxu0
    %v2659 = vadd.f32 0.0, %v2658
    %v2660 = vpop.f32.mrb[0].mxu0
    %v2661 = vpop.f32.mrb[0].mxu0
    %2662 = vdwg.mxu0
    %v2663 = vadd.f32 %v2384, %v2616
    %v2664 = vadd.f32 %v2385, %v2618
    %v2665 = vadd.f32 %v2386, %v2657
    %v2666 = vadd.f32 %v2387, %v2659
    %v2667 = vmul.f32 %v2663, 0.5
    %v2668 = vtanh.pop %v2667
    %v2669 = vmul.f32 %v2668, 0.5
    %v2670 = vadd.f32 %v2669, 0.5
    %v2671 = vmul.f32 %v2664, 0.5
    %v2672 = vtanh.pop %v2671
    %v2673 = vmul.f32 %v2672, 0.5
    %v2674 = vadd.f32 %v2673, 0.5
    %v2675 = vtanh.pop %v2665
    %v2676 = vmul.f32 %v2666, 0.5
    %v2677 = vtanh.pop %v2676
    %v2678 = vmul.f32 %v2677, 0.5
    %v2679 = vadd.f32 %v2678, 0.5
    %v2680 = vld [vmem:[#allocation4] sm:$0xff]
    %v2681 = vmul.f32 %v2674, %v2680
    %v2682 = vmul.f32 %v2670, %v2675
    %v2683 = vadd.f32 %v2681, %v2682
    %v2684 = vtanh.pop %v2683
    %v2685 = vmul.f32 %v2679, %v2684
    %v2686 = vpack.c.bf16 %v2685, %v2685
    %2687 = vst [vmem:[#allocation4] sm:$0xff] %v2683
    %2688 = vst [vmem:[#allocation3] sm:$0xf] %v2686
    %s2689 = smul.u32 7, 4
    %s2690 = smul.addr %s2689, 8
    %s2691 = scalar_lea.vmem [#allocation2], %s2690
    %v2692 = vld [vmem:[%s2691] sm:$0xff]
    %v2693 = vld [vmem:[%s2691 + $0x8] sm:$0xff]
    %v2694 = vld [vmem:[%s2691 + $0x10] sm:$0xff]
    %v2695 = vld [vmem:[%s2691 + $0x18] sm:$0xff]
    %v2696 = vld [vmem:[#allocation3] sm:$0xf]
    %v2697 = vld [vmem:[#allocation10] sm:$0xff]
    %v2698 = vld [vmem:[#allocation10 + $0x8] sm:$0xff]
    %v2699 = vld [vmem:[#allocation10 + $0x10] sm:$0xff]
    %v2700 = vld [vmem:[#allocation10 + $0x18] sm:$0xff]
    %v2701 = vld [vmem:[#allocation10 + $0x20] sm:$0xff]
    %v2702 = vld [vmem:[#allocation10 + $0x28] sm:$0xff]
    %v2703 = vld [vmem:[#allocation10 + $0x30] sm:$0xff]
    %v2704 = vld [vmem:[#allocation10 + $0x38] sm:$0xff]
    %v2705 = vld [vmem:[#allocation10 + $0x40] sm:$0xff]
    %v2706 = vld [vmem:[#allocation10 + $0x48] sm:$0xff]
    %v2707 = vld [vmem:[#allocation10 + $0x50] sm:$0xff]
    %v2708 = vld [vmem:[#allocation10 + $0x58] sm:$0xff]
    %v2709 = vld [vmem:[#allocation10 + $0x60] sm:$0xff]
    %v2710 = vld [vmem:[#allocation10 + $0x68] sm:$0xff]
    %v2711 = vld [vmem:[#allocation10 + $0x70] sm:$0xff]
    %v2712 = vld [vmem:[#allocation10 + $0x78] sm:$0xff]
    %v2713 = vld [vmem:[#allocation10 + $0x80] sm:$0xff]
    %v2714 = vld [vmem:[#allocation10 + $0x88] sm:$0xff]
    %v2715 = vld [vmem:[#allocation10 + $0x90] sm:$0xff]
    %v2716 = vld [vmem:[#allocation10 + $0x98] sm:$0xff]
    %v2717 = vld [vmem:[#allocation10 + $0xa0] sm:$0xff]
    %v2718 = vld [vmem:[#allocation10 + $0xa8] sm:$0xff]
    %v2719 = vld [vmem:[#allocation10 + $0xb0] sm:$0xff]
    %v2720 = vld [vmem:[#allocation10 + $0xb8] sm:$0xff]
    %v2721 = vld [vmem:[#allocation10 + $0xc0] sm:$0xff]
    %v2722 = vld [vmem:[#allocation10 + $0xc8] sm:$0xff]
    %v2723 = vld [vmem:[#allocation10 + $0xd0] sm:$0xff]
    %v2724 = vld [vmem:[#allocation10 + $0xd8] sm:$0xff]
    %v2725 = vld [vmem:[#allocation10 + $0xe0] sm:$0xff]
    %v2726 = vld [vmem:[#allocation10 + $0xe8] sm:$0xff]
    %v2727 = vld [vmem:[#allocation10 + $0xf0] sm:$0xff]
    %v2728 = vld [vmem:[#allocation10 + $0xf8] sm:$0xff]
    %v2761 = vunpack.c.l.b16 %v2697
    %v2762 = vunpack.c.h.b16 %v2697
    %v2763 = vunpack.c.l.b16 %v2698
    %v2764 = vunpack.c.h.b16 %v2698
    %v2765 = vunpack.c.l.b16 %v2699
    %v2766 = vunpack.c.h.b16 %v2699
    %v2767 = vunpack.c.l.b16 %v2700
    %v2768 = vunpack.c.h.b16 %v2700
    %v2769 = vunpack.c.l.b16 %v2701
    %v2770 = vunpack.c.h.b16 %v2701
    %v2771 = vunpack.c.l.b16 %v2702
    %v2772 = vunpack.c.h.b16 %v2702
    %v2773 = vunpack.c.l.b16 %v2703
    %v2774 = vunpack.c.h.b16 %v2703
    %v2775 = vunpack.c.l.b16 %v2704
    %v2776 = vunpack.c.h.b16 %v2704
    %v2777 = vunpack.c.l.b16 %v2705
    %v2778 = vunpack.c.h.b16 %v2705
    %v2779 = vunpack.c.l.b16 %v2706
    %v2780 = vunpack.c.h.b16 %v2706
    %v2781 = vunpack.c.l.b16 %v2707
    %v2782 = vunpack.c.h.b16 %v2707
    %v2783 = vunpack.c.l.b16 %v2708
    %v2784 = vunpack.c.h.b16 %v2708
    %v2785 = vunpack.c.l.b16 %v2709
    %v2786 = vunpack.c.h.b16 %v2709
    %v2787 = vunpack.c.l.b16 %v2710
    %v2788 = vunpack.c.h.b16 %v2710
    %v2789 = vunpack.c.l.b16 %v2711
    %v2790 = vunpack.c.h.b16 %v2711
    %v2791 = vunpack.c.l.b16 %v2712
    %v2792 = vunpack.c.h.b16 %v2712
    %v2793 = vunpack.c.l.b16 %v2713
    %v2794 = vunpack.c.h.b16 %v2713
    %v2795 = vunpack.c.l.b16 %v2714
    %v2796 = vunpack.c.h.b16 %v2714
    %v2797 = vunpack.c.l.b16 %v2715
    %v2798 = vunpack.c.h.b16 %v2715
    %v2799 = vunpack.c.l.b16 %v2716
    %v2800 = vunpack.c.h.b16 %v2716
    %v2801 = vunpack.c.l.b16 %v2717
    %v2802 = vunpack.c.h.b16 %v2717
    %v2803 = vunpack.c.l.b16 %v2718
    %v2804 = vunpack.c.h.b16 %v2718
    %v2805 = vunpack.c.l.b16 %v2719
    %v2806 = vunpack.c.h.b16 %v2719
    %v2807 = vunpack.c.l.b16 %v2720
    %v2808 = vunpack.c.h.b16 %v2720
    %v2809 = vunpack.c.l.b16 %v2721
    %v2810 = vunpack.c.h.b16 %v2721
    %v2811 = vunpack.c.l.b16 %v2722
    %v2812 = vunpack.c.h.b16 %v2722
    %v2813 = vunpack.c.l.b16 %v2723
    %v2814 = vunpack.c.h.b16 %v2723
    %v2815 = vunpack.c.l.b16 %v2724
    %v2816 = vunpack.c.h.b16 %v2724
    %v2817 = vunpack.c.l.b16 %v2725
    %v2818 = vunpack.c.h.b16 %v2725
    %v2819 = vunpack.c.l.b16 %v2726
    %v2820 = vunpack.c.h.b16 %v2726
    %v2821 = vunpack.c.l.b16 %v2727
    %v2822 = vunpack.c.h.b16 %v2727
    %v2823 = vunpack.c.l.b16 %v2728
    %v2824 = vunpack.c.h.b16 %v2728
    %v2825 = vpack.c.b16 %v2765, %v2761
    %v2826 = vpack.c.b16 %v2766, %v2762
    %v2827 = vpack.c.b16 %v2767, %v2763
    %v2828 = vpack.c.b16 %v2768, %v2764
    %v2829 = vpack.c.b16 %v2773, %v2769
    %v2830 = vpack.c.b16 %v2774, %v2770
    %v2831 = vpack.c.b16 %v2775, %v2771
    %v2832 = vpack.c.b16 %v2776, %v2772
    %v2833 = vpack.c.b16 %v2781, %v2777
    %v2834 = vpack.c.b16 %v2782, %v2778
    %v2835 = vpack.c.b16 %v2783, %v2779
    %v2836 = vpack.c.b16 %v2784, %v2780
    %v2837 = vpack.c.b16 %v2789, %v2785
    %v2838 = vpack.c.b16 %v2790, %v2786
    %v2839 = vpack.c.b16 %v2791, %v2787
    %v2840 = vpack.c.b16 %v2792, %v2788
    %v2841 = vpack.c.b16 %v2797, %v2793
    %v2842 = vpack.c.b16 %v2798, %v2794
    %v2843 = vpack.c.b16 %v2799, %v2795
    %v2844 = vpack.c.b16 %v2800, %v2796
    %v2845 = vpack.c.b16 %v2805, %v2801
    %v2846 = vpack.c.b16 %v2806, %v2802
    %v2847 = vpack.c.b16 %v2807, %v2803
    %v2848 = vpack.c.b16 %v2808, %v2804
    %v2849 = vpack.c.b16 %v2813, %v2809
    %v2850 = vpack.c.b16 %v2814, %v2810
    %v2851 = vpack.c.b16 %v2815, %v2811
    %v2852 = vpack.c.b16 %v2816, %v2812
    %v2853 = vpack.c.b16 %v2821, %v2817
    %v2854 = vpack.c.b16 %v2822, %v2818
    %v2855 = vpack.c.b16 %v2823, %v2819
    %v2856 = vpack.c.b16 %v2824, %v2820
    %2889 = vmatprep.subr.bf16.mxu0 %v2826
    %2890 = vmatpush1.bf16.msra.mxu0 %v2825
    %2891 = vmatprep.subr.bf16.mxu0 %v2830
    %2892 = vmatpush1.bf16.msra.mxu0 %v2829
    %2893 = vmatprep.subr.bf16.mxu0 %v2834
    %2894 = vmatpush1.bf16.msra.mxu0 %v2833
    %2895 = vmatprep.subr.bf16.mxu0 %v2838
    %2896 = vmatpush1.bf16.msra.mxu0 %v2837
    %2897 = vmatprep.subr.bf16.mxu0 %v2842
    %2898 = vmatpush1.bf16.msra.mxu0 %v2841
    %2899 = vmatprep.subr.bf16.mxu0 %v2846
    %2900 = vmatpush1.bf16.msra.mxu0 %v2845
    %2901 = vmatprep.subr.bf16.mxu0 %v2850
    %2902 = vmatpush1.bf16.msra.mxu0 %v2849
    %2903 = vmatprep.subr.bf16.mxu0 %v2854
    %2904 = vmatpush1.bf16.msra.mxu0 %v2853
    %2905 = vmatprep.subr.bf16.mxu0 0
    %2906 = vmatpush1.bf16.msra.mxu0 0
    %2907 = vmatprep.subr.bf16.mxu0 0
    %2908 = vmatpush1.bf16.msra.mxu0 0
    %2909 = vmatprep.subr.bf16.mxu0 0
    %2910 = vmatpush1.bf16.msra.mxu0 0
    %2911 = vmatprep.subr.bf16.mxu0 0
    %2912 = vmatpush1.bf16.msra.mxu0 0
    %2913 = vmatprep.subr.bf16.mxu0 0
    %2914 = vmatpush1.bf16.msra.mxu0 0
    %2915 = vmatprep.subr.bf16.mxu0 0
    %2916 = vmatpush1.bf16.msra.mxu0 0
    %2917 = vmatprep.subr.bf16.mxu0 0
    %2918 = vmatpush1.bf16.msra.mxu0 0
    %2919 = vmatprep.subr.bf16.mxu0 0
    %2920 = vmatpush1.bf16.msra.mxu0 0
    %2921 = vmatprep.mubr.bf16.mxu0 0
    %2922 = vmatmul.mubr.bf16.gmra.mrb[0].mxu0 %v2696
    %v2923 = vpop.f32.mrb[0].mxu0
    %v2924 = vadd.f32 0.0, %v2923
    %v2925 = vpop.f32.mrb[0].mxu0
    %v2926 = vadd.f32 0.0, %v2925
    %v2927 = vpop.f32.mrb[0].mxu0
    %v2928 = vpop.f32.mrb[0].mxu0
    %2929 = vdwg.mxu0
    %2930 = vmatprep.subr.bf16.mxu0 %v2828
    %2931 = vmatpush1.bf16.msra.mxu0 %v2827
    %2932 = vmatprep.subr.bf16.mxu0 %v2832
    %2933 = vmatpush1.bf16.msra.mxu0 %v2831
    %2934 = vmatprep.subr.bf16.mxu0 %v2836
    %2935 = vmatpush1.bf16.msra.mxu0 %v2835
    %2936 = vmatprep.subr.bf16.mxu0 %v2840
    %2937 = vmatpush1.bf16.msra.mxu0 %v2839
    %2938 = vmatprep.subr.bf16.mxu0 %v2844
    %2939 = vmatpush1.bf16.msra.mxu0 %v2843
    %2940 = vmatprep.subr.bf16.mxu0 %v2848
    %2941 = vmatpush1.bf16.msra.mxu0 %v2847
    %2942 = vmatprep.subr.bf16.mxu0 %v2852
    %2943 = vmatpush1.bf16.msra.mxu0 %v2851
    %2944 = vmatprep.subr.bf16.mxu0 %v2856
    %2945 = vmatpush1.bf16.msra.mxu0 %v2855
    %2946 = vmatprep.subr.bf16.mxu0 0
    %2947 = vmatpush1.bf16.msra.mxu0 0
    %2948 = vmatprep.subr.bf16.mxu0 0
    %2949 = vmatpush1.bf16.msra.mxu0 0
    %2950 = vmatprep.subr.bf16.mxu0 0
    %2951 = vmatpush1.bf16.msra.mxu0 0
    %2952 = vmatprep.subr.bf16.mxu0 0
    %2953 = vmatpush1.bf16.msra.mxu0 0
    %2954 = vmatprep.subr.bf16.mxu0 0
    %2955 = vmatpush1.bf16.msra.mxu0 0
    %2956 = vmatprep.subr.bf16.mxu0 0
    %2957 = vmatpush1.bf16.msra.mxu0 0
    %2958 = vmatprep.subr.bf16.mxu0 0
    %2959 = vmatpush1.bf16.msra.mxu0 0
    %2960 = vmatprep.subr.bf16.mxu0 0
    %2961 = vmatpush1.bf16.msra.mxu0 0
    %2962 = vmatprep.mubr.bf16.mxu0 0
    %2963 = vmatmul.mubr.bf16.gmra.mrb[0].mxu0 %v2696
    %v2964 = vpop.f32.mrb[0].mxu0
    %v2965 = vadd.f32 0.0, %v2964
    %v2966 = vpop.f32.mrb[0].mxu0
    %v2967 = vadd.f32 0.0, %v2966
    %v2968 = vpop.f32.mrb[0].mxu0
    %v2969 = vpop.f32.mrb[0].mxu0
    %2970 = vdwg.mxu0
    %v2971 = vadd.f32 %v2692, %v2924
    %v2972 = vadd.f32 %v2693, %v2926
    %v2973 = vadd.f32 %v2694, %v2965
    %v2974 = vadd.f32 %v2695, %v2967
    %v2975 = vmul.f32 %v2971, 0.5
    %v2976 = vtanh.pop %v2975
    %v2977 = vmul.f32 %v2976, 0.5
    %v2978 = vadd.f32 %v2977, 0.5
    %v2979 = vmul.f32 %v2972, 0.5
    %v2980 = vtanh.pop %v2979
    %v2981 = vmul.f32 %v2980, 0.5
    %v2982 = vadd.f32 %v2981, 0.5
    %v2983 = vtanh.pop %v2973
    %v2984 = vmul.f32 %v2974, 0.5
    %v2985 = vtanh.pop %v2984
    %v2986 = vmul.f32 %v2985, 0.5
    %v2987 = vadd.f32 %v2986, 0.5
    %v2988 = vld [vmem:[#allocation4] sm:$0xff]
    %v2989 = vmul.f32 %v2982, %v2988
    %v2990 = vmul.f32 %v2978, %v2983
    %v2991 = vadd.f32 %v2989, %v2990
    %v2992 = vtanh.pop %v2991
    %v2993 = vmul.f32 %v2987, %v2992
    %v2994 = vpack.c.bf16 %v2993, %v2993
    %2995 = vst [vmem:[#allocation4] sm:$0xff] %v2991
    %2996 = vst [vmem:[#allocation3] sm:$0xf] %v2994
    // Predicated region
    $region54: #{_lambda_.3} parent=1 // pred_check
      %p2997 = pneg %p103
    $region55: #{_lambda_.3} parent=1 // pred_check_branch
      %2999 = sbr.rel (%p2997) target = $region57
    $region56: #{_lambda_.3} parent=1 // pred_region
      %v3000 = vld [vmem:[#allocation3] sm:$0xf]
      %v3001 = vld [vmem:[#allocation13] sm:$0xf]
      %v3002 = vld [vmem:[#allocation13 + $0x4] sm:$0xf]
      %v3003 = vld [vmem:[#allocation13 + $0x8] sm:$0xf]
      %v3004 = vld [vmem:[#allocation13 + $0xc] sm:$0xf]
      %v3005 = vld [vmem:[#allocation13 + $0x10] sm:$0xf]
      %v3006 = vld [vmem:[#allocation13 + $0x14] sm:$0xf]
      %v3007 = vld [vmem:[#allocation13 + $0x18] sm:$0xf]
      %v3008 = vld [vmem:[#allocation13 + $0x1c] sm:$0xf]
      %v3009 = vld [vmem:[#allocation13 + $0x20] sm:$0xf]
      %v3010 = vld [vmem:[#allocation13 + $0x24] sm:$0xf]
      %v3011 = vld [vmem:[#allocation13 + $0x28] sm:$0xf]
      %v3012 = vld [vmem:[#allocation13 + $0x2c] sm:$0xf]
      %v3013 = vld [vmem:[#allocation13 + $0x30] sm:$0xf]
      %v3014 = vld [vmem:[#allocation13 + $0x34] sm:$0xf]
      %v3015 = vld [vmem:[#allocation13 + $0x38] sm:$0xf]
      %v3016 = vld [vmem:[#allocation13 + $0x3c] sm:$0xf]
      %v3017 = vld [vmem:[#allocation14] sm:$0x1]
      %v3019 = vlaneseq
      %v3020 = vshrl.u32 %v3019, 7
      %v3021 = vsub.s32 0, %v3020
      %v3022 = vrot.slane %v3017, %v3021
      %v3040 = vunpack.c.l.b16 %v3001
      %v3041 = vunpack.c.l.b16 %v3002
      %v3042 = vunpack.c.l.b16 %v3003
      %v3043 = vunpack.c.l.b16 %v3004
      %v3044 = vunpack.c.l.b16 %v3005
      %v3045 = vunpack.c.l.b16 %v3006
      %v3046 = vunpack.c.l.b16 %v3007
      %v3047 = vunpack.c.l.b16 %v3008
      %v3048 = vunpack.c.l.b16 %v3009
      %v3049 = vunpack.c.l.b16 %v3010
      %v3050 = vunpack.c.l.b16 %v3011
      %v3051 = vunpack.c.l.b16 %v3012
      %v3052 = vunpack.c.l.b16 %v3013
      %v3053 = vunpack.c.l.b16 %v3014
      %v3054 = vunpack.c.l.b16 %v3015
      %v3055 = vunpack.c.l.b16 %v3016
      %v3056 = vpack.c.b16 %v3041, %v3040
      %v3057 = vpack.c.b16 %v3043, %v3042
      %v3058 = vpack.c.b16 %v3045, %v3044
      %v3059 = vpack.c.b16 %v3047, %v3046
      %v3060 = vpack.c.b16 %v3049, %v3048
      %v3061 = vpack.c.b16 %v3051, %v3050
      %v3062 = vpack.c.b16 %v3053, %v3052
      %v3063 = vpack.c.b16 %v3055, %v3054
      %3072 = vmatprep.subr.bf16.mxu0 0
      %3073 = vmatpush1.bf16.msra.mxu0 %v3056
      %3074 = vmatprep.subr.bf16.mxu0 0
      %3075 = vmatpush1.bf16.msra.mxu0 %v3057
      %3076 = vmatprep.subr.bf16.mxu0 0
      %3077 = vmatpush1.bf16.msra.mxu0 %v3058
      %3078 = vmatprep.subr.bf16.mxu0 0
      %3079 = vmatpush1.bf16.msra.mxu0 %v3059
      %3080 = vmatprep.subr.bf16.mxu0 0
      %3081 = vmatpush1.bf16.msra.mxu0 %v3060
      %3082 = vmatprep.subr.bf16.mxu0 0
      %3083 = vmatpush1.bf16.msra.mxu0 %v3061
      %3084 = vmatprep.subr.bf16.mxu0 0
      %3085 = vmatpush1.bf16.msra.mxu0 %v3062
      %3086 = vmatprep.subr.bf16.mxu0 0
      %3087 = vmatpush1.bf16.msra.mxu0 %v3063
      %3088 = vmatprep.subr.bf16.mxu0 0
      %3089 = vmatpush1.bf16.msra.mxu0 0
      %3090 = vmatprep.subr.bf16.mxu0 0
      %3091 = vmatpush1.bf16.msra.mxu0 0
      %3092 = vmatprep.subr.bf16.mxu0 0
      %3093 = vmatpush1.bf16.msra.mxu0 0
      %3094 = vmatprep.subr.bf16.mxu0 0
      %3095 = vmatpush1.bf16.msra.mxu0 0
      %3096 = vmatprep.subr.bf16.mxu0 0
      %3097 = vmatpush1.bf16.msra.mxu0 0
      %3098 = vmatprep.subr.bf16.mxu0 0
      %3099 = vmatpush1.bf16.msra.mxu0 0
      %3100 = vmatprep.subr.bf16.mxu0 0
      %3101 = vmatpush1.bf16.msra.mxu0 0
      %3102 = vmatprep.subr.bf16.mxu0 0
      %3103 = vmatpush1.bf16.msra.mxu0 0
      %3104 = vmatprep.mubr.bf16.mxu0 0
      %3105 = vmatmul.mubr.bf16.gmra.mrb[0].mxu0 %v3000
      %v3106 = vpop.f32.mrb[0].mxu0
      %v3107 = vadd.f32 %v3022, %v3106
      %v3108 = vpop.f32.mrb[0].mxu0
      %v3109 = vpop.f32.mrb[0].mxu0
      %v3110 = vpop.f32.mrb[0].mxu0
      %3111 = vdwg.mxu0
      %3112 = vst [vmem:[#allocation16] sm:$0xff] %v3107
    $region57: #{_lambda_.3} parent=1 // pred_fallthru
      _
    // Predicated region
    $region58: #{_lambda_.3} parent=1 // pred_check
      _
    $region59: #{_lambda_.3} parent=1 // pred_check_branch
      %3114 = sbr.rel (0) target = $region61
    $region60: #{_lambda_.3} parent=1 // pred_region
      %s3116 = ssub.s32 128, 128
      %3117 = vsyncadd [#allocation7], %s3116
      %s3119 = sshll.u32 [#allocation16], 4
      %s3120 = int_to_ptr.vmem [resolvable:$true] %s3119
      %3122 = dma.vmem_to_hbm [thread:$0]  %s3120, 128, %s6, [#allocation7]
    $region61: #{_lambda_.3} parent=1 // pred_fallthru
      _
    // Predicated region
    $region62: #{_lambda_.3} parent=1 // pred_check
      _
    $region63: #{_lambda_.3} parent=1 // pred_check_branch
      %3124 = sbr.rel (0) target = $region65
    $region64: #{_lambda_.3} parent=1 // pred_region
      %3125 = dma.done [#allocation7], 128
    $region65: #{_lambda_.3} parent=1 // pred_fallthru
      _
    %3126 = vsyncpa [#allocation6], 1
    %3127 = vsyncpa [#allocation9], 1
    %3128 = vsyncpa [#allocation12], 1
    %3129 = vsyncpa [#allocation15], 1
    %3130 = vsyncpa [#allocation7], 1

</llo_original>
